<compile_context>
chip_gen: v7x
topology: tpu7x:2x2x1
jax: 0.10.0
libtpu: 0.0.40
codegen_flags: <defaults>
</compile_context>

<pallas_src>
import jax
import jax.numpy as jnp
from jax import lax
from jax.experimental import pallas as pl
from jax.experimental.pallas import tpu as pltpu

# ----------------------------- configuration -------------------------------
S = 8            # input grapheme sequence length
H = 32           # hidden size
V_IN = 32        # grapheme vocab
V_OUT = 32       # phoneme vocab
MAX_LEN = 12     # max decode steps (PyTorch default 100; small here)
EOS = 1          # eos_token
LANES = 128      # lane-dense output width


# ------------------------------ fused kernel -------------------------------
def g2p_kernel(x_ref,        # (S, 1)       int32  VMEM  grapheme ids
               wpre_ref,     # (V_IN, H)    f32    VMEM  emb_enc @ w_enc
               benc_ref,     # (1, H)       f32    VMEM
               eih_ref,      # (V_OUT, H)   f32    VMEM  emb_dec @ w_ih
               whh_ref,      # (H, H)       f32    VMEM
               wch_ref,      # (H, H)       f32    VMEM
               bh_ref,       # (1, H)       f32    VMEM
               wout_ref,     # (H, V_OUT)   f32    VMEM
               bout_ref,     # (1, V_OUT)   f32    VMEM
               phon_ref):    # (1, LANES)   int32  VMEM  lane-dense output
    # ---- encoder: one-hot gather folded into a single MXU matmul ----------
    onehot_enc = (x_ref[...] ==
                  lax.broadcasted_iota(jnp.int32, (S, V_IN), 1)
                  ).astype(jnp.float32)                              # (S, V_IN)
    enc = jnp.tanh(
        jnp.dot(onehot_enc, wpre_ref[...],
                preferred_element_type=jnp.float32) + benc_ref[...])  # (S, H)
    enc_t = enc.T                       # (H, S), hoisted out of the decode loop

    # ---- loop invariants ----------------------------------------------------
    e_ih = eih_ref[...]                                              # (V_OUT,H)
    w_hh = whh_ref[...]                                              # (H, H)
    w_ch = wch_ref[...]                                              # (H, H)
    b_h = bh_ref[...]                                                # (1, H)
    w_out = wout_ref[...]                                            # (H,V_OUT)
    b_out = bout_ref[...]                                            # (1,V_OUT)
    iota_v = lax.broadcasted_iota(jnp.int32, (1, V_OUT), 1)
    lane_iota = lax.broadcasted_iota(jnp.int32, (1, LANES), 1)

    # ---- greedy decode: vector-resident, branch-free masked early stop ------
    def step(t, carry):
        hidden, onehot, done, acc = carry
        # RNN pre-activation: both operands ready before attention starts.
        rnn_pre = (jnp.dot(onehot, e_ih, preferred_element_type=jnp.float32)
                   + jnp.dot(hidden, w_hh, preferred_element_type=jnp.float32)
                   + b_h)                                            # (1, H)

        # Dot-product attention over encoder outputs (lane-major softmax).
        scores = jnp.dot(hidden, enc_t,
                         preferred_element_type=jnp.float32)         # (1, S)
        scores = scores - jnp.max(scores, axis=-1, keepdims=True)
        e = jnp.exp(scores)
        attn = e * pl.reciprocal(jnp.sum(e, axis=-1, keepdims=True),
                                 approx=True)                        # (1, S)
        context = jnp.dot(attn, enc,
                          preferred_element_type=jnp.float32)        # (1, H)

        # RNN cell: only the context matmul waits on the softmax.
        h_new = jnp.tanh(rnn_pre + jnp.dot(
            context, w_ch, preferred_element_type=jnp.float32))      # (1, H)

        # Output projection + greedy argmax (first-occurrence tie-break),
        # kept as (1,1)/(1,V_OUT) vregs — no scalar extraction.
        logits = jnp.dot(h_new, w_out,
                         preferred_element_type=jnp.float32) + b_out  # (1, V)
        m = jnp.max(logits, axis=-1, keepdims=True)                   # (1, 1)
        idx_vec = jnp.min(jnp.where(logits == m, iota_v, jnp.int32(V_OUT)),
                          axis=-1, keepdims=True)                     # (1, 1)
        idx_vec = jnp.minimum(idx_vec, jnp.int32(V_OUT - 1))          # NaN guard
        onehot_new = (iota_v == idx_vec).astype(jnp.float32)          # (1, V)

        # phonemes_index[t] = max_index while active, else fill value 1
        # (matching torch.ones().long()); accumulated in a lane-dense vreg.
        write_val = jnp.where(done, jnp.int32(1), idx_vec)            # (1, 1)
        acc = jnp.where(lane_iota == t, write_val, acc)               # (1,128)

        # Masked state updates (single vselects, no scalar carries).
        hidden_next = jnp.where(done, hidden, h_new)
        onehot_next = jnp.where(done, onehot, onehot_new)
        done_next = jnp.logical_or(done, idx_vec == jnp.int32(EOS))
        return hidden_next, onehot_next, done_next, acc

    init = (jnp.ones((1, H), jnp.float32),              # hidden = torch.ones
            (iota_v == 0).astype(jnp.float32),          # token 0 one-hot
            jnp.zeros((1, 1), jnp.bool_),               # done mask
            jnp.ones((1, LANES), jnp.int32))            # output accumulator
    _, _, _, acc_final = lax.fori_loop(0, MAX_LEN, step, init, unroll=True)

    # Single lane-dense (1, 128) unmasked-lane store after the loop.
    phon_ref[...] = acc_final


# ------------------------------ wrapper -------------------------------------
def pack_params(p):
    """One-time repack / pre-fold of raw params into the kernel layout."""
    return {
        "w_pre": p["emb_enc"] @ p["w_enc"],     # (V_IN, H)  emb folded into enc proj
        "b_enc": p["b_enc"],
        "e_ih": p["emb_dec"] @ p["w_ih"],       # (V_OUT, H) emb folded into RNN ih
        "w_hh": p["w_hh"],
        "w_ch": p["w_ch"],
        "b_h": p["b_h"],
        "w_out": p["w_out"],
        "b_out": p["b_out"],
    }


def g2p_forward(x_tokens, kp):
    # x_tokens: (1, S) int32 — matches the PyTorch input before
    # x.transpose(0, 1).contiguous(); batch == 1 so the sequence is row 0.
    x2d = x_tokens.reshape(S, 1).astype(jnp.int32)
    out = pl.pallas_call(
        g2p_kernel,
        out_shape=jax.ShapeDtypeStruct((1, LANES), jnp.int32),
        in_specs=[pl.BlockSpec(memory_space=pltpu.MemorySpace.VMEM)] * 9,
        out_specs=pl.BlockSpec(memory_space=pltpu.MemorySpace.VMEM),
    )(x2d, kp["w_pre"], kp["b_enc"], kp["e_ih"], kp["w_hh"], kp["w_ch"],
      kp["b_h"], kp["w_out"], kp["b_out"])
    return out[0, :MAX_LEN]


def make_params(key):
    keys = jax.random.split(key, 9)
    scale = 0.1
    return {
        "emb_enc": scale * jax.random.normal(keys[0], (V_IN, H), jnp.float32),
        "w_enc":   scale * jax.random.normal(keys[1], (H, H), jnp.float32),
        "b_enc":   scale * jax.random.normal(keys[2], (1, H), jnp.float32),
        "emb_dec": scale * jax.random.normal(keys[3], (V_OUT, H), jnp.float32),
        "w_ih":    scale * jax.random.normal(keys[4], (H, H), jnp.float32),
        "w_hh":    scale * jax.random.normal(keys[5], (H, H), jnp.float32),
        "w_ch":    scale * jax.random.normal(keys[6], (H, H), jnp.float32),
        "b_h":     scale * jax.random.normal(keys[7], (1, H), jnp.float32),
        "w_out":   scale * jax.random.normal(keys[8], (H, V_OUT), jnp.float32),
        "b_out":   jnp.zeros((1, V_OUT), jnp.float32),
    }


if __name__ == "__main__":
    key = jax.random.PRNGKey(0)
    pkey, xkey = jax.random.split(key)
    params = make_params(pkey)
    kp = pack_params(params)                 # pack/pre-fold once, off hot path
    # Grapheme token ids in [2, V_IN) (0 = start, 1 = eos reserved).
    x = jax.random.randint(xkey, (1, S), 2, V_IN, dtype=jnp.int32)

    fwd = jax.jit(g2p_forward)
    phonemes = jax.block_until_ready(fwd(x, kp))
    assert phonemes.shape == (MAX_LEN,) and phonemes.dtype == jnp.int32
    print("KERNEL_OK")
</pallas_src>

<mosaic_0001>
module attributes {stable_mosaic.version = 11 : i64} {
  func.func @g2p_kernel(%arg0: memref<8x1xi32, #tpu.memory_space<vmem>>, %arg1: memref<32x32xf32, #tpu.memory_space<vmem>>, %arg2: memref<1x32xf32, #tpu.memory_space<vmem>>, %arg3: memref<32x32xf32, #tpu.memory_space<vmem>>, %arg4: memref<32x32xf32, #tpu.memory_space<vmem>>, %arg5: memref<32x32xf32, #tpu.memory_space<vmem>>, %arg6: memref<1x32xf32, #tpu.memory_space<vmem>>, %arg7: memref<32x32xf32, #tpu.memory_space<vmem>>, %arg8: memref<1x32xf32, #tpu.memory_space<vmem>>, %arg9: memref<1x128xi32, #tpu.memory_space<vmem>>) attributes {dimension_semantics = [], scalar_prefetch = 0 : i64, scratch_operands = 0 : i64, tpu.core_type = #tpu.core_type<tc>} {
    %c0 = arith.constant 0 : index
    %c0_0 = arith.constant 0 : index
    %0 = vector.load %arg0[%c0, %c0_0] : memref<8x1xi32, #tpu.memory_space<vmem>>, vector<8x1xi32>
    %1 = tpu.iota {dimensions = array<i32: 1>} : vector<8x32xi32>
    %2 = vector.broadcast %0 : vector<8x1xi32> to vector<8x32xi32>
    %3 = arith.cmpi eq, %2, %1 : vector<8x32xi32>
    %4 = arith.extui %3 : vector<8x32xi1> to vector<8x32xi32>
    %5 = arith.sitofp %4 : vector<8x32xi32> to vector<8x32xf32>
    %c0_1 = arith.constant 0 : index
    %c0_2 = arith.constant 0 : index
    %6 = vector.load %arg1[%c0_1, %c0_2] : memref<32x32xf32, #tpu.memory_space<vmem>>, vector<32x32xf32>
    %cst = arith.constant dense<0.000000e+00> : vector<8x32xf32>
    %7 = tpu.matmul %5, %6, %cst {dimension_numbers = #tpu.dot_dimension_numbers<[1], [0], [0], [1], [0, 0, 1, 1], [], []>} : vector<8x32xf32>, vector<32x32xf32>, vector<8x32xf32> -> vector<8x32xf32>
    %c0_3 = arith.constant 0 : index
    %c0_4 = arith.constant 0 : index
    %8 = vector.load %arg2[%c0_3, %c0_4] : memref<1x32xf32, #tpu.memory_space<vmem>>, vector<1x32xf32>
    %9 = vector.broadcast %8 : vector<1x32xf32> to vector<8x32xf32>
    %10 = arith.addf %7, %9 : vector<8x32xf32>
    %11 = math.tanh %10 : vector<8x32xf32>
    %12 = tpu.transpose %11, [1, 0] : vector<8x32xf32> -> vector<32x8xf32>
    %c0_5 = arith.constant 0 : index
    %c0_6 = arith.constant 0 : index
    %13 = vector.load %arg3[%c0_5, %c0_6] : memref<32x32xf32, #tpu.memory_space<vmem>>, vector<32x32xf32>
    %c0_7 = arith.constant 0 : index
    %c0_8 = arith.constant 0 : index
    %14 = vector.load %arg4[%c0_7, %c0_8] : memref<32x32xf32, #tpu.memory_space<vmem>>, vector<32x32xf32>
    %c0_9 = arith.constant 0 : index
    %c0_10 = arith.constant 0 : index
    %15 = vector.load %arg5[%c0_9, %c0_10] : memref<32x32xf32, #tpu.memory_space<vmem>>, vector<32x32xf32>
    %c0_11 = arith.constant 0 : index
    %c0_12 = arith.constant 0 : index
    %16 = vector.load %arg6[%c0_11, %c0_12] : memref<1x32xf32, #tpu.memory_space<vmem>>, vector<1x32xf32>
    %c0_13 = arith.constant 0 : index
    %c0_14 = arith.constant 0 : index
    %17 = vector.load %arg7[%c0_13, %c0_14] : memref<32x32xf32, #tpu.memory_space<vmem>>, vector<32x32xf32>
    %c0_15 = arith.constant 0 : index
    %c0_16 = arith.constant 0 : index
    %18 = vector.load %arg8[%c0_15, %c0_16] : memref<1x32xf32, #tpu.memory_space<vmem>>, vector<1x32xf32>
    %19 = tpu.iota {dimensions = array<i32: 1>} : vector<1x32xi32>
    %20 = tpu.iota {dimensions = array<i32: 1>} : vector<1x128xi32>
    %cst_17 = arith.constant 1.000000e+00 : f32
    %21 = vector.broadcast %cst_17 : f32 to vector<1x32xf32>
    %c0_i32 = arith.constant 0 : i32
    %22 = vector.broadcast %c0_i32 : i32 to vector<1x32xi32>
    %23 = arith.cmpi eq, %19, %22 : vector<1x32xi32>
    %24 = arith.extui %23 : vector<1x32xi1> to vector<1x32xi32>
    %25 = arith.sitofp %24 : vector<1x32xi32> to vector<1x32xf32>
    %false = arith.constant false
    %26 = vector.broadcast %false : i1 to vector<1x1xi1>
    %c1_i32 = arith.constant 1 : i32
    %27 = vector.broadcast %c1_i32 : i32 to vector<1x128xi32>
    %c0_i32_18 = arith.constant 0 : i32
    %cst_19 = arith.constant dense<0.000000e+00> : vector<1x32xf32>
    %28 = tpu.matmul %25, %13, %cst_19 {dimension_numbers = #tpu.dot_dimension_numbers<[1], [0], [0], [1], [0, 0, 1, 1], [], []>} : vector<1x32xf32>, vector<32x32xf32>, vector<1x32xf32> -> vector<1x32xf32>
    %cst_20 = arith.constant dense<0.000000e+00> : vector<1x32xf32>
    %29 = tpu.matmul %21, %14, %cst_20 {dimension_numbers = #tpu.dot_dimension_numbers<[1], [0], [0], [1], [0, 0, 1, 1], [], []>} : vector<1x32xf32>, vector<32x32xf32>, vector<1x32xf32> -> vector<1x32xf32>
    %30 = arith.addf %28, %29 : vector<1x32xf32>
    %31 = arith.addf %30, %16 : vector<1x32xf32>
    %cst_21 = arith.constant dense<0.000000e+00> : vector<1x8xf32>
    %32 = tpu.matmul %21, %12, %cst_21 {dimension_numbers = #tpu.dot_dimension_numbers<[1], [0], [0], [1], [0, 0, 1, 1], [], []>} : vector<1x32xf32>, vector<32x8xf32>, vector<1x8xf32> -> vector<1x8xf32>
    %cst_22 = arith.constant dense<0xFF800000> : vector<1xf32>
    %33 = vector.multi_reduction <maximumf>, %32, %cst_22 [1] : vector<1x8xf32> to vector<1xf32>
    %34 = vector.shape_cast %33 : vector<1xf32> to vector<1x1xf32>
    %35 = vector.broadcast %34 : vector<1x1xf32> to vector<1x8xf32>
    %36 = arith.subf %32, %35 : vector<1x8xf32>
    %37 = math.exp %36 : vector<1x8xf32>
    %cst_23 = arith.constant dense<0.000000e+00> : vector<1xf32>
    %38 = vector.multi_reduction <add>, %37, %cst_23 [1] : vector<1x8xf32> to vector<1xf32>
    %39 = vector.shape_cast %38 : vector<1xf32> to vector<1x1xf32>
    %40 = tpu.reciprocal %39 {approx = true} : vector<1x1xf32> -> vector<1x1xf32>
    %41 = vector.broadcast %40 : vector<1x1xf32> to vector<1x8xf32>
    %42 = arith.mulf %37, %41 : vector<1x8xf32>
    %cst_24 = arith.constant dense<0.000000e+00> : vector<1x32xf32>
    %43 = tpu.matmul %42, %11, %cst_24 {dimension_numbers = #tpu.dot_dimension_numbers<[1], [0], [0], [1], [0, 0, 1, 1], [], []>} : vector<1x8xf32>, vector<8x32xf32>, vector<1x32xf32> -> vector<1x32xf32>
    %cst_25 = arith.constant dense<0.000000e+00> : vector<1x32xf32>
    %44 = tpu.matmul %43, %15, %cst_25 {dimension_numbers = #tpu.dot_dimension_numbers<[1], [0], [0], [1], [0, 0, 1, 1], [], []>} : vector<1x32xf32>, vector<32x32xf32>, vector<1x32xf32> -> vector<1x32xf32>
    %45 = arith.addf %31, %44 : vector<1x32xf32>
    %46 = math.tanh %45 : vector<1x32xf32>
    %cst_26 = arith.constant dense<0.000000e+00> : vector<1x32xf32>
    %47 = tpu.matmul %46, %17, %cst_26 {dimension_numbers = #tpu.dot_dimension_numbers<[1], [0], [0], [1], [0, 0, 1, 1], [], []>} : vector<1x32xf32>, vector<32x32xf32>, vector<1x32xf32> -> vector<1x32xf32>
    %48 = arith.addf %47, %18 : vector<1x32xf32>
    %cst_27 = arith.constant dense<0xFF800000> : vector<1xf32>
    %49 = vector.multi_reduction <maximumf>, %48, %cst_27 [1] : vector<1x32xf32> to vector<1xf32>
    %50 = vector.shape_cast %49 : vector<1xf32> to vector<1x1xf32>
    %51 = vector.broadcast %50 : vector<1x1xf32> to vector<1x32xf32>
    %52 = arith.cmpf oeq, %48, %51 : vector<1x32xf32>
    %c32_i32 = arith.constant 32 : i32
    %53 = vector.broadcast %c32_i32 : i32 to vector<1x32xi32>
    %54 = arith.select %52, %19, %53 : vector<1x32xi1>, vector<1x32xi32>
    %cst_28 = arith.constant dense<2147483647> : vector<1xi32>
    %55 = vector.multi_reduction <minsi>, %54, %cst_28 [1] : vector<1x32xi32> to vector<1xi32>
    %56 = vector.shape_cast %55 : vector<1xi32> to vector<1x1xi32>
    %c31_i32 = arith.constant 31 : i32
    %57 = vector.broadcast %c31_i32 : i32 to vector<1x1xi32>
    %58 = arith.minsi %56, %57 : vector<1x1xi32>
    %59 = vector.broadcast %58 : vector<1x1xi32> to vector<1x32xi32>
    %60 = arith.cmpi eq, %19, %59 : vector<1x32xi32>
    %61 = arith.extui %60 : vector<1x32xi1> to vector<1x32xi32>
    %62 = arith.sitofp %61 : vector<1x32xi32> to vector<1x32xf32>
    %c1_i32_29 = arith.constant 1 : i32
    %63 = vector.broadcast %c1_i32_29 : i32 to vector<1x1xi32>
    %64 = arith.select %26, %63, %58 : vector<1x1xi1>, vector<1x1xi32>
    %65 = vector.broadcast %c0_i32_18 : i32 to vector<1x128xi32>
    %66 = arith.cmpi eq, %20, %65 : vector<1x128xi32>
    %67 = vector.shape_cast %64 : vector<1x1xi32> to vector<1x1xi32>
    %68 = vector.broadcast %67 : vector<1x1xi32> to vector<1x128xi32>
    %69 = arith.select %66, %68, %27 : vector<1x128xi1>, vector<1x128xi32>
    %70 = vector.shape_cast %26 : vector<1x1xi1> to vector<1x1xi1>
    %71 = vector.broadcast %70 : vector<1x1xi1> to vector<1x32xi1>
    %72 = arith.select %71, %21, %46 : vector<1x32xi1>, vector<1x32xf32>
    %73 = vector.shape_cast %26 : vector<1x1xi1> to vector<1x1xi1>
    %74 = vector.broadcast %73 : vector<1x1xi1> to vector<1x32xi1>
    %75 = arith.select %74, %25, %62 : vector<1x32xi1>, vector<1x32xf32>
    %c1_i32_30 = arith.constant 1 : i32
    %76 = vector.broadcast %c1_i32_30 : i32 to vector<1x1xi32>
    %77 = arith.cmpi eq, %58, %76 : vector<1x1xi32>
    %78 = arith.ori %26, %77 : vector<1x1xi1>
    %c1_i32_31 = arith.constant 1 : i32
    %cst_32 = arith.constant dense<0.000000e+00> : vector<1x32xf32>
    %79 = tpu.matmul %75, %13, %cst_32 {dimension_numbers = #tpu.dot_dimension_numbers<[1], [0], [0], [1], [0, 0, 1, 1], [], []>} : vector<1x32xf32>, vector<32x32xf32>, vector<1x32xf32> -> vector<1x32xf32>
    %cst_33 = arith.constant dense<0.000000e+00> : vector<1x32xf32>
    %80 = tpu.matmul %72, %14, %cst_33 {dimension_numbers = #tpu.dot_dimension_numbers<[1], [0], [0], [1], [0, 0, 1, 1], [], []>} : vector<1x32xf32>, vector<32x32xf32>, vector<1x32xf32> -> vector<1x32xf32>
    %81 = arith.addf %79, %80 : vector<1x32xf32>
    %82 = arith.addf %81, %16 : vector<1x32xf32>
    %cst_34 = arith.constant dense<0.000000e+00> : vector<1x8xf32>
    %83 = tpu.matmul %72, %12, %cst_34 {dimension_numbers = #tpu.dot_dimension_numbers<[1], [0], [0], [1], [0, 0, 1, 1], [], []>} : vector<1x32xf32>, vector<32x8xf32>, vector<1x8xf32> -> vector<1x8xf32>
    %cst_35 = arith.constant dense<0xFF800000> : vector<1xf32>
    %84 = vector.multi_reduction <maximumf>, %83, %cst_35 [1] : vector<1x8xf32> to vector<1xf32>
    %85 = vector.shape_cast %84 : vector<1xf32> to vector<1x1xf32>
    %86 = vector.broadcast %85 : vector<1x1xf32> to vector<1x8xf32>
    %87 = arith.subf %83, %86 : vector<1x8xf32>
    %88 = math.exp %87 : vector<1x8xf32>
    %cst_36 = arith.constant dense<0.000000e+00> : vector<1xf32>
    %89 = vector.multi_reduction <add>, %88, %cst_36 [1] : vector<1x8xf32> to vector<1xf32>
    %90 = vector.shape_cast %89 : vector<1xf32> to vector<1x1xf32>
    %91 = tpu.reciprocal %90 {approx = true} : vector<1x1xf32> -> vector<1x1xf32>
    %92 = vector.broadcast %91 : vector<1x1xf32> to vector<1x8xf32>
    %93 = arith.mulf %88, %92 : vector<1x8xf32>
    %cst_37 = arith.constant dense<0.000000e+00> : vector<1x32xf32>
    %94 = tpu.matmul %93, %11, %cst_37 {dimension_numbers = #tpu.dot_dimension_numbers<[1], [0], [0], [1], [0, 0, 1, 1], [], []>} : vector<1x8xf32>, vector<8x32xf32>, vector<1x32xf32> -> vector<1x32xf32>
    %cst_38 = arith.constant dense<0.000000e+00> : vector<1x32xf32>
    %95 = tpu.matmul %94, %15, %cst_38 {dimension_numbers = #tpu.dot_dimension_numbers<[1], [0], [0], [1], [0, 0, 1, 1], [], []>} : vector<1x32xf32>, vector<32x32xf32>, vector<1x32xf32> -> vector<1x32xf32>
    %96 = arith.addf %82, %95 : vector<1x32xf32>
    %97 = math.tanh %96 : vector<1x32xf32>
    %cst_39 = arith.constant dense<0.000000e+00> : vector<1x32xf32>
    %98 = tpu.matmul %97, %17, %cst_39 {dimension_numbers = #tpu.dot_dimension_numbers<[1], [0], [0], [1], [0, 0, 1, 1], [], []>} : vector<1x32xf32>, vector<32x32xf32>, vector<1x32xf32> -> vector<1x32xf32>
    %99 = arith.addf %98, %18 : vector<1x32xf32>
    %cst_40 = arith.constant dense<0xFF800000> : vector<1xf32>
    %100 = vector.multi_reduction <maximumf>, %99, %cst_40 [1] : vector<1x32xf32> to vector<1xf32>
    %101 = vector.shape_cast %100 : vector<1xf32> to vector<1x1xf32>
    %102 = vector.broadcast %101 : vector<1x1xf32> to vector<1x32xf32>
    %103 = arith.cmpf oeq, %99, %102 : vector<1x32xf32>
    %c32_i32_41 = arith.constant 32 : i32
    %104 = vector.broadcast %c32_i32_41 : i32 to vector<1x32xi32>
    %105 = arith.select %103, %19, %104 : vector<1x32xi1>, vector<1x32xi32>
    %cst_42 = arith.constant dense<2147483647> : vector<1xi32>
    %106 = vector.multi_reduction <minsi>, %105, %cst_42 [1] : vector<1x32xi32> to vector<1xi32>
    %107 = vector.shape_cast %106 : vector<1xi32> to vector<1x1xi32>
    %c31_i32_43 = arith.constant 31 : i32
    %108 = vector.broadcast %c31_i32_43 : i32 to vector<1x1xi32>
    %109 = arith.minsi %107, %108 : vector<1x1xi32>
    %110 = vector.broadcast %109 : vector<1x1xi32> to vector<1x32xi32>
    %111 = arith.cmpi eq, %19, %110 : vector<1x32xi32>
    %112 = arith.extui %111 : vector<1x32xi1> to vector<1x32xi32>
    %113 = arith.sitofp %112 : vector<1x32xi32> to vector<1x32xf32>
    %c1_i32_44 = arith.constant 1 : i32
    %114 = vector.broadcast %c1_i32_44 : i32 to vector<1x1xi32>
    %115 = arith.select %78, %114, %109 : vector<1x1xi1>, vector<1x1xi32>
    %116 = vector.broadcast %c1_i32_31 : i32 to vector<1x128xi32>
    %117 = arith.cmpi eq, %20, %116 : vector<1x128xi32>
    %118 = vector.shape_cast %115 : vector<1x1xi32> to vector<1x1xi32>
    %119 = vector.broadcast %118 : vector<1x1xi32> to vector<1x128xi32>
    %120 = arith.select %117, %119, %69 : vector<1x128xi1>, vector<1x128xi32>
    %121 = vector.shape_cast %78 : vector<1x1xi1> to vector<1x1xi1>
    %122 = vector.broadcast %121 : vector<1x1xi1> to vector<1x32xi1>
    %123 = arith.select %122, %72, %97 : vector<1x32xi1>, vector<1x32xf32>
    %124 = vector.shape_cast %78 : vector<1x1xi1> to vector<1x1xi1>
    %125 = vector.broadcast %124 : vector<1x1xi1> to vector<1x32xi1>
    %126 = arith.select %125, %75, %113 : vector<1x32xi1>, vector<1x32xf32>
    %c1_i32_45 = arith.constant 1 : i32
    %127 = vector.broadcast %c1_i32_45 : i32 to vector<1x1xi32>
    %128 = arith.cmpi eq, %109, %127 : vector<1x1xi32>
    %129 = arith.ori %78, %128 : vector<1x1xi1>
    %c2_i32 = arith.constant 2 : i32
    %cst_46 = arith.constant dense<0.000000e+00> : vector<1x32xf32>
    %130 = tpu.matmul %126, %13, %cst_46 {dimension_numbers = #tpu.dot_dimension_numbers<[1], [0], [0], [1], [0, 0, 1, 1], [], []>} : vector<1x32xf32>, vector<32x32xf32>, vector<1x32xf32> -> vector<1x32xf32>
    %cst_47 = arith.constant dense<0.000000e+00> : vector<1x32xf32>
    %131 = tpu.matmul %123, %14, %cst_47 {dimension_numbers = #tpu.dot_dimension_numbers<[1], [0], [0], [1], [0, 0, 1, 1], [], []>} : vector<1x32xf32>, vector<32x32xf32>, vector<1x32xf32> -> vector<1x32xf32>
    %132 = arith.addf %130, %131 : vector<1x32xf32>
    %133 = arith.addf %132, %16 : vector<1x32xf32>
    %cst_48 = arith.constant dense<0.000000e+00> : vector<1x8xf32>
    %134 = tpu.matmul %123, %12, %cst_48 {dimension_numbers = #tpu.dot_dimension_numbers<[1], [0], [0], [1], [0, 0, 1, 1], [], []>} : vector<1x32xf32>, vector<32x8xf32>, vector<1x8xf32> -> vector<1x8xf32>
    %cst_49 = arith.constant dense<0xFF800000> : vector<1xf32>
    %135 = vector.multi_reduction <maximumf>, %134, %cst_49 [1] : vector<1x8xf32> to vector<1xf32>
    %136 = vector.shape_cast %135 : vector<1xf32> to vector<1x1xf32>
    %137 = vector.broadcast %136 : vector<1x1xf32> to vector<1x8xf32>
    %138 = arith.subf %134, %137 : vector<1x8xf32>
    %139 = math.exp %138 : vector<1x8xf32>
    %cst_50 = arith.constant dense<0.000000e+00> : vector<1xf32>
    %140 = vector.multi_reduction <add>, %139, %cst_50 [1] : vector<1x8xf32> to vector<1xf32>
    %141 = vector.shape_cast %140 : vector<1xf32> to vector<1x1xf32>
    %142 = tpu.reciprocal %141 {approx = true} : vector<1x1xf32> -> vector<1x1xf32>
    %143 = vector.broadcast %142 : vector<1x1xf32> to vector<1x8xf32>
    %144 = arith.mulf %139, %143 : vector<1x8xf32>
    %cst_51 = arith.constant dense<0.000000e+00> : vector<1x32xf32>
    %145 = tpu.matmul %144, %11, %cst_51 {dimension_numbers = #tpu.dot_dimension_numbers<[1], [0], [0], [1], [0, 0, 1, 1], [], []>} : vector<1x8xf32>, vector<8x32xf32>, vector<1x32xf32> -> vector<1x32xf32>
    %cst_52 = arith.constant dense<0.000000e+00> : vector<1x32xf32>
    %146 = tpu.matmul %145, %15, %cst_52 {dimension_numbers = #tpu.dot_dimension_numbers<[1], [0], [0], [1], [0, 0, 1, 1], [], []>} : vector<1x32xf32>, vector<32x32xf32>, vector<1x32xf32> -> vector<1x32xf32>
    %147 = arith.addf %133, %146 : vector<1x32xf32>
    %148 = math.tanh %147 : vector<1x32xf32>
    %cst_53 = arith.constant dense<0.000000e+00> : vector<1x32xf32>
    %149 = tpu.matmul %148, %17, %cst_53 {dimension_numbers = #tpu.dot_dimension_numbers<[1], [0], [0], [1], [0, 0, 1, 1], [], []>} : vector<1x32xf32>, vector<32x32xf32>, vector<1x32xf32> -> vector<1x32xf32>
    %150 = arith.addf %149, %18 : vector<1x32xf32>
    %cst_54 = arith.constant dense<0xFF800000> : vector<1xf32>
    %151 = vector.multi_reduction <maximumf>, %150, %cst_54 [1] : vector<1x32xf32> to vector<1xf32>
    %152 = vector.shape_cast %151 : vector<1xf32> to vector<1x1xf32>
    %153 = vector.broadcast %152 : vector<1x1xf32> to vector<1x32xf32>
    %154 = arith.cmpf oeq, %150, %153 : vector<1x32xf32>
    %c32_i32_55 = arith.constant 32 : i32
    %155 = vector.broadcast %c32_i32_55 : i32 to vector<1x32xi32>
    %156 = arith.select %154, %19, %155 : vector<1x32xi1>, vector<1x32xi32>
    %cst_56 = arith.constant dense<2147483647> : vector<1xi32>
    %157 = vector.multi_reduction <minsi>, %156, %cst_56 [1] : vector<1x32xi32> to vector<1xi32>
    %158 = vector.shape_cast %157 : vector<1xi32> to vector<1x1xi32>
    %c31_i32_57 = arith.constant 31 : i32
    %159 = vector.broadcast %c31_i32_57 : i32 to vector<1x1xi32>
    %160 = arith.minsi %158, %159 : vector<1x1xi32>
    %161 = vector.broadcast %160 : vector<1x1xi32> to vector<1x32xi32>
    %162 = arith.cmpi eq, %19, %161 : vector<1x32xi32>
    %163 = arith.extui %162 : vector<1x32xi1> to vector<1x32xi32>
    %164 = arith.sitofp %163 : vector<1x32xi32> to vector<1x32xf32>
    %c1_i32_58 = arith.constant 1 : i32
    %165 = vector.broadcast %c1_i32_58 : i32 to vector<1x1xi32>
    %166 = arith.select %129, %165, %160 : vector<1x1xi1>, vector<1x1xi32>
    %167 = vector.broadcast %c2_i32 : i32 to vector<1x128xi32>
    %168 = arith.cmpi eq, %20, %167 : vector<1x128xi32>
    %169 = vector.shape_cast %166 : vector<1x1xi32> to vector<1x1xi32>
    %170 = vector.broadcast %169 : vector<1x1xi32> to vector<1x128xi32>
    %171 = arith.select %168, %170, %120 : vector<1x128xi1>, vector<1x128xi32>
    %172 = vector.shape_cast %129 : vector<1x1xi1> to vector<1x1xi1>
    %173 = vector.broadcast %172 : vector<1x1xi1> to vector<1x32xi1>
    %174 = arith.select %173, %123, %148 : vector<1x32xi1>, vector<1x32xf32>
    %175 = vector.shape_cast %129 : vector<1x1xi1> to vector<1x1xi1>
    %176 = vector.broadcast %175 : vector<1x1xi1> to vector<1x32xi1>
    %177 = arith.select %176, %126, %164 : vector<1x32xi1>, vector<1x32xf32>
    %c1_i32_59 = arith.constant 1 : i32
    %178 = vector.broadcast %c1_i32_59 : i32 to vector<1x1xi32>
    %179 = arith.cmpi eq, %160, %178 : vector<1x1xi32>
    %180 = arith.ori %129, %179 : vector<1x1xi1>
    %c3_i32 = arith.constant 3 : i32
    %cst_60 = arith.constant dense<0.000000e+00> : vector<1x32xf32>
    %181 = tpu.matmul %177, %13, %cst_60 {dimension_numbers = #tpu.dot_dimension_numbers<[1], [0], [0], [1], [0, 0, 1, 1], [], []>} : vector<1x32xf32>, vector<32x32xf32>, vector<1x32xf32> -> vector<1x32xf32>
    %cst_61 = arith.constant dense<0.000000e+00> : vector<1x32xf32>
    %182 = tpu.matmul %174, %14, %cst_61 {dimension_numbers = #tpu.dot_dimension_numbers<[1], [0], [0], [1], [0, 0, 1, 1], [], []>} : vector<1x32xf32>, vector<32x32xf32>, vector<1x32xf32> -> vector<1x32xf32>
    %183 = arith.addf %181, %182 : vector<1x32xf32>
    %184 = arith.addf %183, %16 : vector<1x32xf32>
    %cst_62 = arith.constant dense<0.000000e+00> : vector<1x8xf32>
    %185 = tpu.matmul %174, %12, %cst_62 {dimension_numbers = #tpu.dot_dimension_numbers<[1], [0], [0], [1], [0, 0, 1, 1], [], []>} : vector<1x32xf32>, vector<32x8xf32>, vector<1x8xf32> -> vector<1x8xf32>
    %cst_63 = arith.constant dense<0xFF800000> : vector<1xf32>
    %186 = vector.multi_reduction <maximumf>, %185, %cst_63 [1] : vector<1x8xf32> to vector<1xf32>
    %187 = vector.shape_cast %186 : vector<1xf32> to vector<1x1xf32>
    %188 = vector.broadcast %187 : vector<1x1xf32> to vector<1x8xf32>
    %189 = arith.subf %185, %188 : vector<1x8xf32>
    %190 = math.exp %189 : vector<1x8xf32>
    %cst_64 = arith.constant dense<0.000000e+00> : vector<1xf32>
    %191 = vector.multi_reduction <add>, %190, %cst_64 [1] : vector<1x8xf32> to vector<1xf32>
    %192 = vector.shape_cast %191 : vector<1xf32> to vector<1x1xf32>
    %193 = tpu.reciprocal %192 {approx = true} : vector<1x1xf32> -> vector<1x1xf32>
    %194 = vector.broadcast %193 : vector<1x1xf32> to vector<1x8xf32>
    %195 = arith.mulf %190, %194 : vector<1x8xf32>
    %cst_65 = arith.constant dense<0.000000e+00> : vector<1x32xf32>
    %196 = tpu.matmul %195, %11, %cst_65 {dimension_numbers = #tpu.dot_dimension_numbers<[1], [0], [0], [1], [0, 0, 1, 1], [], []>} : vector<1x8xf32>, vector<8x32xf32>, vector<1x32xf32> -> vector<1x32xf32>
    %cst_66 = arith.constant dense<0.000000e+00> : vector<1x32xf32>
    %197 = tpu.matmul %196, %15, %cst_66 {dimension_numbers = #tpu.dot_dimension_numbers<[1], [0], [0], [1], [0, 0, 1, 1], [], []>} : vector<1x32xf32>, vector<32x32xf32>, vector<1x32xf32> -> vector<1x32xf32>
    %198 = arith.addf %184, %197 : vector<1x32xf32>
    %199 = math.tanh %198 : vector<1x32xf32>
    %cst_67 = arith.constant dense<0.000000e+00> : vector<1x32xf32>
    %200 = tpu.matmul %199, %17, %cst_67 {dimension_numbers = #tpu.dot_dimension_numbers<[1], [0], [0], [1], [0, 0, 1, 1], [], []>} : vector<1x32xf32>, vector<32x32xf32>, vector<1x32xf32> -> vector<1x32xf32>
    %201 = arith.addf %200, %18 : vector<1x32xf32>
    %cst_68 = arith.constant dense<0xFF800000> : vector<1xf32>
    %202 = vector.multi_reduction <maximumf>, %201, %cst_68 [1] : vector<1x32xf32> to vector<1xf32>
    %203 = vector.shape_cast %202 : vector<1xf32> to vector<1x1xf32>
    %204 = vector.broadcast %203 : vector<1x1xf32> to vector<1x32xf32>
    %205 = arith.cmpf oeq, %201, %204 : vector<1x32xf32>
    %c32_i32_69 = arith.constant 32 : i32
    %206 = vector.broadcast %c32_i32_69 : i32 to vector<1x32xi32>
    %207 = arith.select %205, %19, %206 : vector<1x32xi1>, vector<1x32xi32>
    %cst_70 = arith.constant dense<2147483647> : vector<1xi32>
    %208 = vector.multi_reduction <minsi>, %207, %cst_70 [1] : vector<1x32xi32> to vector<1xi32>
    %209 = vector.shape_cast %208 : vector<1xi32> to vector<1x1xi32>
    %c31_i32_71 = arith.constant 31 : i32
    %210 = vector.broadcast %c31_i32_71 : i32 to vector<1x1xi32>
    %211 = arith.minsi %209, %210 : vector<1x1xi32>
    %212 = vector.broadcast %211 : vector<1x1xi32> to vector<1x32xi32>
    %213 = arith.cmpi eq, %19, %212 : vector<1x32xi32>
    %214 = arith.extui %213 : vector<1x32xi1> to vector<1x32xi32>
    %215 = arith.sitofp %214 : vector<1x32xi32> to vector<1x32xf32>
    %c1_i32_72 = arith.constant 1 : i32
    %216 = vector.broadcast %c1_i32_72 : i32 to vector<1x1xi32>
    %217 = arith.select %180, %216, %211 : vector<1x1xi1>, vector<1x1xi32>
    %218 = vector.broadcast %c3_i32 : i32 to vector<1x128xi32>
    %219 = arith.cmpi eq, %20, %218 : vector<1x128xi32>
    %220 = vector.shape_cast %217 : vector<1x1xi32> to vector<1x1xi32>
    %221 = vector.broadcast %220 : vector<1x1xi32> to vector<1x128xi32>
    %222 = arith.select %219, %221, %171 : vector<1x128xi1>, vector<1x128xi32>
    %223 = vector.shape_cast %180 : vector<1x1xi1> to vector<1x1xi1>
    %224 = vector.broadcast %223 : vector<1x1xi1> to vector<1x32xi1>
    %225 = arith.select %224, %174, %199 : vector<1x32xi1>, vector<1x32xf32>
    %226 = vector.shape_cast %180 : vector<1x1xi1> to vector<1x1xi1>
    %227 = vector.broadcast %226 : vector<1x1xi1> to vector<1x32xi1>
    %228 = arith.select %227, %177, %215 : vector<1x32xi1>, vector<1x32xf32>
    %c1_i32_73 = arith.constant 1 : i32
    %229 = vector.broadcast %c1_i32_73 : i32 to vector<1x1xi32>
    %230 = arith.cmpi eq, %211, %229 : vector<1x1xi32>
    %231 = arith.ori %180, %230 : vector<1x1xi1>
    %c4_i32 = arith.constant 4 : i32
    %cst_74 = arith.constant dense<0.000000e+00> : vector<1x32xf32>
    %232 = tpu.matmul %228, %13, %cst_74 {dimension_numbers = #tpu.dot_dimension_numbers<[1], [0], [0], [1], [0, 0, 1, 1], [], []>} : vector<1x32xf32>, vector<32x32xf32>, vector<1x32xf32> -> vector<1x32xf32>
    %cst_75 = arith.constant dense<0.000000e+00> : vector<1x32xf32>
    %233 = tpu.matmul %225, %14, %cst_75 {dimension_numbers = #tpu.dot_dimension_numbers<[1], [0], [0], [1], [0, 0, 1, 1], [], []>} : vector<1x32xf32>, vector<32x32xf32>, vector<1x32xf32> -> vector<1x32xf32>
    %234 = arith.addf %232, %233 : vector<1x32xf32>
    %235 = arith.addf %234, %16 : vector<1x32xf32>
    %cst_76 = arith.constant dense<0.000000e+00> : vector<1x8xf32>
    %236 = tpu.matmul %225, %12, %cst_76 {dimension_numbers = #tpu.dot_dimension_numbers<[1], [0], [0], [1], [0, 0, 1, 1], [], []>} : vector<1x32xf32>, vector<32x8xf32>, vector<1x8xf32> -> vector<1x8xf32>
    %cst_77 = arith.constant dense<0xFF800000> : vector<1xf32>
    %237 = vector.multi_reduction <maximumf>, %236, %cst_77 [1] : vector<1x8xf32> to vector<1xf32>
    %238 = vector.shape_cast %237 : vector<1xf32> to vector<1x1xf32>
    %239 = vector.broadcast %238 : vector<1x1xf32> to vector<1x8xf32>
    %240 = arith.subf %236, %239 : vector<1x8xf32>
    %241 = math.exp %240 : vector<1x8xf32>
    %cst_78 = arith.constant dense<0.000000e+00> : vector<1xf32>
    %242 = vector.multi_reduction <add>, %241, %cst_78 [1] : vector<1x8xf32> to vector<1xf32>
    %243 = vector.shape_cast %242 : vector<1xf32> to vector<1x1xf32>
    %244 = tpu.reciprocal %243 {approx = true} : vector<1x1xf32> -> vector<1x1xf32>
    %245 = vector.broadcast %244 : vector<1x1xf32> to vector<1x8xf32>
    %246 = arith.mulf %241, %245 : vector<1x8xf32>
    %cst_79 = arith.constant dense<0.000000e+00> : vector<1x32xf32>
    %247 = tpu.matmul %246, %11, %cst_79 {dimension_numbers = #tpu.dot_dimension_numbers<[1], [0], [0], [1], [0, 0, 1, 1], [], []>} : vector<1x8xf32>, vector<8x32xf32>, vector<1x32xf32> -> vector<1x32xf32>
    %cst_80 = arith.constant dense<0.000000e+00> : vector<1x32xf32>
    %248 = tpu.matmul %247, %15, %cst_80 {dimension_numbers = #tpu.dot_dimension_numbers<[1], [0], [0], [1], [0, 0, 1, 1], [], []>} : vector<1x32xf32>, vector<32x32xf32>, vector<1x32xf32> -> vector<1x32xf32>
    %249 = arith.addf %235, %248 : vector<1x32xf32>
    %250 = math.tanh %249 : vector<1x32xf32>
    %cst_81 = arith.constant dense<0.000000e+00> : vector<1x32xf32>
    %251 = tpu.matmul %250, %17, %cst_81 {dimension_numbers = #tpu.dot_dimension_numbers<[1], [0], [0], [1], [0, 0, 1, 1], [], []>} : vector<1x32xf32>, vector<32x32xf32>, vector<1x32xf32> -> vector<1x32xf32>
    %252 = arith.addf %251, %18 : vector<1x32xf32>
    %cst_82 = arith.constant dense<0xFF800000> : vector<1xf32>
    %253 = vector.multi_reduction <maximumf>, %252, %cst_82 [1] : vector<1x32xf32> to vector<1xf32>
    %254 = vector.shape_cast %253 : vector<1xf32> to vector<1x1xf32>
    %255 = vector.broadcast %254 : vector<1x1xf32> to vector<1x32xf32>
    %256 = arith.cmpf oeq, %252, %255 : vector<1x32xf32>
    %c32_i32_83 = arith.constant 32 : i32
    %257 = vector.broadcast %c32_i32_83 : i32 to vector<1x32xi32>
    %258 = arith.select %256, %19, %257 : vector<1x32xi1>, vector<1x32xi32>
    %cst_84 = arith.constant dense<2147483647> : vector<1xi32>
    %259 = vector.multi_reduction <minsi>, %258, %cst_84 [1] : vector<1x32xi32> to vector<1xi32>
    %260 = vector.shape_cast %259 : vector<1xi32> to vector<1x1xi32>
    %c31_i32_85 = arith.constant 31 : i32
    %261 = vector.broadcast %c31_i32_85 : i32 to vector<1x1xi32>
    %262 = arith.minsi %260, %261 : vector<1x1xi32>
    %263 = vector.broadcast %262 : vector<1x1xi32> to vector<1x32xi32>
    %264 = arith.cmpi eq, %19, %263 : vector<1x32xi32>
    %265 = arith.extui %264 : vector<1x32xi1> to vector<1x32xi32>
    %266 = arith.sitofp %265 : vector<1x32xi32> to vector<1x32xf32>
    %c1_i32_86 = arith.constant 1 : i32
    %267 = vector.broadcast %c1_i32_86 : i32 to vector<1x1xi32>
    %268 = arith.select %231, %267, %262 : vector<1x1xi1>, vector<1x1xi32>
    %269 = vector.broadcast %c4_i32 : i32 to vector<1x128xi32>
    %270 = arith.cmpi eq, %20, %269 : vector<1x128xi32>
    %271 = vector.shape_cast %268 : vector<1x1xi32> to vector<1x1xi32>
    %272 = vector.broadcast %271 : vector<1x1xi32> to vector<1x128xi32>
    %273 = arith.select %270, %272, %222 : vector<1x128xi1>, vector<1x128xi32>
    %274 = vector.shape_cast %231 : vector<1x1xi1> to vector<1x1xi1>
    %275 = vector.broadcast %274 : vector<1x1xi1> to vector<1x32xi1>
    %276 = arith.select %275, %225, %250 : vector<1x32xi1>, vector<1x32xf32>
    %277 = vector.shape_cast %231 : vector<1x1xi1> to vector<1x1xi1>
    %278 = vector.broadcast %277 : vector<1x1xi1> to vector<1x32xi1>
    %279 = arith.select %278, %228, %266 : vector<1x32xi1>, vector<1x32xf32>
    %c1_i32_87 = arith.constant 1 : i32
    %280 = vector.broadcast %c1_i32_87 : i32 to vector<1x1xi32>
    %281 = arith.cmpi eq, %262, %280 : vector<1x1xi32>
    %282 = arith.ori %231, %281 : vector<1x1xi1>
    %c5_i32 = arith.constant 5 : i32
    %cst_88 = arith.constant dense<0.000000e+00> : vector<1x32xf32>
    %283 = tpu.matmul %279, %13, %cst_88 {dimension_numbers = #tpu.dot_dimension_numbers<[1], [0], [0], [1], [0, 0, 1, 1], [], []>} : vector<1x32xf32>, vector<32x32xf32>, vector<1x32xf32> -> vector<1x32xf32>
    %cst_89 = arith.constant dense<0.000000e+00> : vector<1x32xf32>
    %284 = tpu.matmul %276, %14, %cst_89 {dimension_numbers = #tpu.dot_dimension_numbers<[1], [0], [0], [1], [0, 0, 1, 1], [], []>} : vector<1x32xf32>, vector<32x32xf32>, vector<1x32xf32> -> vector<1x32xf32>
    %285 = arith.addf %283, %284 : vector<1x32xf32>
    %286 = arith.addf %285, %16 : vector<1x32xf32>
    %cst_90 = arith.constant dense<0.000000e+00> : vector<1x8xf32>
    %287 = tpu.matmul %276, %12, %cst_90 {dimension_numbers = #tpu.dot_dimension_numbers<[1], [0], [0], [1], [0, 0, 1, 1], [], []>} : vector<1x32xf32>, vector<32x8xf32>, vector<1x8xf32> -> vector<1x8xf32>
    %cst_91 = arith.constant dense<0xFF800000> : vector<1xf32>
    %288 = vector.multi_reduction <maximumf>, %287, %cst_91 [1] : vector<1x8xf32> to vector<1xf32>
    %289 = vector.shape_cast %288 : vector<1xf32> to vector<1x1xf32>
    %290 = vector.broadcast %289 : vector<1x1xf32> to vector<1x8xf32>
    %291 = arith.subf %287, %290 : vector<1x8xf32>
    %292 = math.exp %291 : vector<1x8xf32>
    %cst_92 = arith.constant dense<0.000000e+00> : vector<1xf32>
    %293 = vector.multi_reduction <add>, %292, %cst_92 [1] : vector<1x8xf32> to vector<1xf32>
    %294 = vector.shape_cast %293 : vector<1xf32> to vector<1x1xf32>
    %295 = tpu.reciprocal %294 {approx = true} : vector<1x1xf32> -> vector<1x1xf32>
    %296 = vector.broadcast %295 : vector<1x1xf32> to vector<1x8xf32>
    %297 = arith.mulf %292, %296 : vector<1x8xf32>
    %cst_93 = arith.constant dense<0.000000e+00> : vector<1x32xf32>
    %298 = tpu.matmul %297, %11, %cst_93 {dimension_numbers = #tpu.dot_dimension_numbers<[1], [0], [0], [1], [0, 0, 1, 1], [], []>} : vector<1x8xf32>, vector<8x32xf32>, vector<1x32xf32> -> vector<1x32xf32>
    %cst_94 = arith.constant dense<0.000000e+00> : vector<1x32xf32>
    %299 = tpu.matmul %298, %15, %cst_94 {dimension_numbers = #tpu.dot_dimension_numbers<[1], [0], [0], [1], [0, 0, 1, 1], [], []>} : vector<1x32xf32>, vector<32x32xf32>, vector<1x32xf32> -> vector<1x32xf32>
    %300 = arith.addf %286, %299 : vector<1x32xf32>
    %301 = math.tanh %300 : vector<1x32xf32>
    %cst_95 = arith.constant dense<0.000000e+00> : vector<1x32xf32>
    %302 = tpu.matmul %301, %17, %cst_95 {dimension_numbers = #tpu.dot_dimension_numbers<[1], [0], [0], [1], [0, 0, 1, 1], [], []>} : vector<1x32xf32>, vector<32x32xf32>, vector<1x32xf32> -> vector<1x32xf32>
    %303 = arith.addf %302, %18 : vector<1x32xf32>
    %cst_96 = arith.constant dense<0xFF800000> : vector<1xf32>
    %304 = vector.multi_reduction <maximumf>, %303, %cst_96 [1] : vector<1x32xf32> to vector<1xf32>
    %305 = vector.shape_cast %304 : vector<1xf32> to vector<1x1xf32>
    %306 = vector.broadcast %305 : vector<1x1xf32> to vector<1x32xf32>
    %307 = arith.cmpf oeq, %303, %306 : vector<1x32xf32>
    %c32_i32_97 = arith.constant 32 : i32
    %308 = vector.broadcast %c32_i32_97 : i32 to vector<1x32xi32>
    %309 = arith.select %307, %19, %308 : vector<1x32xi1>, vector<1x32xi32>
    %cst_98 = arith.constant dense<2147483647> : vector<1xi32>
    %310 = vector.multi_reduction <minsi>, %309, %cst_98 [1] : vector<1x32xi32> to vector<1xi32>
    %311 = vector.shape_cast %310 : vector<1xi32> to vector<1x1xi32>
    %c31_i32_99 = arith.constant 31 : i32
    %312 = vector.broadcast %c31_i32_99 : i32 to vector<1x1xi32>
    %313 = arith.minsi %311, %312 : vector<1x1xi32>
    %314 = vector.broadcast %313 : vector<1x1xi32> to vector<1x32xi32>
    %315 = arith.cmpi eq, %19, %314 : vector<1x32xi32>
    %316 = arith.extui %315 : vector<1x32xi1> to vector<1x32xi32>
    %317 = arith.sitofp %316 : vector<1x32xi32> to vector<1x32xf32>
    %c1_i32_100 = arith.constant 1 : i32
    %318 = vector.broadcast %c1_i32_100 : i32 to vector<1x1xi32>
    %319 = arith.select %282, %318, %313 : vector<1x1xi1>, vector<1x1xi32>
    %320 = vector.broadcast %c5_i32 : i32 to vector<1x128xi32>
    %321 = arith.cmpi eq, %20, %320 : vector<1x128xi32>
    %322 = vector.shape_cast %319 : vector<1x1xi32> to vector<1x1xi32>
    %323 = vector.broadcast %322 : vector<1x1xi32> to vector<1x128xi32>
    %324 = arith.select %321, %323, %273 : vector<1x128xi1>, vector<1x128xi32>
    %325 = vector.shape_cast %282 : vector<1x1xi1> to vector<1x1xi1>
    %326 = vector.broadcast %325 : vector<1x1xi1> to vector<1x32xi1>
    %327 = arith.select %326, %276, %301 : vector<1x32xi1>, vector<1x32xf32>
    %328 = vector.shape_cast %282 : vector<1x1xi1> to vector<1x1xi1>
    %329 = vector.broadcast %328 : vector<1x1xi1> to vector<1x32xi1>
    %330 = arith.select %329, %279, %317 : vector<1x32xi1>, vector<1x32xf32>
    %c1_i32_101 = arith.constant 1 : i32
    %331 = vector.broadcast %c1_i32_101 : i32 to vector<1x1xi32>
    %332 = arith.cmpi eq, %313, %331 : vector<1x1xi32>
    %333 = arith.ori %282, %332 : vector<1x1xi1>
    %c6_i32 = arith.constant 6 : i32
    %cst_102 = arith.constant dense<0.000000e+00> : vector<1x32xf32>
    %334 = tpu.matmul %330, %13, %cst_102 {dimension_numbers = #tpu.dot_dimension_numbers<[1], [0], [0], [1], [0, 0, 1, 1], [], []>} : vector<1x32xf32>, vector<32x32xf32>, vector<1x32xf32> -> vector<1x32xf32>
    %cst_103 = arith.constant dense<0.000000e+00> : vector<1x32xf32>
    %335 = tpu.matmul %327, %14, %cst_103 {dimension_numbers = #tpu.dot_dimension_numbers<[1], [0], [0], [1], [0, 0, 1, 1], [], []>} : vector<1x32xf32>, vector<32x32xf32>, vector<1x32xf32> -> vector<1x32xf32>
    %336 = arith.addf %334, %335 : vector<1x32xf32>
    %337 = arith.addf %336, %16 : vector<1x32xf32>
    %cst_104 = arith.constant dense<0.000000e+00> : vector<1x8xf32>
    %338 = tpu.matmul %327, %12, %cst_104 {dimension_numbers = #tpu.dot_dimension_numbers<[1], [0], [0], [1], [0, 0, 1, 1], [], []>} : vector<1x32xf32>, vector<32x8xf32>, vector<1x8xf32> -> vector<1x8xf32>
    %cst_105 = arith.constant dense<0xFF800000> : vector<1xf32>
    %339 = vector.multi_reduction <maximumf>, %338, %cst_105 [1] : vector<1x8xf32> to vector<1xf32>
    %340 = vector.shape_cast %339 : vector<1xf32> to vector<1x1xf32>
    %341 = vector.broadcast %340 : vector<1x1xf32> to vector<1x8xf32>
    %342 = arith.subf %338, %341 : vector<1x8xf32>
    %343 = math.exp %342 : vector<1x8xf32>
    %cst_106 = arith.constant dense<0.000000e+00> : vector<1xf32>
    %344 = vector.multi_reduction <add>, %343, %cst_106 [1] : vector<1x8xf32> to vector<1xf32>
    %345 = vector.shape_cast %344 : vector<1xf32> to vector<1x1xf32>
    %346 = tpu.reciprocal %345 {approx = true} : vector<1x1xf32> -> vector<1x1xf32>
    %347 = vector.broadcast %346 : vector<1x1xf32> to vector<1x8xf32>
    %348 = arith.mulf %343, %347 : vector<1x8xf32>
    %cst_107 = arith.constant dense<0.000000e+00> : vector<1x32xf32>
    %349 = tpu.matmul %348, %11, %cst_107 {dimension_numbers = #tpu.dot_dimension_numbers<[1], [0], [0], [1], [0, 0, 1, 1], [], []>} : vector<1x8xf32>, vector<8x32xf32>, vector<1x32xf32> -> vector<1x32xf32>
    %cst_108 = arith.constant dense<0.000000e+00> : vector<1x32xf32>
    %350 = tpu.matmul %349, %15, %cst_108 {dimension_numbers = #tpu.dot_dimension_numbers<[1], [0], [0], [1], [0, 0, 1, 1], [], []>} : vector<1x32xf32>, vector<32x32xf32>, vector<1x32xf32> -> vector<1x32xf32>
    %351 = arith.addf %337, %350 : vector<1x32xf32>
    %352 = math.tanh %351 : vector<1x32xf32>
    %cst_109 = arith.constant dense<0.000000e+00> : vector<1x32xf32>
    %353 = tpu.matmul %352, %17, %cst_109 {dimension_numbers = #tpu.dot_dimension_numbers<[1], [0], [0], [1], [0, 0, 1, 1], [], []>} : vector<1x32xf32>, vector<32x32xf32>, vector<1x32xf32> -> vector<1x32xf32>
    %354 = arith.addf %353, %18 : vector<1x32xf32>
    %cst_110 = arith.constant dense<0xFF800000> : vector<1xf32>
    %355 = vector.multi_reduction <maximumf>, %354, %cst_110 [1] : vector<1x32xf32> to vector<1xf32>
    %356 = vector.shape_cast %355 : vector<1xf32> to vector<1x1xf32>
    %357 = vector.broadcast %356 : vector<1x1xf32> to vector<1x32xf32>
    %358 = arith.cmpf oeq, %354, %357 : vector<1x32xf32>
    %c32_i32_111 = arith.constant 32 : i32
    %359 = vector.broadcast %c32_i32_111 : i32 to vector<1x32xi32>
    %360 = arith.select %358, %19, %359 : vector<1x32xi1>, vector<1x32xi32>
    %cst_112 = arith.constant dense<2147483647> : vector<1xi32>
    %361 = vector.multi_reduction <minsi>, %360, %cst_112 [1] : vector<1x32xi32> to vector<1xi32>
    %362 = vector.shape_cast %361 : vector<1xi32> to vector<1x1xi32>
    %c31_i32_113 = arith.constant 31 : i32
    %363 = vector.broadcast %c31_i32_113 : i32 to vector<1x1xi32>
    %364 = arith.minsi %362, %363 : vector<1x1xi32>
    %365 = vector.broadcast %364 : vector<1x1xi32> to vector<1x32xi32>
    %366 = arith.cmpi eq, %19, %365 : vector<1x32xi32>
    %367 = arith.extui %366 : vector<1x32xi1> to vector<1x32xi32>
    %368 = arith.sitofp %367 : vector<1x32xi32> to vector<1x32xf32>
    %c1_i32_114 = arith.constant 1 : i32
    %369 = vector.broadcast %c1_i32_114 : i32 to vector<1x1xi32>
    %370 = arith.select %333, %369, %364 : vector<1x1xi1>, vector<1x1xi32>
    %371 = vector.broadcast %c6_i32 : i32 to vector<1x128xi32>
    %372 = arith.cmpi eq, %20, %371 : vector<1x128xi32>
    %373 = vector.shape_cast %370 : vector<1x1xi32> to vector<1x1xi32>
    %374 = vector.broadcast %373 : vector<1x1xi32> to vector<1x128xi32>
    %375 = arith.select %372, %374, %324 : vector<1x128xi1>, vector<1x128xi32>
    %376 = vector.shape_cast %333 : vector<1x1xi1> to vector<1x1xi1>
    %377 = vector.broadcast %376 : vector<1x1xi1> to vector<1x32xi1>
    %378 = arith.select %377, %327, %352 : vector<1x32xi1>, vector<1x32xf32>
    %379 = vector.shape_cast %333 : vector<1x1xi1> to vector<1x1xi1>
    %380 = vector.broadcast %379 : vector<1x1xi1> to vector<1x32xi1>
    %381 = arith.select %380, %330, %368 : vector<1x32xi1>, vector<1x32xf32>
    %c1_i32_115 = arith.constant 1 : i32
    %382 = vector.broadcast %c1_i32_115 : i32 to vector<1x1xi32>
    %383 = arith.cmpi eq, %364, %382 : vector<1x1xi32>
    %384 = arith.ori %333, %383 : vector<1x1xi1>
    %c7_i32 = arith.constant 7 : i32
    %cst_116 = arith.constant dense<0.000000e+00> : vector<1x32xf32>
    %385 = tpu.matmul %381, %13, %cst_116 {dimension_numbers = #tpu.dot_dimension_numbers<[1], [0], [0], [1], [0, 0, 1, 1], [], []>} : vector<1x32xf32>, vector<32x32xf32>, vector<1x32xf32> -> vector<1x32xf32>
    %cst_117 = arith.constant dense<0.000000e+00> : vector<1x32xf32>
    %386 = tpu.matmul %378, %14, %cst_117 {dimension_numbers = #tpu.dot_dimension_numbers<[1], [0], [0], [1], [0, 0, 1, 1], [], []>} : vector<1x32xf32>, vector<32x32xf32>, vector<1x32xf32> -> vector<1x32xf32>
    %387 = arith.addf %385, %386 : vector<1x32xf32>
    %388 = arith.addf %387, %16 : vector<1x32xf32>
    %cst_118 = arith.constant dense<0.000000e+00> : vector<1x8xf32>
    %389 = tpu.matmul %378, %12, %cst_118 {dimension_numbers = #tpu.dot_dimension_numbers<[1], [0], [0], [1], [0, 0, 1, 1], [], []>} : vector<1x32xf32>, vector<32x8xf32>, vector<1x8xf32> -> vector<1x8xf32>
    %cst_119 = arith.constant dense<0xFF800000> : vector<1xf32>
    %390 = vector.multi_reduction <maximumf>, %389, %cst_119 [1] : vector<1x8xf32> to vector<1xf32>
    %391 = vector.shape_cast %390 : vector<1xf32> to vector<1x1xf32>
    %392 = vector.broadcast %391 : vector<1x1xf32> to vector<1x8xf32>
    %393 = arith.subf %389, %392 : vector<1x8xf32>
    %394 = math.exp %393 : vector<1x8xf32>
    %cst_120 = arith.constant dense<0.000000e+00> : vector<1xf32>
    %395 = vector.multi_reduction <add>, %394, %cst_120 [1] : vector<1x8xf32> to vector<1xf32>
    %396 = vector.shape_cast %395 : vector<1xf32> to vector<1x1xf32>
    %397 = tpu.reciprocal %396 {approx = true} : vector<1x1xf32> -> vector<1x1xf32>
    %398 = vector.broadcast %397 : vector<1x1xf32> to vector<1x8xf32>
    %399 = arith.mulf %394, %398 : vector<1x8xf32>
    %cst_121 = arith.constant dense<0.000000e+00> : vector<1x32xf32>
    %400 = tpu.matmul %399, %11, %cst_121 {dimension_numbers = #tpu.dot_dimension_numbers<[1], [0], [0], [1], [0, 0, 1, 1], [], []>} : vector<1x8xf32>, vector<8x32xf32>, vector<1x32xf32> -> vector<1x32xf32>
    %cst_122 = arith.constant dense<0.000000e+00> : vector<1x32xf32>
    %401 = tpu.matmul %400, %15, %cst_122 {dimension_numbers = #tpu.dot_dimension_numbers<[1], [0], [0], [1], [0, 0, 1, 1], [], []>} : vector<1x32xf32>, vector<32x32xf32>, vector<1x32xf32> -> vector<1x32xf32>
    %402 = arith.addf %388, %401 : vector<1x32xf32>
    %403 = math.tanh %402 : vector<1x32xf32>
    %cst_123 = arith.constant dense<0.000000e+00> : vector<1x32xf32>
    %404 = tpu.matmul %403, %17, %cst_123 {dimension_numbers = #tpu.dot_dimension_numbers<[1], [0], [0], [1], [0, 0, 1, 1], [], []>} : vector<1x32xf32>, vector<32x32xf32>, vector<1x32xf32> -> vector<1x32xf32>
    %405 = arith.addf %404, %18 : vector<1x32xf32>
    %cst_124 = arith.constant dense<0xFF800000> : vector<1xf32>
    %406 = vector.multi_reduction <maximumf>, %405, %cst_124 [1] : vector<1x32xf32> to vector<1xf32>
    %407 = vector.shape_cast %406 : vector<1xf32> to vector<1x1xf32>
    %408 = vector.broadcast %407 : vector<1x1xf32> to vector<1x32xf32>
    %409 = arith.cmpf oeq, %405, %408 : vector<1x32xf32>
    %c32_i32_125 = arith.constant 32 : i32
    %410 = vector.broadcast %c32_i32_125 : i32 to vector<1x32xi32>
    %411 = arith.select %409, %19, %410 : vector<1x32xi1>, vector<1x32xi32>
    %cst_126 = arith.constant dense<2147483647> : vector<1xi32>
    %412 = vector.multi_reduction <minsi>, %411, %cst_126 [1] : vector<1x32xi32> to vector<1xi32>
    %413 = vector.shape_cast %412 : vector<1xi32> to vector<1x1xi32>
    %c31_i32_127 = arith.constant 31 : i32
    %414 = vector.broadcast %c31_i32_127 : i32 to vector<1x1xi32>
    %415 = arith.minsi %413, %414 : vector<1x1xi32>
    %416 = vector.broadcast %415 : vector<1x1xi32> to vector<1x32xi32>
    %417 = arith.cmpi eq, %19, %416 : vector<1x32xi32>
    %418 = arith.extui %417 : vector<1x32xi1> to vector<1x32xi32>
    %419 = arith.sitofp %418 : vector<1x32xi32> to vector<1x32xf32>
    %c1_i32_128 = arith.constant 1 : i32
    %420 = vector.broadcast %c1_i32_128 : i32 to vector<1x1xi32>
    %421 = arith.select %384, %420, %415 : vector<1x1xi1>, vector<1x1xi32>
    %422 = vector.broadcast %c7_i32 : i32 to vector<1x128xi32>
    %423 = arith.cmpi eq, %20, %422 : vector<1x128xi32>
    %424 = vector.shape_cast %421 : vector<1x1xi32> to vector<1x1xi32>
    %425 = vector.broadcast %424 : vector<1x1xi32> to vector<1x128xi32>
    %426 = arith.select %423, %425, %375 : vector<1x128xi1>, vector<1x128xi32>
    %427 = vector.shape_cast %384 : vector<1x1xi1> to vector<1x1xi1>
    %428 = vector.broadcast %427 : vector<1x1xi1> to vector<1x32xi1>
    %429 = arith.select %428, %378, %403 : vector<1x32xi1>, vector<1x32xf32>
    %430 = vector.shape_cast %384 : vector<1x1xi1> to vector<1x1xi1>
    %431 = vector.broadcast %430 : vector<1x1xi1> to vector<1x32xi1>
    %432 = arith.select %431, %381, %419 : vector<1x32xi1>, vector<1x32xf32>
    %c1_i32_129 = arith.constant 1 : i32
    %433 = vector.broadcast %c1_i32_129 : i32 to vector<1x1xi32>
    %434 = arith.cmpi eq, %415, %433 : vector<1x1xi32>
    %435 = arith.ori %384, %434 : vector<1x1xi1>
    %c8_i32 = arith.constant 8 : i32
    %cst_130 = arith.constant dense<0.000000e+00> : vector<1x32xf32>
    %436 = tpu.matmul %432, %13, %cst_130 {dimension_numbers = #tpu.dot_dimension_numbers<[1], [0], [0], [1], [0, 0, 1, 1], [], []>} : vector<1x32xf32>, vector<32x32xf32>, vector<1x32xf32> -> vector<1x32xf32>
    %cst_131 = arith.constant dense<0.000000e+00> : vector<1x32xf32>
    %437 = tpu.matmul %429, %14, %cst_131 {dimension_numbers = #tpu.dot_dimension_numbers<[1], [0], [0], [1], [0, 0, 1, 1], [], []>} : vector<1x32xf32>, vector<32x32xf32>, vector<1x32xf32> -> vector<1x32xf32>
    %438 = arith.addf %436, %437 : vector<1x32xf32>
    %439 = arith.addf %438, %16 : vector<1x32xf32>
    %cst_132 = arith.constant dense<0.000000e+00> : vector<1x8xf32>
    %440 = tpu.matmul %429, %12, %cst_132 {dimension_numbers = #tpu.dot_dimension_numbers<[1], [0], [0], [1], [0, 0, 1, 1], [], []>} : vector<1x32xf32>, vector<32x8xf32>, vector<1x8xf32> -> vector<1x8xf32>
    %cst_133 = arith.constant dense<0xFF800000> : vector<1xf32>
    %441 = vector.multi_reduction <maximumf>, %440, %cst_133 [1] : vector<1x8xf32> to vector<1xf32>
    %442 = vector.shape_cast %441 : vector<1xf32> to vector<1x1xf32>
    %443 = vector.broadcast %442 : vector<1x1xf32> to vector<1x8xf32>
    %444 = arith.subf %440, %443 : vector<1x8xf32>
    %445 = math.exp %444 : vector<1x8xf32>
    %cst_134 = arith.constant dense<0.000000e+00> : vector<1xf32>
    %446 = vector.multi_reduction <add>, %445, %cst_134 [1] : vector<1x8xf32> to vector<1xf32>
    %447 = vector.shape_cast %446 : vector<1xf32> to vector<1x1xf32>
    %448 = tpu.reciprocal %447 {approx = true} : vector<1x1xf32> -> vector<1x1xf32>
    %449 = vector.broadcast %448 : vector<1x1xf32> to vector<1x8xf32>
    %450 = arith.mulf %445, %449 : vector<1x8xf32>
    %cst_135 = arith.constant dense<0.000000e+00> : vector<1x32xf32>
    %451 = tpu.matmul %450, %11, %cst_135 {dimension_numbers = #tpu.dot_dimension_numbers<[1], [0], [0], [1], [0, 0, 1, 1], [], []>} : vector<1x8xf32>, vector<8x32xf32>, vector<1x32xf32> -> vector<1x32xf32>
    %cst_136 = arith.constant dense<0.000000e+00> : vector<1x32xf32>
    %452 = tpu.matmul %451, %15, %cst_136 {dimension_numbers = #tpu.dot_dimension_numbers<[1], [0], [0], [1], [0, 0, 1, 1], [], []>} : vector<1x32xf32>, vector<32x32xf32>, vector<1x32xf32> -> vector<1x32xf32>
    %453 = arith.addf %439, %452 : vector<1x32xf32>
    %454 = math.tanh %453 : vector<1x32xf32>
    %cst_137 = arith.constant dense<0.000000e+00> : vector<1x32xf32>
    %455 = tpu.matmul %454, %17, %cst_137 {dimension_numbers = #tpu.dot_dimension_numbers<[1], [0], [0], [1], [0, 0, 1, 1], [], []>} : vector<1x32xf32>, vector<32x32xf32>, vector<1x32xf32> -> vector<1x32xf32>
    %456 = arith.addf %455, %18 : vector<1x32xf32>
    %cst_138 = arith.constant dense<0xFF800000> : vector<1xf32>
    %457 = vector.multi_reduction <maximumf>, %456, %cst_138 [1] : vector<1x32xf32> to vector<1xf32>
    %458 = vector.shape_cast %457 : vector<1xf32> to vector<1x1xf32>
    %459 = vector.broadcast %458 : vector<1x1xf32> to vector<1x32xf32>
    %460 = arith.cmpf oeq, %456, %459 : vector<1x32xf32>
    %c32_i32_139 = arith.constant 32 : i32
    %461 = vector.broadcast %c32_i32_139 : i32 to vector<1x32xi32>
    %462 = arith.select %460, %19, %461 : vector<1x32xi1>, vector<1x32xi32>
    %cst_140 = arith.constant dense<2147483647> : vector<1xi32>
    %463 = vector.multi_reduction <minsi>, %462, %cst_140 [1] : vector<1x32xi32> to vector<1xi32>
    %464 = vector.shape_cast %463 : vector<1xi32> to vector<1x1xi32>
    %c31_i32_141 = arith.constant 31 : i32
    %465 = vector.broadcast %c31_i32_141 : i32 to vector<1x1xi32>
    %466 = arith.minsi %464, %465 : vector<1x1xi32>
    %467 = vector.broadcast %466 : vector<1x1xi32> to vector<1x32xi32>
    %468 = arith.cmpi eq, %19, %467 : vector<1x32xi32>
    %469 = arith.extui %468 : vector<1x32xi1> to vector<1x32xi32>
    %470 = arith.sitofp %469 : vector<1x32xi32> to vector<1x32xf32>
    %c1_i32_142 = arith.constant 1 : i32
    %471 = vector.broadcast %c1_i32_142 : i32 to vector<1x1xi32>
    %472 = arith.select %435, %471, %466 : vector<1x1xi1>, vector<1x1xi32>
    %473 = vector.broadcast %c8_i32 : i32 to vector<1x128xi32>
    %474 = arith.cmpi eq, %20, %473 : vector<1x128xi32>
    %475 = vector.shape_cast %472 : vector<1x1xi32> to vector<1x1xi32>
    %476 = vector.broadcast %475 : vector<1x1xi32> to vector<1x128xi32>
    %477 = arith.select %474, %476, %426 : vector<1x128xi1>, vector<1x128xi32>
    %478 = vector.shape_cast %435 : vector<1x1xi1> to vector<1x1xi1>
    %479 = vector.broadcast %478 : vector<1x1xi1> to vector<1x32xi1>
    %480 = arith.select %479, %429, %454 : vector<1x32xi1>, vector<1x32xf32>
    %481 = vector.shape_cast %435 : vector<1x1xi1> to vector<1x1xi1>
    %482 = vector.broadcast %481 : vector<1x1xi1> to vector<1x32xi1>
    %483 = arith.select %482, %432, %470 : vector<1x32xi1>, vector<1x32xf32>
    %c1_i32_143 = arith.constant 1 : i32
    %484 = vector.broadcast %c1_i32_143 : i32 to vector<1x1xi32>
    %485 = arith.cmpi eq, %466, %484 : vector<1x1xi32>
    %486 = arith.ori %435, %485 : vector<1x1xi1>
    %c9_i32 = arith.constant 9 : i32
    %cst_144 = arith.constant dense<0.000000e+00> : vector<1x32xf32>
    %487 = tpu.matmul %483, %13, %cst_144 {dimension_numbers = #tpu.dot_dimension_numbers<[1], [0], [0], [1], [0, 0, 1, 1], [], []>} : vector<1x32xf32>, vector<32x32xf32>, vector<1x32xf32> -> vector<1x32xf32>
    %cst_145 = arith.constant dense<0.000000e+00> : vector<1x32xf32>
    %488 = tpu.matmul %480, %14, %cst_145 {dimension_numbers = #tpu.dot_dimension_numbers<[1], [0], [0], [1], [0, 0, 1, 1], [], []>} : vector<1x32xf32>, vector<32x32xf32>, vector<1x32xf32> -> vector<1x32xf32>
    %489 = arith.addf %487, %488 : vector<1x32xf32>
    %490 = arith.addf %489, %16 : vector<1x32xf32>
    %cst_146 = arith.constant dense<0.000000e+00> : vector<1x8xf32>
    %491 = tpu.matmul %480, %12, %cst_146 {dimension_numbers = #tpu.dot_dimension_numbers<[1], [0], [0], [1], [0, 0, 1, 1], [], []>} : vector<1x32xf32>, vector<32x8xf32>, vector<1x8xf32> -> vector<1x8xf32>
    %cst_147 = arith.constant dense<0xFF800000> : vector<1xf32>
    %492 = vector.multi_reduction <maximumf>, %491, %cst_147 [1] : vector<1x8xf32> to vector<1xf32>
    %493 = vector.shape_cast %492 : vector<1xf32> to vector<1x1xf32>
    %494 = vector.broadcast %493 : vector<1x1xf32> to vector<1x8xf32>
    %495 = arith.subf %491, %494 : vector<1x8xf32>
    %496 = math.exp %495 : vector<1x8xf32>
    %cst_148 = arith.constant dense<0.000000e+00> : vector<1xf32>
    %497 = vector.multi_reduction <add>, %496, %cst_148 [1] : vector<1x8xf32> to vector<1xf32>
    %498 = vector.shape_cast %497 : vector<1xf32> to vector<1x1xf32>
    %499 = tpu.reciprocal %498 {approx = true} : vector<1x1xf32> -> vector<1x1xf32>
    %500 = vector.broadcast %499 : vector<1x1xf32> to vector<1x8xf32>
    %501 = arith.mulf %496, %500 : vector<1x8xf32>
    %cst_149 = arith.constant dense<0.000000e+00> : vector<1x32xf32>
    %502 = tpu.matmul %501, %11, %cst_149 {dimension_numbers = #tpu.dot_dimension_numbers<[1], [0], [0], [1], [0, 0, 1, 1], [], []>} : vector<1x8xf32>, vector<8x32xf32>, vector<1x32xf32> -> vector<1x32xf32>
    %cst_150 = arith.constant dense<0.000000e+00> : vector<1x32xf32>
    %503 = tpu.matmul %502, %15, %cst_150 {dimension_numbers = #tpu.dot_dimension_numbers<[1], [0], [0], [1], [0, 0, 1, 1], [], []>} : vector<1x32xf32>, vector<32x32xf32>, vector<1x32xf32> -> vector<1x32xf32>
    %504 = arith.addf %490, %503 : vector<1x32xf32>
    %505 = math.tanh %504 : vector<1x32xf32>
    %cst_151 = arith.constant dense<0.000000e+00> : vector<1x32xf32>
    %506 = tpu.matmul %505, %17, %cst_151 {dimension_numbers = #tpu.dot_dimension_numbers<[1], [0], [0], [1], [0, 0, 1, 1], [], []>} : vector<1x32xf32>, vector<32x32xf32>, vector<1x32xf32> -> vector<1x32xf32>
    %507 = arith.addf %506, %18 : vector<1x32xf32>
    %cst_152 = arith.constant dense<0xFF800000> : vector<1xf32>
    %508 = vector.multi_reduction <maximumf>, %507, %cst_152 [1] : vector<1x32xf32> to vector<1xf32>
    %509 = vector.shape_cast %508 : vector<1xf32> to vector<1x1xf32>
    %510 = vector.broadcast %509 : vector<1x1xf32> to vector<1x32xf32>
    %511 = arith.cmpf oeq, %507, %510 : vector<1x32xf32>
    %c32_i32_153 = arith.constant 32 : i32
    %512 = vector.broadcast %c32_i32_153 : i32 to vector<1x32xi32>
    %513 = arith.select %511, %19, %512 : vector<1x32xi1>, vector<1x32xi32>
    %cst_154 = arith.constant dense<2147483647> : vector<1xi32>
    %514 = vector.multi_reduction <minsi>, %513, %cst_154 [1] : vector<1x32xi32> to vector<1xi32>
    %515 = vector.shape_cast %514 : vector<1xi32> to vector<1x1xi32>
    %c31_i32_155 = arith.constant 31 : i32
    %516 = vector.broadcast %c31_i32_155 : i32 to vector<1x1xi32>
    %517 = arith.minsi %515, %516 : vector<1x1xi32>
    %518 = vector.broadcast %517 : vector<1x1xi32> to vector<1x32xi32>
    %519 = arith.cmpi eq, %19, %518 : vector<1x32xi32>
    %520 = arith.extui %519 : vector<1x32xi1> to vector<1x32xi32>
    %521 = arith.sitofp %520 : vector<1x32xi32> to vector<1x32xf32>
    %c1_i32_156 = arith.constant 1 : i32
    %522 = vector.broadcast %c1_i32_156 : i32 to vector<1x1xi32>
    %523 = arith.select %486, %522, %517 : vector<1x1xi1>, vector<1x1xi32>
    %524 = vector.broadcast %c9_i32 : i32 to vector<1x128xi32>
    %525 = arith.cmpi eq, %20, %524 : vector<1x128xi32>
    %526 = vector.shape_cast %523 : vector<1x1xi32> to vector<1x1xi32>
    %527 = vector.broadcast %526 : vector<1x1xi32> to vector<1x128xi32>
    %528 = arith.select %525, %527, %477 : vector<1x128xi1>, vector<1x128xi32>
    %529 = vector.shape_cast %486 : vector<1x1xi1> to vector<1x1xi1>
    %530 = vector.broadcast %529 : vector<1x1xi1> to vector<1x32xi1>
    %531 = arith.select %530, %480, %505 : vector<1x32xi1>, vector<1x32xf32>
    %532 = vector.shape_cast %486 : vector<1x1xi1> to vector<1x1xi1>
    %533 = vector.broadcast %532 : vector<1x1xi1> to vector<1x32xi1>
    %534 = arith.select %533, %483, %521 : vector<1x32xi1>, vector<1x32xf32>
    %c1_i32_157 = arith.constant 1 : i32
    %535 = vector.broadcast %c1_i32_157 : i32 to vector<1x1xi32>
    %536 = arith.cmpi eq, %517, %535 : vector<1x1xi32>
    %537 = arith.ori %486, %536 : vector<1x1xi1>
    %c10_i32 = arith.constant 10 : i32
    %cst_158 = arith.constant dense<0.000000e+00> : vector<1x32xf32>
    %538 = tpu.matmul %534, %13, %cst_158 {dimension_numbers = #tpu.dot_dimension_numbers<[1], [0], [0], [1], [0, 0, 1, 1], [], []>} : vector<1x32xf32>, vector<32x32xf32>, vector<1x32xf32> -> vector<1x32xf32>
    %cst_159 = arith.constant dense<0.000000e+00> : vector<1x32xf32>
    %539 = tpu.matmul %531, %14, %cst_159 {dimension_numbers = #tpu.dot_dimension_numbers<[1], [0], [0], [1], [0, 0, 1, 1], [], []>} : vector<1x32xf32>, vector<32x32xf32>, vector<1x32xf32> -> vector<1x32xf32>
    %540 = arith.addf %538, %539 : vector<1x32xf32>
    %541 = arith.addf %540, %16 : vector<1x32xf32>
    %cst_160 = arith.constant dense<0.000000e+00> : vector<1x8xf32>
    %542 = tpu.matmul %531, %12, %cst_160 {dimension_numbers = #tpu.dot_dimension_numbers<[1], [0], [0], [1], [0, 0, 1, 1], [], []>} : vector<1x32xf32>, vector<32x8xf32>, vector<1x8xf32> -> vector<1x8xf32>
    %cst_161 = arith.constant dense<0xFF800000> : vector<1xf32>
    %543 = vector.multi_reduction <maximumf>, %542, %cst_161 [1] : vector<1x8xf32> to vector<1xf32>
    %544 = vector.shape_cast %543 : vector<1xf32> to vector<1x1xf32>
    %545 = vector.broadcast %544 : vector<1x1xf32> to vector<1x8xf32>
    %546 = arith.subf %542, %545 : vector<1x8xf32>
    %547 = math.exp %546 : vector<1x8xf32>
    %cst_162 = arith.constant dense<0.000000e+00> : vector<1xf32>
    %548 = vector.multi_reduction <add>, %547, %cst_162 [1] : vector<1x8xf32> to vector<1xf32>
    %549 = vector.shape_cast %548 : vector<1xf32> to vector<1x1xf32>
    %550 = tpu.reciprocal %549 {approx = true} : vector<1x1xf32> -> vector<1x1xf32>
    %551 = vector.broadcast %550 : vector<1x1xf32> to vector<1x8xf32>
    %552 = arith.mulf %547, %551 : vector<1x8xf32>
    %cst_163 = arith.constant dense<0.000000e+00> : vector<1x32xf32>
    %553 = tpu.matmul %552, %11, %cst_163 {dimension_numbers = #tpu.dot_dimension_numbers<[1], [0], [0], [1], [0, 0, 1, 1], [], []>} : vector<1x8xf32>, vector<8x32xf32>, vector<1x32xf32> -> vector<1x32xf32>
    %cst_164 = arith.constant dense<0.000000e+00> : vector<1x32xf32>
    %554 = tpu.matmul %553, %15, %cst_164 {dimension_numbers = #tpu.dot_dimension_numbers<[1], [0], [0], [1], [0, 0, 1, 1], [], []>} : vector<1x32xf32>, vector<32x32xf32>, vector<1x32xf32> -> vector<1x32xf32>
    %555 = arith.addf %541, %554 : vector<1x32xf32>
    %556 = math.tanh %555 : vector<1x32xf32>
    %cst_165 = arith.constant dense<0.000000e+00> : vector<1x32xf32>
    %557 = tpu.matmul %556, %17, %cst_165 {dimension_numbers = #tpu.dot_dimension_numbers<[1], [0], [0], [1], [0, 0, 1, 1], [], []>} : vector<1x32xf32>, vector<32x32xf32>, vector<1x32xf32> -> vector<1x32xf32>
    %558 = arith.addf %557, %18 : vector<1x32xf32>
    %cst_166 = arith.constant dense<0xFF800000> : vector<1xf32>
    %559 = vector.multi_reduction <maximumf>, %558, %cst_166 [1] : vector<1x32xf32> to vector<1xf32>
    %560 = vector.shape_cast %559 : vector<1xf32> to vector<1x1xf32>
    %561 = vector.broadcast %560 : vector<1x1xf32> to vector<1x32xf32>
    %562 = arith.cmpf oeq, %558, %561 : vector<1x32xf32>
    %c32_i32_167 = arith.constant 32 : i32
    %563 = vector.broadcast %c32_i32_167 : i32 to vector<1x32xi32>
    %564 = arith.select %562, %19, %563 : vector<1x32xi1>, vector<1x32xi32>
    %cst_168 = arith.constant dense<2147483647> : vector<1xi32>
    %565 = vector.multi_reduction <minsi>, %564, %cst_168 [1] : vector<1x32xi32> to vector<1xi32>
    %566 = vector.shape_cast %565 : vector<1xi32> to vector<1x1xi32>
    %c31_i32_169 = arith.constant 31 : i32
    %567 = vector.broadcast %c31_i32_169 : i32 to vector<1x1xi32>
    %568 = arith.minsi %566, %567 : vector<1x1xi32>
    %569 = vector.broadcast %568 : vector<1x1xi32> to vector<1x32xi32>
    %570 = arith.cmpi eq, %19, %569 : vector<1x32xi32>
    %571 = arith.extui %570 : vector<1x32xi1> to vector<1x32xi32>
    %572 = arith.sitofp %571 : vector<1x32xi32> to vector<1x32xf32>
    %c1_i32_170 = arith.constant 1 : i32
    %573 = vector.broadcast %c1_i32_170 : i32 to vector<1x1xi32>
    %574 = arith.select %537, %573, %568 : vector<1x1xi1>, vector<1x1xi32>
    %575 = vector.broadcast %c10_i32 : i32 to vector<1x128xi32>
    %576 = arith.cmpi eq, %20, %575 : vector<1x128xi32>
    %577 = vector.shape_cast %574 : vector<1x1xi32> to vector<1x1xi32>
    %578 = vector.broadcast %577 : vector<1x1xi32> to vector<1x128xi32>
    %579 = arith.select %576, %578, %528 : vector<1x128xi1>, vector<1x128xi32>
    %580 = vector.shape_cast %537 : vector<1x1xi1> to vector<1x1xi1>
    %581 = vector.broadcast %580 : vector<1x1xi1> to vector<1x32xi1>
    %582 = arith.select %581, %531, %556 : vector<1x32xi1>, vector<1x32xf32>
    %583 = vector.shape_cast %537 : vector<1x1xi1> to vector<1x1xi1>
    %584 = vector.broadcast %583 : vector<1x1xi1> to vector<1x32xi1>
    %585 = arith.select %584, %534, %572 : vector<1x32xi1>, vector<1x32xf32>
    %c1_i32_171 = arith.constant 1 : i32
    %586 = vector.broadcast %c1_i32_171 : i32 to vector<1x1xi32>
    %587 = arith.cmpi eq, %568, %586 : vector<1x1xi32>
    %588 = arith.ori %537, %587 : vector<1x1xi1>
    %c11_i32 = arith.constant 11 : i32
    %cst_172 = arith.constant dense<0.000000e+00> : vector<1x32xf32>
    %589 = tpu.matmul %585, %13, %cst_172 {dimension_numbers = #tpu.dot_dimension_numbers<[1], [0], [0], [1], [0, 0, 1, 1], [], []>} : vector<1x32xf32>, vector<32x32xf32>, vector<1x32xf32> -> vector<1x32xf32>
    %cst_173 = arith.constant dense<0.000000e+00> : vector<1x32xf32>
    %590 = tpu.matmul %582, %14, %cst_173 {dimension_numbers = #tpu.dot_dimension_numbers<[1], [0], [0], [1], [0, 0, 1, 1], [], []>} : vector<1x32xf32>, vector<32x32xf32>, vector<1x32xf32> -> vector<1x32xf32>
    %591 = arith.addf %589, %590 : vector<1x32xf32>
    %592 = arith.addf %591, %16 : vector<1x32xf32>
    %cst_174 = arith.constant dense<0.000000e+00> : vector<1x8xf32>
    %593 = tpu.matmul %582, %12, %cst_174 {dimension_numbers = #tpu.dot_dimension_numbers<[1], [0], [0], [1], [0, 0, 1, 1], [], []>} : vector<1x32xf32>, vector<32x8xf32>, vector<1x8xf32> -> vector<1x8xf32>
    %cst_175 = arith.constant dense<0xFF800000> : vector<1xf32>
    %594 = vector.multi_reduction <maximumf>, %593, %cst_175 [1] : vector<1x8xf32> to vector<1xf32>
    %595 = vector.shape_cast %594 : vector<1xf32> to vector<1x1xf32>
    %596 = vector.broadcast %595 : vector<1x1xf32> to vector<1x8xf32>
    %597 = arith.subf %593, %596 : vector<1x8xf32>
    %598 = math.exp %597 : vector<1x8xf32>
    %cst_176 = arith.constant dense<0.000000e+00> : vector<1xf32>
    %599 = vector.multi_reduction <add>, %598, %cst_176 [1] : vector<1x8xf32> to vector<1xf32>
    %600 = vector.shape_cast %599 : vector<1xf32> to vector<1x1xf32>
    %601 = tpu.reciprocal %600 {approx = true} : vector<1x1xf32> -> vector<1x1xf32>
    %602 = vector.broadcast %601 : vector<1x1xf32> to vector<1x8xf32>
    %603 = arith.mulf %598, %602 : vector<1x8xf32>
    %cst_177 = arith.constant dense<0.000000e+00> : vector<1x32xf32>
    %604 = tpu.matmul %603, %11, %cst_177 {dimension_numbers = #tpu.dot_dimension_numbers<[1], [0], [0], [1], [0, 0, 1, 1], [], []>} : vector<1x8xf32>, vector<8x32xf32>, vector<1x32xf32> -> vector<1x32xf32>
    %cst_178 = arith.constant dense<0.000000e+00> : vector<1x32xf32>
    %605 = tpu.matmul %604, %15, %cst_178 {dimension_numbers = #tpu.dot_dimension_numbers<[1], [0], [0], [1], [0, 0, 1, 1], [], []>} : vector<1x32xf32>, vector<32x32xf32>, vector<1x32xf32> -> vector<1x32xf32>
    %606 = arith.addf %592, %605 : vector<1x32xf32>
    %607 = math.tanh %606 : vector<1x32xf32>
    %cst_179 = arith.constant dense<0.000000e+00> : vector<1x32xf32>
    %608 = tpu.matmul %607, %17, %cst_179 {dimension_numbers = #tpu.dot_dimension_numbers<[1], [0], [0], [1], [0, 0, 1, 1], [], []>} : vector<1x32xf32>, vector<32x32xf32>, vector<1x32xf32> -> vector<1x32xf32>
    %609 = arith.addf %608, %18 : vector<1x32xf32>
    %cst_180 = arith.constant dense<0xFF800000> : vector<1xf32>
    %610 = vector.multi_reduction <maximumf>, %609, %cst_180 [1] : vector<1x32xf32> to vector<1xf32>
    %611 = vector.shape_cast %610 : vector<1xf32> to vector<1x1xf32>
    %612 = vector.broadcast %611 : vector<1x1xf32> to vector<1x32xf32>
    %613 = arith.cmpf oeq, %609, %612 : vector<1x32xf32>
    %c32_i32_181 = arith.constant 32 : i32
    %614 = vector.broadcast %c32_i32_181 : i32 to vector<1x32xi32>
    %615 = arith.select %613, %19, %614 : vector<1x32xi1>, vector<1x32xi32>
    %cst_182 = arith.constant dense<2147483647> : vector<1xi32>
    %616 = vector.multi_reduction <minsi>, %615, %cst_182 [1] : vector<1x32xi32> to vector<1xi32>
    %617 = vector.shape_cast %616 : vector<1xi32> to vector<1x1xi32>
    %c31_i32_183 = arith.constant 31 : i32
    %618 = vector.broadcast %c31_i32_183 : i32 to vector<1x1xi32>
    %619 = arith.minsi %617, %618 : vector<1x1xi32>
    %620 = vector.broadcast %619 : vector<1x1xi32> to vector<1x32xi32>
    %621 = arith.cmpi eq, %19, %620 : vector<1x32xi32>
    %622 = arith.extui %621 : vector<1x32xi1> to vector<1x32xi32>
    %623 = arith.sitofp %622 : vector<1x32xi32> to vector<1x32xf32>
    %c1_i32_184 = arith.constant 1 : i32
    %624 = vector.broadcast %c1_i32_184 : i32 to vector<1x1xi32>
    %625 = arith.select %588, %624, %619 : vector<1x1xi1>, vector<1x1xi32>
    %626 = vector.broadcast %c11_i32 : i32 to vector<1x128xi32>
    %627 = arith.cmpi eq, %20, %626 : vector<1x128xi32>
    %628 = vector.shape_cast %625 : vector<1x1xi32> to vector<1x1xi32>
    %629 = vector.broadcast %628 : vector<1x1xi32> to vector<1x128xi32>
    %630 = arith.select %627, %629, %579 : vector<1x128xi1>, vector<1x128xi32>
    %631 = vector.shape_cast %588 : vector<1x1xi1> to vector<1x1xi1>
    %632 = vector.broadcast %631 : vector<1x1xi1> to vector<1x32xi1>
    %633 = arith.select %632, %582, %607 : vector<1x32xi1>, vector<1x32xf32>
    %634 = vector.shape_cast %588 : vector<1x1xi1> to vector<1x1xi1>
    %635 = vector.broadcast %634 : vector<1x1xi1> to vector<1x32xi1>
    %636 = arith.select %635, %585, %623 : vector<1x32xi1>, vector<1x32xf32>
    %c1_i32_185 = arith.constant 1 : i32
    %637 = vector.broadcast %c1_i32_185 : i32 to vector<1x1xi32>
    %638 = arith.cmpi eq, %619, %637 : vector<1x1xi32>
    %639 = arith.ori %588, %638 : vector<1x1xi1>
    %c12_i32 = arith.constant 12 : i32
    %c0_186 = arith.constant 0 : index
    %c0_187 = arith.constant 0 : index
    %640 = vector.load %arg9[%c0_186, %c0_187] : memref<1x128xi32, #tpu.memory_space<vmem>>, vector<1x128xi32>
    tpu.vector_store %arg9[%c0_186, %c0_187], %630 {strides = array<i32>} : memref<1x128xi32, #tpu.memory_space<vmem>>, vector<1x128xi32>,
    return
  }
}

</mosaic_0001>

<llo_original>
// kernel: g2p_forward.1
$region0: #{g2p_forward.1}
  #allocation0 [shape = 'u32[]', space=smem, size = 0x4, offset = 0x4, fixed_abs, tag = 'smem constant byte address 0x4 - core index']
  #allocation1 [shape = 'u32[144,128]{1,0:T(1,128)}', space=vmem, size = 0x12000, scoped, tag = 'internal scratch']
  %s0 = inlined_call_operand.vmem [shape: s32[8,1], index: 0, kind: input, shape index: {}]
  %s1 = inlined_call_operand.vmem [shape: f32[32,32], index: 1, kind: input, shape index: {}]
  %s2 = inlined_call_operand.vmem [shape: f32[1,32], index: 2, kind: input, shape index: {}]
  %s3 = inlined_call_operand.hbm [shape: f32[32,32], index: 3, kind: input, shape index: {}]
  %s4 = inlined_call_operand.hbm [shape: f32[32,32], index: 4, kind: input, shape index: {}]
  %s5 = inlined_call_operand.hbm [shape: f32[32,32], index: 5, kind: input, shape index: {}]
  %s6 = inlined_call_operand.vmem [shape: f32[1,32], index: 6, kind: input, shape index: {}]
  %s7 = inlined_call_operand.hbm [shape: f32[32,32], index: 7, kind: input, shape index: {}]
  %s8 = inlined_call_operand.vmem [shape: f32[1,32], index: 8, kind: input, shape index: {}]
  %s9 = inlined_call_operand.vmem [shape: s32[1,128], index: 9, kind: output, shape index: {}]
  %s10 = sld [smem:[#allocation0]]
  $region62: #{g2p_forward.1} parent=0
    _
  %s12 = ssub.s32 1, %s10
  %s13 = scalar_select 0, %s12, %s10
  $region1: #{g2p_forward.1} parent=0
    #allocation2 [shape = 'u8[16384]{0}', space=vmem, size = 0x4000, scoped, tag = 'input window, operand 3, single buffered']
    #allocation3 [shape = 's32[1]{0}', space=sflag, size = 0x4, scoped, tag = 'scoped memory for g2p_forward.1']
    #allocation4 [shape = 'u8[16384]{0}', space=vmem, size = 0x4000, scoped, tag = 'input window, operand 4, single buffered']
    #allocation5 [shape = 's32[1]{0}', space=sflag, size = 0x4, scoped, tag = 'scoped memory for g2p_forward.1']
    #allocation6 [shape = 'u8[16384]{0}', space=vmem, size = 0x4000, scoped, tag = 'input window, operand 5, single buffered']
    #allocation7 [shape = 'u8[16384]{0}', space=vmem, size = 0x4000, scoped, tag = 'input window, operand 7, single buffered']
    #allocation8 [shape = 's32[1]{0}', space=sflag, size = 0x4, scoped, tag = 'scoped memory for g2p_forward.1']
    %14 = vsyncpa [#allocation3], 0
    %15 = vsyncpa [#allocation5], 0
    %16 = vsyncpa [#allocation8], 0
    // Predicated region
    $region2: #{g2p_forward.1} parent=1 // pred_check
      _
    $region3: #{g2p_forward.1} parent=1 // pred_check_branch
      %18 = sbr.rel (0) target = $region5
    $region4: #{g2p_forward.1} parent=1 // pred_region
      _
    $region5: #{g2p_forward.1} parent=1 // pred_fallthru
      _
    // Predicated region
    $region6: #{g2p_forward.1} parent=1 // pred_check
      _
    $region7: #{g2p_forward.1} parent=1 // pred_check_branch
      %20 = sbr.rel (0) target = $region9
    $region8: #{g2p_forward.1} parent=1 // pred_region
      _
    $region9: #{g2p_forward.1} parent=1 // pred_fallthru
      _
    // Predicated region
    $region10: #{g2p_forward.1} parent=1 // pred_check
      _
    $region11: #{g2p_forward.1} parent=1 // pred_check_branch
      %22 = sbr.rel (0) target = $region13
    $region12: #{g2p_forward.1} parent=1 // pred_region
      _
    $region13: #{g2p_forward.1} parent=1 // pred_fallthru
      _
    // Predicated region
    $region14: #{g2p_forward.1} parent=1 // pred_check
      _
    $region15: #{g2p_forward.1} parent=1 // pred_check_branch
      %24 = sbr.rel (0) target = $region17
    $region16: #{g2p_forward.1} parent=1 // pred_region
      %s26 = ssub.s32 512, 512
      %27 = vsyncadd [#allocation3], %s26
      %s28 = sshll.u32 [#allocation2], 4
      %s29 = int_to_ptr.vmem [resolvable:$true] %s28
      %34 = dma.hbm_to_vmem [thread:$0]  %s3, 512, %s29, [#allocation3], 128, 128, 8
    $region17: #{g2p_forward.1} parent=1 // pred_fallthru
      _
    // Predicated region
    $region18: #{g2p_forward.1} parent=1 // pred_check
      _
    $region19: #{g2p_forward.1} parent=1 // pred_check_branch
      %36 = sbr.rel (0) target = $region21
    $region20: #{g2p_forward.1} parent=1 // pred_region
      %s38 = ssub.s32 512, 512
      %39 = vsyncadd [#allocation5], %s38
      %s40 = sshll.u32 [#allocation4], 4
      %s41 = int_to_ptr.vmem [resolvable:$true] %s40
      %46 = dma.hbm_to_vmem [thread:$0]  %s4, 512, %s41, [#allocation5], 128, 128, 8
    $region21: #{g2p_forward.1} parent=1 // pred_fallthru
      _
    // Predicated region
    $region22: #{g2p_forward.1} parent=1 // pred_check
      _
    $region23: #{g2p_forward.1} parent=1 // pred_check_branch
      %48 = sbr.rel (0) target = $region25
    $region24: #{g2p_forward.1} parent=1 // pred_region
      %s50 = ssub.s32 512, 512
      %51 = vsyncadd [#allocation5], %s50
      %s52 = sshll.u32 [#allocation6], 4
      %s53 = int_to_ptr.vmem [resolvable:$true] %s52
      %58 = dma.hbm_to_vmem [thread:$0]  %s5, 512, %s53, [#allocation5], 128, 128, 8
    $region25: #{g2p_forward.1} parent=1 // pred_fallthru
      _
    // Predicated region
    $region26: #{g2p_forward.1} parent=1 // pred_check
      _
    $region27: #{g2p_forward.1} parent=1 // pred_check_branch
      %60 = sbr.rel (0) target = $region29
    $region28: #{g2p_forward.1} parent=1 // pred_region
      _
    $region29: #{g2p_forward.1} parent=1 // pred_fallthru
      _
    // Predicated region
    $region30: #{g2p_forward.1} parent=1 // pred_check
      _
    $region31: #{g2p_forward.1} parent=1 // pred_check_branch
      %62 = sbr.rel (0) target = $region33
    $region32: #{g2p_forward.1} parent=1 // pred_region
      %s64 = ssub.s32 512, 512
      %65 = vsyncadd [#allocation8], %s64
      %s66 = sshll.u32 [#allocation7], 4
      %s67 = int_to_ptr.vmem [resolvable:$true] %s66
      %72 = dma.hbm_to_vmem [thread:$0]  %s7, 512, %s67, [#allocation8], 128, 128, 8
    $region33: #{g2p_forward.1} parent=1 // pred_fallthru
      _
    // Predicated region
    $region34: #{g2p_forward.1} parent=1 // pred_check
      _
    $region35: #{g2p_forward.1} parent=1 // pred_check_branch
      %74 = sbr.rel (0) target = $region37
    $region36: #{g2p_forward.1} parent=1 // pred_region
      _
    $region37: #{g2p_forward.1} parent=1 // pred_fallthru
      _
    // Predicated region
    $region38: #{g2p_forward.1} parent=1 // pred_check
      _
    $region39: #{g2p_forward.1} parent=1 // pred_check_branch
      %76 = sbr.rel (0) target = $region41
    $region40: #{g2p_forward.1} parent=1 // pred_region
      %77 = dma.done [#allocation3], 512
    $region41: #{g2p_forward.1} parent=1 // pred_fallthru
      _
    // Predicated region
    $region42: #{g2p_forward.1} parent=1 // pred_check
      _
    $region43: #{g2p_forward.1} parent=1 // pred_check_branch
      %79 = sbr.rel (0) target = $region45
    $region44: #{g2p_forward.1} parent=1 // pred_region
      %80 = dma.done [#allocation5], 512
    $region45: #{g2p_forward.1} parent=1 // pred_fallthru
      _
    // Predicated region
    $region46: #{g2p_forward.1} parent=1 // pred_check
      _
    $region47: #{g2p_forward.1} parent=1 // pred_check_branch
      %82 = sbr.rel (0) target = $region49
    $region48: #{g2p_forward.1} parent=1 // pred_region
      %83 = dma.done [#allocation5], 512
    $region49: #{g2p_forward.1} parent=1 // pred_fallthru
      _
    // Predicated region
    $region50: #{g2p_forward.1} parent=1 // pred_check
      _
    $region51: #{g2p_forward.1} parent=1 // pred_check_branch
      %85 = sbr.rel (0) target = $region53
    $region52: #{g2p_forward.1} parent=1 // pred_region
      %86 = dma.done [#allocation8], 512
    $region53: #{g2p_forward.1} parent=1 // pred_fallthru
      _
    %v87 = vld [vmem:[%s0] sm:$0xff]
    %v88 = vlaneseq
    %v89 = vand.u32 %v88, 127
    %90 = vset.pattern.permute.xlu0 0
    %91 = vperm.xlu0 %90, %v87
    %v92 = vpop.permute.xlu0 %91
    %vm93 = vcmp.eq.s32.totalorder %v92, %v89
    %v94 = vsel %vm93, 1, 0
    %v95 = vcvt.s32.f32 %v94
    %v96 = vld [vmem:[%s1] sm:$0xff]
    %v97 = vld [vmem:[%s1 + $0x8] sm:$0xff]
    %v98 = vld [vmem:[%s1 + $0x10] sm:$0xff]
    %v99 = vld [vmem:[%s1 + $0x18] sm:$0xff]
    %v100 = vld [vmem:[%s2] sm:$0x1]
    %v102 = vlaneseq
    %v103 = vshrl.u32 %v102, 7
    %v104 = vsub.s32 0, %v103
    %v105 = vrot.slane %v100, %v104
    %vm107 = vcmask 261120
    %v109 = vsel %vm107, %v95, 0
    %111 = vmatprep.subr.mxu0 0.0
    %112 = vmatpush1.msra.mxu0 %v96
    %113 = vmatprep.subr.mxu0 0.0
    %114 = vmatpush1.msra.mxu0 %v97
    %115 = vmatprep.subr.mxu0 0.0
    %116 = vmatpush1.msra.mxu0 %v98
    %117 = vmatprep.subr.mxu0 0.0
    %118 = vmatpush1.msra.mxu0 %v99
    %119 = vmatprep.subr.mxu0 0.0
    %120 = vmatpush1.msra.mxu0 0.0
    %121 = vmatprep.subr.mxu0 0.0
    %122 = vmatpush1.msra.mxu0 0.0
    %123 = vmatprep.subr.mxu0 0.0
    %124 = vmatpush1.msra.mxu0 0.0
    %125 = vmatprep.subr.mxu0 0.0
    %126 = vmatpush1.msra.mxu0 0.0
    %127 = vmatprep.subr.mxu0 0.0
    %128 = vmatpush1.msra.mxu0 0.0
    %129 = vmatprep.subr.mxu0 0.0
    %130 = vmatpush1.msra.mxu0 0.0
    %131 = vmatprep.subr.mxu0 0.0
    %132 = vmatpush1.msra.mxu0 0.0
    %133 = vmatprep.subr.mxu0 0.0
    %134 = vmatpush1.msra.mxu0 0.0
    %135 = vmatprep.subr.mxu0 0.0
    %136 = vmatpush1.msra.mxu0 0.0
    %137 = vmatprep.subr.mxu0 0.0
    %138 = vmatpush1.msra.mxu0 0.0
    %139 = vmatprep.subr.mxu0 0.0
    %140 = vmatpush1.msra.mxu0 0.0
    %141 = vmatprep.subr.mxu0 0.0
    %142 = vmatpush1.msra.mxu0 0.0
    %143 = vmatprep.subr.mxu0 0.0
    %144 = vmatpush1.msra.mxu0 0.0
    %145 = vmatprep.subr.mxu0 0.0
    %146 = vmatpush1.msra.mxu0 0.0
    %147 = vmatprep.subr.mxu0 0.0
    %148 = vmatpush1.msra.mxu0 0.0
    %149 = vmatprep.subr.mxu0 0.0
    %150 = vmatpush1.msra.mxu0 0.0
    %151 = vmatprep.subr.mxu0 0.0
    %152 = vmatpush1.msra.mxu0 0.0
    %153 = vmatprep.subr.mxu0 0.0
    %154 = vmatpush1.msra.mxu0 0.0
    %155 = vmatprep.subr.mxu0 0.0
    %156 = vmatpush1.msra.mxu0 0.0
    %157 = vmatprep.subr.mxu0 0.0
    %158 = vmatpush1.msra.mxu0 0.0
    %159 = vmatprep.subr.mxu0 0.0
    %160 = vmatpush1.msra.mxu0 0.0
    %161 = vmatprep.subr.mxu0 0.0
    %162 = vmatpush1.msra.mxu0 0.0
    %163 = vmatprep.subr.mxu0 0.0
    %164 = vmatpush1.msra.mxu0 0.0
    %165 = vmatprep.subr.mxu0 0.0
    %166 = vmatpush1.msra.mxu0 0.0
    %167 = vmatprep.subr.mxu0 0.0
    %168 = vmatpush1.msra.mxu0 0.0
    %169 = vmatprep.subr.mxu0 0.0
    %170 = vmatpush1.msra.mxu0 0.0
    %171 = vmatprep.subr.mxu0 0.0
    %172 = vmatpush1.msra.mxu0 0.0
    %173 = vmatprep.subr.mxu0 0.0
    %174 = vmatpush1.msra.mxu0 0.0
    %175 = vmatprep.mubr.f32.mxu0 0.0
    %176 = vmatmul.mubr.f32.gmra.mrb[0].mxu0 %v109
    %v177 = vpop.f32.mrb[0].mxu0
    %v178 = vadd.f32 %v105, %v177
    %v179 = vpop.f32.mrb[0].mxu0
    %180 = vdwg.mxu0
    %v181 = vtanh.pop %v178
    %v182 = vld [vmem:[#allocation2] sm:$0xff]
    %v183 = vld [vmem:[#allocation2 + $0x8] sm:$0xff]
    %v184 = vld [vmem:[#allocation2 + $0x10] sm:$0xff]
    %v185 = vld [vmem:[#allocation2 + $0x18] sm:$0xff]
    %v186 = vld [vmem:[#allocation4] sm:$0xff]
    %v187 = vld [vmem:[#allocation4 + $0x8] sm:$0xff]
    %v188 = vld [vmem:[#allocation4 + $0x10] sm:$0xff]
    %v189 = vld [vmem:[#allocation4 + $0x18] sm:$0xff]
    %v190 = vld [vmem:[#allocation6] sm:$0xff]
    %v191 = vld [vmem:[#allocation6 + $0x8] sm:$0xff]
    %v192 = vld [vmem:[#allocation6 + $0x10] sm:$0xff]
    %v193 = vld [vmem:[#allocation6 + $0x18] sm:$0xff]
    %v194 = vld [vmem:[%s6] sm:$0x1]
    %v195 = vld [vmem:[#allocation7] sm:$0xff]
    %v196 = vld [vmem:[#allocation7 + $0x8] sm:$0xff]
    %v197 = vld [vmem:[#allocation7 + $0x10] sm:$0xff]
    %v198 = vld [vmem:[#allocation7 + $0x18] sm:$0xff]
    %v199 = vld [vmem:[%s8] sm:$0x1]
    %vm200 = vcmp.eq.s32.totalorder %v89, 0
    %v201 = vsel %vm200, 1, 0
    %v202 = vcvt.s32.f32 %v201
    %v204 = vsel %vm107, 1.0, 0
    %206 = vmatprep.subr.mxu0 0.0
    %207 = vmatpush1.msra.mxu0 %v186
    %208 = vmatprep.subr.mxu0 0.0
    %209 = vmatpush1.msra.mxu0 %v187
    %210 = vmatprep.subr.mxu0 0.0
    %211 = vmatpush1.msra.mxu0 %v188
    %212 = vmatprep.subr.mxu0 0.0
    %213 = vmatpush1.msra.mxu0 %v189
    %214 = vmatprep.subr.mxu0 0.0
    %215 = vmatpush1.msra.mxu0 0.0
    %216 = vmatprep.subr.mxu0 0.0
    %217 = vmatpush1.msra.mxu0 0.0
    %218 = vmatprep.subr.mxu0 0.0
    %219 = vmatpush1.msra.mxu0 0.0
    %220 = vmatprep.subr.mxu0 0.0
    %221 = vmatpush1.msra.mxu0 0.0
    %222 = vmatprep.subr.mxu0 0.0
    %223 = vmatpush1.msra.mxu0 0.0
    %224 = vmatprep.subr.mxu0 0.0
    %225 = vmatpush1.msra.mxu0 0.0
    %226 = vmatprep.subr.mxu0 0.0
    %227 = vmatpush1.msra.mxu0 0.0
    %228 = vmatprep.subr.mxu0 0.0
    %229 = vmatpush1.msra.mxu0 0.0
    %230 = vmatprep.subr.mxu0 0.0
    %231 = vmatpush1.msra.mxu0 0.0
    %232 = vmatprep.subr.mxu0 0.0
    %233 = vmatpush1.msra.mxu0 0.0
    %234 = vmatprep.subr.mxu0 0.0
    %235 = vmatpush1.msra.mxu0 0.0
    %236 = vmatprep.subr.mxu0 0.0
    %237 = vmatpush1.msra.mxu0 0.0
    %238 = vmatprep.subr.mxu0 0.0
    %239 = vmatpush1.msra.mxu0 0.0
    %240 = vmatprep.subr.mxu0 0.0
    %241 = vmatpush1.msra.mxu0 0.0
    %242 = vmatprep.subr.mxu0 0.0
    %243 = vmatpush1.msra.mxu0 0.0
    %244 = vmatprep.subr.mxu0 0.0
    %245 = vmatpush1.msra.mxu0 0.0
    %246 = vmatprep.subr.mxu0 0.0
    %247 = vmatpush1.msra.mxu0 0.0
    %248 = vmatprep.subr.mxu0 0.0
    %249 = vmatpush1.msra.mxu0 0.0
    %250 = vmatprep.subr.mxu0 0.0
    %251 = vmatpush1.msra.mxu0 0.0
    %252 = vmatprep.subr.mxu0 0.0
    %253 = vmatpush1.msra.mxu0 0.0
    %254 = vmatprep.subr.mxu0 0.0
    %255 = vmatpush1.msra.mxu0 0.0
    %256 = vmatprep.subr.mxu0 0.0
    %257 = vmatpush1.msra.mxu0 0.0
    %258 = vmatprep.subr.mxu0 0.0
    %259 = vmatpush1.msra.mxu0 0.0
    %260 = vmatprep.subr.mxu0 0.0
    %261 = vmatpush1.msra.mxu0 0.0
    %262 = vmatprep.subr.mxu0 0.0
    %263 = vmatpush1.msra.mxu0 0.0
    %264 = vmatprep.subr.mxu0 0.0
    %265 = vmatpush1.msra.mxu0 0.0
    %266 = vmatprep.subr.mxu0 0.0
    %267 = vmatpush1.msra.mxu0 0.0
    %268 = vmatprep.subr.mxu0 0.0
    %269 = vmatpush1.msra.mxu0 0.0
    %270 = vmatprep.mubr.f32.mxu0 0.0
    %271 = vmatmul.mubr.f32.gmra.mrb[0].mxu0 %v204
    %v272 = vpop.f32.mrb[0].mxu0
    %v273 = vadd.f32 0.0, %v272
    %v274 = vpop.f32.mrb[0].mxu0
    %275 = vdwg.mxu0
    %v277 = vsel %vm107, %v202, 0
    %279 = vmatprep.subr.mxu0 0.0
    %280 = vmatpush1.msra.mxu0 %v182
    %281 = vmatprep.subr.mxu0 0.0
    %282 = vmatpush1.msra.mxu0 %v183
    %283 = vmatprep.subr.mxu0 0.0
    %284 = vmatpush1.msra.mxu0 %v184
    %285 = vmatprep.subr.mxu0 0.0
    %286 = vmatpush1.msra.mxu0 %v185
    %287 = vmatprep.subr.mxu0 0.0
    %288 = vmatpush1.msra.mxu0 0.0
    %289 = vmatprep.subr.mxu0 0.0
    %290 = vmatpush1.msra.mxu0 0.0
    %291 = vmatprep.subr.mxu0 0.0
    %292 = vmatpush1.msra.mxu0 0.0
    %293 = vmatprep.subr.mxu0 0.0
    %294 = vmatpush1.msra.mxu0 0.0
    %295 = vmatprep.subr.mxu0 0.0
    %296 = vmatpush1.msra.mxu0 0.0
    %297 = vmatprep.subr.mxu0 0.0
    %298 = vmatpush1.msra.mxu0 0.0
    %299 = vmatprep.subr.mxu0 0.0
    %300 = vmatpush1.msra.mxu0 0.0
    %301 = vmatprep.subr.mxu0 0.0
    %302 = vmatpush1.msra.mxu0 0.0
    %303 = vmatprep.subr.mxu0 0.0
    %304 = vmatpush1.msra.mxu0 0.0
    %305 = vmatprep.subr.mxu0 0.0
    %306 = vmatpush1.msra.mxu0 0.0
    %307 = vmatprep.subr.mxu0 0.0
    %308 = vmatpush1.msra.mxu0 0.0
    %309 = vmatprep.subr.mxu0 0.0
    %310 = vmatpush1.msra.mxu0 0.0
    %311 = vmatprep.subr.mxu0 0.0
    %312 = vmatpush1.msra.mxu0 0.0
    %313 = vmatprep.subr.mxu0 0.0
    %314 = vmatpush1.msra.mxu0 0.0
    %315 = vmatprep.subr.mxu0 0.0
    %316 = vmatpush1.msra.mxu0 0.0
    %317 = vmatprep.subr.mxu0 0.0
    %318 = vmatpush1.msra.mxu0 0.0
    %319 = vmatprep.subr.mxu0 0.0
    %320 = vmatpush1.msra.mxu0 0.0
    %321 = vmatprep.subr.mxu0 0.0
    %322 = vmatpush1.msra.mxu0 0.0
    %323 = vmatprep.subr.mxu0 0.0
    %324 = vmatpush1.msra.mxu0 0.0
    %325 = vmatprep.subr.mxu0 0.0
    %326 = vmatpush1.msra.mxu0 0.0
    %327 = vmatprep.subr.mxu0 0.0
    %328 = vmatpush1.msra.mxu0 0.0
    %329 = vmatprep.subr.mxu0 0.0
    %330 = vmatpush1.msra.mxu0 0.0
    %331 = vmatprep.subr.mxu0 0.0
    %332 = vmatpush1.msra.mxu0 0.0
    %333 = vmatprep.subr.mxu0 0.0
    %334 = vmatpush1.msra.mxu0 0.0
    %335 = vmatprep.subr.mxu0 0.0
    %336 = vmatpush1.msra.mxu0 0.0
    %337 = vmatprep.subr.mxu0 0.0
    %338 = vmatpush1.msra.mxu0 0.0
    %339 = vmatprep.subr.mxu0 0.0
    %340 = vmatpush1.msra.mxu0 0.0
    %341 = vmatprep.subr.mxu0 0.0
    %342 = vmatpush1.msra.mxu0 0.0
    %343 = vmatprep.mubr.f32.mxu0 0.0
    %344 = vmatmul.mubr.f32.gmra.mrb[0].mxu0 %v277
    %v345 = vpop.f32.mrb[0].mxu0
    %v346 = vadd.f32 %v273, %v345
    %v347 = vpop.f32.mrb[0].mxu0
    %348 = vdwg.mxu0
    %v349 = vadd.f32 %v346, %v194
    %v351 = vsel %vm107, %v181, 0
    %353 = vmatprep.subr.mxu0 0.0
    %354 = vmatpush1.xpose.msra.mxu0 %v351
    %355 = vmatprep.subr.mxu0 0.0
    %356 = vmatpush1.xpose.msra.mxu0 0.0
    %357 = vmatprep.subr.mxu0 0.0
    %358 = vmatpush1.xpose.msra.mxu0 0.0
    %359 = vmatprep.subr.mxu0 0.0
    %360 = vmatpush1.xpose.msra.mxu0 0.0
    %361 = vmatprep.subr.mxu0 0.0
    %362 = vmatpush1.xpose.msra.mxu0 0.0
    %363 = vmatprep.subr.mxu0 0.0
    %364 = vmatpush1.xpose.msra.mxu0 0.0
    %365 = vmatprep.subr.mxu0 0.0
    %366 = vmatpush1.xpose.msra.mxu0 0.0
    %367 = vmatprep.subr.mxu0 0.0
    %368 = vmatpush1.xpose.msra.mxu0 0.0
    %369 = vmatprep.subr.mxu0 0.0
    %370 = vmatpush1.xpose.msra.mxu0 0.0
    %371 = vmatprep.subr.mxu0 0.0
    %372 = vmatpush1.xpose.msra.mxu0 0.0
    %373 = vmatprep.subr.mxu0 0.0
    %374 = vmatpush1.xpose.msra.mxu0 0.0
    %375 = vmatprep.subr.mxu0 0.0
    %376 = vmatpush1.xpose.msra.mxu0 0.0
    %377 = vmatprep.subr.mxu0 0.0
    %378 = vmatpush1.xpose.msra.mxu0 0.0
    %379 = vmatprep.subr.mxu0 0.0
    %380 = vmatpush1.xpose.msra.mxu0 0.0
    %381 = vmatprep.subr.mxu0 0.0
    %382 = vmatpush1.xpose.msra.mxu0 0.0
    %383 = vmatprep.subr.mxu0 0.0
    %384 = vmatpush1.xpose.msra.mxu0 0.0
    %385 = vmatprep.subr.mxu0 0.0
    %386 = vmatpush1.xpose.msra.mxu0 0.0
    %387 = vmatprep.subr.mxu0 0.0
    %388 = vmatpush1.xpose.msra.mxu0 0.0
    %389 = vmatprep.subr.mxu0 0.0
    %390 = vmatpush1.xpose.msra.mxu0 0.0
    %391 = vmatprep.subr.mxu0 0.0
    %392 = vmatpush1.xpose.msra.mxu0 0.0
    %393 = vmatprep.subr.mxu0 0.0
    %394 = vmatpush1.xpose.msra.mxu0 0.0
    %395 = vmatprep.subr.mxu0 0.0
    %396 = vmatpush1.xpose.msra.mxu0 0.0
    %397 = vmatprep.subr.mxu0 0.0
    %398 = vmatpush1.xpose.msra.mxu0 0.0
    %399 = vmatprep.subr.mxu0 0.0
    %400 = vmatpush1.xpose.msra.mxu0 0.0
    %401 = vmatprep.subr.mxu0 0.0
    %402 = vmatpush1.xpose.msra.mxu0 0.0
    %403 = vmatprep.subr.mxu0 0.0
    %404 = vmatpush1.xpose.msra.mxu0 0.0
    %405 = vmatprep.subr.mxu0 0.0
    %406 = vmatpush1.xpose.msra.mxu0 0.0
    %407 = vmatprep.subr.mxu0 0.0
    %408 = vmatpush1.xpose.msra.mxu0 0.0
    %409 = vmatprep.subr.mxu0 0.0
    %410 = vmatpush1.xpose.msra.mxu0 0.0
    %411 = vmatprep.subr.mxu0 0.0
    %412 = vmatpush1.xpose.msra.mxu0 0.0
    %413 = vmatprep.subr.mxu0 0.0
    %414 = vmatpush1.xpose.msra.mxu0 0.0
    %415 = vmatprep.subr.mxu0 0.0
    %416 = vmatpush1.xpose.msra.mxu0 0.0
    %417 = vmatprep.mubr.f32.mxu0 0.0
    %418 = vmatmul.mubr.f32.gmra.mrb[0].mxu0 %v204
    %v419 = vpop.f32.mrb[0].mxu0
    %v420 = vadd.f32 0.0, %v419
    %v421 = vpop.f32.mrb[0].mxu0
    %422 = vdwg.mxu0
    %vm423 = vcmask 57344
    %v424 = vsel %vm423, %v420, -inf
    %425 = vmax.xlane.f32.xlu0 %v424
    %v426 = vpop.xlane.xlu0 %425
    %v427 = vsub.f32 %v420, %v426
    %v428 = vmul.f32 %v427, 1.442695
    %v429 = vpow.pop %v428
    %v430 = vsel %vm423, %v429, 0.0
    %431 = vadd.xlane.f32.xlu0 %v430
    %v432 = vpop.xlane.xlu0 %431
    %v433 = vrcp.pop %v432
    %v434 = vmul.f32 %v429, %v433
    %vm435 = vcmask 64512
    %v437 = vsel %vm435, %v434, 0
    %439 = vmatprep.subr.mxu0 0.0
    %440 = vmatpush1.msra.mxu0 %v181
    %441 = vmatprep.subr.mxu0 0.0
    %442 = vmatpush1.msra.mxu0 0.0
    %443 = vmatprep.subr.mxu0 0.0
    %444 = vmatpush1.msra.mxu0 0.0
    %445 = vmatprep.subr.mxu0 0.0
    %446 = vmatpush1.msra.mxu0 0.0
    %447 = vmatprep.subr.mxu0 0.0
    %448 = vmatpush1.msra.mxu0 0.0
    %449 = vmatprep.subr.mxu0 0.0
    %450 = vmatpush1.msra.mxu0 0.0
    %451 = vmatprep.subr.mxu0 0.0
    %452 = vmatpush1.msra.mxu0 0.0
    %453 = vmatprep.subr.mxu0 0.0
    %454 = vmatpush1.msra.mxu0 0.0
    %455 = vmatprep.subr.mxu0 0.0
    %456 = vmatpush1.msra.mxu0 0.0
    %457 = vmatprep.subr.mxu0 0.0
    %458 = vmatpush1.msra.mxu0 0.0
    %459 = vmatprep.subr.mxu0 0.0
    %460 = vmatpush1.msra.mxu0 0.0
    %461 = vmatprep.subr.mxu0 0.0
    %462 = vmatpush1.msra.mxu0 0.0
    %463 = vmatprep.subr.mxu0 0.0
    %464 = vmatpush1.msra.mxu0 0.0
    %465 = vmatprep.subr.mxu0 0.0
    %466 = vmatpush1.msra.mxu0 0.0
    %467 = vmatprep.subr.mxu0 0.0
    %468 = vmatpush1.msra.mxu0 0.0
    %469 = vmatprep.subr.mxu0 0.0
    %470 = vmatpush1.msra.mxu0 0.0
    %471 = vmatprep.subr.mxu0 0.0
    %472 = vmatpush1.msra.mxu0 0.0
    %473 = vmatprep.subr.mxu0 0.0
    %474 = vmatpush1.msra.mxu0 0.0
    %475 = vmatprep.subr.mxu0 0.0
    %476 = vmatpush1.msra.mxu0 0.0
    %477 = vmatprep.subr.mxu0 0.0
    %478 = vmatpush1.msra.mxu0 0.0
    %479 = vmatprep.subr.mxu0 0.0
    %480 = vmatpush1.msra.mxu0 0.0
    %481 = vmatprep.subr.mxu0 0.0
    %482 = vmatpush1.msra.mxu0 0.0
    %483 = vmatprep.subr.mxu0 0.0
    %484 = vmatpush1.msra.mxu0 0.0
    %485 = vmatprep.subr.mxu0 0.0
    %486 = vmatpush1.msra.mxu0 0.0
    %487 = vmatprep.subr.mxu0 0.0
    %488 = vmatpush1.msra.mxu0 0.0
    %489 = vmatprep.subr.mxu0 0.0
    %490 = vmatpush1.msra.mxu0 0.0
    %491 = vmatprep.subr.mxu0 0.0
    %492 = vmatpush1.msra.mxu0 0.0
    %493 = vmatprep.subr.mxu0 0.0
    %494 = vmatpush1.msra.mxu0 0.0
    %495 = vmatprep.subr.mxu0 0.0
    %496 = vmatpush1.msra.mxu0 0.0
    %497 = vmatprep.subr.mxu0 0.0
    %498 = vmatpush1.msra.mxu0 0.0
    %499 = vmatprep.subr.mxu0 0.0
    %500 = vmatpush1.msra.mxu0 0.0
    %501 = vmatprep.subr.mxu0 0.0
    %502 = vmatpush1.msra.mxu0 0.0
    %503 = vmatprep.mubr.f32.mxu0 0.0
    %504 = vmatmul.mubr.f32.gmra.mrb[0].mxu0 %v437
    %v505 = vpop.f32.mrb[0].mxu0
    %v506 = vadd.f32 0.0, %v505
    %v507 = vpop.f32.mrb[0].mxu0
    %508 = vdwg.mxu0
    %v510 = vsel %vm107, %v506, 0
    %512 = vmatprep.subr.mxu0 0.0
    %513 = vmatpush1.msra.mxu0 %v190
    %514 = vmatprep.subr.mxu0 0.0
    %515 = vmatpush1.msra.mxu0 %v191
    %516 = vmatprep.subr.mxu0 0.0
    %517 = vmatpush1.msra.mxu0 %v192
    %518 = vmatprep.subr.mxu0 0.0
    %519 = vmatpush1.msra.mxu0 %v193
    %520 = vmatprep.subr.mxu0 0.0
    %521 = vmatpush1.msra.mxu0 0.0
    %522 = vmatprep.subr.mxu0 0.0
    %523 = vmatpush1.msra.mxu0 0.0
    %524 = vmatprep.subr.mxu0 0.0
    %525 = vmatpush1.msra.mxu0 0.0
    %526 = vmatprep.subr.mxu0 0.0
    %527 = vmatpush1.msra.mxu0 0.0
    %528 = vmatprep.subr.mxu0 0.0
    %529 = vmatpush1.msra.mxu0 0.0
    %530 = vmatprep.subr.mxu0 0.0
    %531 = vmatpush1.msra.mxu0 0.0
    %532 = vmatprep.subr.mxu0 0.0
    %533 = vmatpush1.msra.mxu0 0.0
    %534 = vmatprep.subr.mxu0 0.0
    %535 = vmatpush1.msra.mxu0 0.0
    %536 = vmatprep.subr.mxu0 0.0
    %537 = vmatpush1.msra.mxu0 0.0
    %538 = vmatprep.subr.mxu0 0.0
    %539 = vmatpush1.msra.mxu0 0.0
    %540 = vmatprep.subr.mxu0 0.0
    %541 = vmatpush1.msra.mxu0 0.0
    %542 = vmatprep.subr.mxu0 0.0
    %543 = vmatpush1.msra.mxu0 0.0
    %544 = vmatprep.subr.mxu0 0.0
    %545 = vmatpush1.msra.mxu0 0.0
    %546 = vmatprep.subr.mxu0 0.0
    %547 = vmatpush1.msra.mxu0 0.0
    %548 = vmatprep.subr.mxu0 0.0
    %549 = vmatpush1.msra.mxu0 0.0
    %550 = vmatprep.subr.mxu0 0.0
    %551 = vmatpush1.msra.mxu0 0.0
    %552 = vmatprep.subr.mxu0 0.0
    %553 = vmatpush1.msra.mxu0 0.0
    %554 = vmatprep.subr.mxu0 0.0
    %555 = vmatpush1.msra.mxu0 0.0
    %556 = vmatprep.subr.mxu0 0.0
    %557 = vmatpush1.msra.mxu0 0.0
    %558 = vmatprep.subr.mxu0 0.0
    %559 = vmatpush1.msra.mxu0 0.0
    %560 = vmatprep.subr.mxu0 0.0
    %561 = vmatpush1.msra.mxu0 0.0
    %562 = vmatprep.subr.mxu0 0.0
    %563 = vmatpush1.msra.mxu0 0.0
    %564 = vmatprep.subr.mxu0 0.0
    %565 = vmatpush1.msra.mxu0 0.0
    %566 = vmatprep.subr.mxu0 0.0
    %567 = vmatpush1.msra.mxu0 0.0
    %568 = vmatprep.subr.mxu0 0.0
    %569 = vmatpush1.msra.mxu0 0.0
    %570 = vmatprep.subr.mxu0 0.0
    %571 = vmatpush1.msra.mxu0 0.0
    %572 = vmatprep.subr.mxu0 0.0
    %573 = vmatpush1.msra.mxu0 0.0
    %574 = vmatprep.subr.mxu0 0.0
    %575 = vmatpush1.msra.mxu0 0.0
    %576 = vmatprep.mubr.f32.mxu0 0.0
    %577 = vmatmul.mubr.f32.gmra.mrb[0].mxu0 %v510
    %v578 = vpop.f32.mrb[0].mxu0
    %v579 = vadd.f32 0.0, %v578
    %v580 = vpop.f32.mrb[0].mxu0
    %581 = vdwg.mxu0
    %v582 = vadd.f32 %v349, %v579
    %v583 = vtanh.pop %v582
    %v585 = vsel %vm107, %v583, 0
    %587 = vmatprep.subr.mxu0 0.0
    %588 = vmatpush1.msra.mxu0 %v195
    %589 = vmatprep.subr.mxu0 0.0
    %590 = vmatpush1.msra.mxu0 %v196
    %591 = vmatprep.subr.mxu0 0.0
    %592 = vmatpush1.msra.mxu0 %v197
    %593 = vmatprep.subr.mxu0 0.0
    %594 = vmatpush1.msra.mxu0 %v198
    %595 = vmatprep.subr.mxu0 0.0
    %596 = vmatpush1.msra.mxu0 0.0
    %597 = vmatprep.subr.mxu0 0.0
    %598 = vmatpush1.msra.mxu0 0.0
    %599 = vmatprep.subr.mxu0 0.0
    %600 = vmatpush1.msra.mxu0 0.0
    %601 = vmatprep.subr.mxu0 0.0
    %602 = vmatpush1.msra.mxu0 0.0
    %603 = vmatprep.subr.mxu0 0.0
    %604 = vmatpush1.msra.mxu0 0.0
    %605 = vmatprep.subr.mxu0 0.0
    %606 = vmatpush1.msra.mxu0 0.0
    %607 = vmatprep.subr.mxu0 0.0
    %608 = vmatpush1.msra.mxu0 0.0
    %609 = vmatprep.subr.mxu0 0.0
    %610 = vmatpush1.msra.mxu0 0.0
    %611 = vmatprep.subr.mxu0 0.0
    %612 = vmatpush1.msra.mxu0 0.0
    %613 = vmatprep.subr.mxu0 0.0
    %614 = vmatpush1.msra.mxu0 0.0
    %615 = vmatprep.subr.mxu0 0.0
    %616 = vmatpush1.msra.mxu0 0.0
    %617 = vmatprep.subr.mxu0 0.0
    %618 = vmatpush1.msra.mxu0 0.0
    %619 = vmatprep.subr.mxu0 0.0
    %620 = vmatpush1.msra.mxu0 0.0
    %621 = vmatprep.subr.mxu0 0.0
    %622 = vmatpush1.msra.mxu0 0.0
    %623 = vmatprep.subr.mxu0 0.0
    %624 = vmatpush1.msra.mxu0 0.0
    %625 = vmatprep.subr.mxu0 0.0
    %626 = vmatpush1.msra.mxu0 0.0
    %627 = vmatprep.subr.mxu0 0.0
    %628 = vmatpush1.msra.mxu0 0.0
    %629 = vmatprep.subr.mxu0 0.0
    %630 = vmatpush1.msra.mxu0 0.0
    %631 = vmatprep.subr.mxu0 0.0
    %632 = vmatpush1.msra.mxu0 0.0
    %633 = vmatprep.subr.mxu0 0.0
    %634 = vmatpush1.msra.mxu0 0.0
    %635 = vmatprep.subr.mxu0 0.0
    %636 = vmatpush1.msra.mxu0 0.0
    %637 = vmatprep.subr.mxu0 0.0
    %638 = vmatpush1.msra.mxu0 0.0
    %639 = vmatprep.subr.mxu0 0.0
    %640 = vmatpush1.msra.mxu0 0.0
    %641 = vmatprep.subr.mxu0 0.0
    %642 = vmatpush1.msra.mxu0 0.0
    %643 = vmatprep.subr.mxu0 0.0
    %644 = vmatpush1.msra.mxu0 0.0
    %645 = vmatprep.subr.mxu0 0.0
    %646 = vmatpush1.msra.mxu0 0.0
    %647 = vmatprep.subr.mxu0 0.0
    %648 = vmatpush1.msra.mxu0 0.0
    %649 = vmatprep.subr.mxu0 0.0
    %650 = vmatpush1.msra.mxu0 0.0
    %651 = vmatprep.mubr.f32.mxu0 0.0
    %652 = vmatmul.mubr.f32.gmra.mrb[0].mxu0 %v585
    %v653 = vpop.f32.mrb[0].mxu0
    %v654 = vadd.f32 %v199, %v653
    %v655 = vpop.f32.mrb[0].mxu0
    %656 = vdwg.mxu0
    %vm657 = vcmask 253952
    %v658 = vsel %vm657, %v654, -inf
    %659 = vmax.xlane.f32.xlu0 %v658
    %v660 = vpop.xlane.xlu0 %659
    %vm661 = vcmp.eq.f32.partialorder %v654, %v660
    %v662 = vsel %vm661, %v89, 32
    %v663 = vsel %vm657, %v662, 2147483647
    %v664 = vand.u32 %v663, 65535
    %v665 = vshra.s32 %v663, 16
    %v666 = vcvt.s32.f32 %v664
    %v667 = vcvt.s32.f32 %v665
    %668 = vmin.xlane.f32.xlu0 %v667
    %v669 = vpop.xlane.xlu0 %668
    %vm670 = vcmp.eq.f32.partialorder %v667, %v669
    %v671 = vsel %vm670, %v666, inf
    %672 = vmin.xlane.f32.xlu0 %v671
    %v673 = vpop.xlane.xlu0 %672
    %v674 = vcvt.f32.s32 %v673
    %v675 = vcvt.f32.s32 %v669
    %v676 = vshll.u32 %v675, 16
    %v677 = vadd.s32 %v676, %v674
    %vm678 = vcmp.lt.s32.totalorder %v677, 31
    %v679 = vsel %vm678, %v677, 31
    %vm680 = vcmp.eq.s32.totalorder %v89, %v679
    %v681 = vsel %vm680, 1, 0
    %v682 = vcvt.s32.f32 %v681
    %v683 = vsel %vm200, %v679, 1
    %vm684 = vcmp.eq.s32.totalorder %v679, 1
    %685 = vmatprep.subr.mxu0 0.0
    %686 = vmatpush1.msra.mxu0 %v186
    %687 = vmatprep.subr.mxu0 0.0
    %688 = vmatpush1.msra.mxu0 %v187
    %689 = vmatprep.subr.mxu0 0.0
    %690 = vmatpush1.msra.mxu0 %v188
    %691 = vmatprep.subr.mxu0 0.0
    %692 = vmatpush1.msra.mxu0 %v189
    %693 = vmatprep.subr.mxu0 0.0
    %694 = vmatpush1.msra.mxu0 0.0
    %695 = vmatprep.subr.mxu0 0.0
    %696 = vmatpush1.msra.mxu0 0.0
    %697 = vmatprep.subr.mxu0 0.0
    %698 = vmatpush1.msra.mxu0 0.0
    %699 = vmatprep.subr.mxu0 0.0
    %700 = vmatpush1.msra.mxu0 0.0
    %701 = vmatprep.subr.mxu0 0.0
    %702 = vmatpush1.msra.mxu0 0.0
    %703 = vmatprep.subr.mxu0 0.0
    %704 = vmatpush1.msra.mxu0 0.0
    %705 = vmatprep.subr.mxu0 0.0
    %706 = vmatpush1.msra.mxu0 0.0
    %707 = vmatprep.subr.mxu0 0.0
    %708 = vmatpush1.msra.mxu0 0.0
    %709 = vmatprep.subr.mxu0 0.0
    %710 = vmatpush1.msra.mxu0 0.0
    %711 = vmatprep.subr.mxu0 0.0
    %712 = vmatpush1.msra.mxu0 0.0
    %713 = vmatprep.subr.mxu0 0.0
    %714 = vmatpush1.msra.mxu0 0.0
    %715 = vmatprep.subr.mxu0 0.0
    %716 = vmatpush1.msra.mxu0 0.0
    %717 = vmatprep.subr.mxu0 0.0
    %718 = vmatpush1.msra.mxu0 0.0
    %719 = vmatprep.subr.mxu0 0.0
    %720 = vmatpush1.msra.mxu0 0.0
    %721 = vmatprep.subr.mxu0 0.0
    %722 = vmatpush1.msra.mxu0 0.0
    %723 = vmatprep.subr.mxu0 0.0
    %724 = vmatpush1.msra.mxu0 0.0
    %725 = vmatprep.subr.mxu0 0.0
    %726 = vmatpush1.msra.mxu0 0.0
    %727 = vmatprep.subr.mxu0 0.0
    %728 = vmatpush1.msra.mxu0 0.0
    %729 = vmatprep.subr.mxu0 0.0
    %730 = vmatpush1.msra.mxu0 0.0
    %731 = vmatprep.subr.mxu0 0.0
    %732 = vmatpush1.msra.mxu0 0.0
    %733 = vmatprep.subr.mxu0 0.0
    %734 = vmatpush1.msra.mxu0 0.0
    %735 = vmatprep.subr.mxu0 0.0
    %736 = vmatpush1.msra.mxu0 0.0
    %737 = vmatprep.subr.mxu0 0.0
    %738 = vmatpush1.msra.mxu0 0.0
    %739 = vmatprep.subr.mxu0 0.0
    %740 = vmatpush1.msra.mxu0 0.0
    %741 = vmatprep.subr.mxu0 0.0
    %742 = vmatpush1.msra.mxu0 0.0
    %743 = vmatprep.subr.mxu0 0.0
    %744 = vmatpush1.msra.mxu0 0.0
    %745 = vmatprep.subr.mxu0 0.0
    %746 = vmatpush1.msra.mxu0 0.0
    %747 = vmatprep.subr.mxu0 0.0
    %748 = vmatpush1.msra.mxu0 0.0
    %749 = vmatprep.mubr.f32.mxu0 0.0
    %750 = vmatmul.mubr.f32.gmra.mrb[0].mxu0 %v585
    %v751 = vpop.f32.mrb[0].mxu0
    %v752 = vadd.f32 0.0, %v751
    %v753 = vpop.f32.mrb[0].mxu0
    %754 = vdwg.mxu0
    %v756 = vsel %vm107, %v682, 0
    %758 = vmatprep.subr.mxu0 0.0
    %759 = vmatpush1.msra.mxu0 %v182
    %760 = vmatprep.subr.mxu0 0.0
    %761 = vmatpush1.msra.mxu0 %v183
    %762 = vmatprep.subr.mxu0 0.0
    %763 = vmatpush1.msra.mxu0 %v184
    %764 = vmatprep.subr.mxu0 0.0
    %765 = vmatpush1.msra.mxu0 %v185
    %766 = vmatprep.subr.mxu0 0.0
    %767 = vmatpush1.msra.mxu0 0.0
    %768 = vmatprep.subr.mxu0 0.0
    %769 = vmatpush1.msra.mxu0 0.0
    %770 = vmatprep.subr.mxu0 0.0
    %771 = vmatpush1.msra.mxu0 0.0
    %772 = vmatprep.subr.mxu0 0.0
    %773 = vmatpush1.msra.mxu0 0.0
    %774 = vmatprep.subr.mxu0 0.0
    %775 = vmatpush1.msra.mxu0 0.0
    %776 = vmatprep.subr.mxu0 0.0
    %777 = vmatpush1.msra.mxu0 0.0
    %778 = vmatprep.subr.mxu0 0.0
    %779 = vmatpush1.msra.mxu0 0.0
    %780 = vmatprep.subr.mxu0 0.0
    %781 = vmatpush1.msra.mxu0 0.0
    %782 = vmatprep.subr.mxu0 0.0
    %783 = vmatpush1.msra.mxu0 0.0
    %784 = vmatprep.subr.mxu0 0.0
    %785 = vmatpush1.msra.mxu0 0.0
    %786 = vmatprep.subr.mxu0 0.0
    %787 = vmatpush1.msra.mxu0 0.0
    %788 = vmatprep.subr.mxu0 0.0
    %789 = vmatpush1.msra.mxu0 0.0
    %790 = vmatprep.subr.mxu0 0.0
    %791 = vmatpush1.msra.mxu0 0.0
    %792 = vmatprep.subr.mxu0 0.0
    %793 = vmatpush1.msra.mxu0 0.0
    %794 = vmatprep.subr.mxu0 0.0
    %795 = vmatpush1.msra.mxu0 0.0
    %796 = vmatprep.subr.mxu0 0.0
    %797 = vmatpush1.msra.mxu0 0.0
    %798 = vmatprep.subr.mxu0 0.0
    %799 = vmatpush1.msra.mxu0 0.0
    %800 = vmatprep.subr.mxu0 0.0
    %801 = vmatpush1.msra.mxu0 0.0
    %802 = vmatprep.subr.mxu0 0.0
    %803 = vmatpush1.msra.mxu0 0.0
    %804 = vmatprep.subr.mxu0 0.0
    %805 = vmatpush1.msra.mxu0 0.0
    %806 = vmatprep.subr.mxu0 0.0
    %807 = vmatpush1.msra.mxu0 0.0
    %808 = vmatprep.subr.mxu0 0.0
    %809 = vmatpush1.msra.mxu0 0.0
    %810 = vmatprep.subr.mxu0 0.0
    %811 = vmatpush1.msra.mxu0 0.0
    %812 = vmatprep.subr.mxu0 0.0
    %813 = vmatpush1.msra.mxu0 0.0
    %814 = vmatprep.subr.mxu0 0.0
    %815 = vmatpush1.msra.mxu0 0.0
    %816 = vmatprep.subr.mxu0 0.0
    %817 = vmatpush1.msra.mxu0 0.0
    %818 = vmatprep.subr.mxu0 0.0
    %819 = vmatpush1.msra.mxu0 0.0
    %820 = vmatprep.subr.mxu0 0.0
    %821 = vmatpush1.msra.mxu0 0.0
    %822 = vmatprep.mubr.f32.mxu0 0.0
    %823 = vmatmul.mubr.f32.gmra.mrb[0].mxu0 %v756
    %v824 = vpop.f32.mrb[0].mxu0
    %v825 = vadd.f32 %v752, %v824
    %v826 = vpop.f32.mrb[0].mxu0
    %827 = vdwg.mxu0
    %v828 = vadd.f32 %v825, %v194
    %829 = vmatprep.subr.mxu0 0.0
    %830 = vmatpush1.xpose.msra.mxu0 %v351
    %831 = vmatprep.subr.mxu0 0.0
    %832 = vmatpush1.xpose.msra.mxu0 0.0
    %833 = vmatprep.subr.mxu0 0.0
    %834 = vmatpush1.xpose.msra.mxu0 0.0
    %835 = vmatprep.subr.mxu0 0.0
    %836 = vmatpush1.xpose.msra.mxu0 0.0
    %837 = vmatprep.subr.mxu0 0.0
    %838 = vmatpush1.xpose.msra.mxu0 0.0
    %839 = vmatprep.subr.mxu0 0.0
    %840 = vmatpush1.xpose.msra.mxu0 0.0
    %841 = vmatprep.subr.mxu0 0.0
    %842 = vmatpush1.xpose.msra.mxu0 0.0
    %843 = vmatprep.subr.mxu0 0.0
    %844 = vmatpush1.xpose.msra.mxu0 0.0
    %845 = vmatprep.subr.mxu0 0.0
    %846 = vmatpush1.xpose.msra.mxu0 0.0
    %847 = vmatprep.subr.mxu0 0.0
    %848 = vmatpush1.xpose.msra.mxu0 0.0
    %849 = vmatprep.subr.mxu0 0.0
    %850 = vmatpush1.xpose.msra.mxu0 0.0
    %851 = vmatprep.subr.mxu0 0.0
    %852 = vmatpush1.xpose.msra.mxu0 0.0
    %853 = vmatprep.subr.mxu0 0.0
    %854 = vmatpush1.xpose.msra.mxu0 0.0
    %855 = vmatprep.subr.mxu0 0.0
    %856 = vmatpush1.xpose.msra.mxu0 0.0
    %857 = vmatprep.subr.mxu0 0.0
    %858 = vmatpush1.xpose.msra.mxu0 0.0
    %859 = vmatprep.subr.mxu0 0.0
    %860 = vmatpush1.xpose.msra.mxu0 0.0
    %861 = vmatprep.subr.mxu0 0.0
    %862 = vmatpush1.xpose.msra.mxu0 0.0
    %863 = vmatprep.subr.mxu0 0.0
    %864 = vmatpush1.xpose.msra.mxu0 0.0
    %865 = vmatprep.subr.mxu0 0.0
    %866 = vmatpush1.xpose.msra.mxu0 0.0
    %867 = vmatprep.subr.mxu0 0.0
    %868 = vmatpush1.xpose.msra.mxu0 0.0
    %869 = vmatprep.subr.mxu0 0.0
    %870 = vmatpush1.xpose.msra.mxu0 0.0
    %871 = vmatprep.subr.mxu0 0.0
    %872 = vmatpush1.xpose.msra.mxu0 0.0
    %873 = vmatprep.subr.mxu0 0.0
    %874 = vmatpush1.xpose.msra.mxu0 0.0
    %875 = vmatprep.subr.mxu0 0.0
    %876 = vmatpush1.xpose.msra.mxu0 0.0
    %877 = vmatprep.subr.mxu0 0.0
    %878 = vmatpush1.xpose.msra.mxu0 0.0
    %879 = vmatprep.subr.mxu0 0.0
    %880 = vmatpush1.xpose.msra.mxu0 0.0
    %881 = vmatprep.subr.mxu0 0.0
    %882 = vmatpush1.xpose.msra.mxu0 0.0
    %883 = vmatprep.subr.mxu0 0.0
    %884 = vmatpush1.xpose.msra.mxu0 0.0
    %885 = vmatprep.subr.mxu0 0.0
    %886 = vmatpush1.xpose.msra.mxu0 0.0
    %887 = vmatprep.subr.mxu0 0.0
    %888 = vmatpush1.xpose.msra.mxu0 0.0
    %889 = vmatprep.subr.mxu0 0.0
    %890 = vmatpush1.xpose.msra.mxu0 0.0
    %891 = vmatprep.subr.mxu0 0.0
    %892 = vmatpush1.xpose.msra.mxu0 0.0
    %893 = vmatprep.mubr.f32.mxu0 0.0
    %894 = vmatmul.mubr.f32.gmra.mrb[0].mxu0 %v585
    %v895 = vpop.f32.mrb[0].mxu0
    %v896 = vadd.f32 0.0, %v895
    %v897 = vpop.f32.mrb[0].mxu0
    %898 = vdwg.mxu0
    %v899 = vsel %vm423, %v896, -inf
    %900 = vmax.xlane.f32.xlu0 %v899
    %v901 = vpop.xlane.xlu0 %900
    %v902 = vsub.f32 %v896, %v901
    %v903 = vmul.f32 %v902, 1.442695
    %v904 = vpow.pop %v903
    %v905 = vsel %vm423, %v904, 0.0
    %906 = vadd.xlane.f32.xlu0 %v905
    %v907 = vpop.xlane.xlu0 %906
    %v908 = vrcp.pop %v907
    %v909 = vmul.f32 %v904, %v908
    %v911 = vsel %vm435, %v909, 0
    %913 = vmatprep.subr.mxu0 0.0
    %914 = vmatpush1.msra.mxu0 %v181
    %915 = vmatprep.subr.mxu0 0.0
    %916 = vmatpush1.msra.mxu0 0.0
    %917 = vmatprep.subr.mxu0 0.0
    %918 = vmatpush1.msra.mxu0 0.0
    %919 = vmatprep.subr.mxu0 0.0
    %920 = vmatpush1.msra.mxu0 0.0
    %921 = vmatprep.subr.mxu0 0.0
    %922 = vmatpush1.msra.mxu0 0.0
    %923 = vmatprep.subr.mxu0 0.0
    %924 = vmatpush1.msra.mxu0 0.0
    %925 = vmatprep.subr.mxu0 0.0
    %926 = vmatpush1.msra.mxu0 0.0
    %927 = vmatprep.subr.mxu0 0.0
    %928 = vmatpush1.msra.mxu0 0.0
    %929 = vmatprep.subr.mxu0 0.0
    %930 = vmatpush1.msra.mxu0 0.0
    %931 = vmatprep.subr.mxu0 0.0
    %932 = vmatpush1.msra.mxu0 0.0
    %933 = vmatprep.subr.mxu0 0.0
    %934 = vmatpush1.msra.mxu0 0.0
    %935 = vmatprep.subr.mxu0 0.0
    %936 = vmatpush1.msra.mxu0 0.0
    %937 = vmatprep.subr.mxu0 0.0
    %938 = vmatpush1.msra.mxu0 0.0
    %939 = vmatprep.subr.mxu0 0.0
    %940 = vmatpush1.msra.mxu0 0.0
    %941 = vmatprep.subr.mxu0 0.0
    %942 = vmatpush1.msra.mxu0 0.0
    %943 = vmatprep.subr.mxu0 0.0
    %944 = vmatpush1.msra.mxu0 0.0
    %945 = vmatprep.subr.mxu0 0.0
    %946 = vmatpush1.msra.mxu0 0.0
    %947 = vmatprep.subr.mxu0 0.0
    %948 = vmatpush1.msra.mxu0 0.0
    %949 = vmatprep.subr.mxu0 0.0
    %950 = vmatpush1.msra.mxu0 0.0
    %951 = vmatprep.subr.mxu0 0.0
    %952 = vmatpush1.msra.mxu0 0.0
    %953 = vmatprep.subr.mxu0 0.0
    %954 = vmatpush1.msra.mxu0 0.0
    %955 = vmatprep.subr.mxu0 0.0
    %956 = vmatpush1.msra.mxu0 0.0
    %957 = vmatprep.subr.mxu0 0.0
    %958 = vmatpush1.msra.mxu0 0.0
    %959 = vmatprep.subr.mxu0 0.0
    %960 = vmatpush1.msra.mxu0 0.0
    %961 = vmatprep.subr.mxu0 0.0
    %962 = vmatpush1.msra.mxu0 0.0
    %963 = vmatprep.subr.mxu0 0.0
    %964 = vmatpush1.msra.mxu0 0.0
    %965 = vmatprep.subr.mxu0 0.0
    %966 = vmatpush1.msra.mxu0 0.0
    %967 = vmatprep.subr.mxu0 0.0
    %968 = vmatpush1.msra.mxu0 0.0
    %969 = vmatprep.subr.mxu0 0.0
    %970 = vmatpush1.msra.mxu0 0.0
    %971 = vmatprep.subr.mxu0 0.0
    %972 = vmatpush1.msra.mxu0 0.0
    %973 = vmatprep.subr.mxu0 0.0
    %974 = vmatpush1.msra.mxu0 0.0
    %975 = vmatprep.subr.mxu0 0.0
    %976 = vmatpush1.msra.mxu0 0.0
    %977 = vmatprep.mubr.f32.mxu0 0.0
    %978 = vmatmul.mubr.f32.gmra.mrb[0].mxu0 %v911
    %v979 = vpop.f32.mrb[0].mxu0
    %v980 = vadd.f32 0.0, %v979
    %v981 = vpop.f32.mrb[0].mxu0
    %982 = vdwg.mxu0
    %v984 = vsel %vm107, %v980, 0
    %986 = vmatprep.subr.mxu0 0.0
    %987 = vmatpush1.msra.mxu0 %v190
    %988 = vmatprep.subr.mxu0 0.0
    %989 = vmatpush1.msra.mxu0 %v191
    %990 = vmatprep.subr.mxu0 0.0
    %991 = vmatpush1.msra.mxu0 %v192
    %992 = vmatprep.subr.mxu0 0.0
    %993 = vmatpush1.msra.mxu0 %v193
    %994 = vmatprep.subr.mxu0 0.0
    %995 = vmatpush1.msra.mxu0 0.0
    %996 = vmatprep.subr.mxu0 0.0
    %997 = vmatpush1.msra.mxu0 0.0
    %998 = vmatprep.subr.mxu0 0.0
    %999 = vmatpush1.msra.mxu0 0.0
    %1000 = vmatprep.subr.mxu0 0.0
    %1001 = vmatpush1.msra.mxu0 0.0
    %1002 = vmatprep.subr.mxu0 0.0
    %1003 = vmatpush1.msra.mxu0 0.0
    %1004 = vmatprep.subr.mxu0 0.0
    %1005 = vmatpush1.msra.mxu0 0.0
    %1006 = vmatprep.subr.mxu0 0.0
    %1007 = vmatpush1.msra.mxu0 0.0
    %1008 = vmatprep.subr.mxu0 0.0
    %1009 = vmatpush1.msra.mxu0 0.0
    %1010 = vmatprep.subr.mxu0 0.0
    %1011 = vmatpush1.msra.mxu0 0.0
    %1012 = vmatprep.subr.mxu0 0.0
    %1013 = vmatpush1.msra.mxu0 0.0
    %1014 = vmatprep.subr.mxu0 0.0
    %1015 = vmatpush1.msra.mxu0 0.0
    %1016 = vmatprep.subr.mxu0 0.0
    %1017 = vmatpush1.msra.mxu0 0.0
    %1018 = vmatprep.subr.mxu0 0.0
    %1019 = vmatpush1.msra.mxu0 0.0
    %1020 = vmatprep.subr.mxu0 0.0
    %1021 = vmatpush1.msra.mxu0 0.0
    %1022 = vmatprep.subr.mxu0 0.0
    %1023 = vmatpush1.msra.mxu0 0.0
    %1024 = vmatprep.subr.mxu0 0.0
    %1025 = vmatpush1.msra.mxu0 0.0
    %1026 = vmatprep.subr.mxu0 0.0
    %1027 = vmatpush1.msra.mxu0 0.0
    %1028 = vmatprep.subr.mxu0 0.0
    %1029 = vmatpush1.msra.mxu0 0.0
    %1030 = vmatprep.subr.mxu0 0.0
    %1031 = vmatpush1.msra.mxu0 0.0
    %1032 = vmatprep.subr.mxu0 0.0
    %1033 = vmatpush1.msra.mxu0 0.0
    %1034 = vmatprep.subr.mxu0 0.0
    %1035 = vmatpush1.msra.mxu0 0.0
    %1036 = vmatprep.subr.mxu0 0.0
    %1037 = vmatpush1.msra.mxu0 0.0
    %1038 = vmatprep.subr.mxu0 0.0
    %1039 = vmatpush1.msra.mxu0 0.0
    %1040 = vmatprep.subr.mxu0 0.0
    %1041 = vmatpush1.msra.mxu0 0.0
    %1042 = vmatprep.subr.mxu0 0.0
    %1043 = vmatpush1.msra.mxu0 0.0
    %1044 = vmatprep.subr.mxu0 0.0
    %1045 = vmatpush1.msra.mxu0 0.0
    %1046 = vmatprep.subr.mxu0 0.0
    %1047 = vmatpush1.msra.mxu0 0.0
    %1048 = vmatprep.subr.mxu0 0.0
    %1049 = vmatpush1.msra.mxu0 0.0
    %1050 = vmatprep.mubr.f32.mxu0 0.0
    %1051 = vmatmul.mubr.f32.gmra.mrb[0].mxu0 %v984
    %v1052 = vpop.f32.mrb[0].mxu0
    %v1053 = vadd.f32 0.0, %v1052
    %v1054 = vpop.f32.mrb[0].mxu0
    %1055 = vdwg.mxu0
    %v1056 = vadd.f32 %v828, %v1053
    %v1057 = vtanh.pop %v1056
    %v1059 = vsel %vm107, %v1057, 0
    %1061 = vmatprep.subr.mxu0 0.0
    %1062 = vmatpush1.msra.mxu0 %v195
    %1063 = vmatprep.subr.mxu0 0.0
    %1064 = vmatpush1.msra.mxu0 %v196
    %1065 = vmatprep.subr.mxu0 0.0
    %1066 = vmatpush1.msra.mxu0 %v197
    %1067 = vmatprep.subr.mxu0 0.0
    %1068 = vmatpush1.msra.mxu0 %v198
    %1069 = vmatprep.subr.mxu0 0.0
    %1070 = vmatpush1.msra.mxu0 0.0
    %1071 = vmatprep.subr.mxu0 0.0
    %1072 = vmatpush1.msra.mxu0 0.0
    %1073 = vmatprep.subr.mxu0 0.0
    %1074 = vmatpush1.msra.mxu0 0.0
    %1075 = vmatprep.subr.mxu0 0.0
    %1076 = vmatpush1.msra.mxu0 0.0
    %1077 = vmatprep.subr.mxu0 0.0
    %1078 = vmatpush1.msra.mxu0 0.0
    %1079 = vmatprep.subr.mxu0 0.0
    %1080 = vmatpush1.msra.mxu0 0.0
    %1081 = vmatprep.subr.mxu0 0.0
    %1082 = vmatpush1.msra.mxu0 0.0
    %1083 = vmatprep.subr.mxu0 0.0
    %1084 = vmatpush1.msra.mxu0 0.0
    %1085 = vmatprep.subr.mxu0 0.0
    %1086 = vmatpush1.msra.mxu0 0.0
    %1087 = vmatprep.subr.mxu0 0.0
    %1088 = vmatpush1.msra.mxu0 0.0
    %1089 = vmatprep.subr.mxu0 0.0
    %1090 = vmatpush1.msra.mxu0 0.0
    %1091 = vmatprep.subr.mxu0 0.0
    %1092 = vmatpush1.msra.mxu0 0.0
    %1093 = vmatprep.subr.mxu0 0.0
    %1094 = vmatpush1.msra.mxu0 0.0
    %1095 = vmatprep.subr.mxu0 0.0
    %1096 = vmatpush1.msra.mxu0 0.0
    %1097 = vmatprep.subr.mxu0 0.0
    %1098 = vmatpush1.msra.mxu0 0.0
    %1099 = vmatprep.subr.mxu0 0.0
    %1100 = vmatpush1.msra.mxu0 0.0
    %1101 = vmatprep.subr.mxu0 0.0
    %1102 = vmatpush1.msra.mxu0 0.0
    %1103 = vmatprep.subr.mxu0 0.0
    %1104 = vmatpush1.msra.mxu0 0.0
    %1105 = vmatprep.subr.mxu0 0.0
    %1106 = vmatpush1.msra.mxu0 0.0
    %1107 = vmatprep.subr.mxu0 0.0
    %1108 = vmatpush1.msra.mxu0 0.0
    %1109 = vmatprep.subr.mxu0 0.0
    %1110 = vmatpush1.msra.mxu0 0.0
    %1111 = vmatprep.subr.mxu0 0.0
    %1112 = vmatpush1.msra.mxu0 0.0
    %1113 = vmatprep.subr.mxu0 0.0
    %1114 = vmatpush1.msra.mxu0 0.0
    %1115 = vmatprep.subr.mxu0 0.0
    %1116 = vmatpush1.msra.mxu0 0.0
    %1117 = vmatprep.subr.mxu0 0.0
    %1118 = vmatpush1.msra.mxu0 0.0
    %1119 = vmatprep.subr.mxu0 0.0
    %1120 = vmatpush1.msra.mxu0 0.0
    %1121 = vmatprep.subr.mxu0 0.0
    %1122 = vmatpush1.msra.mxu0 0.0
    %1123 = vmatprep.subr.mxu0 0.0
    %1124 = vmatpush1.msra.mxu0 0.0
    %1125 = vmatprep.mubr.f32.mxu0 0.0
    %1126 = vmatmul.mubr.f32.gmra.mrb[0].mxu0 %v1059
    %v1127 = vpop.f32.mrb[0].mxu0
    %v1128 = vadd.f32 %v199, %v1127
    %v1129 = vpop.f32.mrb[0].mxu0
    %1130 = vdwg.mxu0
    %v1131 = vsel %vm657, %v1128, -inf
    %1132 = vmax.xlane.f32.xlu0 %v1131
    %v1133 = vpop.xlane.xlu0 %1132
    %vm1134 = vcmp.eq.f32.partialorder %v1128, %v1133
    %v1135 = vsel %vm1134, %v89, 32
    %v1136 = vsel %vm657, %v1135, 2147483647
    %v1137 = vand.u32 %v1136, 65535
    %v1138 = vshra.s32 %v1136, 16
    %v1139 = vcvt.s32.f32 %v1137
    %v1140 = vcvt.s32.f32 %v1138
    %1141 = vmin.xlane.f32.xlu0 %v1140
    %v1142 = vpop.xlane.xlu0 %1141
    %vm1143 = vcmp.eq.f32.partialorder %v1140, %v1142
    %v1144 = vsel %vm1143, %v1139, inf
    %1145 = vmin.xlane.f32.xlu0 %v1144
    %v1146 = vpop.xlane.xlu0 %1145
    %v1147 = vcvt.f32.s32 %v1146
    %v1148 = vcvt.f32.s32 %v1142
    %v1149 = vshll.u32 %v1148, 16
    %v1150 = vadd.s32 %v1149, %v1147
    %vm1151 = vcmp.lt.s32.totalorder %v1150, 31
    %v1152 = vsel %vm1151, %v1150, 31
    %vm1153 = vcmp.eq.s32.totalorder %v89, %v1152
    %v1154 = vsel %vm1153, 1, 0
    %v1155 = vcvt.s32.f32 %v1154
    %v1156 = vsel %vm684, 1, %v1152
    %vm1157 = vcmp.eq.s32.totalorder %v89, 1
    %v1158 = vsel %vm1157, %v1156, %v683
    %v1159 = vsel %vm684, 1, 0
    %vm1160 = vcmp.eq.s32.totalorder %v1159, 1
    %v1161 = vsel %vm1160, %v583, %v1057
    %v1162 = vsel %vm1160, %v682, %v1155
    %vm1163 = vcmp.eq.s32.totalorder %v1152, 1
    %vm1164 = vmor %vm684, %vm1163
    %v1166 = vsel %vm107, %v1161, 0
    %1168 = vmatprep.subr.mxu0 0.0
    %1169 = vmatpush1.msra.mxu0 %v186
    %1170 = vmatprep.subr.mxu0 0.0
    %1171 = vmatpush1.msra.mxu0 %v187
    %1172 = vmatprep.subr.mxu0 0.0
    %1173 = vmatpush1.msra.mxu0 %v188
    %1174 = vmatprep.subr.mxu0 0.0
    %1175 = vmatpush1.msra.mxu0 %v189
    %1176 = vmatprep.subr.mxu0 0.0
    %1177 = vmatpush1.msra.mxu0 0.0
    %1178 = vmatprep.subr.mxu0 0.0
    %1179 = vmatpush1.msra.mxu0 0.0
    %1180 = vmatprep.subr.mxu0 0.0
    %1181 = vmatpush1.msra.mxu0 0.0
    %1182 = vmatprep.subr.mxu0 0.0
    %1183 = vmatpush1.msra.mxu0 0.0
    %1184 = vmatprep.subr.mxu0 0.0
    %1185 = vmatpush1.msra.mxu0 0.0
    %1186 = vmatprep.subr.mxu0 0.0
    %1187 = vmatpush1.msra.mxu0 0.0
    %1188 = vmatprep.subr.mxu0 0.0
    %1189 = vmatpush1.msra.mxu0 0.0
    %1190 = vmatprep.subr.mxu0 0.0
    %1191 = vmatpush1.msra.mxu0 0.0
    %1192 = vmatprep.subr.mxu0 0.0
    %1193 = vmatpush1.msra.mxu0 0.0
    %1194 = vmatprep.subr.mxu0 0.0
    %1195 = vmatpush1.msra.mxu0 0.0
    %1196 = vmatprep.subr.mxu0 0.0
    %1197 = vmatpush1.msra.mxu0 0.0
    %1198 = vmatprep.subr.mxu0 0.0
    %1199 = vmatpush1.msra.mxu0 0.0
    %1200 = vmatprep.subr.mxu0 0.0
    %1201 = vmatpush1.msra.mxu0 0.0
    %1202 = vmatprep.subr.mxu0 0.0
    %1203 = vmatpush1.msra.mxu0 0.0
    %1204 = vmatprep.subr.mxu0 0.0
    %1205 = vmatpush1.msra.mxu0 0.0
    %1206 = vmatprep.subr.mxu0 0.0
    %1207 = vmatpush1.msra.mxu0 0.0
    %1208 = vmatprep.subr.mxu0 0.0
    %1209 = vmatpush1.msra.mxu0 0.0
    %1210 = vmatprep.subr.mxu0 0.0
    %1211 = vmatpush1.msra.mxu0 0.0
    %1212 = vmatprep.subr.mxu0 0.0
    %1213 = vmatpush1.msra.mxu0 0.0
    %1214 = vmatprep.subr.mxu0 0.0
    %1215 = vmatpush1.msra.mxu0 0.0
    %1216 = vmatprep.subr.mxu0 0.0
    %1217 = vmatpush1.msra.mxu0 0.0
    %1218 = vmatprep.subr.mxu0 0.0
    %1219 = vmatpush1.msra.mxu0 0.0
    %1220 = vmatprep.subr.mxu0 0.0
    %1221 = vmatpush1.msra.mxu0 0.0
    %1222 = vmatprep.subr.mxu0 0.0
    %1223 = vmatpush1.msra.mxu0 0.0
    %1224 = vmatprep.subr.mxu0 0.0
    %1225 = vmatpush1.msra.mxu0 0.0
    %1226 = vmatprep.subr.mxu0 0.0
    %1227 = vmatpush1.msra.mxu0 0.0
    %1228 = vmatprep.subr.mxu0 0.0
    %1229 = vmatpush1.msra.mxu0 0.0
    %1230 = vmatprep.subr.mxu0 0.0
    %1231 = vmatpush1.msra.mxu0 0.0
    %1232 = vmatprep.mubr.f32.mxu0 0.0
    %1233 = vmatmul.mubr.f32.gmra.mrb[0].mxu0 %v1166
    %v1234 = vpop.f32.mrb[0].mxu0
    %v1235 = vadd.f32 0.0, %v1234
    %v1236 = vpop.f32.mrb[0].mxu0
    %1237 = vdwg.mxu0
    %v1239 = vsel %vm107, %v1162, 0
    %1241 = vmatprep.subr.mxu0 0.0
    %1242 = vmatpush1.msra.mxu0 %v182
    %1243 = vmatprep.subr.mxu0 0.0
    %1244 = vmatpush1.msra.mxu0 %v183
    %1245 = vmatprep.subr.mxu0 0.0
    %1246 = vmatpush1.msra.mxu0 %v184
    %1247 = vmatprep.subr.mxu0 0.0
    %1248 = vmatpush1.msra.mxu0 %v185
    %1249 = vmatprep.subr.mxu0 0.0
    %1250 = vmatpush1.msra.mxu0 0.0
    %1251 = vmatprep.subr.mxu0 0.0
    %1252 = vmatpush1.msra.mxu0 0.0
    %1253 = vmatprep.subr.mxu0 0.0
    %1254 = vmatpush1.msra.mxu0 0.0
    %1255 = vmatprep.subr.mxu0 0.0
    %1256 = vmatpush1.msra.mxu0 0.0
    %1257 = vmatprep.subr.mxu0 0.0
    %1258 = vmatpush1.msra.mxu0 0.0
    %1259 = vmatprep.subr.mxu0 0.0
    %1260 = vmatpush1.msra.mxu0 0.0
    %1261 = vmatprep.subr.mxu0 0.0
    %1262 = vmatpush1.msra.mxu0 0.0
    %1263 = vmatprep.subr.mxu0 0.0
    %1264 = vmatpush1.msra.mxu0 0.0
    %1265 = vmatprep.subr.mxu0 0.0
    %1266 = vmatpush1.msra.mxu0 0.0
    %1267 = vmatprep.subr.mxu0 0.0
    %1268 = vmatpush1.msra.mxu0 0.0
    %1269 = vmatprep.subr.mxu0 0.0
    %1270 = vmatpush1.msra.mxu0 0.0
    %1271 = vmatprep.subr.mxu0 0.0
    %1272 = vmatpush1.msra.mxu0 0.0
    %1273 = vmatprep.subr.mxu0 0.0
    %1274 = vmatpush1.msra.mxu0 0.0
    %1275 = vmatprep.subr.mxu0 0.0
    %1276 = vmatpush1.msra.mxu0 0.0
    %1277 = vmatprep.subr.mxu0 0.0
    %1278 = vmatpush1.msra.mxu0 0.0
    %1279 = vmatprep.subr.mxu0 0.0
    %1280 = vmatpush1.msra.mxu0 0.0
    %1281 = vmatprep.subr.mxu0 0.0
    %1282 = vmatpush1.msra.mxu0 0.0
    %1283 = vmatprep.subr.mxu0 0.0
    %1284 = vmatpush1.msra.mxu0 0.0
    %1285 = vmatprep.subr.mxu0 0.0
    %1286 = vmatpush1.msra.mxu0 0.0
    %1287 = vmatprep.subr.mxu0 0.0
    %1288 = vmatpush1.msra.mxu0 0.0
    %1289 = vmatprep.subr.mxu0 0.0
    %1290 = vmatpush1.msra.mxu0 0.0
    %1291 = vmatprep.subr.mxu0 0.0
    %1292 = vmatpush1.msra.mxu0 0.0
    %1293 = vmatprep.subr.mxu0 0.0
    %1294 = vmatpush1.msra.mxu0 0.0
    %1295 = vmatprep.subr.mxu0 0.0
    %1296 = vmatpush1.msra.mxu0 0.0
    %1297 = vmatprep.subr.mxu0 0.0
    %1298 = vmatpush1.msra.mxu0 0.0
    %1299 = vmatprep.subr.mxu0 0.0
    %1300 = vmatpush1.msra.mxu0 0.0
    %1301 = vmatprep.subr.mxu0 0.0
    %1302 = vmatpush1.msra.mxu0 0.0
    %1303 = vmatprep.subr.mxu0 0.0
    %1304 = vmatpush1.msra.mxu0 0.0
    %1305 = vmatprep.mubr.f32.mxu0 0.0
    %1306 = vmatmul.mubr.f32.gmra.mrb[0].mxu0 %v1239
    %v1307 = vpop.f32.mrb[0].mxu0
    %v1308 = vadd.f32 %v1235, %v1307
    %v1309 = vpop.f32.mrb[0].mxu0
    %1310 = vdwg.mxu0
    %v1311 = vadd.f32 %v1308, %v194
    %1312 = vmatprep.subr.mxu0 0.0
    %1313 = vmatpush1.xpose.msra.mxu0 %v351
    %1314 = vmatprep.subr.mxu0 0.0
    %1315 = vmatpush1.xpose.msra.mxu0 0.0
    %1316 = vmatprep.subr.mxu0 0.0
    %1317 = vmatpush1.xpose.msra.mxu0 0.0
    %1318 = vmatprep.subr.mxu0 0.0
    %1319 = vmatpush1.xpose.msra.mxu0 0.0
    %1320 = vmatprep.subr.mxu0 0.0
    %1321 = vmatpush1.xpose.msra.mxu0 0.0
    %1322 = vmatprep.subr.mxu0 0.0
    %1323 = vmatpush1.xpose.msra.mxu0 0.0
    %1324 = vmatprep.subr.mxu0 0.0
    %1325 = vmatpush1.xpose.msra.mxu0 0.0
    %1326 = vmatprep.subr.mxu0 0.0
    %1327 = vmatpush1.xpose.msra.mxu0 0.0
    %1328 = vmatprep.subr.mxu0 0.0
    %1329 = vmatpush1.xpose.msra.mxu0 0.0
    %1330 = vmatprep.subr.mxu0 0.0
    %1331 = vmatpush1.xpose.msra.mxu0 0.0
    %1332 = vmatprep.subr.mxu0 0.0
    %1333 = vmatpush1.xpose.msra.mxu0 0.0
    %1334 = vmatprep.subr.mxu0 0.0
    %1335 = vmatpush1.xpose.msra.mxu0 0.0
    %1336 = vmatprep.subr.mxu0 0.0
    %1337 = vmatpush1.xpose.msra.mxu0 0.0
    %1338 = vmatprep.subr.mxu0 0.0
    %1339 = vmatpush1.xpose.msra.mxu0 0.0
    %1340 = vmatprep.subr.mxu0 0.0
    %1341 = vmatpush1.xpose.msra.mxu0 0.0
    %1342 = vmatprep.subr.mxu0 0.0
    %1343 = vmatpush1.xpose.msra.mxu0 0.0
    %1344 = vmatprep.subr.mxu0 0.0
    %1345 = vmatpush1.xpose.msra.mxu0 0.0
    %1346 = vmatprep.subr.mxu0 0.0
    %1347 = vmatpush1.xpose.msra.mxu0 0.0
    %1348 = vmatprep.subr.mxu0 0.0
    %1349 = vmatpush1.xpose.msra.mxu0 0.0
    %1350 = vmatprep.subr.mxu0 0.0
    %1351 = vmatpush1.xpose.msra.mxu0 0.0
    %1352 = vmatprep.subr.mxu0 0.0
    %1353 = vmatpush1.xpose.msra.mxu0 0.0
    %1354 = vmatprep.subr.mxu0 0.0
    %1355 = vmatpush1.xpose.msra.mxu0 0.0
    %1356 = vmatprep.subr.mxu0 0.0
    %1357 = vmatpush1.xpose.msra.mxu0 0.0
    %1358 = vmatprep.subr.mxu0 0.0
    %1359 = vmatpush1.xpose.msra.mxu0 0.0
    %1360 = vmatprep.subr.mxu0 0.0
    %1361 = vmatpush1.xpose.msra.mxu0 0.0
    %1362 = vmatprep.subr.mxu0 0.0
    %1363 = vmatpush1.xpose.msra.mxu0 0.0
    %1364 = vmatprep.subr.mxu0 0.0
    %1365 = vmatpush1.xpose.msra.mxu0 0.0
    %1366 = vmatprep.subr.mxu0 0.0
    %1367 = vmatpush1.xpose.msra.mxu0 0.0
    %1368 = vmatprep.subr.mxu0 0.0
    %1369 = vmatpush1.xpose.msra.mxu0 0.0
    %1370 = vmatprep.subr.mxu0 0.0
    %1371 = vmatpush1.xpose.msra.mxu0 0.0
    %1372 = vmatprep.subr.mxu0 0.0
    %1373 = vmatpush1.xpose.msra.mxu0 0.0
    %1374 = vmatprep.subr.mxu0 0.0
    %1375 = vmatpush1.xpose.msra.mxu0 0.0
    %1376 = vmatprep.mubr.f32.mxu0 0.0
    %1377 = vmatmul.mubr.f32.gmra.mrb[0].mxu0 %v1166
    %v1378 = vpop.f32.mrb[0].mxu0
    %v1379 = vadd.f32 0.0, %v1378
    %v1380 = vpop.f32.mrb[0].mxu0
    %1381 = vdwg.mxu0
    %v1382 = vsel %vm423, %v1379, -inf
    %1383 = vmax.xlane.f32.xlu0 %v1382
    %v1384 = vpop.xlane.xlu0 %1383
    %v1385 = vsub.f32 %v1379, %v1384
    %v1386 = vmul.f32 %v1385, 1.442695
    %v1387 = vpow.pop %v1386
    %v1388 = vsel %vm423, %v1387, 0.0
    %1389 = vadd.xlane.f32.xlu0 %v1388
    %v1390 = vpop.xlane.xlu0 %1389
    %v1391 = vrcp.pop %v1390
    %v1392 = vmul.f32 %v1387, %v1391
    %v1394 = vsel %vm435, %v1392, 0
    %1396 = vmatprep.subr.mxu0 0.0
    %1397 = vmatpush1.msra.mxu0 %v181
    %1398 = vmatprep.subr.mxu0 0.0
    %1399 = vmatpush1.msra.mxu0 0.0
    %1400 = vmatprep.subr.mxu0 0.0
    %1401 = vmatpush1.msra.mxu0 0.0
    %1402 = vmatprep.subr.mxu0 0.0
    %1403 = vmatpush1.msra.mxu0 0.0
    %1404 = vmatprep.subr.mxu0 0.0
    %1405 = vmatpush1.msra.mxu0 0.0
    %1406 = vmatprep.subr.mxu0 0.0
    %1407 = vmatpush1.msra.mxu0 0.0
    %1408 = vmatprep.subr.mxu0 0.0
    %1409 = vmatpush1.msra.mxu0 0.0
    %1410 = vmatprep.subr.mxu0 0.0
    %1411 = vmatpush1.msra.mxu0 0.0
    %1412 = vmatprep.subr.mxu0 0.0
    %1413 = vmatpush1.msra.mxu0 0.0
    %1414 = vmatprep.subr.mxu0 0.0
    %1415 = vmatpush1.msra.mxu0 0.0
    %1416 = vmatprep.subr.mxu0 0.0
    %1417 = vmatpush1.msra.mxu0 0.0
    %1418 = vmatprep.subr.mxu0 0.0
    %1419 = vmatpush1.msra.mxu0 0.0
    %1420 = vmatprep.subr.mxu0 0.0
    %1421 = vmatpush1.msra.mxu0 0.0
    %1422 = vmatprep.subr.mxu0 0.0
    %1423 = vmatpush1.msra.mxu0 0.0
    %1424 = vmatprep.subr.mxu0 0.0
    %1425 = vmatpush1.msra.mxu0 0.0
    %1426 = vmatprep.subr.mxu0 0.0
    %1427 = vmatpush1.msra.mxu0 0.0
    %1428 = vmatprep.subr.mxu0 0.0
    %1429 = vmatpush1.msra.mxu0 0.0
    %1430 = vmatprep.subr.mxu0 0.0
    %1431 = vmatpush1.msra.mxu0 0.0
    %1432 = vmatprep.subr.mxu0 0.0
    %1433 = vmatpush1.msra.mxu0 0.0
    %1434 = vmatprep.subr.mxu0 0.0
    %1435 = vmatpush1.msra.mxu0 0.0
    %1436 = vmatprep.subr.mxu0 0.0
    %1437 = vmatpush1.msra.mxu0 0.0
    %1438 = vmatprep.subr.mxu0 0.0
    %1439 = vmatpush1.msra.mxu0 0.0
    %1440 = vmatprep.subr.mxu0 0.0
    %1441 = vmatpush1.msra.mxu0 0.0
    %1442 = vmatprep.subr.mxu0 0.0
    %1443 = vmatpush1.msra.mxu0 0.0
    %1444 = vmatprep.subr.mxu0 0.0
    %1445 = vmatpush1.msra.mxu0 0.0
    %1446 = vmatprep.subr.mxu0 0.0
    %1447 = vmatpush1.msra.mxu0 0.0
    %1448 = vmatprep.subr.mxu0 0.0
    %1449 = vmatpush1.msra.mxu0 0.0
    %1450 = vmatprep.subr.mxu0 0.0
    %1451 = vmatpush1.msra.mxu0 0.0
    %1452 = vmatprep.subr.mxu0 0.0
    %1453 = vmatpush1.msra.mxu0 0.0
    %1454 = vmatprep.subr.mxu0 0.0
    %1455 = vmatpush1.msra.mxu0 0.0
    %1456 = vmatprep.subr.mxu0 0.0
    %1457 = vmatpush1.msra.mxu0 0.0
    %1458 = vmatprep.subr.mxu0 0.0
    %1459 = vmatpush1.msra.mxu0 0.0
    %1460 = vmatprep.mubr.f32.mxu0 0.0
    %1461 = vmatmul.mubr.f32.gmra.mrb[0].mxu0 %v1394
    %v1462 = vpop.f32.mrb[0].mxu0
    %v1463 = vadd.f32 0.0, %v1462
    %v1464 = vpop.f32.mrb[0].mxu0
    %1465 = vdwg.mxu0
    %v1467 = vsel %vm107, %v1463, 0
    %1469 = vmatprep.subr.mxu0 0.0
    %1470 = vmatpush1.msra.mxu0 %v190
    %1471 = vmatprep.subr.mxu0 0.0
    %1472 = vmatpush1.msra.mxu0 %v191
    %1473 = vmatprep.subr.mxu0 0.0
    %1474 = vmatpush1.msra.mxu0 %v192
    %1475 = vmatprep.subr.mxu0 0.0
    %1476 = vmatpush1.msra.mxu0 %v193
    %1477 = vmatprep.subr.mxu0 0.0
    %1478 = vmatpush1.msra.mxu0 0.0
    %1479 = vmatprep.subr.mxu0 0.0
    %1480 = vmatpush1.msra.mxu0 0.0
    %1481 = vmatprep.subr.mxu0 0.0
    %1482 = vmatpush1.msra.mxu0 0.0
    %1483 = vmatprep.subr.mxu0 0.0
    %1484 = vmatpush1.msra.mxu0 0.0
    %1485 = vmatprep.subr.mxu0 0.0
    %1486 = vmatpush1.msra.mxu0 0.0
    %1487 = vmatprep.subr.mxu0 0.0
    %1488 = vmatpush1.msra.mxu0 0.0
    %1489 = vmatprep.subr.mxu0 0.0
    %1490 = vmatpush1.msra.mxu0 0.0
    %1491 = vmatprep.subr.mxu0 0.0
    %1492 = vmatpush1.msra.mxu0 0.0
    %1493 = vmatprep.subr.mxu0 0.0
    %1494 = vmatpush1.msra.mxu0 0.0
    %1495 = vmatprep.subr.mxu0 0.0
    %1496 = vmatpush1.msra.mxu0 0.0
    %1497 = vmatprep.subr.mxu0 0.0
    %1498 = vmatpush1.msra.mxu0 0.0
    %1499 = vmatprep.subr.mxu0 0.0
    %1500 = vmatpush1.msra.mxu0 0.0
    %1501 = vmatprep.subr.mxu0 0.0
    %1502 = vmatpush1.msra.mxu0 0.0
    %1503 = vmatprep.subr.mxu0 0.0
    %1504 = vmatpush1.msra.mxu0 0.0
    %1505 = vmatprep.subr.mxu0 0.0
    %1506 = vmatpush1.msra.mxu0 0.0
    %1507 = vmatprep.subr.mxu0 0.0
    %1508 = vmatpush1.msra.mxu0 0.0
    %1509 = vmatprep.subr.mxu0 0.0
    %1510 = vmatpush1.msra.mxu0 0.0
    %1511 = vmatprep.subr.mxu0 0.0
    %1512 = vmatpush1.msra.mxu0 0.0
    %1513 = vmatprep.subr.mxu0 0.0
    %1514 = vmatpush1.msra.mxu0 0.0
    %1515 = vmatprep.subr.mxu0 0.0
    %1516 = vmatpush1.msra.mxu0 0.0
    %1517 = vmatprep.subr.mxu0 0.0
    %1518 = vmatpush1.msra.mxu0 0.0
    %1519 = vmatprep.subr.mxu0 0.0
    %1520 = vmatpush1.msra.mxu0 0.0
    %1521 = vmatprep.subr.mxu0 0.0
    %1522 = vmatpush1.msra.mxu0 0.0
    %1523 = vmatprep.subr.mxu0 0.0
    %1524 = vmatpush1.msra.mxu0 0.0
    %1525 = vmatprep.subr.mxu0 0.0
    %1526 = vmatpush1.msra.mxu0 0.0
    %1527 = vmatprep.subr.mxu0 0.0
    %1528 = vmatpush1.msra.mxu0 0.0
    %1529 = vmatprep.subr.mxu0 0.0
    %1530 = vmatpush1.msra.mxu0 0.0
    %1531 = vmatprep.subr.mxu0 0.0
    %1532 = vmatpush1.msra.mxu0 0.0
    %1533 = vmatprep.mubr.f32.mxu0 0.0
    %1534 = vmatmul.mubr.f32.gmra.mrb[0].mxu0 %v1467
    %v1535 = vpop.f32.mrb[0].mxu0
    %v1536 = vadd.f32 0.0, %v1535
    %v1537 = vpop.f32.mrb[0].mxu0
    %1538 = vdwg.mxu0
    %v1539 = vadd.f32 %v1311, %v1536
    %v1540 = vtanh.pop %v1539
    %v1542 = vsel %vm107, %v1540, 0
    %1544 = vmatprep.subr.mxu0 0.0
    %1545 = vmatpush1.msra.mxu0 %v195
    %1546 = vmatprep.subr.mxu0 0.0
    %1547 = vmatpush1.msra.mxu0 %v196
    %1548 = vmatprep.subr.mxu0 0.0
    %1549 = vmatpush1.msra.mxu0 %v197
    %1550 = vmatprep.subr.mxu0 0.0
    %1551 = vmatpush1.msra.mxu0 %v198
    %1552 = vmatprep.subr.mxu0 0.0
    %1553 = vmatpush1.msra.mxu0 0.0
    %1554 = vmatprep.subr.mxu0 0.0
    %1555 = vmatpush1.msra.mxu0 0.0
    %1556 = vmatprep.subr.mxu0 0.0
    %1557 = vmatpush1.msra.mxu0 0.0
    %1558 = vmatprep.subr.mxu0 0.0
    %1559 = vmatpush1.msra.mxu0 0.0
    %1560 = vmatprep.subr.mxu0 0.0
    %1561 = vmatpush1.msra.mxu0 0.0
    %1562 = vmatprep.subr.mxu0 0.0
    %1563 = vmatpush1.msra.mxu0 0.0
    %1564 = vmatprep.subr.mxu0 0.0
    %1565 = vmatpush1.msra.mxu0 0.0
    %1566 = vmatprep.subr.mxu0 0.0
    %1567 = vmatpush1.msra.mxu0 0.0
    %1568 = vmatprep.subr.mxu0 0.0
    %1569 = vmatpush1.msra.mxu0 0.0
    %1570 = vmatprep.subr.mxu0 0.0
    %1571 = vmatpush1.msra.mxu0 0.0
    %1572 = vmatprep.subr.mxu0 0.0
    %1573 = vmatpush1.msra.mxu0 0.0
    %1574 = vmatprep.subr.mxu0 0.0
    %1575 = vmatpush1.msra.mxu0 0.0
    %1576 = vmatprep.subr.mxu0 0.0
    %1577 = vmatpush1.msra.mxu0 0.0
    %1578 = vmatprep.subr.mxu0 0.0
    %1579 = vmatpush1.msra.mxu0 0.0
    %1580 = vmatprep.subr.mxu0 0.0
    %1581 = vmatpush1.msra.mxu0 0.0
    %1582 = vmatprep.subr.mxu0 0.0
    %1583 = vmatpush1.msra.mxu0 0.0
    %1584 = vmatprep.subr.mxu0 0.0
    %1585 = vmatpush1.msra.mxu0 0.0
    %1586 = vmatprep.subr.mxu0 0.0
    %1587 = vmatpush1.msra.mxu0 0.0
    %1588 = vmatprep.subr.mxu0 0.0
    %1589 = vmatpush1.msra.mxu0 0.0
    %1590 = vmatprep.subr.mxu0 0.0
    %1591 = vmatpush1.msra.mxu0 0.0
    %1592 = vmatprep.subr.mxu0 0.0
    %1593 = vmatpush1.msra.mxu0 0.0
    %1594 = vmatprep.subr.mxu0 0.0
    %1595 = vmatpush1.msra.mxu0 0.0
    %1596 = vmatprep.subr.mxu0 0.0
    %1597 = vmatpush1.msra.mxu0 0.0
    %1598 = vmatprep.subr.mxu0 0.0
    %1599 = vmatpush1.msra.mxu0 0.0
    %1600 = vmatprep.subr.mxu0 0.0
    %1601 = vmatpush1.msra.mxu0 0.0
    %1602 = vmatprep.subr.mxu0 0.0
    %1603 = vmatpush1.msra.mxu0 0.0
    %1604 = vmatprep.subr.mxu0 0.0
    %1605 = vmatpush1.msra.mxu0 0.0
    %1606 = vmatprep.subr.mxu0 0.0
    %1607 = vmatpush1.msra.mxu0 0.0
    %1608 = vmatprep.mubr.f32.mxu0 0.0
    %1609 = vmatmul.mubr.f32.gmra.mrb[0].mxu0 %v1542
    %v1610 = vpop.f32.mrb[0].mxu0
    %v1611 = vadd.f32 %v199, %v1610
    %v1612 = vpop.f32.mrb[0].mxu0
    %1613 = vdwg.mxu0
    %v1614 = vsel %vm657, %v1611, -inf
    %1615 = vmax.xlane.f32.xlu0 %v1614
    %v1616 = vpop.xlane.xlu0 %1615
    %vm1617 = vcmp.eq.f32.partialorder %v1611, %v1616
    %v1618 = vsel %vm1617, %v89, 32
    %v1619 = vsel %vm657, %v1618, 2147483647
    %v1620 = vand.u32 %v1619, 65535
    %v1621 = vshra.s32 %v1619, 16
    %v1622 = vcvt.s32.f32 %v1620
    %v1623 = vcvt.s32.f32 %v1621
    %1624 = vmin.xlane.f32.xlu0 %v1623
    %v1625 = vpop.xlane.xlu0 %1624
    %vm1626 = vcmp.eq.f32.partialorder %v1623, %v1625
    %v1627 = vsel %vm1626, %v1622, inf
    %1628 = vmin.xlane.f32.xlu0 %v1627
    %v1629 = vpop.xlane.xlu0 %1628
    %v1630 = vcvt.f32.s32 %v1629
    %v1631 = vcvt.f32.s32 %v1625
    %v1632 = vshll.u32 %v1631, 16
    %v1633 = vadd.s32 %v1632, %v1630
    %vm1634 = vcmp.lt.s32.totalorder %v1633, 31
    %v1635 = vsel %vm1634, %v1633, 31
    %vm1636 = vcmp.eq.s32.totalorder %v89, %v1635
    %v1637 = vsel %vm1636, 1, 0
    %v1638 = vcvt.s32.f32 %v1637
    %v1639 = vsel %vm1164, 1, %v1635
    %vm1640 = vcmp.eq.s32.totalorder %v89, 2
    %v1641 = vsel %vm1640, %v1639, %v1158
    %v1642 = vsel %vm1164, 1, 0
    %vm1643 = vcmp.eq.s32.totalorder %v1642, 1
    %v1644 = vsel %vm1643, %v1161, %v1540
    %v1645 = vsel %vm1643, %v1162, %v1638
    %vm1646 = vcmp.eq.s32.totalorder %v1635, 1
    %vm1647 = vmor %vm1164, %vm1646
    %v1649 = vsel %vm107, %v1644, 0
    %1651 = vmatprep.subr.mxu0 0.0
    %1652 = vmatpush1.msra.mxu0 %v186
    %1653 = vmatprep.subr.mxu0 0.0
    %1654 = vmatpush1.msra.mxu0 %v187
    %1655 = vmatprep.subr.mxu0 0.0
    %1656 = vmatpush1.msra.mxu0 %v188
    %1657 = vmatprep.subr.mxu0 0.0
    %1658 = vmatpush1.msra.mxu0 %v189
    %1659 = vmatprep.subr.mxu0 0.0
    %1660 = vmatpush1.msra.mxu0 0.0
    %1661 = vmatprep.subr.mxu0 0.0
    %1662 = vmatpush1.msra.mxu0 0.0
    %1663 = vmatprep.subr.mxu0 0.0
    %1664 = vmatpush1.msra.mxu0 0.0
    %1665 = vmatprep.subr.mxu0 0.0
    %1666 = vmatpush1.msra.mxu0 0.0
    %1667 = vmatprep.subr.mxu0 0.0
    %1668 = vmatpush1.msra.mxu0 0.0
    %1669 = vmatprep.subr.mxu0 0.0
    %1670 = vmatpush1.msra.mxu0 0.0
    %1671 = vmatprep.subr.mxu0 0.0
    %1672 = vmatpush1.msra.mxu0 0.0
    %1673 = vmatprep.subr.mxu0 0.0
    %1674 = vmatpush1.msra.mxu0 0.0
    %1675 = vmatprep.subr.mxu0 0.0
    %1676 = vmatpush1.msra.mxu0 0.0
    %1677 = vmatprep.subr.mxu0 0.0
    %1678 = vmatpush1.msra.mxu0 0.0
    %1679 = vmatprep.subr.mxu0 0.0
    %1680 = vmatpush1.msra.mxu0 0.0
    %1681 = vmatprep.subr.mxu0 0.0
    %1682 = vmatpush1.msra.mxu0 0.0
    %1683 = vmatprep.subr.mxu0 0.0
    %1684 = vmatpush1.msra.mxu0 0.0
    %1685 = vmatprep.subr.mxu0 0.0
    %1686 = vmatpush1.msra.mxu0 0.0
    %1687 = vmatprep.subr.mxu0 0.0
    %1688 = vmatpush1.msra.mxu0 0.0
    %1689 = vmatprep.subr.mxu0 0.0
    %1690 = vmatpush1.msra.mxu0 0.0
    %1691 = vmatprep.subr.mxu0 0.0
    %1692 = vmatpush1.msra.mxu0 0.0
    %1693 = vmatprep.subr.mxu0 0.0
    %1694 = vmatpush1.msra.mxu0 0.0
    %1695 = vmatprep.subr.mxu0 0.0
    %1696 = vmatpush1.msra.mxu0 0.0
    %1697 = vmatprep.subr.mxu0 0.0
    %1698 = vmatpush1.msra.mxu0 0.0
    %1699 = vmatprep.subr.mxu0 0.0
    %1700 = vmatpush1.msra.mxu0 0.0
    %1701 = vmatprep.subr.mxu0 0.0
    %1702 = vmatpush1.msra.mxu0 0.0
    %1703 = vmatprep.subr.mxu0 0.0
    %1704 = vmatpush1.msra.mxu0 0.0
    %1705 = vmatprep.subr.mxu0 0.0
    %1706 = vmatpush1.msra.mxu0 0.0
    %1707 = vmatprep.subr.mxu0 0.0
    %1708 = vmatpush1.msra.mxu0 0.0
    %1709 = vmatprep.subr.mxu0 0.0
    %1710 = vmatpush1.msra.mxu0 0.0
    %1711 = vmatprep.subr.mxu0 0.0
    %1712 = vmatpush1.msra.mxu0 0.0
    %1713 = vmatprep.subr.mxu0 0.0
    %1714 = vmatpush1.msra.mxu0 0.0
    %1715 = vmatprep.mubr.f32.mxu0 0.0
    %1716 = vmatmul.mubr.f32.gmra.mrb[0].mxu0 %v1649
    %v1717 = vpop.f32.mrb[0].mxu0
    %v1718 = vadd.f32 0.0, %v1717
    %v1719 = vpop.f32.mrb[0].mxu0
    %1720 = vdwg.mxu0
    %v1722 = vsel %vm107, %v1645, 0
    %1724 = vmatprep.subr.mxu0 0.0
    %1725 = vmatpush1.msra.mxu0 %v182
    %1726 = vmatprep.subr.mxu0 0.0
    %1727 = vmatpush1.msra.mxu0 %v183
    %1728 = vmatprep.subr.mxu0 0.0
    %1729 = vmatpush1.msra.mxu0 %v184
    %1730 = vmatprep.subr.mxu0 0.0
    %1731 = vmatpush1.msra.mxu0 %v185
    %1732 = vmatprep.subr.mxu0 0.0
    %1733 = vmatpush1.msra.mxu0 0.0
    %1734 = vmatprep.subr.mxu0 0.0
    %1735 = vmatpush1.msra.mxu0 0.0
    %1736 = vmatprep.subr.mxu0 0.0
    %1737 = vmatpush1.msra.mxu0 0.0
    %1738 = vmatprep.subr.mxu0 0.0
    %1739 = vmatpush1.msra.mxu0 0.0
    %1740 = vmatprep.subr.mxu0 0.0
    %1741 = vmatpush1.msra.mxu0 0.0
    %1742 = vmatprep.subr.mxu0 0.0
    %1743 = vmatpush1.msra.mxu0 0.0
    %1744 = vmatprep.subr.mxu0 0.0
    %1745 = vmatpush1.msra.mxu0 0.0
    %1746 = vmatprep.subr.mxu0 0.0
    %1747 = vmatpush1.msra.mxu0 0.0
    %1748 = vmatprep.subr.mxu0 0.0
    %1749 = vmatpush1.msra.mxu0 0.0
    %1750 = vmatprep.subr.mxu0 0.0
    %1751 = vmatpush1.msra.mxu0 0.0
    %1752 = vmatprep.subr.mxu0 0.0
    %1753 = vmatpush1.msra.mxu0 0.0
    %1754 = vmatprep.subr.mxu0 0.0
    %1755 = vmatpush1.msra.mxu0 0.0
    %1756 = vmatprep.subr.mxu0 0.0
    %1757 = vmatpush1.msra.mxu0 0.0
    %1758 = vmatprep.subr.mxu0 0.0
    %1759 = vmatpush1.msra.mxu0 0.0
    %1760 = vmatprep.subr.mxu0 0.0
    %1761 = vmatpush1.msra.mxu0 0.0
    %1762 = vmatprep.subr.mxu0 0.0
    %1763 = vmatpush1.msra.mxu0 0.0
    %1764 = vmatprep.subr.mxu0 0.0
    %1765 = vmatpush1.msra.mxu0 0.0
    %1766 = vmatprep.subr.mxu0 0.0
    %1767 = vmatpush1.msra.mxu0 0.0
    %1768 = vmatprep.subr.mxu0 0.0
    %1769 = vmatpush1.msra.mxu0 0.0
    %1770 = vmatprep.subr.mxu0 0.0
    %1771 = vmatpush1.msra.mxu0 0.0
    %1772 = vmatprep.subr.mxu0 0.0
    %1773 = vmatpush1.msra.mxu0 0.0
    %1774 = vmatprep.subr.mxu0 0.0
    %1775 = vmatpush1.msra.mxu0 0.0
    %1776 = vmatprep.subr.mxu0 0.0
    %1777 = vmatpush1.msra.mxu0 0.0
    %1778 = vmatprep.subr.mxu0 0.0
    %1779 = vmatpush1.msra.mxu0 0.0
    %1780 = vmatprep.subr.mxu0 0.0
    %1781 = vmatpush1.msra.mxu0 0.0
    %1782 = vmatprep.subr.mxu0 0.0
    %1783 = vmatpush1.msra.mxu0 0.0
    %1784 = vmatprep.subr.mxu0 0.0
    %1785 = vmatpush1.msra.mxu0 0.0
    %1786 = vmatprep.subr.mxu0 0.0
    %1787 = vmatpush1.msra.mxu0 0.0
    %1788 = vmatprep.mubr.f32.mxu0 0.0
    %1789 = vmatmul.mubr.f32.gmra.mrb[0].mxu0 %v1722
    %v1790 = vpop.f32.mrb[0].mxu0
    %v1791 = vadd.f32 %v1718, %v1790
    %v1792 = vpop.f32.mrb[0].mxu0
    %1793 = vdwg.mxu0
    %v1794 = vadd.f32 %v1791, %v194
    %1795 = vmatprep.subr.mxu0 0.0
    %1796 = vmatpush1.xpose.msra.mxu0 %v351
    %1797 = vmatprep.subr.mxu0 0.0
    %1798 = vmatpush1.xpose.msra.mxu0 0.0
    %1799 = vmatprep.subr.mxu0 0.0
    %1800 = vmatpush1.xpose.msra.mxu0 0.0
    %1801 = vmatprep.subr.mxu0 0.0
    %1802 = vmatpush1.xpose.msra.mxu0 0.0
    %1803 = vmatprep.subr.mxu0 0.0
    %1804 = vmatpush1.xpose.msra.mxu0 0.0
    %1805 = vmatprep.subr.mxu0 0.0
    %1806 = vmatpush1.xpose.msra.mxu0 0.0
    %1807 = vmatprep.subr.mxu0 0.0
    %1808 = vmatpush1.xpose.msra.mxu0 0.0
    %1809 = vmatprep.subr.mxu0 0.0
    %1810 = vmatpush1.xpose.msra.mxu0 0.0
    %1811 = vmatprep.subr.mxu0 0.0
    %1812 = vmatpush1.xpose.msra.mxu0 0.0
    %1813 = vmatprep.subr.mxu0 0.0
    %1814 = vmatpush1.xpose.msra.mxu0 0.0
    %1815 = vmatprep.subr.mxu0 0.0
    %1816 = vmatpush1.xpose.msra.mxu0 0.0
    %1817 = vmatprep.subr.mxu0 0.0
    %1818 = vmatpush1.xpose.msra.mxu0 0.0
    %1819 = vmatprep.subr.mxu0 0.0
    %1820 = vmatpush1.xpose.msra.mxu0 0.0
    %1821 = vmatprep.subr.mxu0 0.0
    %1822 = vmatpush1.xpose.msra.mxu0 0.0
    %1823 = vmatprep.subr.mxu0 0.0
    %1824 = vmatpush1.xpose.msra.mxu0 0.0
    %1825 = vmatprep.subr.mxu0 0.0
    %1826 = vmatpush1.xpose.msra.mxu0 0.0
    %1827 = vmatprep.subr.mxu0 0.0
    %1828 = vmatpush1.xpose.msra.mxu0 0.0
    %1829 = vmatprep.subr.mxu0 0.0
    %1830 = vmatpush1.xpose.msra.mxu0 0.0
    %1831 = vmatprep.subr.mxu0 0.0
    %1832 = vmatpush1.xpose.msra.mxu0 0.0
    %1833 = vmatprep.subr.mxu0 0.0
    %1834 = vmatpush1.xpose.msra.mxu0 0.0
    %1835 = vmatprep.subr.mxu0 0.0
    %1836 = vmatpush1.xpose.msra.mxu0 0.0
    %1837 = vmatprep.subr.mxu0 0.0
    %1838 = vmatpush1.xpose.msra.mxu0 0.0
    %1839 = vmatprep.subr.mxu0 0.0
    %1840 = vmatpush1.xpose.msra.mxu0 0.0
    %1841 = vmatprep.subr.mxu0 0.0
    %1842 = vmatpush1.xpose.msra.mxu0 0.0
    %1843 = vmatprep.subr.mxu0 0.0
    %1844 = vmatpush1.xpose.msra.mxu0 0.0
    %1845 = vmatprep.subr.mxu0 0.0
    %1846 = vmatpush1.xpose.msra.mxu0 0.0
    %1847 = vmatprep.subr.mxu0 0.0
    %1848 = vmatpush1.xpose.msra.mxu0 0.0
    %1849 = vmatprep.subr.mxu0 0.0
    %1850 = vmatpush1.xpose.msra.mxu0 0.0
    %1851 = vmatprep.subr.mxu0 0.0
    %1852 = vmatpush1.xpose.msra.mxu0 0.0
    %1853 = vmatprep.subr.mxu0 0.0
    %1854 = vmatpush1.xpose.msra.mxu0 0.0
    %1855 = vmatprep.subr.mxu0 0.0
    %1856 = vmatpush1.xpose.msra.mxu0 0.0
    %1857 = vmatprep.subr.mxu0 0.0
    %1858 = vmatpush1.xpose.msra.mxu0 0.0
    %1859 = vmatprep.mubr.f32.mxu0 0.0
    %1860 = vmatmul.mubr.f32.gmra.mrb[0].mxu0 %v1649
    %v1861 = vpop.f32.mrb[0].mxu0
    %v1862 = vadd.f32 0.0, %v1861
    %v1863 = vpop.f32.mrb[0].mxu0
    %1864 = vdwg.mxu0
    %v1865 = vsel %vm423, %v1862, -inf
    %1866 = vmax.xlane.f32.xlu0 %v1865
    %v1867 = vpop.xlane.xlu0 %1866
    %v1868 = vsub.f32 %v1862, %v1867
    %v1869 = vmul.f32 %v1868, 1.442695
    %v1870 = vpow.pop %v1869
    %v1871 = vsel %vm423, %v1870, 0.0
    %1872 = vadd.xlane.f32.xlu0 %v1871
    %v1873 = vpop.xlane.xlu0 %1872
    %v1874 = vrcp.pop %v1873
    %v1875 = vmul.f32 %v1870, %v1874
    %v1877 = vsel %vm435, %v1875, 0
    %1879 = vmatprep.subr.mxu0 0.0
    %1880 = vmatpush1.msra.mxu0 %v181
    %1881 = vmatprep.subr.mxu0 0.0
    %1882 = vmatpush1.msra.mxu0 0.0
    %1883 = vmatprep.subr.mxu0 0.0
    %1884 = vmatpush1.msra.mxu0 0.0
    %1885 = vmatprep.subr.mxu0 0.0
    %1886 = vmatpush1.msra.mxu0 0.0
    %1887 = vmatprep.subr.mxu0 0.0
    %1888 = vmatpush1.msra.mxu0 0.0
    %1889 = vmatprep.subr.mxu0 0.0
    %1890 = vmatpush1.msra.mxu0 0.0
    %1891 = vmatprep.subr.mxu0 0.0
    %1892 = vmatpush1.msra.mxu0 0.0
    %1893 = vmatprep.subr.mxu0 0.0
    %1894 = vmatpush1.msra.mxu0 0.0
    %1895 = vmatprep.subr.mxu0 0.0
    %1896 = vmatpush1.msra.mxu0 0.0
    %1897 = vmatprep.subr.mxu0 0.0
    %1898 = vmatpush1.msra.mxu0 0.0
    %1899 = vmatprep.subr.mxu0 0.0
    %1900 = vmatpush1.msra.mxu0 0.0
    %1901 = vmatprep.subr.mxu0 0.0
    %1902 = vmatpush1.msra.mxu0 0.0
    %1903 = vmatprep.subr.mxu0 0.0
    %1904 = vmatpush1.msra.mxu0 0.0
    %1905 = vmatprep.subr.mxu0 0.0
    %1906 = vmatpush1.msra.mxu0 0.0
    %1907 = vmatprep.subr.mxu0 0.0
    %1908 = vmatpush1.msra.mxu0 0.0
    %1909 = vmatprep.subr.mxu0 0.0
    %1910 = vmatpush1.msra.mxu0 0.0
    %1911 = vmatprep.subr.mxu0 0.0
    %1912 = vmatpush1.msra.mxu0 0.0
    %1913 = vmatprep.subr.mxu0 0.0
    %1914 = vmatpush1.msra.mxu0 0.0
    %1915 = vmatprep.subr.mxu0 0.0
    %1916 = vmatpush1.msra.mxu0 0.0
    %1917 = vmatprep.subr.mxu0 0.0
    %1918 = vmatpush1.msra.mxu0 0.0
    %1919 = vmatprep.subr.mxu0 0.0
    %1920 = vmatpush1.msra.mxu0 0.0
    %1921 = vmatprep.subr.mxu0 0.0
    %1922 = vmatpush1.msra.mxu0 0.0
    %1923 = vmatprep.subr.mxu0 0.0
    %1924 = vmatpush1.msra.mxu0 0.0
    %1925 = vmatprep.subr.mxu0 0.0
    %1926 = vmatpush1.msra.mxu0 0.0
    %1927 = vmatprep.subr.mxu0 0.0
    %1928 = vmatpush1.msra.mxu0 0.0
    %1929 = vmatprep.subr.mxu0 0.0
    %1930 = vmatpush1.msra.mxu0 0.0
    %1931 = vmatprep.subr.mxu0 0.0
    %1932 = vmatpush1.msra.mxu0 0.0
    %1933 = vmatprep.subr.mxu0 0.0
    %1934 = vmatpush1.msra.mxu0 0.0
    %1935 = vmatprep.subr.mxu0 0.0
    %1936 = vmatpush1.msra.mxu0 0.0
    %1937 = vmatprep.subr.mxu0 0.0
    %1938 = vmatpush1.msra.mxu0 0.0
    %1939 = vmatprep.subr.mxu0 0.0
    %1940 = vmatpush1.msra.mxu0 0.0
    %1941 = vmatprep.subr.mxu0 0.0
    %1942 = vmatpush1.msra.mxu0 0.0
    %1943 = vmatprep.mubr.f32.mxu0 0.0
    %1944 = vmatmul.mubr.f32.gmra.mrb[0].mxu0 %v1877
    %v1945 = vpop.f32.mrb[0].mxu0
    %v1946 = vadd.f32 0.0, %v1945
    %v1947 = vpop.f32.mrb[0].mxu0
    %1948 = vdwg.mxu0
    %v1950 = vsel %vm107, %v1946, 0
    %1952 = vmatprep.subr.mxu0 0.0
    %1953 = vmatpush1.msra.mxu0 %v190
    %1954 = vmatprep.subr.mxu0 0.0
    %1955 = vmatpush1.msra.mxu0 %v191
    %1956 = vmatprep.subr.mxu0 0.0
    %1957 = vmatpush1.msra.mxu0 %v192
    %1958 = vmatprep.subr.mxu0 0.0
    %1959 = vmatpush1.msra.mxu0 %v193
    %1960 = vmatprep.subr.mxu0 0.0
    %1961 = vmatpush1.msra.mxu0 0.0
    %1962 = vmatprep.subr.mxu0 0.0
    %1963 = vmatpush1.msra.mxu0 0.0
    %1964 = vmatprep.subr.mxu0 0.0
    %1965 = vmatpush1.msra.mxu0 0.0
    %1966 = vmatprep.subr.mxu0 0.0
    %1967 = vmatpush1.msra.mxu0 0.0
    %1968 = vmatprep.subr.mxu0 0.0
    %1969 = vmatpush1.msra.mxu0 0.0
    %1970 = vmatprep.subr.mxu0 0.0
    %1971 = vmatpush1.msra.mxu0 0.0
    %1972 = vmatprep.subr.mxu0 0.0
    %1973 = vmatpush1.msra.mxu0 0.0
    %1974 = vmatprep.subr.mxu0 0.0
    %1975 = vmatpush1.msra.mxu0 0.0
    %1976 = vmatprep.subr.mxu0 0.0
    %1977 = vmatpush1.msra.mxu0 0.0
    %1978 = vmatprep.subr.mxu0 0.0
    %1979 = vmatpush1.msra.mxu0 0.0
    %1980 = vmatprep.subr.mxu0 0.0
    %1981 = vmatpush1.msra.mxu0 0.0
    %1982 = vmatprep.subr.mxu0 0.0
    %1983 = vmatpush1.msra.mxu0 0.0
    %1984 = vmatprep.subr.mxu0 0.0
    %1985 = vmatpush1.msra.mxu0 0.0
    %1986 = vmatprep.subr.mxu0 0.0
    %1987 = vmatpush1.msra.mxu0 0.0
    %1988 = vmatprep.subr.mxu0 0.0
    %1989 = vmatpush1.msra.mxu0 0.0
    %1990 = vmatprep.subr.mxu0 0.0
    %1991 = vmatpush1.msra.mxu0 0.0
    %1992 = vmatprep.subr.mxu0 0.0
    %1993 = vmatpush1.msra.mxu0 0.0
    %1994 = vmatprep.subr.mxu0 0.0
    %1995 = vmatpush1.msra.mxu0 0.0
    %1996 = vmatprep.subr.mxu0 0.0
    %1997 = vmatpush1.msra.mxu0 0.0
    %1998 = vmatprep.subr.mxu0 0.0
    %1999 = vmatpush1.msra.mxu0 0.0
    %2000 = vmatprep.subr.mxu0 0.0
    %2001 = vmatpush1.msra.mxu0 0.0
    %2002 = vmatprep.subr.mxu0 0.0
    %2003 = vmatpush1.msra.mxu0 0.0
    %2004 = vmatprep.subr.mxu0 0.0
    %2005 = vmatpush1.msra.mxu0 0.0
    %2006 = vmatprep.subr.mxu0 0.0
    %2007 = vmatpush1.msra.mxu0 0.0
    %2008 = vmatprep.subr.mxu0 0.0
    %2009 = vmatpush1.msra.mxu0 0.0
    %2010 = vmatprep.subr.mxu0 0.0
    %2011 = vmatpush1.msra.mxu0 0.0
    %2012 = vmatprep.subr.mxu0 0.0
    %2013 = vmatpush1.msra.mxu0 0.0
    %2014 = vmatprep.subr.mxu0 0.0
    %2015 = vmatpush1.msra.mxu0 0.0
    %2016 = vmatprep.mubr.f32.mxu0 0.0
    %2017 = vmatmul.mubr.f32.gmra.mrb[0].mxu0 %v1950
    %v2018 = vpop.f32.mrb[0].mxu0
    %v2019 = vadd.f32 0.0, %v2018
    %v2020 = vpop.f32.mrb[0].mxu0
    %2021 = vdwg.mxu0
    %v2022 = vadd.f32 %v1794, %v2019
    %v2023 = vtanh.pop %v2022
    %v2025 = vsel %vm107, %v2023, 0
    %2027 = vmatprep.subr.mxu0 0.0
    %2028 = vmatpush1.msra.mxu0 %v195
    %2029 = vmatprep.subr.mxu0 0.0
    %2030 = vmatpush1.msra.mxu0 %v196
    %2031 = vmatprep.subr.mxu0 0.0
    %2032 = vmatpush1.msra.mxu0 %v197
    %2033 = vmatprep.subr.mxu0 0.0
    %2034 = vmatpush1.msra.mxu0 %v198
    %2035 = vmatprep.subr.mxu0 0.0
    %2036 = vmatpush1.msra.mxu0 0.0
    %2037 = vmatprep.subr.mxu0 0.0
    %2038 = vmatpush1.msra.mxu0 0.0
    %2039 = vmatprep.subr.mxu0 0.0
    %2040 = vmatpush1.msra.mxu0 0.0
    %2041 = vmatprep.subr.mxu0 0.0
    %2042 = vmatpush1.msra.mxu0 0.0
    %2043 = vmatprep.subr.mxu0 0.0
    %2044 = vmatpush1.msra.mxu0 0.0
    %2045 = vmatprep.subr.mxu0 0.0
    %2046 = vmatpush1.msra.mxu0 0.0
    %2047 = vmatprep.subr.mxu0 0.0
    %2048 = vmatpush1.msra.mxu0 0.0
    %2049 = vmatprep.subr.mxu0 0.0
    %2050 = vmatpush1.msra.mxu0 0.0
    %2051 = vmatprep.subr.mxu0 0.0
    %2052 = vmatpush1.msra.mxu0 0.0
    %2053 = vmatprep.subr.mxu0 0.0
    %2054 = vmatpush1.msra.mxu0 0.0
    %2055 = vmatprep.subr.mxu0 0.0
    %2056 = vmatpush1.msra.mxu0 0.0
    %2057 = vmatprep.subr.mxu0 0.0
    %2058 = vmatpush1.msra.mxu0 0.0
    %2059 = vmatprep.subr.mxu0 0.0
    %2060 = vmatpush1.msra.mxu0 0.0
    %2061 = vmatprep.subr.mxu0 0.0
    %2062 = vmatpush1.msra.mxu0 0.0
    %2063 = vmatprep.subr.mxu0 0.0
    %2064 = vmatpush1.msra.mxu0 0.0
    %2065 = vmatprep.subr.mxu0 0.0
    %2066 = vmatpush1.msra.mxu0 0.0
    %2067 = vmatprep.subr.mxu0 0.0
    %2068 = vmatpush1.msra.mxu0 0.0
    %2069 = vmatprep.subr.mxu0 0.0
    %2070 = vmatpush1.msra.mxu0 0.0
    %2071 = vmatprep.subr.mxu0 0.0
    %2072 = vmatpush1.msra.mxu0 0.0
    %2073 = vmatprep.subr.mxu0 0.0
    %2074 = vmatpush1.msra.mxu0 0.0
    %2075 = vmatprep.subr.mxu0 0.0
    %2076 = vmatpush1.msra.mxu0 0.0
    %2077 = vmatprep.subr.mxu0 0.0
    %2078 = vmatpush1.msra.mxu0 0.0
    %2079 = vmatprep.subr.mxu0 0.0
    %2080 = vmatpush1.msra.mxu0 0.0
    %2081 = vmatprep.subr.mxu0 0.0
    %2082 = vmatpush1.msra.mxu0 0.0
    %2083 = vmatprep.subr.mxu0 0.0
    %2084 = vmatpush1.msra.mxu0 0.0
    %2085 = vmatprep.subr.mxu0 0.0
    %2086 = vmatpush1.msra.mxu0 0.0
    %2087 = vmatprep.subr.mxu0 0.0
    %2088 = vmatpush1.msra.mxu0 0.0
    %2089 = vmatprep.subr.mxu0 0.0
    %2090 = vmatpush1.msra.mxu0 0.0
    %2091 = vmatprep.mubr.f32.mxu0 0.0
    %2092 = vmatmul.mubr.f32.gmra.mrb[0].mxu0 %v2025
    %v2093 = vpop.f32.mrb[0].mxu0
    %v2094 = vadd.f32 %v199, %v2093
    %v2095 = vpop.f32.mrb[0].mxu0
    %2096 = vdwg.mxu0
    %v2097 = vsel %vm657, %v2094, -inf
    %2098 = vmax.xlane.f32.xlu0 %v2097
    %v2099 = vpop.xlane.xlu0 %2098
    %vm2100 = vcmp.eq.f32.partialorder %v2094, %v2099
    %v2101 = vsel %vm2100, %v89, 32
    %v2102 = vsel %vm657, %v2101, 2147483647
    %v2103 = vand.u32 %v2102, 65535
    %v2104 = vshra.s32 %v2102, 16
    %v2105 = vcvt.s32.f32 %v2103
    %v2106 = vcvt.s32.f32 %v2104
    %2107 = vmin.xlane.f32.xlu0 %v2106
    %v2108 = vpop.xlane.xlu0 %2107
    %vm2109 = vcmp.eq.f32.partialorder %v2106, %v2108
    %v2110 = vsel %vm2109, %v2105, inf
    %2111 = vmin.xlane.f32.xlu0 %v2110
    %v2112 = vpop.xlane.xlu0 %2111
    %v2113 = vcvt.f32.s32 %v2112
    %v2114 = vcvt.f32.s32 %v2108
    %v2115 = vshll.u32 %v2114, 16
    %v2116 = vadd.s32 %v2115, %v2113
    %vm2117 = vcmp.lt.s32.totalorder %v2116, 31
    %v2118 = vsel %vm2117, %v2116, 31
    %vm2119 = vcmp.eq.s32.totalorder %v89, %v2118
    %v2120 = vsel %vm2119, 1, 0
    %v2121 = vcvt.s32.f32 %v2120
    %v2122 = vsel %vm1647, 1, %v2118
    %vm2123 = vcmp.eq.s32.totalorder %v89, 3
    %v2124 = vsel %vm2123, %v2122, %v1641
    %v2125 = vsel %vm1647, 1, 0
    %vm2126 = vcmp.eq.s32.totalorder %v2125, 1
    %v2127 = vsel %vm2126, %v1644, %v2023
    %v2128 = vsel %vm2126, %v1645, %v2121
    %vm2129 = vcmp.eq.s32.totalorder %v2118, 1
    %vm2130 = vmor %vm1647, %vm2129
    %v2132 = vsel %vm107, %v2127, 0
    %2134 = vmatprep.subr.mxu0 0.0
    %2135 = vmatpush1.msra.mxu0 %v186
    %2136 = vmatprep.subr.mxu0 0.0
    %2137 = vmatpush1.msra.mxu0 %v187
    %2138 = vmatprep.subr.mxu0 0.0
    %2139 = vmatpush1.msra.mxu0 %v188
    %2140 = vmatprep.subr.mxu0 0.0
    %2141 = vmatpush1.msra.mxu0 %v189
    %2142 = vmatprep.subr.mxu0 0.0
    %2143 = vmatpush1.msra.mxu0 0.0
    %2144 = vmatprep.subr.mxu0 0.0
    %2145 = vmatpush1.msra.mxu0 0.0
    %2146 = vmatprep.subr.mxu0 0.0
    %2147 = vmatpush1.msra.mxu0 0.0
    %2148 = vmatprep.subr.mxu0 0.0
    %2149 = vmatpush1.msra.mxu0 0.0
    %2150 = vmatprep.subr.mxu0 0.0
    %2151 = vmatpush1.msra.mxu0 0.0
    %2152 = vmatprep.subr.mxu0 0.0
    %2153 = vmatpush1.msra.mxu0 0.0
    %2154 = vmatprep.subr.mxu0 0.0
    %2155 = vmatpush1.msra.mxu0 0.0
    %2156 = vmatprep.subr.mxu0 0.0
    %2157 = vmatpush1.msra.mxu0 0.0
    %2158 = vmatprep.subr.mxu0 0.0
    %2159 = vmatpush1.msra.mxu0 0.0
    %2160 = vmatprep.subr.mxu0 0.0
    %2161 = vmatpush1.msra.mxu0 0.0
    %2162 = vmatprep.subr.mxu0 0.0
    %2163 = vmatpush1.msra.mxu0 0.0
    %2164 = vmatprep.subr.mxu0 0.0
    %2165 = vmatpush1.msra.mxu0 0.0
    %2166 = vmatprep.subr.mxu0 0.0
    %2167 = vmatpush1.msra.mxu0 0.0
    %2168 = vmatprep.subr.mxu0 0.0
    %2169 = vmatpush1.msra.mxu0 0.0
    %2170 = vmatprep.subr.mxu0 0.0
    %2171 = vmatpush1.msra.mxu0 0.0
    %2172 = vmatprep.subr.mxu0 0.0
    %2173 = vmatpush1.msra.mxu0 0.0
    %2174 = vmatprep.subr.mxu0 0.0
    %2175 = vmatpush1.msra.mxu0 0.0
    %2176 = vmatprep.subr.mxu0 0.0
    %2177 = vmatpush1.msra.mxu0 0.0
    %2178 = vmatprep.subr.mxu0 0.0
    %2179 = vmatpush1.msra.mxu0 0.0
    %2180 = vmatprep.subr.mxu0 0.0
    %2181 = vmatpush1.msra.mxu0 0.0
    %2182 = vmatprep.subr.mxu0 0.0
    %2183 = vmatpush1.msra.mxu0 0.0
    %2184 = vmatprep.subr.mxu0 0.0
    %2185 = vmatpush1.msra.mxu0 0.0
    %2186 = vmatprep.subr.mxu0 0.0
    %2187 = vmatpush1.msra.mxu0 0.0
    %2188 = vmatprep.subr.mxu0 0.0
    %2189 = vmatpush1.msra.mxu0 0.0
    %2190 = vmatprep.subr.mxu0 0.0
    %2191 = vmatpush1.msra.mxu0 0.0
    %2192 = vmatprep.subr.mxu0 0.0
    %2193 = vmatpush1.msra.mxu0 0.0
    %2194 = vmatprep.subr.mxu0 0.0
    %2195 = vmatpush1.msra.mxu0 0.0
    %2196 = vmatprep.subr.mxu0 0.0
    %2197 = vmatpush1.msra.mxu0 0.0
    %2198 = vmatprep.mubr.f32.mxu0 0.0
    %2199 = vmatmul.mubr.f32.gmra.mrb[0].mxu0 %v2132
    %v2200 = vpop.f32.mrb[0].mxu0
    %v2201 = vadd.f32 0.0, %v2200
    %v2202 = vpop.f32.mrb[0].mxu0
    %2203 = vdwg.mxu0
    %v2205 = vsel %vm107, %v2128, 0
    %2207 = vmatprep.subr.mxu0 0.0
    %2208 = vmatpush1.msra.mxu0 %v182
    %2209 = vmatprep.subr.mxu0 0.0
    %2210 = vmatpush1.msra.mxu0 %v183
    %2211 = vmatprep.subr.mxu0 0.0
    %2212 = vmatpush1.msra.mxu0 %v184
    %2213 = vmatprep.subr.mxu0 0.0
    %2214 = vmatpush1.msra.mxu0 %v185
    %2215 = vmatprep.subr.mxu0 0.0
    %2216 = vmatpush1.msra.mxu0 0.0
    %2217 = vmatprep.subr.mxu0 0.0
    %2218 = vmatpush1.msra.mxu0 0.0
    %2219 = vmatprep.subr.mxu0 0.0
    %2220 = vmatpush1.msra.mxu0 0.0
    %2221 = vmatprep.subr.mxu0 0.0
    %2222 = vmatpush1.msra.mxu0 0.0
    %2223 = vmatprep.subr.mxu0 0.0
    %2224 = vmatpush1.msra.mxu0 0.0
    %2225 = vmatprep.subr.mxu0 0.0
    %2226 = vmatpush1.msra.mxu0 0.0
    %2227 = vmatprep.subr.mxu0 0.0
    %2228 = vmatpush1.msra.mxu0 0.0
    %2229 = vmatprep.subr.mxu0 0.0
    %2230 = vmatpush1.msra.mxu0 0.0
    %2231 = vmatprep.subr.mxu0 0.0
    %2232 = vmatpush1.msra.mxu0 0.0
    %2233 = vmatprep.subr.mxu0 0.0
    %2234 = vmatpush1.msra.mxu0 0.0
    %2235 = vmatprep.subr.mxu0 0.0
    %2236 = vmatpush1.msra.mxu0 0.0
    %2237 = vmatprep.subr.mxu0 0.0
    %2238 = vmatpush1.msra.mxu0 0.0
    %2239 = vmatprep.subr.mxu0 0.0
    %2240 = vmatpush1.msra.mxu0 0.0
    %2241 = vmatprep.subr.mxu0 0.0
    %2242 = vmatpush1.msra.mxu0 0.0
    %2243 = vmatprep.subr.mxu0 0.0
    %2244 = vmatpush1.msra.mxu0 0.0
    %2245 = vmatprep.subr.mxu0 0.0
    %2246 = vmatpush1.msra.mxu0 0.0
    %2247 = vmatprep.subr.mxu0 0.0
    %2248 = vmatpush1.msra.mxu0 0.0
    %2249 = vmatprep.subr.mxu0 0.0
    %2250 = vmatpush1.msra.mxu0 0.0
    %2251 = vmatprep.subr.mxu0 0.0
    %2252 = vmatpush1.msra.mxu0 0.0
    %2253 = vmatprep.subr.mxu0 0.0
    %2254 = vmatpush1.msra.mxu0 0.0
    %2255 = vmatprep.subr.mxu0 0.0
    %2256 = vmatpush1.msra.mxu0 0.0
    %2257 = vmatprep.subr.mxu0 0.0
    %2258 = vmatpush1.msra.mxu0 0.0
    %2259 = vmatprep.subr.mxu0 0.0
    %2260 = vmatpush1.msra.mxu0 0.0
    %2261 = vmatprep.subr.mxu0 0.0
    %2262 = vmatpush1.msra.mxu0 0.0
    %2263 = vmatprep.subr.mxu0 0.0
    %2264 = vmatpush1.msra.mxu0 0.0
    %2265 = vmatprep.subr.mxu0 0.0
    %2266 = vmatpush1.msra.mxu0 0.0
    %2267 = vmatprep.subr.mxu0 0.0
    %2268 = vmatpush1.msra.mxu0 0.0
    %2269 = vmatprep.subr.mxu0 0.0
    %2270 = vmatpush1.msra.mxu0 0.0
    %2271 = vmatprep.mubr.f32.mxu0 0.0
    %2272 = vmatmul.mubr.f32.gmra.mrb[0].mxu0 %v2205
    %v2273 = vpop.f32.mrb[0].mxu0
    %v2274 = vadd.f32 %v2201, %v2273
    %v2275 = vpop.f32.mrb[0].mxu0
    %2276 = vdwg.mxu0
    %v2277 = vadd.f32 %v2274, %v194
    %2278 = vmatprep.subr.mxu0 0.0
    %2279 = vmatpush1.xpose.msra.mxu0 %v351
    %2280 = vmatprep.subr.mxu0 0.0
    %2281 = vmatpush1.xpose.msra.mxu0 0.0
    %2282 = vmatprep.subr.mxu0 0.0
    %2283 = vmatpush1.xpose.msra.mxu0 0.0
    %2284 = vmatprep.subr.mxu0 0.0
    %2285 = vmatpush1.xpose.msra.mxu0 0.0
    %2286 = vmatprep.subr.mxu0 0.0
    %2287 = vmatpush1.xpose.msra.mxu0 0.0
    %2288 = vmatprep.subr.mxu0 0.0
    %2289 = vmatpush1.xpose.msra.mxu0 0.0
    %2290 = vmatprep.subr.mxu0 0.0
    %2291 = vmatpush1.xpose.msra.mxu0 0.0
    %2292 = vmatprep.subr.mxu0 0.0
    %2293 = vmatpush1.xpose.msra.mxu0 0.0
    %2294 = vmatprep.subr.mxu0 0.0
    %2295 = vmatpush1.xpose.msra.mxu0 0.0
    %2296 = vmatprep.subr.mxu0 0.0
    %2297 = vmatpush1.xpose.msra.mxu0 0.0
    %2298 = vmatprep.subr.mxu0 0.0
    %2299 = vmatpush1.xpose.msra.mxu0 0.0
    %2300 = vmatprep.subr.mxu0 0.0
    %2301 = vmatpush1.xpose.msra.mxu0 0.0
    %2302 = vmatprep.subr.mxu0 0.0
    %2303 = vmatpush1.xpose.msra.mxu0 0.0
    %2304 = vmatprep.subr.mxu0 0.0
    %2305 = vmatpush1.xpose.msra.mxu0 0.0
    %2306 = vmatprep.subr.mxu0 0.0
    %2307 = vmatpush1.xpose.msra.mxu0 0.0
    %2308 = vmatprep.subr.mxu0 0.0
    %2309 = vmatpush1.xpose.msra.mxu0 0.0
    %2310 = vmatprep.subr.mxu0 0.0
    %2311 = vmatpush1.xpose.msra.mxu0 0.0
    %2312 = vmatprep.subr.mxu0 0.0
    %2313 = vmatpush1.xpose.msra.mxu0 0.0
    %2314 = vmatprep.subr.mxu0 0.0
    %2315 = vmatpush1.xpose.msra.mxu0 0.0
    %2316 = vmatprep.subr.mxu0 0.0
    %2317 = vmatpush1.xpose.msra.mxu0 0.0
    %2318 = vmatprep.subr.mxu0 0.0
    %2319 = vmatpush1.xpose.msra.mxu0 0.0
    %2320 = vmatprep.subr.mxu0 0.0
    %2321 = vmatpush1.xpose.msra.mxu0 0.0
    %2322 = vmatprep.subr.mxu0 0.0
    %2323 = vmatpush1.xpose.msra.mxu0 0.0
    %2324 = vmatprep.subr.mxu0 0.0
    %2325 = vmatpush1.xpose.msra.mxu0 0.0
    %2326 = vmatprep.subr.mxu0 0.0
    %2327 = vmatpush1.xpose.msra.mxu0 0.0
    %2328 = vmatprep.subr.mxu0 0.0
    %2329 = vmatpush1.xpose.msra.mxu0 0.0
    %2330 = vmatprep.subr.mxu0 0.0
    %2331 = vmatpush1.xpose.msra.mxu0 0.0
    %2332 = vmatprep.subr.mxu0 0.0
    %2333 = vmatpush1.xpose.msra.mxu0 0.0
    %2334 = vmatprep.subr.mxu0 0.0
    %2335 = vmatpush1.xpose.msra.mxu0 0.0
    %2336 = vmatprep.subr.mxu0 0.0
    %2337 = vmatpush1.xpose.msra.mxu0 0.0
    %2338 = vmatprep.subr.mxu0 0.0
    %2339 = vmatpush1.xpose.msra.mxu0 0.0
    %2340 = vmatprep.subr.mxu0 0.0
    %2341 = vmatpush1.xpose.msra.mxu0 0.0
    %2342 = vmatprep.mubr.f32.mxu0 0.0
    %2343 = vmatmul.mubr.f32.gmra.mrb[0].mxu0 %v2132
    %v2344 = vpop.f32.mrb[0].mxu0
    %v2345 = vadd.f32 0.0, %v2344
    %v2346 = vpop.f32.mrb[0].mxu0
    %2347 = vdwg.mxu0
    %v2348 = vsel %vm423, %v2345, -inf
    %2349 = vmax.xlane.f32.xlu0 %v2348
    %v2350 = vpop.xlane.xlu0 %2349
    %v2351 = vsub.f32 %v2345, %v2350
    %v2352 = vmul.f32 %v2351, 1.442695
    %v2353 = vpow.pop %v2352
    %v2354 = vsel %vm423, %v2353, 0.0
    %2355 = vadd.xlane.f32.xlu0 %v2354
    %v2356 = vpop.xlane.xlu0 %2355
    %v2357 = vrcp.pop %v2356
    %v2358 = vmul.f32 %v2353, %v2357
    %v2360 = vsel %vm435, %v2358, 0
    %2362 = vmatprep.subr.mxu0 0.0
    %2363 = vmatpush1.msra.mxu0 %v181
    %2364 = vmatprep.subr.mxu0 0.0
    %2365 = vmatpush1.msra.mxu0 0.0
    %2366 = vmatprep.subr.mxu0 0.0
    %2367 = vmatpush1.msra.mxu0 0.0
    %2368 = vmatprep.subr.mxu0 0.0
    %2369 = vmatpush1.msra.mxu0 0.0
    %2370 = vmatprep.subr.mxu0 0.0
    %2371 = vmatpush1.msra.mxu0 0.0
    %2372 = vmatprep.subr.mxu0 0.0
    %2373 = vmatpush1.msra.mxu0 0.0
    %2374 = vmatprep.subr.mxu0 0.0
    %2375 = vmatpush1.msra.mxu0 0.0
    %2376 = vmatprep.subr.mxu0 0.0
    %2377 = vmatpush1.msra.mxu0 0.0
    %2378 = vmatprep.subr.mxu0 0.0
    %2379 = vmatpush1.msra.mxu0 0.0
    %2380 = vmatprep.subr.mxu0 0.0
    %2381 = vmatpush1.msra.mxu0 0.0
    %2382 = vmatprep.subr.mxu0 0.0
    %2383 = vmatpush1.msra.mxu0 0.0
    %2384 = vmatprep.subr.mxu0 0.0
    %2385 = vmatpush1.msra.mxu0 0.0
    %2386 = vmatprep.subr.mxu0 0.0
    %2387 = vmatpush1.msra.mxu0 0.0
    %2388 = vmatprep.subr.mxu0 0.0
    %2389 = vmatpush1.msra.mxu0 0.0
    %2390 = vmatprep.subr.mxu0 0.0
    %2391 = vmatpush1.msra.mxu0 0.0
    %2392 = vmatprep.subr.mxu0 0.0
    %2393 = vmatpush1.msra.mxu0 0.0
    %2394 = vmatprep.subr.mxu0 0.0
    %2395 = vmatpush1.msra.mxu0 0.0
    %2396 = vmatprep.subr.mxu0 0.0
    %2397 = vmatpush1.msra.mxu0 0.0
    %2398 = vmatprep.subr.mxu0 0.0
    %2399 = vmatpush1.msra.mxu0 0.0
    %2400 = vmatprep.subr.mxu0 0.0
    %2401 = vmatpush1.msra.mxu0 0.0
    %2402 = vmatprep.subr.mxu0 0.0
    %2403 = vmatpush1.msra.mxu0 0.0
    %2404 = vmatprep.subr.mxu0 0.0
    %2405 = vmatpush1.msra.mxu0 0.0
    %2406 = vmatprep.subr.mxu0 0.0
    %2407 = vmatpush1.msra.mxu0 0.0
    %2408 = vmatprep.subr.mxu0 0.0
    %2409 = vmatpush1.msra.mxu0 0.0
    %2410 = vmatprep.subr.mxu0 0.0
    %2411 = vmatpush1.msra.mxu0 0.0
    %2412 = vmatprep.subr.mxu0 0.0
    %2413 = vmatpush1.msra.mxu0 0.0
    %2414 = vmatprep.subr.mxu0 0.0
    %2415 = vmatpush1.msra.mxu0 0.0
    %2416 = vmatprep.subr.mxu0 0.0
    %2417 = vmatpush1.msra.mxu0 0.0
    %2418 = vmatprep.subr.mxu0 0.0
    %2419 = vmatpush1.msra.mxu0 0.0
    %2420 = vmatprep.subr.mxu0 0.0
    %2421 = vmatpush1.msra.mxu0 0.0
    %2422 = vmatprep.subr.mxu0 0.0
    %2423 = vmatpush1.msra.mxu0 0.0
    %2424 = vmatprep.subr.mxu0 0.0
    %2425 = vmatpush1.msra.mxu0 0.0
    %2426 = vmatprep.mubr.f32.mxu0 0.0
    %2427 = vmatmul.mubr.f32.gmra.mrb[0].mxu0 %v2360
    %v2428 = vpop.f32.mrb[0].mxu0
    %v2429 = vadd.f32 0.0, %v2428
    %v2430 = vpop.f32.mrb[0].mxu0
    %2431 = vdwg.mxu0
    %v2433 = vsel %vm107, %v2429, 0
    %2435 = vmatprep.subr.mxu0 0.0
    %2436 = vmatpush1.msra.mxu0 %v190
    %2437 = vmatprep.subr.mxu0 0.0
    %2438 = vmatpush1.msra.mxu0 %v191
    %2439 = vmatprep.subr.mxu0 0.0
    %2440 = vmatpush1.msra.mxu0 %v192
    %2441 = vmatprep.subr.mxu0 0.0
    %2442 = vmatpush1.msra.mxu0 %v193
    %2443 = vmatprep.subr.mxu0 0.0
    %2444 = vmatpush1.msra.mxu0 0.0
    %2445 = vmatprep.subr.mxu0 0.0
    %2446 = vmatpush1.msra.mxu0 0.0
    %2447 = vmatprep.subr.mxu0 0.0
    %2448 = vmatpush1.msra.mxu0 0.0
    %2449 = vmatprep.subr.mxu0 0.0
    %2450 = vmatpush1.msra.mxu0 0.0
    %2451 = vmatprep.subr.mxu0 0.0
    %2452 = vmatpush1.msra.mxu0 0.0
    %2453 = vmatprep.subr.mxu0 0.0
    %2454 = vmatpush1.msra.mxu0 0.0
    %2455 = vmatprep.subr.mxu0 0.0
    %2456 = vmatpush1.msra.mxu0 0.0
    %2457 = vmatprep.subr.mxu0 0.0
    %2458 = vmatpush1.msra.mxu0 0.0
    %2459 = vmatprep.subr.mxu0 0.0
    %2460 = vmatpush1.msra.mxu0 0.0
    %2461 = vmatprep.subr.mxu0 0.0
    %2462 = vmatpush1.msra.mxu0 0.0
    %2463 = vmatprep.subr.mxu0 0.0
    %2464 = vmatpush1.msra.mxu0 0.0
    %2465 = vmatprep.subr.mxu0 0.0
    %2466 = vmatpush1.msra.mxu0 0.0
    %2467 = vmatprep.subr.mxu0 0.0
    %2468 = vmatpush1.msra.mxu0 0.0
    %2469 = vmatprep.subr.mxu0 0.0
    %2470 = vmatpush1.msra.mxu0 0.0
    %2471 = vmatprep.subr.mxu0 0.0
    %2472 = vmatpush1.msra.mxu0 0.0
    %2473 = vmatprep.subr.mxu0 0.0
    %2474 = vmatpush1.msra.mxu0 0.0
    %2475 = vmatprep.subr.mxu0 0.0
    %2476 = vmatpush1.msra.mxu0 0.0
    %2477 = vmatprep.subr.mxu0 0.0
    %2478 = vmatpush1.msra.mxu0 0.0
    %2479 = vmatprep.subr.mxu0 0.0
    %2480 = vmatpush1.msra.mxu0 0.0
    %2481 = vmatprep.subr.mxu0 0.0
    %2482 = vmatpush1.msra.mxu0 0.0
    %2483 = vmatprep.subr.mxu0 0.0
    %2484 = vmatpush1.msra.mxu0 0.0
    %2485 = vmatprep.subr.mxu0 0.0
    %2486 = vmatpush1.msra.mxu0 0.0
    %2487 = vmatprep.subr.mxu0 0.0
    %2488 = vmatpush1.msra.mxu0 0.0
    %2489 = vmatprep.subr.mxu0 0.0
    %2490 = vmatpush1.msra.mxu0 0.0
    %2491 = vmatprep.subr.mxu0 0.0
    %2492 = vmatpush1.msra.mxu0 0.0
    %2493 = vmatprep.subr.mxu0 0.0
    %2494 = vmatpush1.msra.mxu0 0.0
    %2495 = vmatprep.subr.mxu0 0.0
    %2496 = vmatpush1.msra.mxu0 0.0
    %2497 = vmatprep.subr.mxu0 0.0
    %2498 = vmatpush1.msra.mxu0 0.0
    %2499 = vmatprep.mubr.f32.mxu0 0.0
    %2500 = vmatmul.mubr.f32.gmra.mrb[0].mxu0 %v2433
    %v2501 = vpop.f32.mrb[0].mxu0
    %v2502 = vadd.f32 0.0, %v2501
    %v2503 = vpop.f32.mrb[0].mxu0
    %2504 = vdwg.mxu0
    %v2505 = vadd.f32 %v2277, %v2502
    %v2506 = vtanh.pop %v2505
    %v2508 = vsel %vm107, %v2506, 0
    %2510 = vmatprep.subr.mxu0 0.0
    %2511 = vmatpush1.msra.mxu0 %v195
    %2512 = vmatprep.subr.mxu0 0.0
    %2513 = vmatpush1.msra.mxu0 %v196
    %2514 = vmatprep.subr.mxu0 0.0
    %2515 = vmatpush1.msra.mxu0 %v197
    %2516 = vmatprep.subr.mxu0 0.0
    %2517 = vmatpush1.msra.mxu0 %v198
    %2518 = vmatprep.subr.mxu0 0.0
    %2519 = vmatpush1.msra.mxu0 0.0
    %2520 = vmatprep.subr.mxu0 0.0
    %2521 = vmatpush1.msra.mxu0 0.0
    %2522 = vmatprep.subr.mxu0 0.0
    %2523 = vmatpush1.msra.mxu0 0.0
    %2524 = vmatprep.subr.mxu0 0.0
    %2525 = vmatpush1.msra.mxu0 0.0
    %2526 = vmatprep.subr.mxu0 0.0
    %2527 = vmatpush1.msra.mxu0 0.0
    %2528 = vmatprep.subr.mxu0 0.0
    %2529 = vmatpush1.msra.mxu0 0.0
    %2530 = vmatprep.subr.mxu0 0.0
    %2531 = vmatpush1.msra.mxu0 0.0
    %2532 = vmatprep.subr.mxu0 0.0
    %2533 = vmatpush1.msra.mxu0 0.0
    %2534 = vmatprep.subr.mxu0 0.0
    %2535 = vmatpush1.msra.mxu0 0.0
    %2536 = vmatprep.subr.mxu0 0.0
    %2537 = vmatpush1.msra.mxu0 0.0
    %2538 = vmatprep.subr.mxu0 0.0
    %2539 = vmatpush1.msra.mxu0 0.0
    %2540 = vmatprep.subr.mxu0 0.0
    %2541 = vmatpush1.msra.mxu0 0.0
    %2542 = vmatprep.subr.mxu0 0.0
    %2543 = vmatpush1.msra.mxu0 0.0
    %2544 = vmatprep.subr.mxu0 0.0
    %2545 = vmatpush1.msra.mxu0 0.0
    %2546 = vmatprep.subr.mxu0 0.0
    %2547 = vmatpush1.msra.mxu0 0.0
    %2548 = vmatprep.subr.mxu0 0.0
    %2549 = vmatpush1.msra.mxu0 0.0
    %2550 = vmatprep.subr.mxu0 0.0
    %2551 = vmatpush1.msra.mxu0 0.0
    %2552 = vmatprep.subr.mxu0 0.0
    %2553 = vmatpush1.msra.mxu0 0.0
    %2554 = vmatprep.subr.mxu0 0.0
    %2555 = vmatpush1.msra.mxu0 0.0
    %2556 = vmatprep.subr.mxu0 0.0
    %2557 = vmatpush1.msra.mxu0 0.0
    %2558 = vmatprep.subr.mxu0 0.0
    %2559 = vmatpush1.msra.mxu0 0.0
    %2560 = vmatprep.subr.mxu0 0.0
    %2561 = vmatpush1.msra.mxu0 0.0
    %2562 = vmatprep.subr.mxu0 0.0
    %2563 = vmatpush1.msra.mxu0 0.0
    %2564 = vmatprep.subr.mxu0 0.0
    %2565 = vmatpush1.msra.mxu0 0.0
    %2566 = vmatprep.subr.mxu0 0.0
    %2567 = vmatpush1.msra.mxu0 0.0
    %2568 = vmatprep.subr.mxu0 0.0
    %2569 = vmatpush1.msra.mxu0 0.0
    %2570 = vmatprep.subr.mxu0 0.0
    %2571 = vmatpush1.msra.mxu0 0.0
    %2572 = vmatprep.subr.mxu0 0.0
    %2573 = vmatpush1.msra.mxu0 0.0
    %2574 = vmatprep.mubr.f32.mxu0 0.0
    %2575 = vmatmul.mubr.f32.gmra.mrb[0].mxu0 %v2508
    %v2576 = vpop.f32.mrb[0].mxu0
    %v2577 = vadd.f32 %v199, %v2576
    %v2578 = vpop.f32.mrb[0].mxu0
    %2579 = vdwg.mxu0
    %v2580 = vsel %vm657, %v2577, -inf
    %2581 = vmax.xlane.f32.xlu0 %v2580
    %v2582 = vpop.xlane.xlu0 %2581
    %vm2583 = vcmp.eq.f32.partialorder %v2577, %v2582
    %v2584 = vsel %vm2583, %v89, 32
    %v2585 = vsel %vm657, %v2584, 2147483647
    %v2586 = vand.u32 %v2585, 65535
    %v2587 = vshra.s32 %v2585, 16
    %v2588 = vcvt.s32.f32 %v2586
    %v2589 = vcvt.s32.f32 %v2587
    %2590 = vmin.xlane.f32.xlu0 %v2589
    %v2591 = vpop.xlane.xlu0 %2590
    %vm2592 = vcmp.eq.f32.partialorder %v2589, %v2591
    %v2593 = vsel %vm2592, %v2588, inf
    %2594 = vmin.xlane.f32.xlu0 %v2593
    %v2595 = vpop.xlane.xlu0 %2594
    %v2596 = vcvt.f32.s32 %v2595
    %v2597 = vcvt.f32.s32 %v2591
    %v2598 = vshll.u32 %v2597, 16
    %v2599 = vadd.s32 %v2598, %v2596
    %vm2600 = vcmp.lt.s32.totalorder %v2599, 31
    %v2601 = vsel %vm2600, %v2599, 31
    %vm2602 = vcmp.eq.s32.totalorder %v89, %v2601
    %v2603 = vsel %vm2602, 1, 0
    %v2604 = vcvt.s32.f32 %v2603
    %v2605 = vsel %vm2130, 1, %v2601
    %vm2606 = vcmp.eq.s32.totalorder %v89, 4
    %v2607 = vsel %vm2606, %v2605, %v2124
    %v2608 = vsel %vm2130, 1, 0
    %vm2609 = vcmp.eq.s32.totalorder %v2608, 1
    %v2610 = vsel %vm2609, %v2127, %v2506
    %v2611 = vsel %vm2609, %v2128, %v2604
    %vm2612 = vcmp.eq.s32.totalorder %v2601, 1
    %vm2613 = vmor %vm2130, %vm2612
    %v2615 = vsel %vm107, %v2610, 0
    %2617 = vmatprep.subr.mxu0 0.0
    %2618 = vmatpush1.msra.mxu0 %v186
    %2619 = vmatprep.subr.mxu0 0.0
    %2620 = vmatpush1.msra.mxu0 %v187
    %2621 = vmatprep.subr.mxu0 0.0
    %2622 = vmatpush1.msra.mxu0 %v188
    %2623 = vmatprep.subr.mxu0 0.0
    %2624 = vmatpush1.msra.mxu0 %v189
    %2625 = vmatprep.subr.mxu0 0.0
    %2626 = vmatpush1.msra.mxu0 0.0
    %2627 = vmatprep.subr.mxu0 0.0
    %2628 = vmatpush1.msra.mxu0 0.0
    %2629 = vmatprep.subr.mxu0 0.0
    %2630 = vmatpush1.msra.mxu0 0.0
    %2631 = vmatprep.subr.mxu0 0.0
    %2632 = vmatpush1.msra.mxu0 0.0
    %2633 = vmatprep.subr.mxu0 0.0
    %2634 = vmatpush1.msra.mxu0 0.0
    %2635 = vmatprep.subr.mxu0 0.0
    %2636 = vmatpush1.msra.mxu0 0.0
    %2637 = vmatprep.subr.mxu0 0.0
    %2638 = vmatpush1.msra.mxu0 0.0
    %2639 = vmatprep.subr.mxu0 0.0
    %2640 = vmatpush1.msra.mxu0 0.0
    %2641 = vmatprep.subr.mxu0 0.0
    %2642 = vmatpush1.msra.mxu0 0.0
    %2643 = vmatprep.subr.mxu0 0.0
    %2644 = vmatpush1.msra.mxu0 0.0
    %2645 = vmatprep.subr.mxu0 0.0
    %2646 = vmatpush1.msra.mxu0 0.0
    %2647 = vmatprep.subr.mxu0 0.0
    %2648 = vmatpush1.msra.mxu0 0.0
    %2649 = vmatprep.subr.mxu0 0.0
    %2650 = vmatpush1.msra.mxu0 0.0
    %2651 = vmatprep.subr.mxu0 0.0
    %2652 = vmatpush1.msra.mxu0 0.0
    %2653 = vmatprep.subr.mxu0 0.0
    %2654 = vmatpush1.msra.mxu0 0.0
    %2655 = vmatprep.subr.mxu0 0.0
    %2656 = vmatpush1.msra.mxu0 0.0
    %2657 = vmatprep.subr.mxu0 0.0
    %2658 = vmatpush1.msra.mxu0 0.0
    %2659 = vmatprep.subr.mxu0 0.0
    %2660 = vmatpush1.msra.mxu0 0.0
    %2661 = vmatprep.subr.mxu0 0.0
    %2662 = vmatpush1.msra.mxu0 0.0
    %2663 = vmatprep.subr.mxu0 0.0
    %2664 = vmatpush1.msra.mxu0 0.0
    %2665 = vmatprep.subr.mxu0 0.0
    %2666 = vmatpush1.msra.mxu0 0.0
    %2667 = vmatprep.subr.mxu0 0.0
    %2668 = vmatpush1.msra.mxu0 0.0
    %2669 = vmatprep.subr.mxu0 0.0
    %2670 = vmatpush1.msra.mxu0 0.0
    %2671 = vmatprep.subr.mxu0 0.0
    %2672 = vmatpush1.msra.mxu0 0.0
    %2673 = vmatprep.subr.mxu0 0.0
    %2674 = vmatpush1.msra.mxu0 0.0
    %2675 = vmatprep.subr.mxu0 0.0
    %2676 = vmatpush1.msra.mxu0 0.0
    %2677 = vmatprep.subr.mxu0 0.0
    %2678 = vmatpush1.msra.mxu0 0.0
    %2679 = vmatprep.subr.mxu0 0.0
    %2680 = vmatpush1.msra.mxu0 0.0
    %2681 = vmatprep.mubr.f32.mxu0 0.0
    %2682 = vmatmul.mubr.f32.gmra.mrb[0].mxu0 %v2615
    %v2683 = vpop.f32.mrb[0].mxu0
    %v2684 = vadd.f32 0.0, %v2683
    %v2685 = vpop.f32.mrb[0].mxu0
    %2686 = vdwg.mxu0
    %v2688 = vsel %vm107, %v2611, 0
    %2690 = vmatprep.subr.mxu0 0.0
    %2691 = vmatpush1.msra.mxu0 %v182
    %2692 = vmatprep.subr.mxu0 0.0
    %2693 = vmatpush1.msra.mxu0 %v183
    %2694 = vmatprep.subr.mxu0 0.0
    %2695 = vmatpush1.msra.mxu0 %v184
    %2696 = vmatprep.subr.mxu0 0.0
    %2697 = vmatpush1.msra.mxu0 %v185
    %2698 = vmatprep.subr.mxu0 0.0
    %2699 = vmatpush1.msra.mxu0 0.0
    %2700 = vmatprep.subr.mxu0 0.0
    %2701 = vmatpush1.msra.mxu0 0.0
    %2702 = vmatprep.subr.mxu0 0.0
    %2703 = vmatpush1.msra.mxu0 0.0
    %2704 = vmatprep.subr.mxu0 0.0
    %2705 = vmatpush1.msra.mxu0 0.0
    %2706 = vmatprep.subr.mxu0 0.0
    %2707 = vmatpush1.msra.mxu0 0.0
    %2708 = vmatprep.subr.mxu0 0.0
    %2709 = vmatpush1.msra.mxu0 0.0
    %2710 = vmatprep.subr.mxu0 0.0
    %2711 = vmatpush1.msra.mxu0 0.0
    %2712 = vmatprep.subr.mxu0 0.0
    %2713 = vmatpush1.msra.mxu0 0.0
    %2714 = vmatprep.subr.mxu0 0.0
    %2715 = vmatpush1.msra.mxu0 0.0
    %2716 = vmatprep.subr.mxu0 0.0
    %2717 = vmatpush1.msra.mxu0 0.0
    %2718 = vmatprep.subr.mxu0 0.0
    %2719 = vmatpush1.msra.mxu0 0.0
    %2720 = vmatprep.subr.mxu0 0.0
    %2721 = vmatpush1.msra.mxu0 0.0
    %2722 = vmatprep.subr.mxu0 0.0
    %2723 = vmatpush1.msra.mxu0 0.0
    %2724 = vmatprep.subr.mxu0 0.0
    %2725 = vmatpush1.msra.mxu0 0.0
    %2726 = vmatprep.subr.mxu0 0.0
    %2727 = vmatpush1.msra.mxu0 0.0
    %2728 = vmatprep.subr.mxu0 0.0
    %2729 = vmatpush1.msra.mxu0 0.0
    %2730 = vmatprep.subr.mxu0 0.0
    %2731 = vmatpush1.msra.mxu0 0.0
    %2732 = vmatprep.subr.mxu0 0.0
    %2733 = vmatpush1.msra.mxu0 0.0
    %2734 = vmatprep.subr.mxu0 0.0
    %2735 = vmatpush1.msra.mxu0 0.0
    %2736 = vmatprep.subr.mxu0 0.0
    %2737 = vmatpush1.msra.mxu0 0.0
    %2738 = vmatprep.subr.mxu0 0.0
    %2739 = vmatpush1.msra.mxu0 0.0
    %2740 = vmatprep.subr.mxu0 0.0
    %2741 = vmatpush1.msra.mxu0 0.0
    %2742 = vmatprep.subr.mxu0 0.0
    %2743 = vmatpush1.msra.mxu0 0.0
    %2744 = vmatprep.subr.mxu0 0.0
    %2745 = vmatpush1.msra.mxu0 0.0
    %2746 = vmatprep.subr.mxu0 0.0
    %2747 = vmatpush1.msra.mxu0 0.0
    %2748 = vmatprep.subr.mxu0 0.0
    %2749 = vmatpush1.msra.mxu0 0.0
    %2750 = vmatprep.subr.mxu0 0.0
    %2751 = vmatpush1.msra.mxu0 0.0
    %2752 = vmatprep.subr.mxu0 0.0
    %2753 = vmatpush1.msra.mxu0 0.0
    %2754 = vmatprep.mubr.f32.mxu0 0.0
    %2755 = vmatmul.mubr.f32.gmra.mrb[0].mxu0 %v2688
    %v2756 = vpop.f32.mrb[0].mxu0
    %v2757 = vadd.f32 %v2684, %v2756
    %v2758 = vpop.f32.mrb[0].mxu0
    %2759 = vdwg.mxu0
    %v2760 = vadd.f32 %v2757, %v194
    %2761 = vmatprep.subr.mxu0 0.0
    %2762 = vmatpush1.xpose.msra.mxu0 %v351
    %2763 = vmatprep.subr.mxu0 0.0
    %2764 = vmatpush1.xpose.msra.mxu0 0.0
    %2765 = vmatprep.subr.mxu0 0.0
    %2766 = vmatpush1.xpose.msra.mxu0 0.0
    %2767 = vmatprep.subr.mxu0 0.0
    %2768 = vmatpush1.xpose.msra.mxu0 0.0
    %2769 = vmatprep.subr.mxu0 0.0
    %2770 = vmatpush1.xpose.msra.mxu0 0.0
    %2771 = vmatprep.subr.mxu0 0.0
    %2772 = vmatpush1.xpose.msra.mxu0 0.0
    %2773 = vmatprep.subr.mxu0 0.0
    %2774 = vmatpush1.xpose.msra.mxu0 0.0
    %2775 = vmatprep.subr.mxu0 0.0
    %2776 = vmatpush1.xpose.msra.mxu0 0.0
    %2777 = vmatprep.subr.mxu0 0.0
    %2778 = vmatpush1.xpose.msra.mxu0 0.0
    %2779 = vmatprep.subr.mxu0 0.0
    %2780 = vmatpush1.xpose.msra.mxu0 0.0
    %2781 = vmatprep.subr.mxu0 0.0
    %2782 = vmatpush1.xpose.msra.mxu0 0.0
    %2783 = vmatprep.subr.mxu0 0.0
    %2784 = vmatpush1.xpose.msra.mxu0 0.0
    %2785 = vmatprep.subr.mxu0 0.0
    %2786 = vmatpush1.xpose.msra.mxu0 0.0
    %2787 = vmatprep.subr.mxu0 0.0
    %2788 = vmatpush1.xpose.msra.mxu0 0.0
    %2789 = vmatprep.subr.mxu0 0.0
    %2790 = vmatpush1.xpose.msra.mxu0 0.0
    %2791 = vmatprep.subr.mxu0 0.0
    %2792 = vmatpush1.xpose.msra.mxu0 0.0
    %2793 = vmatprep.subr.mxu0 0.0
    %2794 = vmatpush1.xpose.msra.mxu0 0.0
    %2795 = vmatprep.subr.mxu0 0.0
    %2796 = vmatpush1.xpose.msra.mxu0 0.0
    %2797 = vmatprep.subr.mxu0 0.0
    %2798 = vmatpush1.xpose.msra.mxu0 0.0
    %2799 = vmatprep.subr.mxu0 0.0
    %2800 = vmatpush1.xpose.msra.mxu0 0.0
    %2801 = vmatprep.subr.mxu0 0.0
    %2802 = vmatpush1.xpose.msra.mxu0 0.0
    %2803 = vmatprep.subr.mxu0 0.0
    %2804 = vmatpush1.xpose.msra.mxu0 0.0
    %2805 = vmatprep.subr.mxu0 0.0
    %2806 = vmatpush1.xpose.msra.mxu0 0.0
    %2807 = vmatprep.subr.mxu0 0.0
    %2808 = vmatpush1.xpose.msra.mxu0 0.0
    %2809 = vmatprep.subr.mxu0 0.0
    %2810 = vmatpush1.xpose.msra.mxu0 0.0
    %2811 = vmatprep.subr.mxu0 0.0
    %2812 = vmatpush1.xpose.msra.mxu0 0.0
    %2813 = vmatprep.subr.mxu0 0.0
    %2814 = vmatpush1.xpose.msra.mxu0 0.0
    %2815 = vmatprep.subr.mxu0 0.0
    %2816 = vmatpush1.xpose.msra.mxu0 0.0
    %2817 = vmatprep.subr.mxu0 0.0
    %2818 = vmatpush1.xpose.msra.mxu0 0.0
    %2819 = vmatprep.subr.mxu0 0.0
    %2820 = vmatpush1.xpose.msra.mxu0 0.0
    %2821 = vmatprep.subr.mxu0 0.0
    %2822 = vmatpush1.xpose.msra.mxu0 0.0
    %2823 = vmatprep.subr.mxu0 0.0
    %2824 = vmatpush1.xpose.msra.mxu0 0.0
    %2825 = vmatprep.mubr.f32.mxu0 0.0
    %2826 = vmatmul.mubr.f32.gmra.mrb[0].mxu0 %v2615
    %v2827 = vpop.f32.mrb[0].mxu0
    %v2828 = vadd.f32 0.0, %v2827
    %v2829 = vpop.f32.mrb[0].mxu0
    %2830 = vdwg.mxu0
    %v2831 = vsel %vm423, %v2828, -inf
    %2832 = vmax.xlane.f32.xlu0 %v2831
    %v2833 = vpop.xlane.xlu0 %2832
    %v2834 = vsub.f32 %v2828, %v2833
    %v2835 = vmul.f32 %v2834, 1.442695
    %v2836 = vpow.pop %v2835
    %v2837 = vsel %vm423, %v2836, 0.0
    %2838 = vadd.xlane.f32.xlu0 %v2837
    %v2839 = vpop.xlane.xlu0 %2838
    %v2840 = vrcp.pop %v2839
    %v2841 = vmul.f32 %v2836, %v2840
    %v2843 = vsel %vm435, %v2841, 0
    %2845 = vmatprep.subr.mxu0 0.0
    %2846 = vmatpush1.msra.mxu0 %v181
    %2847 = vmatprep.subr.mxu0 0.0
    %2848 = vmatpush1.msra.mxu0 0.0
    %2849 = vmatprep.subr.mxu0 0.0
    %2850 = vmatpush1.msra.mxu0 0.0
    %2851 = vmatprep.subr.mxu0 0.0
    %2852 = vmatpush1.msra.mxu0 0.0
    %2853 = vmatprep.subr.mxu0 0.0
    %2854 = vmatpush1.msra.mxu0 0.0
    %2855 = vmatprep.subr.mxu0 0.0
    %2856 = vmatpush1.msra.mxu0 0.0
    %2857 = vmatprep.subr.mxu0 0.0
    %2858 = vmatpush1.msra.mxu0 0.0
    %2859 = vmatprep.subr.mxu0 0.0
    %2860 = vmatpush1.msra.mxu0 0.0
    %2861 = vmatprep.subr.mxu0 0.0
    %2862 = vmatpush1.msra.mxu0 0.0
    %2863 = vmatprep.subr.mxu0 0.0
    %2864 = vmatpush1.msra.mxu0 0.0
    %2865 = vmatprep.subr.mxu0 0.0
    %2866 = vmatpush1.msra.mxu0 0.0
    %2867 = vmatprep.subr.mxu0 0.0
    %2868 = vmatpush1.msra.mxu0 0.0
    %2869 = vmatprep.subr.mxu0 0.0
    %2870 = vmatpush1.msra.mxu0 0.0
    %2871 = vmatprep.subr.mxu0 0.0
    %2872 = vmatpush1.msra.mxu0 0.0
    %2873 = vmatprep.subr.mxu0 0.0
    %2874 = vmatpush1.msra.mxu0 0.0
    %2875 = vmatprep.subr.mxu0 0.0
    %2876 = vmatpush1.msra.mxu0 0.0
    %2877 = vmatprep.subr.mxu0 0.0
    %2878 = vmatpush1.msra.mxu0 0.0
    %2879 = vmatprep.subr.mxu0 0.0
    %2880 = vmatpush1.msra.mxu0 0.0
    %2881 = vmatprep.subr.mxu0 0.0
    %2882 = vmatpush1.msra.mxu0 0.0
    %2883 = vmatprep.subr.mxu0 0.0
    %2884 = vmatpush1.msra.mxu0 0.0
    %2885 = vmatprep.subr.mxu0 0.0
    %2886 = vmatpush1.msra.mxu0 0.0
    %2887 = vmatprep.subr.mxu0 0.0
    %2888 = vmatpush1.msra.mxu0 0.0
    %2889 = vmatprep.subr.mxu0 0.0
    %2890 = vmatpush1.msra.mxu0 0.0
    %2891 = vmatprep.subr.mxu0 0.0
    %2892 = vmatpush1.msra.mxu0 0.0
    %2893 = vmatprep.subr.mxu0 0.0
    %2894 = vmatpush1.msra.mxu0 0.0
    %2895 = vmatprep.subr.mxu0 0.0
    %2896 = vmatpush1.msra.mxu0 0.0
    %2897 = vmatprep.subr.mxu0 0.0
    %2898 = vmatpush1.msra.mxu0 0.0
    %2899 = vmatprep.subr.mxu0 0.0
    %2900 = vmatpush1.msra.mxu0 0.0
    %2901 = vmatprep.subr.mxu0 0.0
    %2902 = vmatpush1.msra.mxu0 0.0
    %2903 = vmatprep.subr.mxu0 0.0
    %2904 = vmatpush1.msra.mxu0 0.0
    %2905 = vmatprep.subr.mxu0 0.0
    %2906 = vmatpush1.msra.mxu0 0.0
    %2907 = vmatprep.subr.mxu0 0.0
    %2908 = vmatpush1.msra.mxu0 0.0
    %2909 = vmatprep.mubr.f32.mxu0 0.0
    %2910 = vmatmul.mubr.f32.gmra.mrb[0].mxu0 %v2843
    %v2911 = vpop.f32.mrb[0].mxu0
    %v2912 = vadd.f32 0.0, %v2911
    %v2913 = vpop.f32.mrb[0].mxu0
    %2914 = vdwg.mxu0
    %v2916 = vsel %vm107, %v2912, 0
    %2918 = vmatprep.subr.mxu0 0.0
    %2919 = vmatpush1.msra.mxu0 %v190
    %2920 = vmatprep.subr.mxu0 0.0
    %2921 = vmatpush1.msra.mxu0 %v191
    %2922 = vmatprep.subr.mxu0 0.0
    %2923 = vmatpush1.msra.mxu0 %v192
    %2924 = vmatprep.subr.mxu0 0.0
    %2925 = vmatpush1.msra.mxu0 %v193
    %2926 = vmatprep.subr.mxu0 0.0
    %2927 = vmatpush1.msra.mxu0 0.0
    %2928 = vmatprep.subr.mxu0 0.0
    %2929 = vmatpush1.msra.mxu0 0.0
    %2930 = vmatprep.subr.mxu0 0.0
    %2931 = vmatpush1.msra.mxu0 0.0
    %2932 = vmatprep.subr.mxu0 0.0
    %2933 = vmatpush1.msra.mxu0 0.0
    %2934 = vmatprep.subr.mxu0 0.0
    %2935 = vmatpush1.msra.mxu0 0.0
    %2936 = vmatprep.subr.mxu0 0.0
    %2937 = vmatpush1.msra.mxu0 0.0
    %2938 = vmatprep.subr.mxu0 0.0
    %2939 = vmatpush1.msra.mxu0 0.0
    %2940 = vmatprep.subr.mxu0 0.0
    %2941 = vmatpush1.msra.mxu0 0.0
    %2942 = vmatprep.subr.mxu0 0.0
    %2943 = vmatpush1.msra.mxu0 0.0
    %2944 = vmatprep.subr.mxu0 0.0
    %2945 = vmatpush1.msra.mxu0 0.0
    %2946 = vmatprep.subr.mxu0 0.0
    %2947 = vmatpush1.msra.mxu0 0.0
    %2948 = vmatprep.subr.mxu0 0.0
    %2949 = vmatpush1.msra.mxu0 0.0
    %2950 = vmatprep.subr.mxu0 0.0
    %2951 = vmatpush1.msra.mxu0 0.0
    %2952 = vmatprep.subr.mxu0 0.0
    %2953 = vmatpush1.msra.mxu0 0.0
    %2954 = vmatprep.subr.mxu0 0.0
    %2955 = vmatpush1.msra.mxu0 0.0
    %2956 = vmatprep.subr.mxu0 0.0
    %2957 = vmatpush1.msra.mxu0 0.0
    %2958 = vmatprep.subr.mxu0 0.0
    %2959 = vmatpush1.msra.mxu0 0.0
    %2960 = vmatprep.subr.mxu0 0.0
    %2961 = vmatpush1.msra.mxu0 0.0
    %2962 = vmatprep.subr.mxu0 0.0
    %2963 = vmatpush1.msra.mxu0 0.0
    %2964 = vmatprep.subr.mxu0 0.0
    %2965 = vmatpush1.msra.mxu0 0.0
    %2966 = vmatprep.subr.mxu0 0.0
    %2967 = vmatpush1.msra.mxu0 0.0
    %2968 = vmatprep.subr.mxu0 0.0
    %2969 = vmatpush1.msra.mxu0 0.0
    %2970 = vmatprep.subr.mxu0 0.0
    %2971 = vmatpush1.msra.mxu0 0.0
    %2972 = vmatprep.subr.mxu0 0.0
    %2973 = vmatpush1.msra.mxu0 0.0
    %2974 = vmatprep.subr.mxu0 0.0
    %2975 = vmatpush1.msra.mxu0 0.0
    %2976 = vmatprep.subr.mxu0 0.0
    %2977 = vmatpush1.msra.mxu0 0.0
    %2978 = vmatprep.subr.mxu0 0.0
    %2979 = vmatpush1.msra.mxu0 0.0
    %2980 = vmatprep.subr.mxu0 0.0
    %2981 = vmatpush1.msra.mxu0 0.0
    %2982 = vmatprep.mubr.f32.mxu0 0.0
    %2983 = vmatmul.mubr.f32.gmra.mrb[0].mxu0 %v2916
    %v2984 = vpop.f32.mrb[0].mxu0
    %v2985 = vadd.f32 0.0, %v2984
    %v2986 = vpop.f32.mrb[0].mxu0
    %2987 = vdwg.mxu0
    %v2988 = vadd.f32 %v2760, %v2985
    %v2989 = vtanh.pop %v2988
    %v2991 = vsel %vm107, %v2989, 0
    %2993 = vmatprep.subr.mxu0 0.0
    %2994 = vmatpush1.msra.mxu0 %v195
    %2995 = vmatprep.subr.mxu0 0.0
    %2996 = vmatpush1.msra.mxu0 %v196
    %2997 = vmatprep.subr.mxu0 0.0
    %2998 = vmatpush1.msra.mxu0 %v197
    %2999 = vmatprep.subr.mxu0 0.0
    %3000 = vmatpush1.msra.mxu0 %v198
    %3001 = vmatprep.subr.mxu0 0.0
    %3002 = vmatpush1.msra.mxu0 0.0
    %3003 = vmatprep.subr.mxu0 0.0
    %3004 = vmatpush1.msra.mxu0 0.0
    %3005 = vmatprep.subr.mxu0 0.0
    %3006 = vmatpush1.msra.mxu0 0.0
    %3007 = vmatprep.subr.mxu0 0.0
    %3008 = vmatpush1.msra.mxu0 0.0
    %3009 = vmatprep.subr.mxu0 0.0
    %3010 = vmatpush1.msra.mxu0 0.0
    %3011 = vmatprep.subr.mxu0 0.0
    %3012 = vmatpush1.msra.mxu0 0.0
    %3013 = vmatprep.subr.mxu0 0.0
    %3014 = vmatpush1.msra.mxu0 0.0
    %3015 = vmatprep.subr.mxu0 0.0
    %3016 = vmatpush1.msra.mxu0 0.0
    %3017 = vmatprep.subr.mxu0 0.0
    %3018 = vmatpush1.msra.mxu0 0.0
    %3019 = vmatprep.subr.mxu0 0.0
    %3020 = vmatpush1.msra.mxu0 0.0
    %3021 = vmatprep.subr.mxu0 0.0
    %3022 = vmatpush1.msra.mxu0 0.0
    %3023 = vmatprep.subr.mxu0 0.0
    %3024 = vmatpush1.msra.mxu0 0.0
    %3025 = vmatprep.subr.mxu0 0.0
    %3026 = vmatpush1.msra.mxu0 0.0
    %3027 = vmatprep.subr.mxu0 0.0
    %3028 = vmatpush1.msra.mxu0 0.0
    %3029 = vmatprep.subr.mxu0 0.0
    %3030 = vmatpush1.msra.mxu0 0.0
    %3031 = vmatprep.subr.mxu0 0.0
    %3032 = vmatpush1.msra.mxu0 0.0
    %3033 = vmatprep.subr.mxu0 0.0
    %3034 = vmatpush1.msra.mxu0 0.0
    %3035 = vmatprep.subr.mxu0 0.0
    %3036 = vmatpush1.msra.mxu0 0.0
    %3037 = vmatprep.subr.mxu0 0.0
    %3038 = vmatpush1.msra.mxu0 0.0
    %3039 = vmatprep.subr.mxu0 0.0
    %3040 = vmatpush1.msra.mxu0 0.0
    %3041 = vmatprep.subr.mxu0 0.0
    %3042 = vmatpush1.msra.mxu0 0.0
    %3043 = vmatprep.subr.mxu0 0.0
    %3044 = vmatpush1.msra.mxu0 0.0
    %3045 = vmatprep.subr.mxu0 0.0
    %3046 = vmatpush1.msra.mxu0 0.0
    %3047 = vmatprep.subr.mxu0 0.0
    %3048 = vmatpush1.msra.mxu0 0.0
    %3049 = vmatprep.subr.mxu0 0.0
    %3050 = vmatpush1.msra.mxu0 0.0
    %3051 = vmatprep.subr.mxu0 0.0
    %3052 = vmatpush1.msra.mxu0 0.0
    %3053 = vmatprep.subr.mxu0 0.0
    %3054 = vmatpush1.msra.mxu0 0.0
    %3055 = vmatprep.subr.mxu0 0.0
    %3056 = vmatpush1.msra.mxu0 0.0
    %3057 = vmatprep.mubr.f32.mxu0 0.0
    %3058 = vmatmul.mubr.f32.gmra.mrb[0].mxu0 %v2991
    %v3059 = vpop.f32.mrb[0].mxu0
    %v3060 = vadd.f32 %v199, %v3059
    %v3061 = vpop.f32.mrb[0].mxu0
    %3062 = vdwg.mxu0
    %v3063 = vsel %vm657, %v3060, -inf
    %3064 = vmax.xlane.f32.xlu0 %v3063
    %v3065 = vpop.xlane.xlu0 %3064
    %vm3066 = vcmp.eq.f32.partialorder %v3060, %v3065
    %v3067 = vsel %vm3066, %v89, 32
    %v3068 = vsel %vm657, %v3067, 2147483647
    %v3069 = vand.u32 %v3068, 65535
    %v3070 = vshra.s32 %v3068, 16
    %v3071 = vcvt.s32.f32 %v3069
    %v3072 = vcvt.s32.f32 %v3070
    %3073 = vmin.xlane.f32.xlu0 %v3072
    %v3074 = vpop.xlane.xlu0 %3073
    %vm3075 = vcmp.eq.f32.partialorder %v3072, %v3074
    %v3076 = vsel %vm3075, %v3071, inf
    %3077 = vmin.xlane.f32.xlu0 %v3076
    %v3078 = vpop.xlane.xlu0 %3077
    %v3079 = vcvt.f32.s32 %v3078
    %v3080 = vcvt.f32.s32 %v3074
    %v3081 = vshll.u32 %v3080, 16
    %v3082 = vadd.s32 %v3081, %v3079
    %vm3083 = vcmp.lt.s32.totalorder %v3082, 31
    %v3084 = vsel %vm3083, %v3082, 31
    %vm3085 = vcmp.eq.s32.totalorder %v89, %v3084
    %v3086 = vsel %vm3085, 1, 0
    %v3087 = vcvt.s32.f32 %v3086
    %v3088 = vsel %vm2613, 1, %v3084
    %vm3089 = vcmp.eq.s32.totalorder %v89, 5
    %v3090 = vsel %vm3089, %v3088, %v2607
    %v3091 = vsel %vm2613, 1, 0
    %vm3092 = vcmp.eq.s32.totalorder %v3091, 1
    %v3093 = vsel %vm3092, %v2610, %v2989
    %v3094 = vsel %vm3092, %v2611, %v3087
    %vm3095 = vcmp.eq.s32.totalorder %v3084, 1
    %vm3096 = vmor %vm2613, %vm3095
    %v3098 = vsel %vm107, %v3093, 0
    %3100 = vmatprep.subr.mxu0 0.0
    %3101 = vmatpush1.msra.mxu0 %v186
    %3102 = vmatprep.subr.mxu0 0.0
    %3103 = vmatpush1.msra.mxu0 %v187
    %3104 = vmatprep.subr.mxu0 0.0
    %3105 = vmatpush1.msra.mxu0 %v188
    %3106 = vmatprep.subr.mxu0 0.0
    %3107 = vmatpush1.msra.mxu0 %v189
    %3108 = vmatprep.subr.mxu0 0.0
    %3109 = vmatpush1.msra.mxu0 0.0
    %3110 = vmatprep.subr.mxu0 0.0
    %3111 = vmatpush1.msra.mxu0 0.0
    %3112 = vmatprep.subr.mxu0 0.0
    %3113 = vmatpush1.msra.mxu0 0.0
    %3114 = vmatprep.subr.mxu0 0.0
    %3115 = vmatpush1.msra.mxu0 0.0
    %3116 = vmatprep.subr.mxu0 0.0
    %3117 = vmatpush1.msra.mxu0 0.0
    %3118 = vmatprep.subr.mxu0 0.0
    %3119 = vmatpush1.msra.mxu0 0.0
    %3120 = vmatprep.subr.mxu0 0.0
    %3121 = vmatpush1.msra.mxu0 0.0
    %3122 = vmatprep.subr.mxu0 0.0
    %3123 = vmatpush1.msra.mxu0 0.0
    %3124 = vmatprep.subr.mxu0 0.0
    %3125 = vmatpush1.msra.mxu0 0.0
    %3126 = vmatprep.subr.mxu0 0.0
    %3127 = vmatpush1.msra.mxu0 0.0
    %3128 = vmatprep.subr.mxu0 0.0
    %3129 = vmatpush1.msra.mxu0 0.0
    %3130 = vmatprep.subr.mxu0 0.0
    %3131 = vmatpush1.msra.mxu0 0.0
    %3132 = vmatprep.subr.mxu0 0.0
    %3133 = vmatpush1.msra.mxu0 0.0
    %3134 = vmatprep.subr.mxu0 0.0
    %3135 = vmatpush1.msra.mxu0 0.0
    %3136 = vmatprep.subr.mxu0 0.0
    %3137 = vmatpush1.msra.mxu0 0.0
    %3138 = vmatprep.subr.mxu0 0.0
    %3139 = vmatpush1.msra.mxu0 0.0
    %3140 = vmatprep.subr.mxu0 0.0
    %3141 = vmatpush1.msra.mxu0 0.0
    %3142 = vmatprep.subr.mxu0 0.0
    %3143 = vmatpush1.msra.mxu0 0.0
    %3144 = vmatprep.subr.mxu0 0.0
    %3145 = vmatpush1.msra.mxu0 0.0
    %3146 = vmatprep.subr.mxu0 0.0
    %3147 = vmatpush1.msra.mxu0 0.0
    %3148 = vmatprep.subr.mxu0 0.0
    %3149 = vmatpush1.msra.mxu0 0.0
    %3150 = vmatprep.subr.mxu0 0.0
    %3151 = vmatpush1.msra.mxu0 0.0
    %3152 = vmatprep.subr.mxu0 0.0
    %3153 = vmatpush1.msra.mxu0 0.0
    %3154 = vmatprep.subr.mxu0 0.0
    %3155 = vmatpush1.msra.mxu0 0.0
    %3156 = vmatprep.subr.mxu0 0.0
    %3157 = vmatpush1.msra.mxu0 0.0
    %3158 = vmatprep.subr.mxu0 0.0
    %3159 = vmatpush1.msra.mxu0 0.0
    %3160 = vmatprep.subr.mxu0 0.0
    %3161 = vmatpush1.msra.mxu0 0.0
    %3162 = vmatprep.subr.mxu0 0.0
    %3163 = vmatpush1.msra.mxu0 0.0
    %3164 = vmatprep.mubr.f32.mxu0 0.0
    %3165 = vmatmul.mubr.f32.gmra.mrb[0].mxu0 %v3098
    %v3166 = vpop.f32.mrb[0].mxu0
    %v3167 = vadd.f32 0.0, %v3166
    %v3168 = vpop.f32.mrb[0].mxu0
    %3169 = vdwg.mxu0
    %v3171 = vsel %vm107, %v3094, 0
    %3173 = vmatprep.subr.mxu0 0.0
    %3174 = vmatpush1.msra.mxu0 %v182
    %3175 = vmatprep.subr.mxu0 0.0
    %3176 = vmatpush1.msra.mxu0 %v183
    %3177 = vmatprep.subr.mxu0 0.0
    %3178 = vmatpush1.msra.mxu0 %v184
    %3179 = vmatprep.subr.mxu0 0.0
    %3180 = vmatpush1.msra.mxu0 %v185
    %3181 = vmatprep.subr.mxu0 0.0
    %3182 = vmatpush1.msra.mxu0 0.0
    %3183 = vmatprep.subr.mxu0 0.0
    %3184 = vmatpush1.msra.mxu0 0.0
    %3185 = vmatprep.subr.mxu0 0.0
    %3186 = vmatpush1.msra.mxu0 0.0
    %3187 = vmatprep.subr.mxu0 0.0
    %3188 = vmatpush1.msra.mxu0 0.0
    %3189 = vmatprep.subr.mxu0 0.0
    %3190 = vmatpush1.msra.mxu0 0.0
    %3191 = vmatprep.subr.mxu0 0.0
    %3192 = vmatpush1.msra.mxu0 0.0
    %3193 = vmatprep.subr.mxu0 0.0
    %3194 = vmatpush1.msra.mxu0 0.0
    %3195 = vmatprep.subr.mxu0 0.0
    %3196 = vmatpush1.msra.mxu0 0.0
    %3197 = vmatprep.subr.mxu0 0.0
    %3198 = vmatpush1.msra.mxu0 0.0
    %3199 = vmatprep.subr.mxu0 0.0
    %3200 = vmatpush1.msra.mxu0 0.0
    %3201 = vmatprep.subr.mxu0 0.0
    %3202 = vmatpush1.msra.mxu0 0.0
    %3203 = vmatprep.subr.mxu0 0.0
    %3204 = vmatpush1.msra.mxu0 0.0
    %3205 = vmatprep.subr.mxu0 0.0
    %3206 = vmatpush1.msra.mxu0 0.0
    %3207 = vmatprep.subr.mxu0 0.0
    %3208 = vmatpush1.msra.mxu0 0.0
    %3209 = vmatprep.subr.mxu0 0.0
    %3210 = vmatpush1.msra.mxu0 0.0
    %3211 = vmatprep.subr.mxu0 0.0
    %3212 = vmatpush1.msra.mxu0 0.0
    %3213 = vmatprep.subr.mxu0 0.0
    %3214 = vmatpush1.msra.mxu0 0.0
    %3215 = vmatprep.subr.mxu0 0.0
    %3216 = vmatpush1.msra.mxu0 0.0
    %3217 = vmatprep.subr.mxu0 0.0
    %3218 = vmatpush1.msra.mxu0 0.0
    %3219 = vmatprep.subr.mxu0 0.0
    %3220 = vmatpush1.msra.mxu0 0.0
    %3221 = vmatprep.subr.mxu0 0.0
    %3222 = vmatpush1.msra.mxu0 0.0
    %3223 = vmatprep.subr.mxu0 0.0
    %3224 = vmatpush1.msra.mxu0 0.0
    %3225 = vmatprep.subr.mxu0 0.0
    %3226 = vmatpush1.msra.mxu0 0.0
    %3227 = vmatprep.subr.mxu0 0.0
    %3228 = vmatpush1.msra.mxu0 0.0
    %3229 = vmatprep.subr.mxu0 0.0
    %3230 = vmatpush1.msra.mxu0 0.0
    %3231 = vmatprep.subr.mxu0 0.0
    %3232 = vmatpush1.msra.mxu0 0.0
    %3233 = vmatprep.subr.mxu0 0.0
    %3234 = vmatpush1.msra.mxu0 0.0
    %3235 = vmatprep.subr.mxu0 0.0
    %3236 = vmatpush1.msra.mxu0 0.0
    %3237 = vmatprep.mubr.f32.mxu0 0.0
    %3238 = vmatmul.mubr.f32.gmra.mrb[0].mxu0 %v3171
    %v3239 = vpop.f32.mrb[0].mxu0
    %v3240 = vadd.f32 %v3167, %v3239
    %v3241 = vpop.f32.mrb[0].mxu0
    %3242 = vdwg.mxu0
    %v3243 = vadd.f32 %v3240, %v194
    %3244 = vmatprep.subr.mxu0 0.0
    %3245 = vmatpush1.xpose.msra.mxu0 %v351
    %3246 = vmatprep.subr.mxu0 0.0
    %3247 = vmatpush1.xpose.msra.mxu0 0.0
    %3248 = vmatprep.subr.mxu0 0.0
    %3249 = vmatpush1.xpose.msra.mxu0 0.0
    %3250 = vmatprep.subr.mxu0 0.0
    %3251 = vmatpush1.xpose.msra.mxu0 0.0
    %3252 = vmatprep.subr.mxu0 0.0
    %3253 = vmatpush1.xpose.msra.mxu0 0.0
    %3254 = vmatprep.subr.mxu0 0.0
    %3255 = vmatpush1.xpose.msra.mxu0 0.0
    %3256 = vmatprep.subr.mxu0 0.0
    %3257 = vmatpush1.xpose.msra.mxu0 0.0
    %3258 = vmatprep.subr.mxu0 0.0
    %3259 = vmatpush1.xpose.msra.mxu0 0.0
    %3260 = vmatprep.subr.mxu0 0.0
    %3261 = vmatpush1.xpose.msra.mxu0 0.0
    %3262 = vmatprep.subr.mxu0 0.0
    %3263 = vmatpush1.xpose.msra.mxu0 0.0
    %3264 = vmatprep.subr.mxu0 0.0
    %3265 = vmatpush1.xpose.msra.mxu0 0.0
    %3266 = vmatprep.subr.mxu0 0.0
    %3267 = vmatpush1.xpose.msra.mxu0 0.0
    %3268 = vmatprep.subr.mxu0 0.0
    %3269 = vmatpush1.xpose.msra.mxu0 0.0
    %3270 = vmatprep.subr.mxu0 0.0
    %3271 = vmatpush1.xpose.msra.mxu0 0.0
    %3272 = vmatprep.subr.mxu0 0.0
    %3273 = vmatpush1.xpose.msra.mxu0 0.0
    %3274 = vmatprep.subr.mxu0 0.0
    %3275 = vmatpush1.xpose.msra.mxu0 0.0
    %3276 = vmatprep.subr.mxu0 0.0
    %3277 = vmatpush1.xpose.msra.mxu0 0.0
    %3278 = vmatprep.subr.mxu0 0.0
    %3279 = vmatpush1.xpose.msra.mxu0 0.0
    %3280 = vmatprep.subr.mxu0 0.0
    %3281 = vmatpush1.xpose.msra.mxu0 0.0
    %3282 = vmatprep.subr.mxu0 0.0
    %3283 = vmatpush1.xpose.msra.mxu0 0.0
    %3284 = vmatprep.subr.mxu0 0.0
    %3285 = vmatpush1.xpose.msra.mxu0 0.0
    %3286 = vmatprep.subr.mxu0 0.0
    %3287 = vmatpush1.xpose.msra.mxu0 0.0
    %3288 = vmatprep.subr.mxu0 0.0
    %3289 = vmatpush1.xpose.msra.mxu0 0.0
    %3290 = vmatprep.subr.mxu0 0.0
    %3291 = vmatpush1.xpose.msra.mxu0 0.0
    %3292 = vmatprep.subr.mxu0 0.0
    %3293 = vmatpush1.xpose.msra.mxu0 0.0
    %3294 = vmatprep.subr.mxu0 0.0
    %3295 = vmatpush1.xpose.msra.mxu0 0.0
    %3296 = vmatprep.subr.mxu0 0.0
    %3297 = vmatpush1.xpose.msra.mxu0 0.0
    %3298 = vmatprep.subr.mxu0 0.0
    %3299 = vmatpush1.xpose.msra.mxu0 0.0
    %3300 = vmatprep.subr.mxu0 0.0
    %3301 = vmatpush1.xpose.msra.mxu0 0.0
    %3302 = vmatprep.subr.mxu0 0.0
    %3303 = vmatpush1.xpose.msra.mxu0 0.0
    %3304 = vmatprep.subr.mxu0 0.0
    %3305 = vmatpush1.xpose.msra.mxu0 0.0
    %3306 = vmatprep.subr.mxu0 0.0
    %3307 = vmatpush1.xpose.msra.mxu0 0.0
    %3308 = vmatprep.mubr.f32.mxu0 0.0
    %3309 = vmatmul.mubr.f32.gmra.mrb[0].mxu0 %v3098
    %v3310 = vpop.f32.mrb[0].mxu0
    %v3311 = vadd.f32 0.0, %v3310
    %v3312 = vpop.f32.mrb[0].mxu0
    %3313 = vdwg.mxu0
    %v3314 = vsel %vm423, %v3311, -inf
    %3315 = vmax.xlane.f32.xlu0 %v3314
    %v3316 = vpop.xlane.xlu0 %3315
    %v3317 = vsub.f32 %v3311, %v3316
    %v3318 = vmul.f32 %v3317, 1.442695
    %v3319 = vpow.pop %v3318
    %v3320 = vsel %vm423, %v3319, 0.0
    %3321 = vadd.xlane.f32.xlu0 %v3320
    %v3322 = vpop.xlane.xlu0 %3321
    %v3323 = vrcp.pop %v3322
    %v3324 = vmul.f32 %v3319, %v3323
    %v3326 = vsel %vm435, %v3324, 0
    %3328 = vmatprep.subr.mxu0 0.0
    %3329 = vmatpush1.msra.mxu0 %v181
    %3330 = vmatprep.subr.mxu0 0.0
    %3331 = vmatpush1.msra.mxu0 0.0
    %3332 = vmatprep.subr.mxu0 0.0
    %3333 = vmatpush1.msra.mxu0 0.0
    %3334 = vmatprep.subr.mxu0 0.0
    %3335 = vmatpush1.msra.mxu0 0.0
    %3336 = vmatprep.subr.mxu0 0.0
    %3337 = vmatpush1.msra.mxu0 0.0
    %3338 = vmatprep.subr.mxu0 0.0
    %3339 = vmatpush1.msra.mxu0 0.0
    %3340 = vmatprep.subr.mxu0 0.0
    %3341 = vmatpush1.msra.mxu0 0.0
    %3342 = vmatprep.subr.mxu0 0.0
    %3343 = vmatpush1.msra.mxu0 0.0
    %3344 = vmatprep.subr.mxu0 0.0
    %3345 = vmatpush1.msra.mxu0 0.0
    %3346 = vmatprep.subr.mxu0 0.0
    %3347 = vmatpush1.msra.mxu0 0.0
    %3348 = vmatprep.subr.mxu0 0.0
    %3349 = vmatpush1.msra.mxu0 0.0
    %3350 = vmatprep.subr.mxu0 0.0
    %3351 = vmatpush1.msra.mxu0 0.0
    %3352 = vmatprep.subr.mxu0 0.0
    %3353 = vmatpush1.msra.mxu0 0.0
    %3354 = vmatprep.subr.mxu0 0.0
    %3355 = vmatpush1.msra.mxu0 0.0
    %3356 = vmatprep.subr.mxu0 0.0
    %3357 = vmatpush1.msra.mxu0 0.0
    %3358 = vmatprep.subr.mxu0 0.0
    %3359 = vmatpush1.msra.mxu0 0.0
    %3360 = vmatprep.subr.mxu0 0.0
    %3361 = vmatpush1.msra.mxu0 0.0
    %3362 = vmatprep.subr.mxu0 0.0
    %3363 = vmatpush1.msra.mxu0 0.0
    %3364 = vmatprep.subr.mxu0 0.0
    %3365 = vmatpush1.msra.mxu0 0.0
    %3366 = vmatprep.subr.mxu0 0.0
    %3367 = vmatpush1.msra.mxu0 0.0
    %3368 = vmatprep.subr.mxu0 0.0
    %3369 = vmatpush1.msra.mxu0 0.0
    %3370 = vmatprep.subr.mxu0 0.0
    %3371 = vmatpush1.msra.mxu0 0.0
    %3372 = vmatprep.subr.mxu0 0.0
    %3373 = vmatpush1.msra.mxu0 0.0
    %3374 = vmatprep.subr.mxu0 0.0
    %3375 = vmatpush1.msra.mxu0 0.0
    %3376 = vmatprep.subr.mxu0 0.0
    %3377 = vmatpush1.msra.mxu0 0.0
    %3378 = vmatprep.subr.mxu0 0.0
    %3379 = vmatpush1.msra.mxu0 0.0
    %3380 = vmatprep.subr.mxu0 0.0
    %3381 = vmatpush1.msra.mxu0 0.0
    %3382 = vmatprep.subr.mxu0 0.0
    %3383 = vmatpush1.msra.mxu0 0.0
    %3384 = vmatprep.subr.mxu0 0.0
    %3385 = vmatpush1.msra.mxu0 0.0
    %3386 = vmatprep.subr.mxu0 0.0
    %3387 = vmatpush1.msra.mxu0 0.0
    %3388 = vmatprep.subr.mxu0 0.0
    %3389 = vmatpush1.msra.mxu0 0.0
    %3390 = vmatprep.subr.mxu0 0.0
    %3391 = vmatpush1.msra.mxu0 0.0
    %3392 = vmatprep.mubr.f32.mxu0 0.0
    %3393 = vmatmul.mubr.f32.gmra.mrb[0].mxu0 %v3326
    %v3394 = vpop.f32.mrb[0].mxu0
    %v3395 = vadd.f32 0.0, %v3394
    %v3396 = vpop.f32.mrb[0].mxu0
    %3397 = vdwg.mxu0
    %v3399 = vsel %vm107, %v3395, 0
    %3401 = vmatprep.subr.mxu0 0.0
    %3402 = vmatpush1.msra.mxu0 %v190
    %3403 = vmatprep.subr.mxu0 0.0
    %3404 = vmatpush1.msra.mxu0 %v191
    %3405 = vmatprep.subr.mxu0 0.0
    %3406 = vmatpush1.msra.mxu0 %v192
    %3407 = vmatprep.subr.mxu0 0.0
    %3408 = vmatpush1.msra.mxu0 %v193
    %3409 = vmatprep.subr.mxu0 0.0
    %3410 = vmatpush1.msra.mxu0 0.0
    %3411 = vmatprep.subr.mxu0 0.0
    %3412 = vmatpush1.msra.mxu0 0.0
    %3413 = vmatprep.subr.mxu0 0.0
    %3414 = vmatpush1.msra.mxu0 0.0
    %3415 = vmatprep.subr.mxu0 0.0
    %3416 = vmatpush1.msra.mxu0 0.0
    %3417 = vmatprep.subr.mxu0 0.0
    %3418 = vmatpush1.msra.mxu0 0.0
    %3419 = vmatprep.subr.mxu0 0.0
    %3420 = vmatpush1.msra.mxu0 0.0
    %3421 = vmatprep.subr.mxu0 0.0
    %3422 = vmatpush1.msra.mxu0 0.0
    %3423 = vmatprep.subr.mxu0 0.0
    %3424 = vmatpush1.msra.mxu0 0.0
    %3425 = vmatprep.subr.mxu0 0.0
    %3426 = vmatpush1.msra.mxu0 0.0
    %3427 = vmatprep.subr.mxu0 0.0
    %3428 = vmatpush1.msra.mxu0 0.0
    %3429 = vmatprep.subr.mxu0 0.0
    %3430 = vmatpush1.msra.mxu0 0.0
    %3431 = vmatprep.subr.mxu0 0.0
    %3432 = vmatpush1.msra.mxu0 0.0
    %3433 = vmatprep.subr.mxu0 0.0
    %3434 = vmatpush1.msra.mxu0 0.0
    %3435 = vmatprep.subr.mxu0 0.0
    %3436 = vmatpush1.msra.mxu0 0.0
    %3437 = vmatprep.subr.mxu0 0.0
    %3438 = vmatpush1.msra.mxu0 0.0
    %3439 = vmatprep.subr.mxu0 0.0
    %3440 = vmatpush1.msra.mxu0 0.0
    %3441 = vmatprep.subr.mxu0 0.0
    %3442 = vmatpush1.msra.mxu0 0.0
    %3443 = vmatprep.subr.mxu0 0.0
    %3444 = vmatpush1.msra.mxu0 0.0
    %3445 = vmatprep.subr.mxu0 0.0
    %3446 = vmatpush1.msra.mxu0 0.0
    %3447 = vmatprep.subr.mxu0 0.0
    %3448 = vmatpush1.msra.mxu0 0.0
    %3449 = vmatprep.subr.mxu0 0.0
    %3450 = vmatpush1.msra.mxu0 0.0
    %3451 = vmatprep.subr.mxu0 0.0
    %3452 = vmatpush1.msra.mxu0 0.0
    %3453 = vmatprep.subr.mxu0 0.0
    %3454 = vmatpush1.msra.mxu0 0.0
    %3455 = vmatprep.subr.mxu0 0.0
    %3456 = vmatpush1.msra.mxu0 0.0
    %3457 = vmatprep.subr.mxu0 0.0
    %3458 = vmatpush1.msra.mxu0 0.0
    %3459 = vmatprep.subr.mxu0 0.0
    %3460 = vmatpush1.msra.mxu0 0.0
    %3461 = vmatprep.subr.mxu0 0.0
    %3462 = vmatpush1.msra.mxu0 0.0
    %3463 = vmatprep.subr.mxu0 0.0
    %3464 = vmatpush1.msra.mxu0 0.0
    %3465 = vmatprep.mubr.f32.mxu0 0.0
    %3466 = vmatmul.mubr.f32.gmra.mrb[0].mxu0 %v3399
    %v3467 = vpop.f32.mrb[0].mxu0
    %v3468 = vadd.f32 0.0, %v3467
    %v3469 = vpop.f32.mrb[0].mxu0
    %3470 = vdwg.mxu0
    %v3471 = vadd.f32 %v3243, %v3468
    %v3472 = vtanh.pop %v3471
    %v3474 = vsel %vm107, %v3472, 0
    %3476 = vmatprep.subr.mxu0 0.0
    %3477 = vmatpush1.msra.mxu0 %v195
    %3478 = vmatprep.subr.mxu0 0.0
    %3479 = vmatpush1.msra.mxu0 %v196
    %3480 = vmatprep.subr.mxu0 0.0
    %3481 = vmatpush1.msra.mxu0 %v197
    %3482 = vmatprep.subr.mxu0 0.0
    %3483 = vmatpush1.msra.mxu0 %v198
    %3484 = vmatprep.subr.mxu0 0.0
    %3485 = vmatpush1.msra.mxu0 0.0
    %3486 = vmatprep.subr.mxu0 0.0
    %3487 = vmatpush1.msra.mxu0 0.0
    %3488 = vmatprep.subr.mxu0 0.0
    %3489 = vmatpush1.msra.mxu0 0.0
    %3490 = vmatprep.subr.mxu0 0.0
    %3491 = vmatpush1.msra.mxu0 0.0
    %3492 = vmatprep.subr.mxu0 0.0
    %3493 = vmatpush1.msra.mxu0 0.0
    %3494 = vmatprep.subr.mxu0 0.0
    %3495 = vmatpush1.msra.mxu0 0.0
    %3496 = vmatprep.subr.mxu0 0.0
    %3497 = vmatpush1.msra.mxu0 0.0
    %3498 = vmatprep.subr.mxu0 0.0
    %3499 = vmatpush1.msra.mxu0 0.0
    %3500 = vmatprep.subr.mxu0 0.0
    %3501 = vmatpush1.msra.mxu0 0.0
    %3502 = vmatprep.subr.mxu0 0.0
    %3503 = vmatpush1.msra.mxu0 0.0
    %3504 = vmatprep.subr.mxu0 0.0
    %3505 = vmatpush1.msra.mxu0 0.0
    %3506 = vmatprep.subr.mxu0 0.0
    %3507 = vmatpush1.msra.mxu0 0.0
    %3508 = vmatprep.subr.mxu0 0.0
    %3509 = vmatpush1.msra.mxu0 0.0
    %3510 = vmatprep.subr.mxu0 0.0
    %3511 = vmatpush1.msra.mxu0 0.0
    %3512 = vmatprep.subr.mxu0 0.0
    %3513 = vmatpush1.msra.mxu0 0.0
    %3514 = vmatprep.subr.mxu0 0.0
    %3515 = vmatpush1.msra.mxu0 0.0
    %3516 = vmatprep.subr.mxu0 0.0
    %3517 = vmatpush1.msra.mxu0 0.0
    %3518 = vmatprep.subr.mxu0 0.0
    %3519 = vmatpush1.msra.mxu0 0.0
    %3520 = vmatprep.subr.mxu0 0.0
    %3521 = vmatpush1.msra.mxu0 0.0
    %3522 = vmatprep.subr.mxu0 0.0
    %3523 = vmatpush1.msra.mxu0 0.0
    %3524 = vmatprep.subr.mxu0 0.0
    %3525 = vmatpush1.msra.mxu0 0.0
    %3526 = vmatprep.subr.mxu0 0.0
    %3527 = vmatpush1.msra.mxu0 0.0
    %3528 = vmatprep.subr.mxu0 0.0
    %3529 = vmatpush1.msra.mxu0 0.0
    %3530 = vmatprep.subr.mxu0 0.0
    %3531 = vmatpush1.msra.mxu0 0.0
    %3532 = vmatprep.subr.mxu0 0.0
    %3533 = vmatpush1.msra.mxu0 0.0
    %3534 = vmatprep.subr.mxu0 0.0
    %3535 = vmatpush1.msra.mxu0 0.0
    %3536 = vmatprep.subr.mxu0 0.0
    %3537 = vmatpush1.msra.mxu0 0.0
    %3538 = vmatprep.subr.mxu0 0.0
    %3539 = vmatpush1.msra.mxu0 0.0
    %3540 = vmatprep.mubr.f32.mxu0 0.0
    %3541 = vmatmul.mubr.f32.gmra.mrb[0].mxu0 %v3474
    %v3542 = vpop.f32.mrb[0].mxu0
    %v3543 = vadd.f32 %v199, %v3542
    %v3544 = vpop.f32.mrb[0].mxu0
    %3545 = vdwg.mxu0
    %v3546 = vsel %vm657, %v3543, -inf
    %3547 = vmax.xlane.f32.xlu0 %v3546
    %v3548 = vpop.xlane.xlu0 %3547
    %vm3549 = vcmp.eq.f32.partialorder %v3543, %v3548
    %v3550 = vsel %vm3549, %v89, 32
    %v3551 = vsel %vm657, %v3550, 2147483647
    %v3552 = vand.u32 %v3551, 65535
    %v3553 = vshra.s32 %v3551, 16
    %v3554 = vcvt.s32.f32 %v3552
    %v3555 = vcvt.s32.f32 %v3553
    %3556 = vmin.xlane.f32.xlu0 %v3555
    %v3557 = vpop.xlane.xlu0 %3556
    %vm3558 = vcmp.eq.f32.partialorder %v3555, %v3557
    %v3559 = vsel %vm3558, %v3554, inf
    %3560 = vmin.xlane.f32.xlu0 %v3559
    %v3561 = vpop.xlane.xlu0 %3560
    %v3562 = vcvt.f32.s32 %v3561
    %v3563 = vcvt.f32.s32 %v3557
    %v3564 = vshll.u32 %v3563, 16
    %v3565 = vadd.s32 %v3564, %v3562
    %vm3566 = vcmp.lt.s32.totalorder %v3565, 31
    %v3567 = vsel %vm3566, %v3565, 31
    %vm3568 = vcmp.eq.s32.totalorder %v89, %v3567
    %v3569 = vsel %vm3568, 1, 0
    %v3570 = vcvt.s32.f32 %v3569
    %v3571 = vsel %vm3096, 1, %v3567
    %vm3572 = vcmp.eq.s32.totalorder %v89, 6
    %v3573 = vsel %vm3572, %v3571, %v3090
    %v3574 = vsel %vm3096, 1, 0
    %vm3575 = vcmp.eq.s32.totalorder %v3574, 1
    %v3576 = vsel %vm3575, %v3093, %v3472
    %v3577 = vsel %vm3575, %v3094, %v3570
    %vm3578 = vcmp.eq.s32.totalorder %v3567, 1
    %vm3579 = vmor %vm3096, %vm3578
    %v3581 = vsel %vm107, %v3576, 0
    %3583 = vmatprep.subr.mxu0 0.0
    %3584 = vmatpush1.msra.mxu0 %v186
    %3585 = vmatprep.subr.mxu0 0.0
    %3586 = vmatpush1.msra.mxu0 %v187
    %3587 = vmatprep.subr.mxu0 0.0
    %3588 = vmatpush1.msra.mxu0 %v188
    %3589 = vmatprep.subr.mxu0 0.0
    %3590 = vmatpush1.msra.mxu0 %v189
    %3591 = vmatprep.subr.mxu0 0.0
    %3592 = vmatpush1.msra.mxu0 0.0
    %3593 = vmatprep.subr.mxu0 0.0
    %3594 = vmatpush1.msra.mxu0 0.0
    %3595 = vmatprep.subr.mxu0 0.0
    %3596 = vmatpush1.msra.mxu0 0.0
    %3597 = vmatprep.subr.mxu0 0.0
    %3598 = vmatpush1.msra.mxu0 0.0
    %3599 = vmatprep.subr.mxu0 0.0
    %3600 = vmatpush1.msra.mxu0 0.0
    %3601 = vmatprep.subr.mxu0 0.0
    %3602 = vmatpush1.msra.mxu0 0.0
    %3603 = vmatprep.subr.mxu0 0.0
    %3604 = vmatpush1.msra.mxu0 0.0
    %3605 = vmatprep.subr.mxu0 0.0
    %3606 = vmatpush1.msra.mxu0 0.0
    %3607 = vmatprep.subr.mxu0 0.0
    %3608 = vmatpush1.msra.mxu0 0.0
    %3609 = vmatprep.subr.mxu0 0.0
    %3610 = vmatpush1.msra.mxu0 0.0
    %3611 = vmatprep.subr.mxu0 0.0
    %3612 = vmatpush1.msra.mxu0 0.0
    %3613 = vmatprep.subr.mxu0 0.0
    %3614 = vmatpush1.msra.mxu0 0.0
    %3615 = vmatprep.subr.mxu0 0.0
    %3616 = vmatpush1.msra.mxu0 0.0
    %3617 = vmatprep.subr.mxu0 0.0
    %3618 = vmatpush1.msra.mxu0 0.0
    %3619 = vmatprep.subr.mxu0 0.0
    %3620 = vmatpush1.msra.mxu0 0.0
    %3621 = vmatprep.subr.mxu0 0.0
    %3622 = vmatpush1.msra.mxu0 0.0
    %3623 = vmatprep.subr.mxu0 0.0
    %3624 = vmatpush1.msra.mxu0 0.0
    %3625 = vmatprep.subr.mxu0 0.0
    %3626 = vmatpush1.msra.mxu0 0.0
    %3627 = vmatprep.subr.mxu0 0.0
    %3628 = vmatpush1.msra.mxu0 0.0
    %3629 = vmatprep.subr.mxu0 0.0
    %3630 = vmatpush1.msra.mxu0 0.0
    %3631 = vmatprep.subr.mxu0 0.0
    %3632 = vmatpush1.msra.mxu0 0.0
    %3633 = vmatprep.subr.mxu0 0.0
    %3634 = vmatpush1.msra.mxu0 0.0
    %3635 = vmatprep.subr.mxu0 0.0
    %3636 = vmatpush1.msra.mxu0 0.0
    %3637 = vmatprep.subr.mxu0 0.0
    %3638 = vmatpush1.msra.mxu0 0.0
    %3639 = vmatprep.subr.mxu0 0.0
    %3640 = vmatpush1.msra.mxu0 0.0
    %3641 = vmatprep.subr.mxu0 0.0
    %3642 = vmatpush1.msra.mxu0 0.0
    %3643 = vmatprep.subr.mxu0 0.0
    %3644 = vmatpush1.msra.mxu0 0.0
    %3645 = vmatprep.subr.mxu0 0.0
    %3646 = vmatpush1.msra.mxu0 0.0
    %3647 = vmatprep.mubr.f32.mxu0 0.0
    %3648 = vmatmul.mubr.f32.gmra.mrb[0].mxu0 %v3581
    %v3649 = vpop.f32.mrb[0].mxu0
    %v3650 = vadd.f32 0.0, %v3649
    %v3651 = vpop.f32.mrb[0].mxu0
    %3652 = vdwg.mxu0
    %v3654 = vsel %vm107, %v3577, 0
    %3656 = vmatprep.subr.mxu0 0.0
    %3657 = vmatpush1.msra.mxu0 %v182
    %3658 = vmatprep.subr.mxu0 0.0
    %3659 = vmatpush1.msra.mxu0 %v183
    %3660 = vmatprep.subr.mxu0 0.0
    %3661 = vmatpush1.msra.mxu0 %v184
    %3662 = vmatprep.subr.mxu0 0.0
    %3663 = vmatpush1.msra.mxu0 %v185
    %3664 = vmatprep.subr.mxu0 0.0
    %3665 = vmatpush1.msra.mxu0 0.0
    %3666 = vmatprep.subr.mxu0 0.0
    %3667 = vmatpush1.msra.mxu0 0.0
    %3668 = vmatprep.subr.mxu0 0.0
    %3669 = vmatpush1.msra.mxu0 0.0
    %3670 = vmatprep.subr.mxu0 0.0
    %3671 = vmatpush1.msra.mxu0 0.0
    %3672 = vmatprep.subr.mxu0 0.0
    %3673 = vmatpush1.msra.mxu0 0.0
    %3674 = vmatprep.subr.mxu0 0.0
    %3675 = vmatpush1.msra.mxu0 0.0
    %3676 = vmatprep.subr.mxu0 0.0
    %3677 = vmatpush1.msra.mxu0 0.0
    %3678 = vmatprep.subr.mxu0 0.0
    %3679 = vmatpush1.msra.mxu0 0.0
    %3680 = vmatprep.subr.mxu0 0.0
    %3681 = vmatpush1.msra.mxu0 0.0
    %3682 = vmatprep.subr.mxu0 0.0
    %3683 = vmatpush1.msra.mxu0 0.0
    %3684 = vmatprep.subr.mxu0 0.0
    %3685 = vmatpush1.msra.mxu0 0.0
    %3686 = vmatprep.subr.mxu0 0.0
    %3687 = vmatpush1.msra.mxu0 0.0
    %3688 = vmatprep.subr.mxu0 0.0
    %3689 = vmatpush1.msra.mxu0 0.0
    %3690 = vmatprep.subr.mxu0 0.0
    %3691 = vmatpush1.msra.mxu0 0.0
    %3692 = vmatprep.subr.mxu0 0.0
    %3693 = vmatpush1.msra.mxu0 0.0
    %3694 = vmatprep.subr.mxu0 0.0
    %3695 = vmatpush1.msra.mxu0 0.0
    %3696 = vmatprep.subr.mxu0 0.0
    %3697 = vmatpush1.msra.mxu0 0.0
    %3698 = vmatprep.subr.mxu0 0.0
    %3699 = vmatpush1.msra.mxu0 0.0
    %3700 = vmatprep.subr.mxu0 0.0
    %3701 = vmatpush1.msra.mxu0 0.0
    %3702 = vmatprep.subr.mxu0 0.0
    %3703 = vmatpush1.msra.mxu0 0.0
    %3704 = vmatprep.subr.mxu0 0.0
    %3705 = vmatpush1.msra.mxu0 0.0
    %3706 = vmatprep.subr.mxu0 0.0
    %3707 = vmatpush1.msra.mxu0 0.0
    %3708 = vmatprep.subr.mxu0 0.0
    %3709 = vmatpush1.msra.mxu0 0.0
    %3710 = vmatprep.subr.mxu0 0.0
    %3711 = vmatpush1.msra.mxu0 0.0
    %3712 = vmatprep.subr.mxu0 0.0
    %3713 = vmatpush1.msra.mxu0 0.0
    %3714 = vmatprep.subr.mxu0 0.0
    %3715 = vmatpush1.msra.mxu0 0.0
    %3716 = vmatprep.subr.mxu0 0.0
    %3717 = vmatpush1.msra.mxu0 0.0
    %3718 = vmatprep.subr.mxu0 0.0
    %3719 = vmatpush1.msra.mxu0 0.0
    %3720 = vmatprep.mubr.f32.mxu0 0.0
    %3721 = vmatmul.mubr.f32.gmra.mrb[0].mxu0 %v3654
    %v3722 = vpop.f32.mrb[0].mxu0
    %v3723 = vadd.f32 %v3650, %v3722
    %v3724 = vpop.f32.mrb[0].mxu0
    %3725 = vdwg.mxu0
    %v3726 = vadd.f32 %v3723, %v194
    %3727 = vmatprep.subr.mxu0 0.0
    %3728 = vmatpush1.xpose.msra.mxu0 %v351
    %3729 = vmatprep.subr.mxu0 0.0
    %3730 = vmatpush1.xpose.msra.mxu0 0.0
    %3731 = vmatprep.subr.mxu0 0.0
    %3732 = vmatpush1.xpose.msra.mxu0 0.0
    %3733 = vmatprep.subr.mxu0 0.0
    %3734 = vmatpush1.xpose.msra.mxu0 0.0
    %3735 = vmatprep.subr.mxu0 0.0
    %3736 = vmatpush1.xpose.msra.mxu0 0.0
    %3737 = vmatprep.subr.mxu0 0.0
    %3738 = vmatpush1.xpose.msra.mxu0 0.0
    %3739 = vmatprep.subr.mxu0 0.0
    %3740 = vmatpush1.xpose.msra.mxu0 0.0
    %3741 = vmatprep.subr.mxu0 0.0
    %3742 = vmatpush1.xpose.msra.mxu0 0.0
    %3743 = vmatprep.subr.mxu0 0.0
    %3744 = vmatpush1.xpose.msra.mxu0 0.0
    %3745 = vmatprep.subr.mxu0 0.0
    %3746 = vmatpush1.xpose.msra.mxu0 0.0
    %3747 = vmatprep.subr.mxu0 0.0
    %3748 = vmatpush1.xpose.msra.mxu0 0.0
    %3749 = vmatprep.subr.mxu0 0.0
    %3750 = vmatpush1.xpose.msra.mxu0 0.0
    %3751 = vmatprep.subr.mxu0 0.0
    %3752 = vmatpush1.xpose.msra.mxu0 0.0
    %3753 = vmatprep.subr.mxu0 0.0
    %3754 = vmatpush1.xpose.msra.mxu0 0.0
    %3755 = vmatprep.subr.mxu0 0.0
    %3756 = vmatpush1.xpose.msra.mxu0 0.0
    %3757 = vmatprep.subr.mxu0 0.0
    %3758 = vmatpush1.xpose.msra.mxu0 0.0
    %3759 = vmatprep.subr.mxu0 0.0
    %3760 = vmatpush1.xpose.msra.mxu0 0.0
    %3761 = vmatprep.subr.mxu0 0.0
    %3762 = vmatpush1.xpose.msra.mxu0 0.0
    %3763 = vmatprep.subr.mxu0 0.0
    %3764 = vmatpush1.xpose.msra.mxu0 0.0
    %3765 = vmatprep.subr.mxu0 0.0
    %3766 = vmatpush1.xpose.msra.mxu0 0.0
    %3767 = vmatprep.subr.mxu0 0.0
    %3768 = vmatpush1.xpose.msra.mxu0 0.0
    %3769 = vmatprep.subr.mxu0 0.0
    %3770 = vmatpush1.xpose.msra.mxu0 0.0
    %3771 = vmatprep.subr.mxu0 0.0
    %3772 = vmatpush1.xpose.msra.mxu0 0.0
    %3773 = vmatprep.subr.mxu0 0.0
    %3774 = vmatpush1.xpose.msra.mxu0 0.0
    %3775 = vmatprep.subr.mxu0 0.0
    %3776 = vmatpush1.xpose.msra.mxu0 0.0
    %3777 = vmatprep.subr.mxu0 0.0
    %3778 = vmatpush1.xpose.msra.mxu0 0.0
    %3779 = vmatprep.subr.mxu0 0.0
    %3780 = vmatpush1.xpose.msra.mxu0 0.0
    %3781 = vmatprep.subr.mxu0 0.0
    %3782 = vmatpush1.xpose.msra.mxu0 0.0
    %3783 = vmatprep.subr.mxu0 0.0
    %3784 = vmatpush1.xpose.msra.mxu0 0.0
    %3785 = vmatprep.subr.mxu0 0.0
    %3786 = vmatpush1.xpose.msra.mxu0 0.0
    %3787 = vmatprep.subr.mxu0 0.0
    %3788 = vmatpush1.xpose.msra.mxu0 0.0
    %3789 = vmatprep.subr.mxu0 0.0
    %3790 = vmatpush1.xpose.msra.mxu0 0.0
    %3791 = vmatprep.mubr.f32.mxu0 0.0
    %3792 = vmatmul.mubr.f32.gmra.mrb[0].mxu0 %v3581
    %v3793 = vpop.f32.mrb[0].mxu0
    %v3794 = vadd.f32 0.0, %v3793
    %v3795 = vpop.f32.mrb[0].mxu0
    %3796 = vdwg.mxu0
    %v3797 = vsel %vm423, %v3794, -inf
    %3798 = vmax.xlane.f32.xlu0 %v3797
    %v3799 = vpop.xlane.xlu0 %3798
    %v3800 = vsub.f32 %v3794, %v3799
    %v3801 = vmul.f32 %v3800, 1.442695
    %v3802 = vpow.pop %v3801
    %v3803 = vsel %vm423, %v3802, 0.0
    %3804 = vadd.xlane.f32.xlu0 %v3803
    %v3805 = vpop.xlane.xlu0 %3804
    %v3806 = vrcp.pop %v3805
    %v3807 = vmul.f32 %v3802, %v3806
    %v3809 = vsel %vm435, %v3807, 0
    %3811 = vmatprep.subr.mxu0 0.0
    %3812 = vmatpush1.msra.mxu0 %v181
    %3813 = vmatprep.subr.mxu0 0.0
    %3814 = vmatpush1.msra.mxu0 0.0
    %3815 = vmatprep.subr.mxu0 0.0
    %3816 = vmatpush1.msra.mxu0 0.0
    %3817 = vmatprep.subr.mxu0 0.0
    %3818 = vmatpush1.msra.mxu0 0.0
    %3819 = vmatprep.subr.mxu0 0.0
    %3820 = vmatpush1.msra.mxu0 0.0
    %3821 = vmatprep.subr.mxu0 0.0
    %3822 = vmatpush1.msra.mxu0 0.0
    %3823 = vmatprep.subr.mxu0 0.0
    %3824 = vmatpush1.msra.mxu0 0.0
    %3825 = vmatprep.subr.mxu0 0.0
    %3826 = vmatpush1.msra.mxu0 0.0
    %3827 = vmatprep.subr.mxu0 0.0
    %3828 = vmatpush1.msra.mxu0 0.0
    %3829 = vmatprep.subr.mxu0 0.0
    %3830 = vmatpush1.msra.mxu0 0.0
    %3831 = vmatprep.subr.mxu0 0.0
    %3832 = vmatpush1.msra.mxu0 0.0
    %3833 = vmatprep.subr.mxu0 0.0
    %3834 = vmatpush1.msra.mxu0 0.0
    %3835 = vmatprep.subr.mxu0 0.0
    %3836 = vmatpush1.msra.mxu0 0.0
    %3837 = vmatprep.subr.mxu0 0.0
    %3838 = vmatpush1.msra.mxu0 0.0
    %3839 = vmatprep.subr.mxu0 0.0
    %3840 = vmatpush1.msra.mxu0 0.0
    %3841 = vmatprep.subr.mxu0 0.0
    %3842 = vmatpush1.msra.mxu0 0.0
    %3843 = vmatprep.subr.mxu0 0.0
    %3844 = vmatpush1.msra.mxu0 0.0
    %3845 = vmatprep.subr.mxu0 0.0
    %3846 = vmatpush1.msra.mxu0 0.0
    %3847 = vmatprep.subr.mxu0 0.0
    %3848 = vmatpush1.msra.mxu0 0.0
    %3849 = vmatprep.subr.mxu0 0.0
    %3850 = vmatpush1.msra.mxu0 0.0
    %3851 = vmatprep.subr.mxu0 0.0
    %3852 = vmatpush1.msra.mxu0 0.0
    %3853 = vmatprep.subr.mxu0 0.0
    %3854 = vmatpush1.msra.mxu0 0.0
    %3855 = vmatprep.subr.mxu0 0.0
    %3856 = vmatpush1.msra.mxu0 0.0
    %3857 = vmatprep.subr.mxu0 0.0
    %3858 = vmatpush1.msra.mxu0 0.0
    %3859 = vmatprep.subr.mxu0 0.0
    %3860 = vmatpush1.msra.mxu0 0.0
    %3861 = vmatprep.subr.mxu0 0.0
    %3862 = vmatpush1.msra.mxu0 0.0
    %3863 = vmatprep.subr.mxu0 0.0
    %3864 = vmatpush1.msra.mxu0 0.0
    %3865 = vmatprep.subr.mxu0 0.0
    %3866 = vmatpush1.msra.mxu0 0.0
    %3867 = vmatprep.subr.mxu0 0.0
    %3868 = vmatpush1.msra.mxu0 0.0
    %3869 = vmatprep.subr.mxu0 0.0
    %3870 = vmatpush1.msra.mxu0 0.0
    %3871 = vmatprep.subr.mxu0 0.0
    %3872 = vmatpush1.msra.mxu0 0.0
    %3873 = vmatprep.subr.mxu0 0.0
    %3874 = vmatpush1.msra.mxu0 0.0
    %3875 = vmatprep.mubr.f32.mxu0 0.0
    %3876 = vmatmul.mubr.f32.gmra.mrb[0].mxu0 %v3809
    %v3877 = vpop.f32.mrb[0].mxu0
    %v3878 = vadd.f32 0.0, %v3877
    %v3879 = vpop.f32.mrb[0].mxu0
    %3880 = vdwg.mxu0
    %v3882 = vsel %vm107, %v3878, 0
    %3884 = vmatprep.subr.mxu0 0.0
    %3885 = vmatpush1.msra.mxu0 %v190
    %3886 = vmatprep.subr.mxu0 0.0
    %3887 = vmatpush1.msra.mxu0 %v191
    %3888 = vmatprep.subr.mxu0 0.0
    %3889 = vmatpush1.msra.mxu0 %v192
    %3890 = vmatprep.subr.mxu0 0.0
    %3891 = vmatpush1.msra.mxu0 %v193
    %3892 = vmatprep.subr.mxu0 0.0
    %3893 = vmatpush1.msra.mxu0 0.0
    %3894 = vmatprep.subr.mxu0 0.0
    %3895 = vmatpush1.msra.mxu0 0.0
    %3896 = vmatprep.subr.mxu0 0.0
    %3897 = vmatpush1.msra.mxu0 0.0
    %3898 = vmatprep.subr.mxu0 0.0
    %3899 = vmatpush1.msra.mxu0 0.0
    %3900 = vmatprep.subr.mxu0 0.0
    %3901 = vmatpush1.msra.mxu0 0.0
    %3902 = vmatprep.subr.mxu0 0.0
    %3903 = vmatpush1.msra.mxu0 0.0
    %3904 = vmatprep.subr.mxu0 0.0
    %3905 = vmatpush1.msra.mxu0 0.0
    %3906 = vmatprep.subr.mxu0 0.0
    %3907 = vmatpush1.msra.mxu0 0.0
    %3908 = vmatprep.subr.mxu0 0.0
    %3909 = vmatpush1.msra.mxu0 0.0
    %3910 = vmatprep.subr.mxu0 0.0
    %3911 = vmatpush1.msra.mxu0 0.0
    %3912 = vmatprep.subr.mxu0 0.0
    %3913 = vmatpush1.msra.mxu0 0.0
    %3914 = vmatprep.subr.mxu0 0.0
    %3915 = vmatpush1.msra.mxu0 0.0
    %3916 = vmatprep.subr.mxu0 0.0
    %3917 = vmatpush1.msra.mxu0 0.0
    %3918 = vmatprep.subr.mxu0 0.0
    %3919 = vmatpush1.msra.mxu0 0.0
    %3920 = vmatprep.subr.mxu0 0.0
    %3921 = vmatpush1.msra.mxu0 0.0
    %3922 = vmatprep.subr.mxu0 0.0
    %3923 = vmatpush1.msra.mxu0 0.0
    %3924 = vmatprep.subr.mxu0 0.0
    %3925 = vmatpush1.msra.mxu0 0.0
    %3926 = vmatprep.subr.mxu0 0.0
    %3927 = vmatpush1.msra.mxu0 0.0
    %3928 = vmatprep.subr.mxu0 0.0
    %3929 = vmatpush1.msra.mxu0 0.0
    %3930 = vmatprep.subr.mxu0 0.0
    %3931 = vmatpush1.msra.mxu0 0.0
    %3932 = vmatprep.subr.mxu0 0.0
    %3933 = vmatpush1.msra.mxu0 0.0
    %3934 = vmatprep.subr.mxu0 0.0
    %3935 = vmatpush1.msra.mxu0 0.0
    %3936 = vmatprep.subr.mxu0 0.0
    %3937 = vmatpush1.msra.mxu0 0.0
    %3938 = vmatprep.subr.mxu0 0.0
    %3939 = vmatpush1.msra.mxu0 0.0
    %3940 = vmatprep.subr.mxu0 0.0
    %3941 = vmatpush1.msra.mxu0 0.0
    %3942 = vmatprep.subr.mxu0 0.0
    %3943 = vmatpush1.msra.mxu0 0.0
    %3944 = vmatprep.subr.mxu0 0.0
    %3945 = vmatpush1.msra.mxu0 0.0
    %3946 = vmatprep.subr.mxu0 0.0
    %3947 = vmatpush1.msra.mxu0 0.0
    %3948 = vmatprep.mubr.f32.mxu0 0.0
    %3949 = vmatmul.mubr.f32.gmra.mrb[0].mxu0 %v3882
    %v3950 = vpop.f32.mrb[0].mxu0
    %v3951 = vadd.f32 0.0, %v3950
    %v3952 = vpop.f32.mrb[0].mxu0
    %3953 = vdwg.mxu0
    %v3954 = vadd.f32 %v3726, %v3951
    %v3955 = vtanh.pop %v3954
    %v3957 = vsel %vm107, %v3955, 0
    %3959 = vmatprep.subr.mxu0 0.0
    %3960 = vmatpush1.msra.mxu0 %v195
    %3961 = vmatprep.subr.mxu0 0.0
    %3962 = vmatpush1.msra.mxu0 %v196
    %3963 = vmatprep.subr.mxu0 0.0
    %3964 = vmatpush1.msra.mxu0 %v197
    %3965 = vmatprep.subr.mxu0 0.0
    %3966 = vmatpush1.msra.mxu0 %v198
    %3967 = vmatprep.subr.mxu0 0.0
    %3968 = vmatpush1.msra.mxu0 0.0
    %3969 = vmatprep.subr.mxu0 0.0
    %3970 = vmatpush1.msra.mxu0 0.0
    %3971 = vmatprep.subr.mxu0 0.0
    %3972 = vmatpush1.msra.mxu0 0.0
    %3973 = vmatprep.subr.mxu0 0.0
    %3974 = vmatpush1.msra.mxu0 0.0
    %3975 = vmatprep.subr.mxu0 0.0
    %3976 = vmatpush1.msra.mxu0 0.0
    %3977 = vmatprep.subr.mxu0 0.0
    %3978 = vmatpush1.msra.mxu0 0.0
    %3979 = vmatprep.subr.mxu0 0.0
    %3980 = vmatpush1.msra.mxu0 0.0
    %3981 = vmatprep.subr.mxu0 0.0
    %3982 = vmatpush1.msra.mxu0 0.0
    %3983 = vmatprep.subr.mxu0 0.0
    %3984 = vmatpush1.msra.mxu0 0.0
    %3985 = vmatprep.subr.mxu0 0.0
    %3986 = vmatpush1.msra.mxu0 0.0
    %3987 = vmatprep.subr.mxu0 0.0
    %3988 = vmatpush1.msra.mxu0 0.0
    %3989 = vmatprep.subr.mxu0 0.0
    %3990 = vmatpush1.msra.mxu0 0.0
    %3991 = vmatprep.subr.mxu0 0.0
    %3992 = vmatpush1.msra.mxu0 0.0
    %3993 = vmatprep.subr.mxu0 0.0
    %3994 = vmatpush1.msra.mxu0 0.0
    %3995 = vmatprep.subr.mxu0 0.0
    %3996 = vmatpush1.msra.mxu0 0.0
    %3997 = vmatprep.subr.mxu0 0.0
    %3998 = vmatpush1.msra.mxu0 0.0
    %3999 = vmatprep.subr.mxu0 0.0
    %4000 = vmatpush1.msra.mxu0 0.0
    %4001 = vmatprep.subr.mxu0 0.0
    %4002 = vmatpush1.msra.mxu0 0.0
    %4003 = vmatprep.subr.mxu0 0.0
    %4004 = vmatpush1.msra.mxu0 0.0
    %4005 = vmatprep.subr.mxu0 0.0
    %4006 = vmatpush1.msra.mxu0 0.0
    %4007 = vmatprep.subr.mxu0 0.0
    %4008 = vmatpush1.msra.mxu0 0.0
    %4009 = vmatprep.subr.mxu0 0.0
    %4010 = vmatpush1.msra.mxu0 0.0
    %4011 = vmatprep.subr.mxu0 0.0
    %4012 = vmatpush1.msra.mxu0 0.0
    %4013 = vmatprep.subr.mxu0 0.0
    %4014 = vmatpush1.msra.mxu0 0.0
    %4015 = vmatprep.subr.mxu0 0.0
    %4016 = vmatpush1.msra.mxu0 0.0
    %4017 = vmatprep.subr.mxu0 0.0
    %4018 = vmatpush1.msra.mxu0 0.0
    %4019 = vmatprep.subr.mxu0 0.0
    %4020 = vmatpush1.msra.mxu0 0.0
    %4021 = vmatprep.subr.mxu0 0.0
    %4022 = vmatpush1.msra.mxu0 0.0
    %4023 = vmatprep.mubr.f32.mxu0 0.0
    %4024 = vmatmul.mubr.f32.gmra.mrb[0].mxu0 %v3957
    %v4025 = vpop.f32.mrb[0].mxu0
    %v4026 = vadd.f32 %v199, %v4025
    %v4027 = vpop.f32.mrb[0].mxu0
    %4028 = vdwg.mxu0
    %v4029 = vsel %vm657, %v4026, -inf
    %4030 = vmax.xlane.f32.xlu0 %v4029
    %v4031 = vpop.xlane.xlu0 %4030
    %vm4032 = vcmp.eq.f32.partialorder %v4026, %v4031
    %v4033 = vsel %vm4032, %v89, 32
    %v4034 = vsel %vm657, %v4033, 2147483647
    %v4035 = vand.u32 %v4034, 65535
    %v4036 = vshra.s32 %v4034, 16
    %v4037 = vcvt.s32.f32 %v4035
    %v4038 = vcvt.s32.f32 %v4036
    %4039 = vmin.xlane.f32.xlu0 %v4038
    %v4040 = vpop.xlane.xlu0 %4039
    %vm4041 = vcmp.eq.f32.partialorder %v4038, %v4040
    %v4042 = vsel %vm4041, %v4037, inf
    %4043 = vmin.xlane.f32.xlu0 %v4042
    %v4044 = vpop.xlane.xlu0 %4043
    %v4045 = vcvt.f32.s32 %v4044
    %v4046 = vcvt.f32.s32 %v4040
    %v4047 = vshll.u32 %v4046, 16
    %v4048 = vadd.s32 %v4047, %v4045
    %vm4049 = vcmp.lt.s32.totalorder %v4048, 31
    %v4050 = vsel %vm4049, %v4048, 31
    %vm4051 = vcmp.eq.s32.totalorder %v89, %v4050
    %v4052 = vsel %vm4051, 1, 0
    %v4053 = vcvt.s32.f32 %v4052
    %v4054 = vsel %vm3579, 1, %v4050
    %vm4055 = vcmp.eq.s32.totalorder %v89, 7
    %v4056 = vsel %vm4055, %v4054, %v3573
    %v4057 = vsel %vm3579, 1, 0
    %vm4058 = vcmp.eq.s32.totalorder %v4057, 1
    %v4059 = vsel %vm4058, %v3576, %v3955
    %v4060 = vsel %vm4058, %v3577, %v4053
    %vm4061 = vcmp.eq.s32.totalorder %v4050, 1
    %vm4062 = vmor %vm3579, %vm4061
    %v4064 = vsel %vm107, %v4059, 0
    %4066 = vmatprep.subr.mxu0 0.0
    %4067 = vmatpush1.msra.mxu0 %v186
    %4068 = vmatprep.subr.mxu0 0.0
    %4069 = vmatpush1.msra.mxu0 %v187
    %4070 = vmatprep.subr.mxu0 0.0
    %4071 = vmatpush1.msra.mxu0 %v188
    %4072 = vmatprep.subr.mxu0 0.0
    %4073 = vmatpush1.msra.mxu0 %v189
    %4074 = vmatprep.subr.mxu0 0.0
    %4075 = vmatpush1.msra.mxu0 0.0
    %4076 = vmatprep.subr.mxu0 0.0
    %4077 = vmatpush1.msra.mxu0 0.0
    %4078 = vmatprep.subr.mxu0 0.0
    %4079 = vmatpush1.msra.mxu0 0.0
    %4080 = vmatprep.subr.mxu0 0.0
    %4081 = vmatpush1.msra.mxu0 0.0
    %4082 = vmatprep.subr.mxu0 0.0
    %4083 = vmatpush1.msra.mxu0 0.0
    %4084 = vmatprep.subr.mxu0 0.0
    %4085 = vmatpush1.msra.mxu0 0.0
    %4086 = vmatprep.subr.mxu0 0.0
    %4087 = vmatpush1.msra.mxu0 0.0
    %4088 = vmatprep.subr.mxu0 0.0
    %4089 = vmatpush1.msra.mxu0 0.0
    %4090 = vmatprep.subr.mxu0 0.0
    %4091 = vmatpush1.msra.mxu0 0.0
    %4092 = vmatprep.subr.mxu0 0.0
    %4093 = vmatpush1.msra.mxu0 0.0
    %4094 = vmatprep.subr.mxu0 0.0
    %4095 = vmatpush1.msra.mxu0 0.0
    %4096 = vmatprep.subr.mxu0 0.0
    %4097 = vmatpush1.msra.mxu0 0.0
    %4098 = vmatprep.subr.mxu0 0.0
    %4099 = vmatpush1.msra.mxu0 0.0
    %4100 = vmatprep.subr.mxu0 0.0
    %4101 = vmatpush1.msra.mxu0 0.0
    %4102 = vmatprep.subr.mxu0 0.0
    %4103 = vmatpush1.msra.mxu0 0.0
    %4104 = vmatprep.subr.mxu0 0.0
    %4105 = vmatpush1.msra.mxu0 0.0
    %4106 = vmatprep.subr.mxu0 0.0
    %4107 = vmatpush1.msra.mxu0 0.0
    %4108 = vmatprep.subr.mxu0 0.0
    %4109 = vmatpush1.msra.mxu0 0.0
    %4110 = vmatprep.subr.mxu0 0.0
    %4111 = vmatpush1.msra.mxu0 0.0
    %4112 = vmatprep.subr.mxu0 0.0
    %4113 = vmatpush1.msra.mxu0 0.0
    %4114 = vmatprep.subr.mxu0 0.0
    %4115 = vmatpush1.msra.mxu0 0.0
    %4116 = vmatprep.subr.mxu0 0.0
    %4117 = vmatpush1.msra.mxu0 0.0
    %4118 = vmatprep.subr.mxu0 0.0
    %4119 = vmatpush1.msra.mxu0 0.0
    %4120 = vmatprep.subr.mxu0 0.0
    %4121 = vmatpush1.msra.mxu0 0.0
    %4122 = vmatprep.subr.mxu0 0.0
    %4123 = vmatpush1.msra.mxu0 0.0
    %4124 = vmatprep.subr.mxu0 0.0
    %4125 = vmatpush1.msra.mxu0 0.0
    %4126 = vmatprep.subr.mxu0 0.0
    %4127 = vmatpush1.msra.mxu0 0.0
    %4128 = vmatprep.subr.mxu0 0.0
    %4129 = vmatpush1.msra.mxu0 0.0
    %4130 = vmatprep.mubr.f32.mxu0 0.0
    %4131 = vmatmul.mubr.f32.gmra.mrb[0].mxu0 %v4064
    %v4132 = vpop.f32.mrb[0].mxu0
    %v4133 = vadd.f32 0.0, %v4132
    %v4134 = vpop.f32.mrb[0].mxu0
    %4135 = vdwg.mxu0
    %v4137 = vsel %vm107, %v4060, 0
    %4139 = vmatprep.subr.mxu0 0.0
    %4140 = vmatpush1.msra.mxu0 %v182
    %4141 = vmatprep.subr.mxu0 0.0
    %4142 = vmatpush1.msra.mxu0 %v183
    %4143 = vmatprep.subr.mxu0 0.0
    %4144 = vmatpush1.msra.mxu0 %v184
    %4145 = vmatprep.subr.mxu0 0.0
    %4146 = vmatpush1.msra.mxu0 %v185
    %4147 = vmatprep.subr.mxu0 0.0
    %4148 = vmatpush1.msra.mxu0 0.0
    %4149 = vmatprep.subr.mxu0 0.0
    %4150 = vmatpush1.msra.mxu0 0.0
    %4151 = vmatprep.subr.mxu0 0.0
    %4152 = vmatpush1.msra.mxu0 0.0
    %4153 = vmatprep.subr.mxu0 0.0
    %4154 = vmatpush1.msra.mxu0 0.0
    %4155 = vmatprep.subr.mxu0 0.0
    %4156 = vmatpush1.msra.mxu0 0.0
    %4157 = vmatprep.subr.mxu0 0.0
    %4158 = vmatpush1.msra.mxu0 0.0
    %4159 = vmatprep.subr.mxu0 0.0
    %4160 = vmatpush1.msra.mxu0 0.0
    %4161 = vmatprep.subr.mxu0 0.0
    %4162 = vmatpush1.msra.mxu0 0.0
    %4163 = vmatprep.subr.mxu0 0.0
    %4164 = vmatpush1.msra.mxu0 0.0
    %4165 = vmatprep.subr.mxu0 0.0
    %4166 = vmatpush1.msra.mxu0 0.0
    %4167 = vmatprep.subr.mxu0 0.0
    %4168 = vmatpush1.msra.mxu0 0.0
    %4169 = vmatprep.subr.mxu0 0.0
    %4170 = vmatpush1.msra.mxu0 0.0
    %4171 = vmatprep.subr.mxu0 0.0
    %4172 = vmatpush1.msra.mxu0 0.0
    %4173 = vmatprep.subr.mxu0 0.0
    %4174 = vmatpush1.msra.mxu0 0.0
    %4175 = vmatprep.subr.mxu0 0.0
    %4176 = vmatpush1.msra.mxu0 0.0
    %4177 = vmatprep.subr.mxu0 0.0
    %4178 = vmatpush1.msra.mxu0 0.0
    %4179 = vmatprep.subr.mxu0 0.0
    %4180 = vmatpush1.msra.mxu0 0.0
    %4181 = vmatprep.subr.mxu0 0.0
    %4182 = vmatpush1.msra.mxu0 0.0
    %4183 = vmatprep.subr.mxu0 0.0
    %4184 = vmatpush1.msra.mxu0 0.0
    %4185 = vmatprep.subr.mxu0 0.0
    %4186 = vmatpush1.msra.mxu0 0.0
    %4187 = vmatprep.subr.mxu0 0.0
    %4188 = vmatpush1.msra.mxu0 0.0
    %4189 = vmatprep.subr.mxu0 0.0
    %4190 = vmatpush1.msra.mxu0 0.0
    %4191 = vmatprep.subr.mxu0 0.0
    %4192 = vmatpush1.msra.mxu0 0.0
    %4193 = vmatprep.subr.mxu0 0.0
    %4194 = vmatpush1.msra.mxu0 0.0
    %4195 = vmatprep.subr.mxu0 0.0
    %4196 = vmatpush1.msra.mxu0 0.0
    %4197 = vmatprep.subr.mxu0 0.0
    %4198 = vmatpush1.msra.mxu0 0.0
    %4199 = vmatprep.subr.mxu0 0.0
    %4200 = vmatpush1.msra.mxu0 0.0
    %4201 = vmatprep.subr.mxu0 0.0
    %4202 = vmatpush1.msra.mxu0 0.0
    %4203 = vmatprep.mubr.f32.mxu0 0.0
    %4204 = vmatmul.mubr.f32.gmra.mrb[0].mxu0 %v4137
    %v4205 = vpop.f32.mrb[0].mxu0
    %v4206 = vadd.f32 %v4133, %v4205
    %v4207 = vpop.f32.mrb[0].mxu0
    %4208 = vdwg.mxu0
    %v4209 = vadd.f32 %v4206, %v194
    %4210 = vmatprep.subr.mxu0 0.0
    %4211 = vmatpush1.xpose.msra.mxu0 %v351
    %4212 = vmatprep.subr.mxu0 0.0
    %4213 = vmatpush1.xpose.msra.mxu0 0.0
    %4214 = vmatprep.subr.mxu0 0.0
    %4215 = vmatpush1.xpose.msra.mxu0 0.0
    %4216 = vmatprep.subr.mxu0 0.0
    %4217 = vmatpush1.xpose.msra.mxu0 0.0
    %4218 = vmatprep.subr.mxu0 0.0
    %4219 = vmatpush1.xpose.msra.mxu0 0.0
    %4220 = vmatprep.subr.mxu0 0.0
    %4221 = vmatpush1.xpose.msra.mxu0 0.0
    %4222 = vmatprep.subr.mxu0 0.0
    %4223 = vmatpush1.xpose.msra.mxu0 0.0
    %4224 = vmatprep.subr.mxu0 0.0
    %4225 = vmatpush1.xpose.msra.mxu0 0.0
    %4226 = vmatprep.subr.mxu0 0.0
    %4227 = vmatpush1.xpose.msra.mxu0 0.0
    %4228 = vmatprep.subr.mxu0 0.0
    %4229 = vmatpush1.xpose.msra.mxu0 0.0
    %4230 = vmatprep.subr.mxu0 0.0
    %4231 = vmatpush1.xpose.msra.mxu0 0.0
    %4232 = vmatprep.subr.mxu0 0.0
    %4233 = vmatpush1.xpose.msra.mxu0 0.0
    %4234 = vmatprep.subr.mxu0 0.0
    %4235 = vmatpush1.xpose.msra.mxu0 0.0
    %4236 = vmatprep.subr.mxu0 0.0
    %4237 = vmatpush1.xpose.msra.mxu0 0.0
    %4238 = vmatprep.subr.mxu0 0.0
    %4239 = vmatpush1.xpose.msra.mxu0 0.0
    %4240 = vmatprep.subr.mxu0 0.0
    %4241 = vmatpush1.xpose.msra.mxu0 0.0
    %4242 = vmatprep.subr.mxu0 0.0
    %4243 = vmatpush1.xpose.msra.mxu0 0.0
    %4244 = vmatprep.subr.mxu0 0.0
    %4245 = vmatpush1.xpose.msra.mxu0 0.0
    %4246 = vmatprep.subr.mxu0 0.0
    %4247 = vmatpush1.xpose.msra.mxu0 0.0
    %4248 = vmatprep.subr.mxu0 0.0
    %4249 = vmatpush1.xpose.msra.mxu0 0.0
    %4250 = vmatprep.subr.mxu0 0.0
    %4251 = vmatpush1.xpose.msra.mxu0 0.0
    %4252 = vmatprep.subr.mxu0 0.0
    %4253 = vmatpush1.xpose.msra.mxu0 0.0
    %4254 = vmatprep.subr.mxu0 0.0
    %4255 = vmatpush1.xpose.msra.mxu0 0.0
    %4256 = vmatprep.subr.mxu0 0.0
    %4257 = vmatpush1.xpose.msra.mxu0 0.0
    %4258 = vmatprep.subr.mxu0 0.0
    %4259 = vmatpush1.xpose.msra.mxu0 0.0
    %4260 = vmatprep.subr.mxu0 0.0
    %4261 = vmatpush1.xpose.msra.mxu0 0.0
    %4262 = vmatprep.subr.mxu0 0.0
    %4263 = vmatpush1.xpose.msra.mxu0 0.0
    %4264 = vmatprep.subr.mxu0 0.0
    %4265 = vmatpush1.xpose.msra.mxu0 0.0
    %4266 = vmatprep.subr.mxu0 0.0
    %4267 = vmatpush1.xpose.msra.mxu0 0.0
    %4268 = vmatprep.subr.mxu0 0.0
    %4269 = vmatpush1.xpose.msra.mxu0 0.0
    %4270 = vmatprep.subr.mxu0 0.0
    %4271 = vmatpush1.xpose.msra.mxu0 0.0
    %4272 = vmatprep.subr.mxu0 0.0
    %4273 = vmatpush1.xpose.msra.mxu0 0.0
    %4274 = vmatprep.mubr.f32.mxu0 0.0
    %4275 = vmatmul.mubr.f32.gmra.mrb[0].mxu0 %v4064
    %v4276 = vpop.f32.mrb[0].mxu0
    %v4277 = vadd.f32 0.0, %v4276
    %v4278 = vpop.f32.mrb[0].mxu0
    %4279 = vdwg.mxu0
    %v4280 = vsel %vm423, %v4277, -inf
    %4281 = vmax.xlane.f32.xlu0 %v4280
    %v4282 = vpop.xlane.xlu0 %4281
    %v4283 = vsub.f32 %v4277, %v4282
    %v4284 = vmul.f32 %v4283, 1.442695
    %v4285 = vpow.pop %v4284
    %v4286 = vsel %vm423, %v4285, 0.0
    %4287 = vadd.xlane.f32.xlu0 %v4286
    %v4288 = vpop.xlane.xlu0 %4287
    %v4289 = vrcp.pop %v4288
    %v4290 = vmul.f32 %v4285, %v4289
    %v4292 = vsel %vm435, %v4290, 0
    %4294 = vmatprep.subr.mxu0 0.0
    %4295 = vmatpush1.msra.mxu0 %v181
    %4296 = vmatprep.subr.mxu0 0.0
    %4297 = vmatpush1.msra.mxu0 0.0
    %4298 = vmatprep.subr.mxu0 0.0
    %4299 = vmatpush1.msra.mxu0 0.0
    %4300 = vmatprep.subr.mxu0 0.0
    %4301 = vmatpush1.msra.mxu0 0.0
    %4302 = vmatprep.subr.mxu0 0.0
    %4303 = vmatpush1.msra.mxu0 0.0
    %4304 = vmatprep.subr.mxu0 0.0
    %4305 = vmatpush1.msra.mxu0 0.0
    %4306 = vmatprep.subr.mxu0 0.0
    %4307 = vmatpush1.msra.mxu0 0.0
    %4308 = vmatprep.subr.mxu0 0.0
    %4309 = vmatpush1.msra.mxu0 0.0
    %4310 = vmatprep.subr.mxu0 0.0
    %4311 = vmatpush1.msra.mxu0 0.0
    %4312 = vmatprep.subr.mxu0 0.0
    %4313 = vmatpush1.msra.mxu0 0.0
    %4314 = vmatprep.subr.mxu0 0.0
    %4315 = vmatpush1.msra.mxu0 0.0
    %4316 = vmatprep.subr.mxu0 0.0
    %4317 = vmatpush1.msra.mxu0 0.0
    %4318 = vmatprep.subr.mxu0 0.0
    %4319 = vmatpush1.msra.mxu0 0.0
    %4320 = vmatprep.subr.mxu0 0.0
    %4321 = vmatpush1.msra.mxu0 0.0
    %4322 = vmatprep.subr.mxu0 0.0
    %4323 = vmatpush1.msra.mxu0 0.0
    %4324 = vmatprep.subr.mxu0 0.0
    %4325 = vmatpush1.msra.mxu0 0.0
    %4326 = vmatprep.subr.mxu0 0.0
    %4327 = vmatpush1.msra.mxu0 0.0
    %4328 = vmatprep.subr.mxu0 0.0
    %4329 = vmatpush1.msra.mxu0 0.0
    %4330 = vmatprep.subr.mxu0 0.0
    %4331 = vmatpush1.msra.mxu0 0.0
    %4332 = vmatprep.subr.mxu0 0.0
    %4333 = vmatpush1.msra.mxu0 0.0
    %4334 = vmatprep.subr.mxu0 0.0
    %4335 = vmatpush1.msra.mxu0 0.0
    %4336 = vmatprep.subr.mxu0 0.0
    %4337 = vmatpush1.msra.mxu0 0.0
    %4338 = vmatprep.subr.mxu0 0.0
    %4339 = vmatpush1.msra.mxu0 0.0
    %4340 = vmatprep.subr.mxu0 0.0
    %4341 = vmatpush1.msra.mxu0 0.0
    %4342 = vmatprep.subr.mxu0 0.0
    %4343 = vmatpush1.msra.mxu0 0.0
    %4344 = vmatprep.subr.mxu0 0.0
    %4345 = vmatpush1.msra.mxu0 0.0
    %4346 = vmatprep.subr.mxu0 0.0
    %4347 = vmatpush1.msra.mxu0 0.0
    %4348 = vmatprep.subr.mxu0 0.0
    %4349 = vmatpush1.msra.mxu0 0.0
    %4350 = vmatprep.subr.mxu0 0.0
    %4351 = vmatpush1.msra.mxu0 0.0
    %4352 = vmatprep.subr.mxu0 0.0
    %4353 = vmatpush1.msra.mxu0 0.0
    %4354 = vmatprep.subr.mxu0 0.0
    %4355 = vmatpush1.msra.mxu0 0.0
    %4356 = vmatprep.subr.mxu0 0.0
    %4357 = vmatpush1.msra.mxu0 0.0
    %4358 = vmatprep.mubr.f32.mxu0 0.0
    %4359 = vmatmul.mubr.f32.gmra.mrb[0].mxu0 %v4292
    %v4360 = vpop.f32.mrb[0].mxu0
    %v4361 = vadd.f32 0.0, %v4360
    %v4362 = vpop.f32.mrb[0].mxu0
    %4363 = vdwg.mxu0
    %v4365 = vsel %vm107, %v4361, 0
    %4367 = vmatprep.subr.mxu0 0.0
    %4368 = vmatpush1.msra.mxu0 %v190
    %4369 = vmatprep.subr.mxu0 0.0
    %4370 = vmatpush1.msra.mxu0 %v191
    %4371 = vmatprep.subr.mxu0 0.0
    %4372 = vmatpush1.msra.mxu0 %v192
    %4373 = vmatprep.subr.mxu0 0.0
    %4374 = vmatpush1.msra.mxu0 %v193
    %4375 = vmatprep.subr.mxu0 0.0
    %4376 = vmatpush1.msra.mxu0 0.0
    %4377 = vmatprep.subr.mxu0 0.0
    %4378 = vmatpush1.msra.mxu0 0.0
    %4379 = vmatprep.subr.mxu0 0.0
    %4380 = vmatpush1.msra.mxu0 0.0
    %4381 = vmatprep.subr.mxu0 0.0
    %4382 = vmatpush1.msra.mxu0 0.0
    %4383 = vmatprep.subr.mxu0 0.0
    %4384 = vmatpush1.msra.mxu0 0.0
    %4385 = vmatprep.subr.mxu0 0.0
    %4386 = vmatpush1.msra.mxu0 0.0
    %4387 = vmatprep.subr.mxu0 0.0
    %4388 = vmatpush1.msra.mxu0 0.0
    %4389 = vmatprep.subr.mxu0 0.0
    %4390 = vmatpush1.msra.mxu0 0.0
    %4391 = vmatprep.subr.mxu0 0.0
    %4392 = vmatpush1.msra.mxu0 0.0
    %4393 = vmatprep.subr.mxu0 0.0
    %4394 = vmatpush1.msra.mxu0 0.0
    %4395 = vmatprep.subr.mxu0 0.0
    %4396 = vmatpush1.msra.mxu0 0.0
    %4397 = vmatprep.subr.mxu0 0.0
    %4398 = vmatpush1.msra.mxu0 0.0
    %4399 = vmatprep.subr.mxu0 0.0
    %4400 = vmatpush1.msra.mxu0 0.0
    %4401 = vmatprep.subr.mxu0 0.0
    %4402 = vmatpush1.msra.mxu0 0.0
    %4403 = vmatprep.subr.mxu0 0.0
    %4404 = vmatpush1.msra.mxu0 0.0
    %4405 = vmatprep.subr.mxu0 0.0
    %4406 = vmatpush1.msra.mxu0 0.0
    %4407 = vmatprep.subr.mxu0 0.0
    %4408 = vmatpush1.msra.mxu0 0.0
    %4409 = vmatprep.subr.mxu0 0.0
    %4410 = vmatpush1.msra.mxu0 0.0
    %4411 = vmatprep.subr.mxu0 0.0
    %4412 = vmatpush1.msra.mxu0 0.0
    %4413 = vmatprep.subr.mxu0 0.0
    %4414 = vmatpush1.msra.mxu0 0.0
    %4415 = vmatprep.subr.mxu0 0.0
    %4416 = vmatpush1.msra.mxu0 0.0
    %4417 = vmatprep.subr.mxu0 0.0
    %4418 = vmatpush1.msra.mxu0 0.0
    %4419 = vmatprep.subr.mxu0 0.0
    %4420 = vmatpush1.msra.mxu0 0.0
    %4421 = vmatprep.subr.mxu0 0.0
    %4422 = vmatpush1.msra.mxu0 0.0
    %4423 = vmatprep.subr.mxu0 0.0
    %4424 = vmatpush1.msra.mxu0 0.0
    %4425 = vmatprep.subr.mxu0 0.0
    %4426 = vmatpush1.msra.mxu0 0.0
    %4427 = vmatprep.subr.mxu0 0.0
    %4428 = vmatpush1.msra.mxu0 0.0
    %4429 = vmatprep.subr.mxu0 0.0
    %4430 = vmatpush1.msra.mxu0 0.0
    %4431 = vmatprep.mubr.f32.mxu0 0.0
    %4432 = vmatmul.mubr.f32.gmra.mrb[0].mxu0 %v4365
    %v4433 = vpop.f32.mrb[0].mxu0
    %v4434 = vadd.f32 0.0, %v4433
    %v4435 = vpop.f32.mrb[0].mxu0
    %4436 = vdwg.mxu0
    %v4437 = vadd.f32 %v4209, %v4434
    %v4438 = vtanh.pop %v4437
    %v4440 = vsel %vm107, %v4438, 0
    %4442 = vmatprep.subr.mxu0 0.0
    %4443 = vmatpush1.msra.mxu0 %v195
    %4444 = vmatprep.subr.mxu0 0.0
    %4445 = vmatpush1.msra.mxu0 %v196
    %4446 = vmatprep.subr.mxu0 0.0
    %4447 = vmatpush1.msra.mxu0 %v197
    %4448 = vmatprep.subr.mxu0 0.0
    %4449 = vmatpush1.msra.mxu0 %v198
    %4450 = vmatprep.subr.mxu0 0.0
    %4451 = vmatpush1.msra.mxu0 0.0
    %4452 = vmatprep.subr.mxu0 0.0
    %4453 = vmatpush1.msra.mxu0 0.0
    %4454 = vmatprep.subr.mxu0 0.0
    %4455 = vmatpush1.msra.mxu0 0.0
    %4456 = vmatprep.subr.mxu0 0.0
    %4457 = vmatpush1.msra.mxu0 0.0
    %4458 = vmatprep.subr.mxu0 0.0
    %4459 = vmatpush1.msra.mxu0 0.0
    %4460 = vmatprep.subr.mxu0 0.0
    %4461 = vmatpush1.msra.mxu0 0.0
    %4462 = vmatprep.subr.mxu0 0.0
    %4463 = vmatpush1.msra.mxu0 0.0
    %4464 = vmatprep.subr.mxu0 0.0
    %4465 = vmatpush1.msra.mxu0 0.0
    %4466 = vmatprep.subr.mxu0 0.0
    %4467 = vmatpush1.msra.mxu0 0.0
    %4468 = vmatprep.subr.mxu0 0.0
    %4469 = vmatpush1.msra.mxu0 0.0
    %4470 = vmatprep.subr.mxu0 0.0
    %4471 = vmatpush1.msra.mxu0 0.0
    %4472 = vmatprep.subr.mxu0 0.0
    %4473 = vmatpush1.msra.mxu0 0.0
    %4474 = vmatprep.subr.mxu0 0.0
    %4475 = vmatpush1.msra.mxu0 0.0
    %4476 = vmatprep.subr.mxu0 0.0
    %4477 = vmatpush1.msra.mxu0 0.0
    %4478 = vmatprep.subr.mxu0 0.0
    %4479 = vmatpush1.msra.mxu0 0.0
    %4480 = vmatprep.subr.mxu0 0.0
    %4481 = vmatpush1.msra.mxu0 0.0
    %4482 = vmatprep.subr.mxu0 0.0
    %4483 = vmatpush1.msra.mxu0 0.0
    %4484 = vmatprep.subr.mxu0 0.0
    %4485 = vmatpush1.msra.mxu0 0.0
    %4486 = vmatprep.subr.mxu0 0.0
    %4487 = vmatpush1.msra.mxu0 0.0
    %4488 = vmatprep.subr.mxu0 0.0
    %4489 = vmatpush1.msra.mxu0 0.0
    %4490 = vmatprep.subr.mxu0 0.0
    %4491 = vmatpush1.msra.mxu0 0.0
    %4492 = vmatprep.subr.mxu0 0.0
    %4493 = vmatpush1.msra.mxu0 0.0
    %4494 = vmatprep.subr.mxu0 0.0
    %4495 = vmatpush1.msra.mxu0 0.0
    %4496 = vmatprep.subr.mxu0 0.0
    %4497 = vmatpush1.msra.mxu0 0.0
    %4498 = vmatprep.subr.mxu0 0.0
    %4499 = vmatpush1.msra.mxu0 0.0
    %4500 = vmatprep.subr.mxu0 0.0
    %4501 = vmatpush1.msra.mxu0 0.0
    %4502 = vmatprep.subr.mxu0 0.0
    %4503 = vmatpush1.msra.mxu0 0.0
    %4504 = vmatprep.subr.mxu0 0.0
    %4505 = vmatpush1.msra.mxu0 0.0
    %4506 = vmatprep.mubr.f32.mxu0 0.0
    %4507 = vmatmul.mubr.f32.gmra.mrb[0].mxu0 %v4440
    %v4508 = vpop.f32.mrb[0].mxu0
    %v4509 = vadd.f32 %v199, %v4508
    %v4510 = vpop.f32.mrb[0].mxu0
    %4511 = vdwg.mxu0
    %v4512 = vsel %vm657, %v4509, -inf
    %4513 = vmax.xlane.f32.xlu0 %v4512
    %v4514 = vpop.xlane.xlu0 %4513
    %vm4515 = vcmp.eq.f32.partialorder %v4509, %v4514
    %v4516 = vsel %vm4515, %v89, 32
    %v4517 = vsel %vm657, %v4516, 2147483647
    %v4518 = vand.u32 %v4517, 65535
    %v4519 = vshra.s32 %v4517, 16
    %v4520 = vcvt.s32.f32 %v4518
    %v4521 = vcvt.s32.f32 %v4519
    %4522 = vmin.xlane.f32.xlu0 %v4521
    %v4523 = vpop.xlane.xlu0 %4522
    %vm4524 = vcmp.eq.f32.partialorder %v4521, %v4523
    %v4525 = vsel %vm4524, %v4520, inf
    %4526 = vmin.xlane.f32.xlu0 %v4525
    %v4527 = vpop.xlane.xlu0 %4526
    %v4528 = vcvt.f32.s32 %v4527
    %v4529 = vcvt.f32.s32 %v4523
    %v4530 = vshll.u32 %v4529, 16
    %v4531 = vadd.s32 %v4530, %v4528
    %vm4532 = vcmp.lt.s32.totalorder %v4531, 31
    %v4533 = vsel %vm4532, %v4531, 31
    %vm4534 = vcmp.eq.s32.totalorder %v89, %v4533
    %v4535 = vsel %vm4534, 1, 0
    %v4536 = vcvt.s32.f32 %v4535
    %v4537 = vsel %vm4062, 1, %v4533
    %vm4538 = vcmp.eq.s32.totalorder %v89, 8
    %v4539 = vsel %vm4538, %v4537, %v4056
    %v4540 = vsel %vm4062, 1, 0
    %vm4541 = vcmp.eq.s32.totalorder %v4540, 1
    %v4542 = vsel %vm4541, %v4059, %v4438
    %v4543 = vsel %vm4541, %v4060, %v4536
    %vm4544 = vcmp.eq.s32.totalorder %v4533, 1
    %vm4545 = vmor %vm4062, %vm4544
    %v4547 = vsel %vm107, %v4542, 0
    %4549 = vmatprep.subr.mxu0 0.0
    %4550 = vmatpush1.msra.mxu0 %v186
    %4551 = vmatprep.subr.mxu0 0.0
    %4552 = vmatpush1.msra.mxu0 %v187
    %4553 = vmatprep.subr.mxu0 0.0
    %4554 = vmatpush1.msra.mxu0 %v188
    %4555 = vmatprep.subr.mxu0 0.0
    %4556 = vmatpush1.msra.mxu0 %v189
    %4557 = vmatprep.subr.mxu0 0.0
    %4558 = vmatpush1.msra.mxu0 0.0
    %4559 = vmatprep.subr.mxu0 0.0
    %4560 = vmatpush1.msra.mxu0 0.0
    %4561 = vmatprep.subr.mxu0 0.0
    %4562 = vmatpush1.msra.mxu0 0.0
    %4563 = vmatprep.subr.mxu0 0.0
    %4564 = vmatpush1.msra.mxu0 0.0
    %4565 = vmatprep.subr.mxu0 0.0
    %4566 = vmatpush1.msra.mxu0 0.0
    %4567 = vmatprep.subr.mxu0 0.0
    %4568 = vmatpush1.msra.mxu0 0.0
    %4569 = vmatprep.subr.mxu0 0.0
    %4570 = vmatpush1.msra.mxu0 0.0
    %4571 = vmatprep.subr.mxu0 0.0
    %4572 = vmatpush1.msra.mxu0 0.0
    %4573 = vmatprep.subr.mxu0 0.0
    %4574 = vmatpush1.msra.mxu0 0.0
    %4575 = vmatprep.subr.mxu0 0.0
    %4576 = vmatpush1.msra.mxu0 0.0
    %4577 = vmatprep.subr.mxu0 0.0
    %4578 = vmatpush1.msra.mxu0 0.0
    %4579 = vmatprep.subr.mxu0 0.0
    %4580 = vmatpush1.msra.mxu0 0.0
    %4581 = vmatprep.subr.mxu0 0.0
    %4582 = vmatpush1.msra.mxu0 0.0
    %4583 = vmatprep.subr.mxu0 0.0
    %4584 = vmatpush1.msra.mxu0 0.0
    %4585 = vmatprep.subr.mxu0 0.0
    %4586 = vmatpush1.msra.mxu0 0.0
    %4587 = vmatprep.subr.mxu0 0.0
    %4588 = vmatpush1.msra.mxu0 0.0
    %4589 = vmatprep.subr.mxu0 0.0
    %4590 = vmatpush1.msra.mxu0 0.0
    %4591 = vmatprep.subr.mxu0 0.0
    %4592 = vmatpush1.msra.mxu0 0.0
    %4593 = vmatprep.subr.mxu0 0.0
    %4594 = vmatpush1.msra.mxu0 0.0
    %4595 = vmatprep.subr.mxu0 0.0
    %4596 = vmatpush1.msra.mxu0 0.0
    %4597 = vmatprep.subr.mxu0 0.0
    %4598 = vmatpush1.msra.mxu0 0.0
    %4599 = vmatprep.subr.mxu0 0.0
    %4600 = vmatpush1.msra.mxu0 0.0
    %4601 = vmatprep.subr.mxu0 0.0
    %4602 = vmatpush1.msra.mxu0 0.0
    %4603 = vmatprep.subr.mxu0 0.0
    %4604 = vmatpush1.msra.mxu0 0.0
    %4605 = vmatprep.subr.mxu0 0.0
    %4606 = vmatpush1.msra.mxu0 0.0
    %4607 = vmatprep.subr.mxu0 0.0
    %4608 = vmatpush1.msra.mxu0 0.0
    %4609 = vmatprep.subr.mxu0 0.0
    %4610 = vmatpush1.msra.mxu0 0.0
    %4611 = vmatprep.subr.mxu0 0.0
    %4612 = vmatpush1.msra.mxu0 0.0
    %4613 = vmatprep.mubr.f32.mxu0 0.0
    %4614 = vmatmul.mubr.f32.gmra.mrb[0].mxu0 %v4547
    %v4615 = vpop.f32.mrb[0].mxu0
    %v4616 = vadd.f32 0.0, %v4615
    %v4617 = vpop.f32.mrb[0].mxu0
    %4618 = vdwg.mxu0
    %v4620 = vsel %vm107, %v4543, 0
    %4622 = vmatprep.subr.mxu0 0.0
    %4623 = vmatpush1.msra.mxu0 %v182
    %4624 = vmatprep.subr.mxu0 0.0
    %4625 = vmatpush1.msra.mxu0 %v183
    %4626 = vmatprep.subr.mxu0 0.0
    %4627 = vmatpush1.msra.mxu0 %v184
    %4628 = vmatprep.subr.mxu0 0.0
    %4629 = vmatpush1.msra.mxu0 %v185
    %4630 = vmatprep.subr.mxu0 0.0
    %4631 = vmatpush1.msra.mxu0 0.0
    %4632 = vmatprep.subr.mxu0 0.0
    %4633 = vmatpush1.msra.mxu0 0.0
    %4634 = vmatprep.subr.mxu0 0.0
    %4635 = vmatpush1.msra.mxu0 0.0
    %4636 = vmatprep.subr.mxu0 0.0
    %4637 = vmatpush1.msra.mxu0 0.0
    %4638 = vmatprep.subr.mxu0 0.0
    %4639 = vmatpush1.msra.mxu0 0.0
    %4640 = vmatprep.subr.mxu0 0.0
    %4641 = vmatpush1.msra.mxu0 0.0
    %4642 = vmatprep.subr.mxu0 0.0
    %4643 = vmatpush1.msra.mxu0 0.0
    %4644 = vmatprep.subr.mxu0 0.0
    %4645 = vmatpush1.msra.mxu0 0.0
    %4646 = vmatprep.subr.mxu0 0.0
    %4647 = vmatpush1.msra.mxu0 0.0
    %4648 = vmatprep.subr.mxu0 0.0
    %4649 = vmatpush1.msra.mxu0 0.0
    %4650 = vmatprep.subr.mxu0 0.0
    %4651 = vmatpush1.msra.mxu0 0.0
    %4652 = vmatprep.subr.mxu0 0.0
    %4653 = vmatpush1.msra.mxu0 0.0
    %4654 = vmatprep.subr.mxu0 0.0
    %4655 = vmatpush1.msra.mxu0 0.0
    %4656 = vmatprep.subr.mxu0 0.0
    %4657 = vmatpush1.msra.mxu0 0.0
    %4658 = vmatprep.subr.mxu0 0.0
    %4659 = vmatpush1.msra.mxu0 0.0
    %4660 = vmatprep.subr.mxu0 0.0
    %4661 = vmatpush1.msra.mxu0 0.0
    %4662 = vmatprep.subr.mxu0 0.0
    %4663 = vmatpush1.msra.mxu0 0.0
    %4664 = vmatprep.subr.mxu0 0.0
    %4665 = vmatpush1.msra.mxu0 0.0
    %4666 = vmatprep.subr.mxu0 0.0
    %4667 = vmatpush1.msra.mxu0 0.0
    %4668 = vmatprep.subr.mxu0 0.0
    %4669 = vmatpush1.msra.mxu0 0.0
    %4670 = vmatprep.subr.mxu0 0.0
    %4671 = vmatpush1.msra.mxu0 0.0
    %4672 = vmatprep.subr.mxu0 0.0
    %4673 = vmatpush1.msra.mxu0 0.0
    %4674 = vmatprep.subr.mxu0 0.0
    %4675 = vmatpush1.msra.mxu0 0.0
    %4676 = vmatprep.subr.mxu0 0.0
    %4677 = vmatpush1.msra.mxu0 0.0
    %4678 = vmatprep.subr.mxu0 0.0
    %4679 = vmatpush1.msra.mxu0 0.0
    %4680 = vmatprep.subr.mxu0 0.0
    %4681 = vmatpush1.msra.mxu0 0.0
    %4682 = vmatprep.subr.mxu0 0.0
    %4683 = vmatpush1.msra.mxu0 0.0
    %4684 = vmatprep.subr.mxu0 0.0
    %4685 = vmatpush1.msra.mxu0 0.0
    %4686 = vmatprep.mubr.f32.mxu0 0.0
    %4687 = vmatmul.mubr.f32.gmra.mrb[0].mxu0 %v4620
    %v4688 = vpop.f32.mrb[0].mxu0
    %v4689 = vadd.f32 %v4616, %v4688
    %v4690 = vpop.f32.mrb[0].mxu0
    %4691 = vdwg.mxu0
    %v4692 = vadd.f32 %v4689, %v194
    %4693 = vmatprep.subr.mxu0 0.0
    %4694 = vmatpush1.xpose.msra.mxu0 %v351
    %4695 = vmatprep.subr.mxu0 0.0
    %4696 = vmatpush1.xpose.msra.mxu0 0.0
    %4697 = vmatprep.subr.mxu0 0.0
    %4698 = vmatpush1.xpose.msra.mxu0 0.0
    %4699 = vmatprep.subr.mxu0 0.0
    %4700 = vmatpush1.xpose.msra.mxu0 0.0
    %4701 = vmatprep.subr.mxu0 0.0
    %4702 = vmatpush1.xpose.msra.mxu0 0.0
    %4703 = vmatprep.subr.mxu0 0.0
    %4704 = vmatpush1.xpose.msra.mxu0 0.0
    %4705 = vmatprep.subr.mxu0 0.0
    %4706 = vmatpush1.xpose.msra.mxu0 0.0
    %4707 = vmatprep.subr.mxu0 0.0
    %4708 = vmatpush1.xpose.msra.mxu0 0.0
    %4709 = vmatprep.subr.mxu0 0.0
    %4710 = vmatpush1.xpose.msra.mxu0 0.0
    %4711 = vmatprep.subr.mxu0 0.0
    %4712 = vmatpush1.xpose.msra.mxu0 0.0
    %4713 = vmatprep.subr.mxu0 0.0
    %4714 = vmatpush1.xpose.msra.mxu0 0.0
    %4715 = vmatprep.subr.mxu0 0.0
    %4716 = vmatpush1.xpose.msra.mxu0 0.0
    %4717 = vmatprep.subr.mxu0 0.0
    %4718 = vmatpush1.xpose.msra.mxu0 0.0
    %4719 = vmatprep.subr.mxu0 0.0
    %4720 = vmatpush1.xpose.msra.mxu0 0.0
    %4721 = vmatprep.subr.mxu0 0.0
    %4722 = vmatpush1.xpose.msra.mxu0 0.0
    %4723 = vmatprep.subr.mxu0 0.0
    %4724 = vmatpush1.xpose.msra.mxu0 0.0
    %4725 = vmatprep.subr.mxu0 0.0
    %4726 = vmatpush1.xpose.msra.mxu0 0.0
    %4727 = vmatprep.subr.mxu0 0.0
    %4728 = vmatpush1.xpose.msra.mxu0 0.0
    %4729 = vmatprep.subr.mxu0 0.0
    %4730 = vmatpush1.xpose.msra.mxu0 0.0
    %4731 = vmatprep.subr.mxu0 0.0
    %4732 = vmatpush1.xpose.msra.mxu0 0.0
    %4733 = vmatprep.subr.mxu0 0.0
    %4734 = vmatpush1.xpose.msra.mxu0 0.0
    %4735 = vmatprep.subr.mxu0 0.0
    %4736 = vmatpush1.xpose.msra.mxu0 0.0
    %4737 = vmatprep.subr.mxu0 0.0
    %4738 = vmatpush1.xpose.msra.mxu0 0.0
    %4739 = vmatprep.subr.mxu0 0.0
    %4740 = vmatpush1.xpose.msra.mxu0 0.0
    %4741 = vmatprep.subr.mxu0 0.0
    %4742 = vmatpush1.xpose.msra.mxu0 0.0
    %4743 = vmatprep.subr.mxu0 0.0
    %4744 = vmatpush1.xpose.msra.mxu0 0.0
    %4745 = vmatprep.subr.mxu0 0.0
    %4746 = vmatpush1.xpose.msra.mxu0 0.0
    %4747 = vmatprep.subr.mxu0 0.0
    %4748 = vmatpush1.xpose.msra.mxu0 0.0
    %4749 = vmatprep.subr.mxu0 0.0
    %4750 = vmatpush1.xpose.msra.mxu0 0.0
    %4751 = vmatprep.subr.mxu0 0.0
    %4752 = vmatpush1.xpose.msra.mxu0 0.0
    %4753 = vmatprep.subr.mxu0 0.0
    %4754 = vmatpush1.xpose.msra.mxu0 0.0
    %4755 = vmatprep.subr.mxu0 0.0
    %4756 = vmatpush1.xpose.msra.mxu0 0.0
    %4757 = vmatprep.mubr.f32.mxu0 0.0
    %4758 = vmatmul.mubr.f32.gmra.mrb[0].mxu0 %v4547
    %v4759 = vpop.f32.mrb[0].mxu0
    %v4760 = vadd.f32 0.0, %v4759
    %v4761 = vpop.f32.mrb[0].mxu0
    %4762 = vdwg.mxu0
    %v4763 = vsel %vm423, %v4760, -inf
    %4764 = vmax.xlane.f32.xlu0 %v4763
    %v4765 = vpop.xlane.xlu0 %4764
    %v4766 = vsub.f32 %v4760, %v4765
    %v4767 = vmul.f32 %v4766, 1.442695
    %v4768 = vpow.pop %v4767
    %v4769 = vsel %vm423, %v4768, 0.0
    %4770 = vadd.xlane.f32.xlu0 %v4769
    %v4771 = vpop.xlane.xlu0 %4770
    %v4772 = vrcp.pop %v4771
    %v4773 = vmul.f32 %v4768, %v4772
    %v4775 = vsel %vm435, %v4773, 0
    %4777 = vmatprep.subr.mxu0 0.0
    %4778 = vmatpush1.msra.mxu0 %v181
    %4779 = vmatprep.subr.mxu0 0.0
    %4780 = vmatpush1.msra.mxu0 0.0
    %4781 = vmatprep.subr.mxu0 0.0
    %4782 = vmatpush1.msra.mxu0 0.0
    %4783 = vmatprep.subr.mxu0 0.0
    %4784 = vmatpush1.msra.mxu0 0.0
    %4785 = vmatprep.subr.mxu0 0.0
    %4786 = vmatpush1.msra.mxu0 0.0
    %4787 = vmatprep.subr.mxu0 0.0
    %4788 = vmatpush1.msra.mxu0 0.0
    %4789 = vmatprep.subr.mxu0 0.0
    %4790 = vmatpush1.msra.mxu0 0.0
    %4791 = vmatprep.subr.mxu0 0.0
    %4792 = vmatpush1.msra.mxu0 0.0
    %4793 = vmatprep.subr.mxu0 0.0
    %4794 = vmatpush1.msra.mxu0 0.0
    %4795 = vmatprep.subr.mxu0 0.0
    %4796 = vmatpush1.msra.mxu0 0.0
    %4797 = vmatprep.subr.mxu0 0.0
    %4798 = vmatpush1.msra.mxu0 0.0
    %4799 = vmatprep.subr.mxu0 0.0
    %4800 = vmatpush1.msra.mxu0 0.0
    %4801 = vmatprep.subr.mxu0 0.0
    %4802 = vmatpush1.msra.mxu0 0.0
    %4803 = vmatprep.subr.mxu0 0.0
    %4804 = vmatpush1.msra.mxu0 0.0
    %4805 = vmatprep.subr.mxu0 0.0
    %4806 = vmatpush1.msra.mxu0 0.0
    %4807 = vmatprep.subr.mxu0 0.0
    %4808 = vmatpush1.msra.mxu0 0.0
    %4809 = vmatprep.subr.mxu0 0.0
    %4810 = vmatpush1.msra.mxu0 0.0
    %4811 = vmatprep.subr.mxu0 0.0
    %4812 = vmatpush1.msra.mxu0 0.0
    %4813 = vmatprep.subr.mxu0 0.0
    %4814 = vmatpush1.msra.mxu0 0.0
    %4815 = vmatprep.subr.mxu0 0.0
    %4816 = vmatpush1.msra.mxu0 0.0
    %4817 = vmatprep.subr.mxu0 0.0
    %4818 = vmatpush1.msra.mxu0 0.0
    %4819 = vmatprep.subr.mxu0 0.0
    %4820 = vmatpush1.msra.mxu0 0.0
    %4821 = vmatprep.subr.mxu0 0.0
    %4822 = vmatpush1.msra.mxu0 0.0
    %4823 = vmatprep.subr.mxu0 0.0
    %4824 = vmatpush1.msra.mxu0 0.0
    %4825 = vmatprep.subr.mxu0 0.0
    %4826 = vmatpush1.msra.mxu0 0.0
    %4827 = vmatprep.subr.mxu0 0.0
    %4828 = vmatpush1.msra.mxu0 0.0
    %4829 = vmatprep.subr.mxu0 0.0
    %4830 = vmatpush1.msra.mxu0 0.0
    %4831 = vmatprep.subr.mxu0 0.0
    %4832 = vmatpush1.msra.mxu0 0.0
    %4833 = vmatprep.subr.mxu0 0.0
    %4834 = vmatpush1.msra.mxu0 0.0
    %4835 = vmatprep.subr.mxu0 0.0
    %4836 = vmatpush1.msra.mxu0 0.0
    %4837 = vmatprep.subr.mxu0 0.0
    %4838 = vmatpush1.msra.mxu0 0.0
    %4839 = vmatprep.subr.mxu0 0.0
    %4840 = vmatpush1.msra.mxu0 0.0
    %4841 = vmatprep.mubr.f32.mxu0 0.0
    %4842 = vmatmul.mubr.f32.gmra.mrb[0].mxu0 %v4775
    %v4843 = vpop.f32.mrb[0].mxu0
    %v4844 = vadd.f32 0.0, %v4843
    %v4845 = vpop.f32.mrb[0].mxu0
    %4846 = vdwg.mxu0
    %v4848 = vsel %vm107, %v4844, 0
    %4850 = vmatprep.subr.mxu0 0.0
    %4851 = vmatpush1.msra.mxu0 %v190
    %4852 = vmatprep.subr.mxu0 0.0
    %4853 = vmatpush1.msra.mxu0 %v191
    %4854 = vmatprep.subr.mxu0 0.0
    %4855 = vmatpush1.msra.mxu0 %v192
    %4856 = vmatprep.subr.mxu0 0.0
    %4857 = vmatpush1.msra.mxu0 %v193
    %4858 = vmatprep.subr.mxu0 0.0
    %4859 = vmatpush1.msra.mxu0 0.0
    %4860 = vmatprep.subr.mxu0 0.0
    %4861 = vmatpush1.msra.mxu0 0.0
    %4862 = vmatprep.subr.mxu0 0.0
    %4863 = vmatpush1.msra.mxu0 0.0
    %4864 = vmatprep.subr.mxu0 0.0
    %4865 = vmatpush1.msra.mxu0 0.0
    %4866 = vmatprep.subr.mxu0 0.0
    %4867 = vmatpush1.msra.mxu0 0.0
    %4868 = vmatprep.subr.mxu0 0.0
    %4869 = vmatpush1.msra.mxu0 0.0
    %4870 = vmatprep.subr.mxu0 0.0
    %4871 = vmatpush1.msra.mxu0 0.0
    %4872 = vmatprep.subr.mxu0 0.0
    %4873 = vmatpush1.msra.mxu0 0.0
    %4874 = vmatprep.subr.mxu0 0.0
    %4875 = vmatpush1.msra.mxu0 0.0
    %4876 = vmatprep.subr.mxu0 0.0
    %4877 = vmatpush1.msra.mxu0 0.0
    %4878 = vmatprep.subr.mxu0 0.0
    %4879 = vmatpush1.msra.mxu0 0.0
    %4880 = vmatprep.subr.mxu0 0.0
    %4881 = vmatpush1.msra.mxu0 0.0
    %4882 = vmatprep.subr.mxu0 0.0
    %4883 = vmatpush1.msra.mxu0 0.0
    %4884 = vmatprep.subr.mxu0 0.0
    %4885 = vmatpush1.msra.mxu0 0.0
    %4886 = vmatprep.subr.mxu0 0.0
    %4887 = vmatpush1.msra.mxu0 0.0
    %4888 = vmatprep.subr.mxu0 0.0
    %4889 = vmatpush1.msra.mxu0 0.0
    %4890 = vmatprep.subr.mxu0 0.0
    %4891 = vmatpush1.msra.mxu0 0.0
    %4892 = vmatprep.subr.mxu0 0.0
    %4893 = vmatpush1.msra.mxu0 0.0
    %4894 = vmatprep.subr.mxu0 0.0
    %4895 = vmatpush1.msra.mxu0 0.0
    %4896 = vmatprep.subr.mxu0 0.0
    %4897 = vmatpush1.msra.mxu0 0.0
    %4898 = vmatprep.subr.mxu0 0.0
    %4899 = vmatpush1.msra.mxu0 0.0
    %4900 = vmatprep.subr.mxu0 0.0
    %4901 = vmatpush1.msra.mxu0 0.0
    %4902 = vmatprep.subr.mxu0 0.0
    %4903 = vmatpush1.msra.mxu0 0.0
    %4904 = vmatprep.subr.mxu0 0.0
    %4905 = vmatpush1.msra.mxu0 0.0
    %4906 = vmatprep.subr.mxu0 0.0
    %4907 = vmatpush1.msra.mxu0 0.0
    %4908 = vmatprep.subr.mxu0 0.0
    %4909 = vmatpush1.msra.mxu0 0.0
    %4910 = vmatprep.subr.mxu0 0.0
    %4911 = vmatpush1.msra.mxu0 0.0
    %4912 = vmatprep.subr.mxu0 0.0
    %4913 = vmatpush1.msra.mxu0 0.0
    %4914 = vmatprep.mubr.f32.mxu0 0.0
    %4915 = vmatmul.mubr.f32.gmra.mrb[0].mxu0 %v4848
    %v4916 = vpop.f32.mrb[0].mxu0
    %v4917 = vadd.f32 0.0, %v4916
    %v4918 = vpop.f32.mrb[0].mxu0
    %4919 = vdwg.mxu0
    %v4920 = vadd.f32 %v4692, %v4917
    %v4921 = vtanh.pop %v4920
    %v4923 = vsel %vm107, %v4921, 0
    %4925 = vmatprep.subr.mxu0 0.0
    %4926 = vmatpush1.msra.mxu0 %v195
    %4927 = vmatprep.subr.mxu0 0.0
    %4928 = vmatpush1.msra.mxu0 %v196
    %4929 = vmatprep.subr.mxu0 0.0
    %4930 = vmatpush1.msra.mxu0 %v197
    %4931 = vmatprep.subr.mxu0 0.0
    %4932 = vmatpush1.msra.mxu0 %v198
    %4933 = vmatprep.subr.mxu0 0.0
    %4934 = vmatpush1.msra.mxu0 0.0
    %4935 = vmatprep.subr.mxu0 0.0
    %4936 = vmatpush1.msra.mxu0 0.0
    %4937 = vmatprep.subr.mxu0 0.0
    %4938 = vmatpush1.msra.mxu0 0.0
    %4939 = vmatprep.subr.mxu0 0.0
    %4940 = vmatpush1.msra.mxu0 0.0
    %4941 = vmatprep.subr.mxu0 0.0
    %4942 = vmatpush1.msra.mxu0 0.0
    %4943 = vmatprep.subr.mxu0 0.0
    %4944 = vmatpush1.msra.mxu0 0.0
    %4945 = vmatprep.subr.mxu0 0.0
    %4946 = vmatpush1.msra.mxu0 0.0
    %4947 = vmatprep.subr.mxu0 0.0
    %4948 = vmatpush1.msra.mxu0 0.0
    %4949 = vmatprep.subr.mxu0 0.0
    %4950 = vmatpush1.msra.mxu0 0.0
    %4951 = vmatprep.subr.mxu0 0.0
    %4952 = vmatpush1.msra.mxu0 0.0
    %4953 = vmatprep.subr.mxu0 0.0
    %4954 = vmatpush1.msra.mxu0 0.0
    %4955 = vmatprep.subr.mxu0 0.0
    %4956 = vmatpush1.msra.mxu0 0.0
    %4957 = vmatprep.subr.mxu0 0.0
    %4958 = vmatpush1.msra.mxu0 0.0
    %4959 = vmatprep.subr.mxu0 0.0
    %4960 = vmatpush1.msra.mxu0 0.0
    %4961 = vmatprep.subr.mxu0 0.0
    %4962 = vmatpush1.msra.mxu0 0.0
    %4963 = vmatprep.subr.mxu0 0.0
    %4964 = vmatpush1.msra.mxu0 0.0
    %4965 = vmatprep.subr.mxu0 0.0
    %4966 = vmatpush1.msra.mxu0 0.0
    %4967 = vmatprep.subr.mxu0 0.0
    %4968 = vmatpush1.msra.mxu0 0.0
    %4969 = vmatprep.subr.mxu0 0.0
    %4970 = vmatpush1.msra.mxu0 0.0
    %4971 = vmatprep.subr.mxu0 0.0
    %4972 = vmatpush1.msra.mxu0 0.0
    %4973 = vmatprep.subr.mxu0 0.0
    %4974 = vmatpush1.msra.mxu0 0.0
    %4975 = vmatprep.subr.mxu0 0.0
    %4976 = vmatpush1.msra.mxu0 0.0
    %4977 = vmatprep.subr.mxu0 0.0
    %4978 = vmatpush1.msra.mxu0 0.0
    %4979 = vmatprep.subr.mxu0 0.0
    %4980 = vmatpush1.msra.mxu0 0.0
    %4981 = vmatprep.subr.mxu0 0.0
    %4982 = vmatpush1.msra.mxu0 0.0
    %4983 = vmatprep.subr.mxu0 0.0
    %4984 = vmatpush1.msra.mxu0 0.0
    %4985 = vmatprep.subr.mxu0 0.0
    %4986 = vmatpush1.msra.mxu0 0.0
    %4987 = vmatprep.subr.mxu0 0.0
    %4988 = vmatpush1.msra.mxu0 0.0
    %4989 = vmatprep.mubr.f32.mxu0 0.0
    %4990 = vmatmul.mubr.f32.gmra.mrb[0].mxu0 %v4923
    %v4991 = vpop.f32.mrb[0].mxu0
    %v4992 = vadd.f32 %v199, %v4991
    %v4993 = vpop.f32.mrb[0].mxu0
    %4994 = vdwg.mxu0
    %v4995 = vsel %vm657, %v4992, -inf
    %4996 = vmax.xlane.f32.xlu0 %v4995
    %v4997 = vpop.xlane.xlu0 %4996
    %vm4998 = vcmp.eq.f32.partialorder %v4992, %v4997
    %v4999 = vsel %vm4998, %v89, 32
    %v5000 = vsel %vm657, %v4999, 2147483647
    %v5001 = vand.u32 %v5000, 65535
    %v5002 = vshra.s32 %v5000, 16
    %v5003 = vcvt.s32.f32 %v5001
    %v5004 = vcvt.s32.f32 %v5002
    %5005 = vmin.xlane.f32.xlu0 %v5004
    %v5006 = vpop.xlane.xlu0 %5005
    %vm5007 = vcmp.eq.f32.partialorder %v5004, %v5006
    %v5008 = vsel %vm5007, %v5003, inf
    %5009 = vmin.xlane.f32.xlu0 %v5008
    %v5010 = vpop.xlane.xlu0 %5009
    %v5011 = vcvt.f32.s32 %v5010
    %v5012 = vcvt.f32.s32 %v5006
    %v5013 = vshll.u32 %v5012, 16
    %v5014 = vadd.s32 %v5013, %v5011
    %vm5015 = vcmp.lt.s32.totalorder %v5014, 31
    %v5016 = vsel %vm5015, %v5014, 31
    %vm5017 = vcmp.eq.s32.totalorder %v89, %v5016
    %v5018 = vsel %vm5017, 1, 0
    %v5019 = vcvt.s32.f32 %v5018
    %v5020 = vsel %vm4545, 1, %v5016
    %vm5021 = vcmp.eq.s32.totalorder %v89, 9
    %v5022 = vsel %vm5021, %v5020, %v4539
    %v5023 = vsel %vm4545, 1, 0
    %vm5024 = vcmp.eq.s32.totalorder %v5023, 1
    %v5025 = vsel %vm5024, %v4542, %v4921
    %v5026 = vsel %vm5024, %v4543, %v5019
    %vm5027 = vcmp.eq.s32.totalorder %v5016, 1
    %vm5028 = vmor %vm4545, %vm5027
    %v5030 = vsel %vm107, %v5025, 0
    %5032 = vmatprep.subr.mxu0 0.0
    %5033 = vmatpush1.msra.mxu0 %v186
    %5034 = vmatprep.subr.mxu0 0.0
    %5035 = vmatpush1.msra.mxu0 %v187
    %5036 = vmatprep.subr.mxu0 0.0
    %5037 = vmatpush1.msra.mxu0 %v188
    %5038 = vmatprep.subr.mxu0 0.0
    %5039 = vmatpush1.msra.mxu0 %v189
    %5040 = vmatprep.subr.mxu0 0.0
    %5041 = vmatpush1.msra.mxu0 0.0
    %5042 = vmatprep.subr.mxu0 0.0
    %5043 = vmatpush1.msra.mxu0 0.0
    %5044 = vmatprep.subr.mxu0 0.0
    %5045 = vmatpush1.msra.mxu0 0.0
    %5046 = vmatprep.subr.mxu0 0.0
    %5047 = vmatpush1.msra.mxu0 0.0
    %5048 = vmatprep.subr.mxu0 0.0
    %5049 = vmatpush1.msra.mxu0 0.0
    %5050 = vmatprep.subr.mxu0 0.0
    %5051 = vmatpush1.msra.mxu0 0.0
    %5052 = vmatprep.subr.mxu0 0.0
    %5053 = vmatpush1.msra.mxu0 0.0
    %5054 = vmatprep.subr.mxu0 0.0
    %5055 = vmatpush1.msra.mxu0 0.0
    %5056 = vmatprep.subr.mxu0 0.0
    %5057 = vmatpush1.msra.mxu0 0.0
    %5058 = vmatprep.subr.mxu0 0.0
    %5059 = vmatpush1.msra.mxu0 0.0
    %5060 = vmatprep.subr.mxu0 0.0
    %5061 = vmatpush1.msra.mxu0 0.0
    %5062 = vmatprep.subr.mxu0 0.0
    %5063 = vmatpush1.msra.mxu0 0.0
    %5064 = vmatprep.subr.mxu0 0.0
    %5065 = vmatpush1.msra.mxu0 0.0
    %5066 = vmatprep.subr.mxu0 0.0
    %5067 = vmatpush1.msra.mxu0 0.0
    %5068 = vmatprep.subr.mxu0 0.0
    %5069 = vmatpush1.msra.mxu0 0.0
    %5070 = vmatprep.subr.mxu0 0.0
    %5071 = vmatpush1.msra.mxu0 0.0
    %5072 = vmatprep.subr.mxu0 0.0
    %5073 = vmatpush1.msra.mxu0 0.0
    %5074 = vmatprep.subr.mxu0 0.0
    %5075 = vmatpush1.msra.mxu0 0.0
    %5076 = vmatprep.subr.mxu0 0.0
    %5077 = vmatpush1.msra.mxu0 0.0
    %5078 = vmatprep.subr.mxu0 0.0
    %5079 = vmatpush1.msra.mxu0 0.0
    %5080 = vmatprep.subr.mxu0 0.0
    %5081 = vmatpush1.msra.mxu0 0.0
    %5082 = vmatprep.subr.mxu0 0.0
    %5083 = vmatpush1.msra.mxu0 0.0
    %5084 = vmatprep.subr.mxu0 0.0
    %5085 = vmatpush1.msra.mxu0 0.0
    %5086 = vmatprep.subr.mxu0 0.0
    %5087 = vmatpush1.msra.mxu0 0.0
    %5088 = vmatprep.subr.mxu0 0.0
    %5089 = vmatpush1.msra.mxu0 0.0
    %5090 = vmatprep.subr.mxu0 0.0
    %5091 = vmatpush1.msra.mxu0 0.0
    %5092 = vmatprep.subr.mxu0 0.0
    %5093 = vmatpush1.msra.mxu0 0.0
    %5094 = vmatprep.subr.mxu0 0.0
    %5095 = vmatpush1.msra.mxu0 0.0
    %5096 = vmatprep.mubr.f32.mxu0 0.0
    %5097 = vmatmul.mubr.f32.gmra.mrb[0].mxu0 %v5030
    %v5098 = vpop.f32.mrb[0].mxu0
    %v5099 = vadd.f32 0.0, %v5098
    %v5100 = vpop.f32.mrb[0].mxu0
    %5101 = vdwg.mxu0
    %v5103 = vsel %vm107, %v5026, 0
    %5105 = vmatprep.subr.mxu0 0.0
    %5106 = vmatpush1.msra.mxu0 %v182
    %5107 = vmatprep.subr.mxu0 0.0
    %5108 = vmatpush1.msra.mxu0 %v183
    %5109 = vmatprep.subr.mxu0 0.0
    %5110 = vmatpush1.msra.mxu0 %v184
    %5111 = vmatprep.subr.mxu0 0.0
    %5112 = vmatpush1.msra.mxu0 %v185
    %5113 = vmatprep.subr.mxu0 0.0
    %5114 = vmatpush1.msra.mxu0 0.0
    %5115 = vmatprep.subr.mxu0 0.0
    %5116 = vmatpush1.msra.mxu0 0.0
    %5117 = vmatprep.subr.mxu0 0.0
    %5118 = vmatpush1.msra.mxu0 0.0
    %5119 = vmatprep.subr.mxu0 0.0
    %5120 = vmatpush1.msra.mxu0 0.0
    %5121 = vmatprep.subr.mxu0 0.0
    %5122 = vmatpush1.msra.mxu0 0.0
    %5123 = vmatprep.subr.mxu0 0.0
    %5124 = vmatpush1.msra.mxu0 0.0
    %5125 = vmatprep.subr.mxu0 0.0
    %5126 = vmatpush1.msra.mxu0 0.0
    %5127 = vmatprep.subr.mxu0 0.0
    %5128 = vmatpush1.msra.mxu0 0.0
    %5129 = vmatprep.subr.mxu0 0.0
    %5130 = vmatpush1.msra.mxu0 0.0
    %5131 = vmatprep.subr.mxu0 0.0
    %5132 = vmatpush1.msra.mxu0 0.0
    %5133 = vmatprep.subr.mxu0 0.0
    %5134 = vmatpush1.msra.mxu0 0.0
    %5135 = vmatprep.subr.mxu0 0.0
    %5136 = vmatpush1.msra.mxu0 0.0
    %5137 = vmatprep.subr.mxu0 0.0
    %5138 = vmatpush1.msra.mxu0 0.0
    %5139 = vmatprep.subr.mxu0 0.0
    %5140 = vmatpush1.msra.mxu0 0.0
    %5141 = vmatprep.subr.mxu0 0.0
    %5142 = vmatpush1.msra.mxu0 0.0
    %5143 = vmatprep.subr.mxu0 0.0
    %5144 = vmatpush1.msra.mxu0 0.0
    %5145 = vmatprep.subr.mxu0 0.0
    %5146 = vmatpush1.msra.mxu0 0.0
    %5147 = vmatprep.subr.mxu0 0.0
    %5148 = vmatpush1.msra.mxu0 0.0
    %5149 = vmatprep.subr.mxu0 0.0
    %5150 = vmatpush1.msra.mxu0 0.0
    %5151 = vmatprep.subr.mxu0 0.0
    %5152 = vmatpush1.msra.mxu0 0.0
    %5153 = vmatprep.subr.mxu0 0.0
    %5154 = vmatpush1.msra.mxu0 0.0
    %5155 = vmatprep.subr.mxu0 0.0
    %5156 = vmatpush1.msra.mxu0 0.0
    %5157 = vmatprep.subr.mxu0 0.0
    %5158 = vmatpush1.msra.mxu0 0.0
    %5159 = vmatprep.subr.mxu0 0.0
    %5160 = vmatpush1.msra.mxu0 0.0
    %5161 = vmatprep.subr.mxu0 0.0
    %5162 = vmatpush1.msra.mxu0 0.0
    %5163 = vmatprep.subr.mxu0 0.0
    %5164 = vmatpush1.msra.mxu0 0.0
    %5165 = vmatprep.subr.mxu0 0.0
    %5166 = vmatpush1.msra.mxu0 0.0
    %5167 = vmatprep.subr.mxu0 0.0
    %5168 = vmatpush1.msra.mxu0 0.0
    %5169 = vmatprep.mubr.f32.mxu0 0.0
    %5170 = vmatmul.mubr.f32.gmra.mrb[0].mxu0 %v5103
    %v5171 = vpop.f32.mrb[0].mxu0
    %v5172 = vadd.f32 %v5099, %v5171
    %v5173 = vpop.f32.mrb[0].mxu0
    %5174 = vdwg.mxu0
    %v5175 = vadd.f32 %v5172, %v194
    %5176 = vmatprep.subr.mxu0 0.0
    %5177 = vmatpush1.xpose.msra.mxu0 %v351
    %5178 = vmatprep.subr.mxu0 0.0
    %5179 = vmatpush1.xpose.msra.mxu0 0.0
    %5180 = vmatprep.subr.mxu0 0.0
    %5181 = vmatpush1.xpose.msra.mxu0 0.0
    %5182 = vmatprep.subr.mxu0 0.0
    %5183 = vmatpush1.xpose.msra.mxu0 0.0
    %5184 = vmatprep.subr.mxu0 0.0
    %5185 = vmatpush1.xpose.msra.mxu0 0.0
    %5186 = vmatprep.subr.mxu0 0.0
    %5187 = vmatpush1.xpose.msra.mxu0 0.0
    %5188 = vmatprep.subr.mxu0 0.0
    %5189 = vmatpush1.xpose.msra.mxu0 0.0
    %5190 = vmatprep.subr.mxu0 0.0
    %5191 = vmatpush1.xpose.msra.mxu0 0.0
    %5192 = vmatprep.subr.mxu0 0.0
    %5193 = vmatpush1.xpose.msra.mxu0 0.0
    %5194 = vmatprep.subr.mxu0 0.0
    %5195 = vmatpush1.xpose.msra.mxu0 0.0
    %5196 = vmatprep.subr.mxu0 0.0
    %5197 = vmatpush1.xpose.msra.mxu0 0.0
    %5198 = vmatprep.subr.mxu0 0.0
    %5199 = vmatpush1.xpose.msra.mxu0 0.0
    %5200 = vmatprep.subr.mxu0 0.0
    %5201 = vmatpush1.xpose.msra.mxu0 0.0
    %5202 = vmatprep.subr.mxu0 0.0
    %5203 = vmatpush1.xpose.msra.mxu0 0.0
    %5204 = vmatprep.subr.mxu0 0.0
    %5205 = vmatpush1.xpose.msra.mxu0 0.0
    %5206 = vmatprep.subr.mxu0 0.0
    %5207 = vmatpush1.xpose.msra.mxu0 0.0
    %5208 = vmatprep.subr.mxu0 0.0
    %5209 = vmatpush1.xpose.msra.mxu0 0.0
    %5210 = vmatprep.subr.mxu0 0.0
    %5211 = vmatpush1.xpose.msra.mxu0 0.0
    %5212 = vmatprep.subr.mxu0 0.0
    %5213 = vmatpush1.xpose.msra.mxu0 0.0
    %5214 = vmatprep.subr.mxu0 0.0
    %5215 = vmatpush1.xpose.msra.mxu0 0.0
    %5216 = vmatprep.subr.mxu0 0.0
    %5217 = vmatpush1.xpose.msra.mxu0 0.0
    %5218 = vmatprep.subr.mxu0 0.0
    %5219 = vmatpush1.xpose.msra.mxu0 0.0
    %5220 = vmatprep.subr.mxu0 0.0
    %5221 = vmatpush1.xpose.msra.mxu0 0.0
    %5222 = vmatprep.subr.mxu0 0.0
    %5223 = vmatpush1.xpose.msra.mxu0 0.0
    %5224 = vmatprep.subr.mxu0 0.0
    %5225 = vmatpush1.xpose.msra.mxu0 0.0
    %5226 = vmatprep.subr.mxu0 0.0
    %5227 = vmatpush1.xpose.msra.mxu0 0.0
    %5228 = vmatprep.subr.mxu0 0.0
    %5229 = vmatpush1.xpose.msra.mxu0 0.0
    %5230 = vmatprep.subr.mxu0 0.0
    %5231 = vmatpush1.xpose.msra.mxu0 0.0
    %5232 = vmatprep.subr.mxu0 0.0
    %5233 = vmatpush1.xpose.msra.mxu0 0.0
    %5234 = vmatprep.subr.mxu0 0.0
    %5235 = vmatpush1.xpose.msra.mxu0 0.0
    %5236 = vmatprep.subr.mxu0 0.0
    %5237 = vmatpush1.xpose.msra.mxu0 0.0
    %5238 = vmatprep.subr.mxu0 0.0
    %5239 = vmatpush1.xpose.msra.mxu0 0.0
    %5240 = vmatprep.mubr.f32.mxu0 0.0
    %5241 = vmatmul.mubr.f32.gmra.mrb[0].mxu0 %v5030
    %v5242 = vpop.f32.mrb[0].mxu0
    %v5243 = vadd.f32 0.0, %v5242
    %v5244 = vpop.f32.mrb[0].mxu0
    %5245 = vdwg.mxu0
    %v5246 = vsel %vm423, %v5243, -inf
    %5247 = vmax.xlane.f32.xlu0 %v5246
    %v5248 = vpop.xlane.xlu0 %5247
    %v5249 = vsub.f32 %v5243, %v5248
    %v5250 = vmul.f32 %v5249, 1.442695
    %v5251 = vpow.pop %v5250
    %v5252 = vsel %vm423, %v5251, 0.0
    %5253 = vadd.xlane.f32.xlu0 %v5252
    %v5254 = vpop.xlane.xlu0 %5253
    %v5255 = vrcp.pop %v5254
    %v5256 = vmul.f32 %v5251, %v5255
    %v5258 = vsel %vm435, %v5256, 0
    %5260 = vmatprep.subr.mxu0 0.0
    %5261 = vmatpush1.msra.mxu0 %v181
    %5262 = vmatprep.subr.mxu0 0.0
    %5263 = vmatpush1.msra.mxu0 0.0
    %5264 = vmatprep.subr.mxu0 0.0
    %5265 = vmatpush1.msra.mxu0 0.0
    %5266 = vmatprep.subr.mxu0 0.0
    %5267 = vmatpush1.msra.mxu0 0.0
    %5268 = vmatprep.subr.mxu0 0.0
    %5269 = vmatpush1.msra.mxu0 0.0
    %5270 = vmatprep.subr.mxu0 0.0
    %5271 = vmatpush1.msra.mxu0 0.0
    %5272 = vmatprep.subr.mxu0 0.0
    %5273 = vmatpush1.msra.mxu0 0.0
    %5274 = vmatprep.subr.mxu0 0.0
    %5275 = vmatpush1.msra.mxu0 0.0
    %5276 = vmatprep.subr.mxu0 0.0
    %5277 = vmatpush1.msra.mxu0 0.0
    %5278 = vmatprep.subr.mxu0 0.0
    %5279 = vmatpush1.msra.mxu0 0.0
    %5280 = vmatprep.subr.mxu0 0.0
    %5281 = vmatpush1.msra.mxu0 0.0
    %5282 = vmatprep.subr.mxu0 0.0
    %5283 = vmatpush1.msra.mxu0 0.0
    %5284 = vmatprep.subr.mxu0 0.0
    %5285 = vmatpush1.msra.mxu0 0.0
    %5286 = vmatprep.subr.mxu0 0.0
    %5287 = vmatpush1.msra.mxu0 0.0
    %5288 = vmatprep.subr.mxu0 0.0
    %5289 = vmatpush1.msra.mxu0 0.0
    %5290 = vmatprep.subr.mxu0 0.0
    %5291 = vmatpush1.msra.mxu0 0.0
    %5292 = vmatprep.subr.mxu0 0.0
    %5293 = vmatpush1.msra.mxu0 0.0
    %5294 = vmatprep.subr.mxu0 0.0
    %5295 = vmatpush1.msra.mxu0 0.0
    %5296 = vmatprep.subr.mxu0 0.0
    %5297 = vmatpush1.msra.mxu0 0.0
    %5298 = vmatprep.subr.mxu0 0.0
    %5299 = vmatpush1.msra.mxu0 0.0
    %5300 = vmatprep.subr.mxu0 0.0
    %5301 = vmatpush1.msra.mxu0 0.0
    %5302 = vmatprep.subr.mxu0 0.0
    %5303 = vmatpush1.msra.mxu0 0.0
    %5304 = vmatprep.subr.mxu0 0.0
    %5305 = vmatpush1.msra.mxu0 0.0
    %5306 = vmatprep.subr.mxu0 0.0
    %5307 = vmatpush1.msra.mxu0 0.0
    %5308 = vmatprep.subr.mxu0 0.0
    %5309 = vmatpush1.msra.mxu0 0.0
    %5310 = vmatprep.subr.mxu0 0.0
    %5311 = vmatpush1.msra.mxu0 0.0
    %5312 = vmatprep.subr.mxu0 0.0
    %5313 = vmatpush1.msra.mxu0 0.0
    %5314 = vmatprep.subr.mxu0 0.0
    %5315 = vmatpush1.msra.mxu0 0.0
    %5316 = vmatprep.subr.mxu0 0.0
    %5317 = vmatpush1.msra.mxu0 0.0
    %5318 = vmatprep.subr.mxu0 0.0
    %5319 = vmatpush1.msra.mxu0 0.0
    %5320 = vmatprep.subr.mxu0 0.0
    %5321 = vmatpush1.msra.mxu0 0.0
    %5322 = vmatprep.subr.mxu0 0.0
    %5323 = vmatpush1.msra.mxu0 0.0
    %5324 = vmatprep.mubr.f32.mxu0 0.0
    %5325 = vmatmul.mubr.f32.gmra.mrb[0].mxu0 %v5258
    %v5326 = vpop.f32.mrb[0].mxu0
    %v5327 = vadd.f32 0.0, %v5326
    %v5328 = vpop.f32.mrb[0].mxu0
    %5329 = vdwg.mxu0
    %v5331 = vsel %vm107, %v5327, 0
    %5333 = vmatprep.subr.mxu0 0.0
    %5334 = vmatpush1.msra.mxu0 %v190
    %5335 = vmatprep.subr.mxu0 0.0
    %5336 = vmatpush1.msra.mxu0 %v191
    %5337 = vmatprep.subr.mxu0 0.0
    %5338 = vmatpush1.msra.mxu0 %v192
    %5339 = vmatprep.subr.mxu0 0.0
    %5340 = vmatpush1.msra.mxu0 %v193
    %5341 = vmatprep.subr.mxu0 0.0
    %5342 = vmatpush1.msra.mxu0 0.0
    %5343 = vmatprep.subr.mxu0 0.0
    %5344 = vmatpush1.msra.mxu0 0.0
    %5345 = vmatprep.subr.mxu0 0.0
    %5346 = vmatpush1.msra.mxu0 0.0
    %5347 = vmatprep.subr.mxu0 0.0
    %5348 = vmatpush1.msra.mxu0 0.0
    %5349 = vmatprep.subr.mxu0 0.0
    %5350 = vmatpush1.msra.mxu0 0.0
    %5351 = vmatprep.subr.mxu0 0.0
    %5352 = vmatpush1.msra.mxu0 0.0
    %5353 = vmatprep.subr.mxu0 0.0
    %5354 = vmatpush1.msra.mxu0 0.0
    %5355 = vmatprep.subr.mxu0 0.0
    %5356 = vmatpush1.msra.mxu0 0.0
    %5357 = vmatprep.subr.mxu0 0.0
    %5358 = vmatpush1.msra.mxu0 0.0
    %5359 = vmatprep.subr.mxu0 0.0
    %5360 = vmatpush1.msra.mxu0 0.0
    %5361 = vmatprep.subr.mxu0 0.0
    %5362 = vmatpush1.msra.mxu0 0.0
    %5363 = vmatprep.subr.mxu0 0.0
    %5364 = vmatpush1.msra.mxu0 0.0
    %5365 = vmatprep.subr.mxu0 0.0
    %5366 = vmatpush1.msra.mxu0 0.0
    %5367 = vmatprep.subr.mxu0 0.0
    %5368 = vmatpush1.msra.mxu0 0.0
    %5369 = vmatprep.subr.mxu0 0.0
    %5370 = vmatpush1.msra.mxu0 0.0
    %5371 = vmatprep.subr.mxu0 0.0
    %5372 = vmatpush1.msra.mxu0 0.0
    %5373 = vmatprep.subr.mxu0 0.0
    %5374 = vmatpush1.msra.mxu0 0.0
    %5375 = vmatprep.subr.mxu0 0.0
    %5376 = vmatpush1.msra.mxu0 0.0
    %5377 = vmatprep.subr.mxu0 0.0
    %5378 = vmatpush1.msra.mxu0 0.0
    %5379 = vmatprep.subr.mxu0 0.0
    %5380 = vmatpush1.msra.mxu0 0.0
    %5381 = vmatprep.subr.mxu0 0.0
    %5382 = vmatpush1.msra.mxu0 0.0
    %5383 = vmatprep.subr.mxu0 0.0
    %5384 = vmatpush1.msra.mxu0 0.0
    %5385 = vmatprep.subr.mxu0 0.0
    %5386 = vmatpush1.msra.mxu0 0.0
    %5387 = vmatprep.subr.mxu0 0.0
    %5388 = vmatpush1.msra.mxu0 0.0
    %5389 = vmatprep.subr.mxu0 0.0
    %5390 = vmatpush1.msra.mxu0 0.0
    %5391 = vmatprep.subr.mxu0 0.0
    %5392 = vmatpush1.msra.mxu0 0.0
    %5393 = vmatprep.subr.mxu0 0.0
    %5394 = vmatpush1.msra.mxu0 0.0
    %5395 = vmatprep.subr.mxu0 0.0
    %5396 = vmatpush1.msra.mxu0 0.0
    %5397 = vmatprep.mubr.f32.mxu0 0.0
    %5398 = vmatmul.mubr.f32.gmra.mrb[0].mxu0 %v5331
    %v5399 = vpop.f32.mrb[0].mxu0
    %v5400 = vadd.f32 0.0, %v5399
    %v5401 = vpop.f32.mrb[0].mxu0
    %5402 = vdwg.mxu0
    %v5403 = vadd.f32 %v5175, %v5400
    %v5404 = vtanh.pop %v5403
    %v5406 = vsel %vm107, %v5404, 0
    %5408 = vmatprep.subr.mxu0 0.0
    %5409 = vmatpush1.msra.mxu0 %v195
    %5410 = vmatprep.subr.mxu0 0.0
    %5411 = vmatpush1.msra.mxu0 %v196
    %5412 = vmatprep.subr.mxu0 0.0
    %5413 = vmatpush1.msra.mxu0 %v197
    %5414 = vmatprep.subr.mxu0 0.0
    %5415 = vmatpush1.msra.mxu0 %v198
    %5416 = vmatprep.subr.mxu0 0.0
    %5417 = vmatpush1.msra.mxu0 0.0
    %5418 = vmatprep.subr.mxu0 0.0
    %5419 = vmatpush1.msra.mxu0 0.0
    %5420 = vmatprep.subr.mxu0 0.0
    %5421 = vmatpush1.msra.mxu0 0.0
    %5422 = vmatprep.subr.mxu0 0.0
    %5423 = vmatpush1.msra.mxu0 0.0
    %5424 = vmatprep.subr.mxu0 0.0
    %5425 = vmatpush1.msra.mxu0 0.0
    %5426 = vmatprep.subr.mxu0 0.0
    %5427 = vmatpush1.msra.mxu0 0.0
    %5428 = vmatprep.subr.mxu0 0.0
    %5429 = vmatpush1.msra.mxu0 0.0
    %5430 = vmatprep.subr.mxu0 0.0
    %5431 = vmatpush1.msra.mxu0 0.0
    %5432 = vmatprep.subr.mxu0 0.0
    %5433 = vmatpush1.msra.mxu0 0.0
    %5434 = vmatprep.subr.mxu0 0.0
    %5435 = vmatpush1.msra.mxu0 0.0
    %5436 = vmatprep.subr.mxu0 0.0
    %5437 = vmatpush1.msra.mxu0 0.0
    %5438 = vmatprep.subr.mxu0 0.0
    %5439 = vmatpush1.msra.mxu0 0.0
    %5440 = vmatprep.subr.mxu0 0.0
    %5441 = vmatpush1.msra.mxu0 0.0
    %5442 = vmatprep.subr.mxu0 0.0
    %5443 = vmatpush1.msra.mxu0 0.0
    %5444 = vmatprep.subr.mxu0 0.0
    %5445 = vmatpush1.msra.mxu0 0.0
    %5446 = vmatprep.subr.mxu0 0.0
    %5447 = vmatpush1.msra.mxu0 0.0
    %5448 = vmatprep.subr.mxu0 0.0
    %5449 = vmatpush1.msra.mxu0 0.0
    %5450 = vmatprep.subr.mxu0 0.0
    %5451 = vmatpush1.msra.mxu0 0.0
    %5452 = vmatprep.subr.mxu0 0.0
    %5453 = vmatpush1.msra.mxu0 0.0
    %5454 = vmatprep.subr.mxu0 0.0
    %5455 = vmatpush1.msra.mxu0 0.0
    %5456 = vmatprep.subr.mxu0 0.0
    %5457 = vmatpush1.msra.mxu0 0.0
    %5458 = vmatprep.subr.mxu0 0.0
    %5459 = vmatpush1.msra.mxu0 0.0
    %5460 = vmatprep.subr.mxu0 0.0
    %5461 = vmatpush1.msra.mxu0 0.0
    %5462 = vmatprep.subr.mxu0 0.0
    %5463 = vmatpush1.msra.mxu0 0.0
    %5464 = vmatprep.subr.mxu0 0.0
    %5465 = vmatpush1.msra.mxu0 0.0
    %5466 = vmatprep.subr.mxu0 0.0
    %5467 = vmatpush1.msra.mxu0 0.0
    %5468 = vmatprep.subr.mxu0 0.0
    %5469 = vmatpush1.msra.mxu0 0.0
    %5470 = vmatprep.subr.mxu0 0.0
    %5471 = vmatpush1.msra.mxu0 0.0
    %5472 = vmatprep.mubr.f32.mxu0 0.0
    %5473 = vmatmul.mubr.f32.gmra.mrb[0].mxu0 %v5406
    %v5474 = vpop.f32.mrb[0].mxu0
    %v5475 = vadd.f32 %v199, %v5474
    %v5476 = vpop.f32.mrb[0].mxu0
    %5477 = vdwg.mxu0
    %v5478 = vsel %vm657, %v5475, -inf
    %5479 = vmax.xlane.f32.xlu0 %v5478
    %v5480 = vpop.xlane.xlu0 %5479
    %vm5481 = vcmp.eq.f32.partialorder %v5475, %v5480
    %v5482 = vsel %vm5481, %v89, 32
    %v5483 = vsel %vm657, %v5482, 2147483647
    %v5484 = vand.u32 %v5483, 65535
    %v5485 = vshra.s32 %v5483, 16
    %v5486 = vcvt.s32.f32 %v5484
    %v5487 = vcvt.s32.f32 %v5485
    %5488 = vmin.xlane.f32.xlu0 %v5487
    %v5489 = vpop.xlane.xlu0 %5488
    %vm5490 = vcmp.eq.f32.partialorder %v5487, %v5489
    %v5491 = vsel %vm5490, %v5486, inf
    %5492 = vmin.xlane.f32.xlu0 %v5491
    %v5493 = vpop.xlane.xlu0 %5492
    %v5494 = vcvt.f32.s32 %v5493
    %v5495 = vcvt.f32.s32 %v5489
    %v5496 = vshll.u32 %v5495, 16
    %v5497 = vadd.s32 %v5496, %v5494
    %vm5498 = vcmp.lt.s32.totalorder %v5497, 31
    %v5499 = vsel %vm5498, %v5497, 31
    %vm5500 = vcmp.eq.s32.totalorder %v89, %v5499
    %v5501 = vsel %vm5500, 1, 0
    %v5502 = vcvt.s32.f32 %v5501
    %v5503 = vsel %vm5028, 1, %v5499
    %vm5504 = vcmp.eq.s32.totalorder %v89, 10
    %v5505 = vsel %vm5504, %v5503, %v5022
    %v5506 = vsel %vm5028, 1, 0
    %vm5507 = vcmp.eq.s32.totalorder %v5506, 1
    %v5508 = vsel %vm5507, %v5025, %v5404
    %v5509 = vsel %vm5507, %v5026, %v5502
    %vm5510 = vcmp.eq.s32.totalorder %v5499, 1
    %vm5511 = vmor %vm5028, %vm5510
    %v5513 = vsel %vm107, %v5508, 0
    %5515 = vmatprep.subr.mxu0 0.0
    %5516 = vmatpush1.msra.mxu0 %v186
    %5517 = vmatprep.subr.mxu0 0.0
    %5518 = vmatpush1.msra.mxu0 %v187
    %5519 = vmatprep.subr.mxu0 0.0
    %5520 = vmatpush1.msra.mxu0 %v188
    %5521 = vmatprep.subr.mxu0 0.0
    %5522 = vmatpush1.msra.mxu0 %v189
    %5523 = vmatprep.subr.mxu0 0.0
    %5524 = vmatpush1.msra.mxu0 0.0
    %5525 = vmatprep.subr.mxu0 0.0
    %5526 = vmatpush1.msra.mxu0 0.0
    %5527 = vmatprep.subr.mxu0 0.0
    %5528 = vmatpush1.msra.mxu0 0.0
    %5529 = vmatprep.subr.mxu0 0.0
    %5530 = vmatpush1.msra.mxu0 0.0
    %5531 = vmatprep.subr.mxu0 0.0
    %5532 = vmatpush1.msra.mxu0 0.0
    %5533 = vmatprep.subr.mxu0 0.0
    %5534 = vmatpush1.msra.mxu0 0.0
    %5535 = vmatprep.subr.mxu0 0.0
    %5536 = vmatpush1.msra.mxu0 0.0
    %5537 = vmatprep.subr.mxu0 0.0
    %5538 = vmatpush1.msra.mxu0 0.0
    %5539 = vmatprep.subr.mxu0 0.0
    %5540 = vmatpush1.msra.mxu0 0.0
    %5541 = vmatprep.subr.mxu0 0.0
    %5542 = vmatpush1.msra.mxu0 0.0
    %5543 = vmatprep.subr.mxu0 0.0
    %5544 = vmatpush1.msra.mxu0 0.0
    %5545 = vmatprep.subr.mxu0 0.0
    %5546 = vmatpush1.msra.mxu0 0.0
    %5547 = vmatprep.subr.mxu0 0.0
    %5548 = vmatpush1.msra.mxu0 0.0
    %5549 = vmatprep.subr.mxu0 0.0
    %5550 = vmatpush1.msra.mxu0 0.0
    %5551 = vmatprep.subr.mxu0 0.0
    %5552 = vmatpush1.msra.mxu0 0.0
    %5553 = vmatprep.subr.mxu0 0.0
    %5554 = vmatpush1.msra.mxu0 0.0
    %5555 = vmatprep.subr.mxu0 0.0
    %5556 = vmatpush1.msra.mxu0 0.0
    %5557 = vmatprep.subr.mxu0 0.0
    %5558 = vmatpush1.msra.mxu0 0.0
    %5559 = vmatprep.subr.mxu0 0.0
    %5560 = vmatpush1.msra.mxu0 0.0
    %5561 = vmatprep.subr.mxu0 0.0
    %5562 = vmatpush1.msra.mxu0 0.0
    %5563 = vmatprep.subr.mxu0 0.0
    %5564 = vmatpush1.msra.mxu0 0.0
    %5565 = vmatprep.subr.mxu0 0.0
    %5566 = vmatpush1.msra.mxu0 0.0
    %5567 = vmatprep.subr.mxu0 0.0
    %5568 = vmatpush1.msra.mxu0 0.0
    %5569 = vmatprep.subr.mxu0 0.0
    %5570 = vmatpush1.msra.mxu0 0.0
    %5571 = vmatprep.subr.mxu0 0.0
    %5572 = vmatpush1.msra.mxu0 0.0
    %5573 = vmatprep.subr.mxu0 0.0
    %5574 = vmatpush1.msra.mxu0 0.0
    %5575 = vmatprep.subr.mxu0 0.0
    %5576 = vmatpush1.msra.mxu0 0.0
    %5577 = vmatprep.subr.mxu0 0.0
    %5578 = vmatpush1.msra.mxu0 0.0
    %5579 = vmatprep.mubr.f32.mxu0 0.0
    %5580 = vmatmul.mubr.f32.gmra.mrb[0].mxu0 %v5513
    %v5581 = vpop.f32.mrb[0].mxu0
    %v5582 = vadd.f32 0.0, %v5581
    %v5583 = vpop.f32.mrb[0].mxu0
    %5584 = vdwg.mxu0
    %v5586 = vsel %vm107, %v5509, 0
    %5588 = vmatprep.subr.mxu0 0.0
    %5589 = vmatpush1.msra.mxu0 %v182
    %5590 = vmatprep.subr.mxu0 0.0
    %5591 = vmatpush1.msra.mxu0 %v183
    %5592 = vmatprep.subr.mxu0 0.0
    %5593 = vmatpush1.msra.mxu0 %v184
    %5594 = vmatprep.subr.mxu0 0.0
    %5595 = vmatpush1.msra.mxu0 %v185
    %5596 = vmatprep.subr.mxu0 0.0
    %5597 = vmatpush1.msra.mxu0 0.0
    %5598 = vmatprep.subr.mxu0 0.0
    %5599 = vmatpush1.msra.mxu0 0.0
    %5600 = vmatprep.subr.mxu0 0.0
    %5601 = vmatpush1.msra.mxu0 0.0
    %5602 = vmatprep.subr.mxu0 0.0
    %5603 = vmatpush1.msra.mxu0 0.0
    %5604 = vmatprep.subr.mxu0 0.0
    %5605 = vmatpush1.msra.mxu0 0.0
    %5606 = vmatprep.subr.mxu0 0.0
    %5607 = vmatpush1.msra.mxu0 0.0
    %5608 = vmatprep.subr.mxu0 0.0
    %5609 = vmatpush1.msra.mxu0 0.0
    %5610 = vmatprep.subr.mxu0 0.0
    %5611 = vmatpush1.msra.mxu0 0.0
    %5612 = vmatprep.subr.mxu0 0.0
    %5613 = vmatpush1.msra.mxu0 0.0
    %5614 = vmatprep.subr.mxu0 0.0
    %5615 = vmatpush1.msra.mxu0 0.0
    %5616 = vmatprep.subr.mxu0 0.0
    %5617 = vmatpush1.msra.mxu0 0.0
    %5618 = vmatprep.subr.mxu0 0.0
    %5619 = vmatpush1.msra.mxu0 0.0
    %5620 = vmatprep.subr.mxu0 0.0
    %5621 = vmatpush1.msra.mxu0 0.0
    %5622 = vmatprep.subr.mxu0 0.0
    %5623 = vmatpush1.msra.mxu0 0.0
    %5624 = vmatprep.subr.mxu0 0.0
    %5625 = vmatpush1.msra.mxu0 0.0
    %5626 = vmatprep.subr.mxu0 0.0
    %5627 = vmatpush1.msra.mxu0 0.0
    %5628 = vmatprep.subr.mxu0 0.0
    %5629 = vmatpush1.msra.mxu0 0.0
    %5630 = vmatprep.subr.mxu0 0.0
    %5631 = vmatpush1.msra.mxu0 0.0
    %5632 = vmatprep.subr.mxu0 0.0
    %5633 = vmatpush1.msra.mxu0 0.0
    %5634 = vmatprep.subr.mxu0 0.0
    %5635 = vmatpush1.msra.mxu0 0.0
    %5636 = vmatprep.subr.mxu0 0.0
    %5637 = vmatpush1.msra.mxu0 0.0
    %5638 = vmatprep.subr.mxu0 0.0
    %5639 = vmatpush1.msra.mxu0 0.0
    %5640 = vmatprep.subr.mxu0 0.0
    %5641 = vmatpush1.msra.mxu0 0.0
    %5642 = vmatprep.subr.mxu0 0.0
    %5643 = vmatpush1.msra.mxu0 0.0
    %5644 = vmatprep.subr.mxu0 0.0
    %5645 = vmatpush1.msra.mxu0 0.0
    %5646 = vmatprep.subr.mxu0 0.0
    %5647 = vmatpush1.msra.mxu0 0.0
    %5648 = vmatprep.subr.mxu0 0.0
    %5649 = vmatpush1.msra.mxu0 0.0
    %5650 = vmatprep.subr.mxu0 0.0
    %5651 = vmatpush1.msra.mxu0 0.0
    %5652 = vmatprep.mubr.f32.mxu0 0.0
    %5653 = vmatmul.mubr.f32.gmra.mrb[0].mxu0 %v5586
    %v5654 = vpop.f32.mrb[0].mxu0
    %v5655 = vadd.f32 %v5582, %v5654
    %v5656 = vpop.f32.mrb[0].mxu0
    %5657 = vdwg.mxu0
    %v5658 = vadd.f32 %v5655, %v194
    %5659 = vmatprep.subr.mxu0 0.0
    %5660 = vmatpush1.xpose.msra.mxu0 %v351
    %5661 = vmatprep.subr.mxu0 0.0
    %5662 = vmatpush1.xpose.msra.mxu0 0.0
    %5663 = vmatprep.subr.mxu0 0.0
    %5664 = vmatpush1.xpose.msra.mxu0 0.0
    %5665 = vmatprep.subr.mxu0 0.0
    %5666 = vmatpush1.xpose.msra.mxu0 0.0
    %5667 = vmatprep.subr.mxu0 0.0
    %5668 = vmatpush1.xpose.msra.mxu0 0.0
    %5669 = vmatprep.subr.mxu0 0.0
    %5670 = vmatpush1.xpose.msra.mxu0 0.0
    %5671 = vmatprep.subr.mxu0 0.0
    %5672 = vmatpush1.xpose.msra.mxu0 0.0
    %5673 = vmatprep.subr.mxu0 0.0
    %5674 = vmatpush1.xpose.msra.mxu0 0.0
    %5675 = vmatprep.subr.mxu0 0.0
    %5676 = vmatpush1.xpose.msra.mxu0 0.0
    %5677 = vmatprep.subr.mxu0 0.0
    %5678 = vmatpush1.xpose.msra.mxu0 0.0
    %5679 = vmatprep.subr.mxu0 0.0
    %5680 = vmatpush1.xpose.msra.mxu0 0.0
    %5681 = vmatprep.subr.mxu0 0.0
    %5682 = vmatpush1.xpose.msra.mxu0 0.0
    %5683 = vmatprep.subr.mxu0 0.0
    %5684 = vmatpush1.xpose.msra.mxu0 0.0
    %5685 = vmatprep.subr.mxu0 0.0
    %5686 = vmatpush1.xpose.msra.mxu0 0.0
    %5687 = vmatprep.subr.mxu0 0.0
    %5688 = vmatpush1.xpose.msra.mxu0 0.0
    %5689 = vmatprep.subr.mxu0 0.0
    %5690 = vmatpush1.xpose.msra.mxu0 0.0
    %5691 = vmatprep.subr.mxu0 0.0
    %5692 = vmatpush1.xpose.msra.mxu0 0.0
    %5693 = vmatprep.subr.mxu0 0.0
    %5694 = vmatpush1.xpose.msra.mxu0 0.0
    %5695 = vmatprep.subr.mxu0 0.0
    %5696 = vmatpush1.xpose.msra.mxu0 0.0
    %5697 = vmatprep.subr.mxu0 0.0
    %5698 = vmatpush1.xpose.msra.mxu0 0.0
    %5699 = vmatprep.subr.mxu0 0.0
    %5700 = vmatpush1.xpose.msra.mxu0 0.0
    %5701 = vmatprep.subr.mxu0 0.0
    %5702 = vmatpush1.xpose.msra.mxu0 0.0
    %5703 = vmatprep.subr.mxu0 0.0
    %5704 = vmatpush1.xpose.msra.mxu0 0.0
    %5705 = vmatprep.subr.mxu0 0.0
    %5706 = vmatpush1.xpose.msra.mxu0 0.0
    %5707 = vmatprep.subr.mxu0 0.0
    %5708 = vmatpush1.xpose.msra.mxu0 0.0
    %5709 = vmatprep.subr.mxu0 0.0
    %5710 = vmatpush1.xpose.msra.mxu0 0.0
    %5711 = vmatprep.subr.mxu0 0.0
    %5712 = vmatpush1.xpose.msra.mxu0 0.0
    %5713 = vmatprep.subr.mxu0 0.0
    %5714 = vmatpush1.xpose.msra.mxu0 0.0
    %5715 = vmatprep.subr.mxu0 0.0
    %5716 = vmatpush1.xpose.msra.mxu0 0.0
    %5717 = vmatprep.subr.mxu0 0.0
    %5718 = vmatpush1.xpose.msra.mxu0 0.0
    %5719 = vmatprep.subr.mxu0 0.0
    %5720 = vmatpush1.xpose.msra.mxu0 0.0
    %5721 = vmatprep.subr.mxu0 0.0
    %5722 = vmatpush1.xpose.msra.mxu0 0.0
    %5723 = vmatprep.mubr.f32.mxu0 0.0
    %5724 = vmatmul.mubr.f32.gmra.mrb[0].mxu0 %v5513
    %v5725 = vpop.f32.mrb[0].mxu0
    %v5726 = vadd.f32 0.0, %v5725
    %v5727 = vpop.f32.mrb[0].mxu0
    %5728 = vdwg.mxu0
    %v5729 = vsel %vm423, %v5726, -inf
    %5730 = vmax.xlane.f32.xlu0 %v5729
    %v5731 = vpop.xlane.xlu0 %5730
    %v5732 = vsub.f32 %v5726, %v5731
    %v5733 = vmul.f32 %v5732, 1.442695
    %v5734 = vpow.pop %v5733
    %v5735 = vsel %vm423, %v5734, 0.0
    %5736 = vadd.xlane.f32.xlu0 %v5735
    %v5737 = vpop.xlane.xlu0 %5736
    %v5738 = vrcp.pop %v5737
    %v5739 = vmul.f32 %v5734, %v5738
    %v5741 = vsel %vm435, %v5739, 0
    %5743 = vmatprep.subr.mxu0 0.0
    %5744 = vmatpush1.msra.mxu0 %v181
    %5745 = vmatprep.subr.mxu0 0.0
    %5746 = vmatpush1.msra.mxu0 0.0
    %5747 = vmatprep.subr.mxu0 0.0
    %5748 = vmatpush1.msra.mxu0 0.0
    %5749 = vmatprep.subr.mxu0 0.0
    %5750 = vmatpush1.msra.mxu0 0.0
    %5751 = vmatprep.subr.mxu0 0.0
    %5752 = vmatpush1.msra.mxu0 0.0
    %5753 = vmatprep.subr.mxu0 0.0
    %5754 = vmatpush1.msra.mxu0 0.0
    %5755 = vmatprep.subr.mxu0 0.0
    %5756 = vmatpush1.msra.mxu0 0.0
    %5757 = vmatprep.subr.mxu0 0.0
    %5758 = vmatpush1.msra.mxu0 0.0
    %5759 = vmatprep.subr.mxu0 0.0
    %5760 = vmatpush1.msra.mxu0 0.0
    %5761 = vmatprep.subr.mxu0 0.0
    %5762 = vmatpush1.msra.mxu0 0.0
    %5763 = vmatprep.subr.mxu0 0.0
    %5764 = vmatpush1.msra.mxu0 0.0
    %5765 = vmatprep.subr.mxu0 0.0
    %5766 = vmatpush1.msra.mxu0 0.0
    %5767 = vmatprep.subr.mxu0 0.0
    %5768 = vmatpush1.msra.mxu0 0.0
    %5769 = vmatprep.subr.mxu0 0.0
    %5770 = vmatpush1.msra.mxu0 0.0
    %5771 = vmatprep.subr.mxu0 0.0
    %5772 = vmatpush1.msra.mxu0 0.0
    %5773 = vmatprep.subr.mxu0 0.0
    %5774 = vmatpush1.msra.mxu0 0.0
    %5775 = vmatprep.subr.mxu0 0.0
    %5776 = vmatpush1.msra.mxu0 0.0
    %5777 = vmatprep.subr.mxu0 0.0
    %5778 = vmatpush1.msra.mxu0 0.0
    %5779 = vmatprep.subr.mxu0 0.0
    %5780 = vmatpush1.msra.mxu0 0.0
    %5781 = vmatprep.subr.mxu0 0.0
    %5782 = vmatpush1.msra.mxu0 0.0
    %5783 = vmatprep.subr.mxu0 0.0
    %5784 = vmatpush1.msra.mxu0 0.0
    %5785 = vmatprep.subr.mxu0 0.0
    %5786 = vmatpush1.msra.mxu0 0.0
    %5787 = vmatprep.subr.mxu0 0.0
    %5788 = vmatpush1.msra.mxu0 0.0
    %5789 = vmatprep.subr.mxu0 0.0
    %5790 = vmatpush1.msra.mxu0 0.0
    %5791 = vmatprep.subr.mxu0 0.0
    %5792 = vmatpush1.msra.mxu0 0.0
    %5793 = vmatprep.subr.mxu0 0.0
    %5794 = vmatpush1.msra.mxu0 0.0
    %5795 = vmatprep.subr.mxu0 0.0
    %5796 = vmatpush1.msra.mxu0 0.0
    %5797 = vmatprep.subr.mxu0 0.0
    %5798 = vmatpush1.msra.mxu0 0.0
    %5799 = vmatprep.subr.mxu0 0.0
    %5800 = vmatpush1.msra.mxu0 0.0
    %5801 = vmatprep.subr.mxu0 0.0
    %5802 = vmatpush1.msra.mxu0 0.0
    %5803 = vmatprep.subr.mxu0 0.0
    %5804 = vmatpush1.msra.mxu0 0.0
    %5805 = vmatprep.subr.mxu0 0.0
    %5806 = vmatpush1.msra.mxu0 0.0
    %5807 = vmatprep.mubr.f32.mxu0 0.0
    %5808 = vmatmul.mubr.f32.gmra.mrb[0].mxu0 %v5741
    %v5809 = vpop.f32.mrb[0].mxu0
    %v5810 = vadd.f32 0.0, %v5809
    %v5811 = vpop.f32.mrb[0].mxu0
    %5812 = vdwg.mxu0
    %v5814 = vsel %vm107, %v5810, 0
    %5816 = vmatprep.subr.mxu0 0.0
    %5817 = vmatpush1.msra.mxu0 %v190
    %5818 = vmatprep.subr.mxu0 0.0
    %5819 = vmatpush1.msra.mxu0 %v191
    %5820 = vmatprep.subr.mxu0 0.0
    %5821 = vmatpush1.msra.mxu0 %v192
    %5822 = vmatprep.subr.mxu0 0.0
    %5823 = vmatpush1.msra.mxu0 %v193
    %5824 = vmatprep.subr.mxu0 0.0
    %5825 = vmatpush1.msra.mxu0 0.0
    %5826 = vmatprep.subr.mxu0 0.0
    %5827 = vmatpush1.msra.mxu0 0.0
    %5828 = vmatprep.subr.mxu0 0.0
    %5829 = vmatpush1.msra.mxu0 0.0
    %5830 = vmatprep.subr.mxu0 0.0
    %5831 = vmatpush1.msra.mxu0 0.0
    %5832 = vmatprep.subr.mxu0 0.0
    %5833 = vmatpush1.msra.mxu0 0.0
    %5834 = vmatprep.subr.mxu0 0.0
    %5835 = vmatpush1.msra.mxu0 0.0
    %5836 = vmatprep.subr.mxu0 0.0
    %5837 = vmatpush1.msra.mxu0 0.0
    %5838 = vmatprep.subr.mxu0 0.0
    %5839 = vmatpush1.msra.mxu0 0.0
    %5840 = vmatprep.subr.mxu0 0.0
    %5841 = vmatpush1.msra.mxu0 0.0
    %5842 = vmatprep.subr.mxu0 0.0
    %5843 = vmatpush1.msra.mxu0 0.0
    %5844 = vmatprep.subr.mxu0 0.0
    %5845 = vmatpush1.msra.mxu0 0.0
    %5846 = vmatprep.subr.mxu0 0.0
    %5847 = vmatpush1.msra.mxu0 0.0
    %5848 = vmatprep.subr.mxu0 0.0
    %5849 = vmatpush1.msra.mxu0 0.0
    %5850 = vmatprep.subr.mxu0 0.0
    %5851 = vmatpush1.msra.mxu0 0.0
    %5852 = vmatprep.subr.mxu0 0.0
    %5853 = vmatpush1.msra.mxu0 0.0
    %5854 = vmatprep.subr.mxu0 0.0
    %5855 = vmatpush1.msra.mxu0 0.0
    %5856 = vmatprep.subr.mxu0 0.0
    %5857 = vmatpush1.msra.mxu0 0.0
    %5858 = vmatprep.subr.mxu0 0.0
    %5859 = vmatpush1.msra.mxu0 0.0
    %5860 = vmatprep.subr.mxu0 0.0
    %5861 = vmatpush1.msra.mxu0 0.0
    %5862 = vmatprep.subr.mxu0 0.0
    %5863 = vmatpush1.msra.mxu0 0.0
    %5864 = vmatprep.subr.mxu0 0.0
    %5865 = vmatpush1.msra.mxu0 0.0
    %5866 = vmatprep.subr.mxu0 0.0
    %5867 = vmatpush1.msra.mxu0 0.0
    %5868 = vmatprep.subr.mxu0 0.0
    %5869 = vmatpush1.msra.mxu0 0.0
    %5870 = vmatprep.subr.mxu0 0.0
    %5871 = vmatpush1.msra.mxu0 0.0
    %5872 = vmatprep.subr.mxu0 0.0
    %5873 = vmatpush1.msra.mxu0 0.0
    %5874 = vmatprep.subr.mxu0 0.0
    %5875 = vmatpush1.msra.mxu0 0.0
    %5876 = vmatprep.subr.mxu0 0.0
    %5877 = vmatpush1.msra.mxu0 0.0
    %5878 = vmatprep.subr.mxu0 0.0
    %5879 = vmatpush1.msra.mxu0 0.0
    %5880 = vmatprep.mubr.f32.mxu0 0.0
    %5881 = vmatmul.mubr.f32.gmra.mrb[0].mxu0 %v5814
    %v5882 = vpop.f32.mrb[0].mxu0
    %v5883 = vadd.f32 0.0, %v5882
    %v5884 = vpop.f32.mrb[0].mxu0
    %5885 = vdwg.mxu0
    %v5886 = vadd.f32 %v5658, %v5883
    %v5887 = vtanh.pop %v5886
    %v5889 = vsel %vm107, %v5887, 0
    %5891 = vmatprep.subr.mxu0 0.0
    %5892 = vmatpush1.msra.mxu0 %v195
    %5893 = vmatprep.subr.mxu0 0.0
    %5894 = vmatpush1.msra.mxu0 %v196
    %5895 = vmatprep.subr.mxu0 0.0
    %5896 = vmatpush1.msra.mxu0 %v197
    %5897 = vmatprep.subr.mxu0 0.0
    %5898 = vmatpush1.msra.mxu0 %v198
    %5899 = vmatprep.subr.mxu0 0.0
    %5900 = vmatpush1.msra.mxu0 0.0
    %5901 = vmatprep.subr.mxu0 0.0
    %5902 = vmatpush1.msra.mxu0 0.0
    %5903 = vmatprep.subr.mxu0 0.0
    %5904 = vmatpush1.msra.mxu0 0.0
    %5905 = vmatprep.subr.mxu0 0.0
    %5906 = vmatpush1.msra.mxu0 0.0
    %5907 = vmatprep.subr.mxu0 0.0
    %5908 = vmatpush1.msra.mxu0 0.0
    %5909 = vmatprep.subr.mxu0 0.0
    %5910 = vmatpush1.msra.mxu0 0.0
    %5911 = vmatprep.subr.mxu0 0.0
    %5912 = vmatpush1.msra.mxu0 0.0
    %5913 = vmatprep.subr.mxu0 0.0
    %5914 = vmatpush1.msra.mxu0 0.0
    %5915 = vmatprep.subr.mxu0 0.0
    %5916 = vmatpush1.msra.mxu0 0.0
    %5917 = vmatprep.subr.mxu0 0.0
    %5918 = vmatpush1.msra.mxu0 0.0
    %5919 = vmatprep.subr.mxu0 0.0
    %5920 = vmatpush1.msra.mxu0 0.0
    %5921 = vmatprep.subr.mxu0 0.0
    %5922 = vmatpush1.msra.mxu0 0.0
    %5923 = vmatprep.subr.mxu0 0.0
    %5924 = vmatpush1.msra.mxu0 0.0
    %5925 = vmatprep.subr.mxu0 0.0
    %5926 = vmatpush1.msra.mxu0 0.0
    %5927 = vmatprep.subr.mxu0 0.0
    %5928 = vmatpush1.msra.mxu0 0.0
    %5929 = vmatprep.subr.mxu0 0.0
    %5930 = vmatpush1.msra.mxu0 0.0
    %5931 = vmatprep.subr.mxu0 0.0
    %5932 = vmatpush1.msra.mxu0 0.0
    %5933 = vmatprep.subr.mxu0 0.0
    %5934 = vmatpush1.msra.mxu0 0.0
    %5935 = vmatprep.subr.mxu0 0.0
    %5936 = vmatpush1.msra.mxu0 0.0
    %5937 = vmatprep.subr.mxu0 0.0
    %5938 = vmatpush1.msra.mxu0 0.0
    %5939 = vmatprep.subr.mxu0 0.0
    %5940 = vmatpush1.msra.mxu0 0.0
    %5941 = vmatprep.subr.mxu0 0.0
    %5942 = vmatpush1.msra.mxu0 0.0
    %5943 = vmatprep.subr.mxu0 0.0
    %5944 = vmatpush1.msra.mxu0 0.0
    %5945 = vmatprep.subr.mxu0 0.0
    %5946 = vmatpush1.msra.mxu0 0.0
    %5947 = vmatprep.subr.mxu0 0.0
    %5948 = vmatpush1.msra.mxu0 0.0
    %5949 = vmatprep.subr.mxu0 0.0
    %5950 = vmatpush1.msra.mxu0 0.0
    %5951 = vmatprep.subr.mxu0 0.0
    %5952 = vmatpush1.msra.mxu0 0.0
    %5953 = vmatprep.subr.mxu0 0.0
    %5954 = vmatpush1.msra.mxu0 0.0
    %5955 = vmatprep.mubr.f32.mxu0 0.0
    %5956 = vmatmul.mubr.f32.gmra.mrb[0].mxu0 %v5889
    %v5957 = vpop.f32.mrb[0].mxu0
    %v5958 = vadd.f32 %v199, %v5957
    %v5959 = vpop.f32.mrb[0].mxu0
    %5960 = vdwg.mxu0
    %v5961 = vsel %vm657, %v5958, -inf
    %5962 = vmax.xlane.f32.xlu0 %v5961
    %v5963 = vpop.xlane.xlu0 %5962
    %vm5964 = vcmp.eq.f32.partialorder %v5958, %v5963
    %v5965 = vsel %vm5964, %v89, 32
    %v5966 = vsel %vm657, %v5965, 2147483647
    %v5967 = vand.u32 %v5966, 65535
    %v5968 = vshra.s32 %v5966, 16
    %v5969 = vcvt.s32.f32 %v5967
    %v5970 = vcvt.s32.f32 %v5968
    %5971 = vmin.xlane.f32.xlu0 %v5970
    %v5972 = vpop.xlane.xlu0 %5971
    %vm5973 = vcmp.eq.f32.partialorder %v5970, %v5972
    %v5974 = vsel %vm5973, %v5969, inf
    %5975 = vmin.xlane.f32.xlu0 %v5974
    %v5976 = vpop.xlane.xlu0 %5975
    %v5977 = vcvt.f32.s32 %v5976
    %v5978 = vcvt.f32.s32 %v5972
    %v5979 = vshll.u32 %v5978, 16
    %v5980 = vadd.s32 %v5979, %v5977
    %vm5981 = vcmp.lt.s32.totalorder %v5980, 31
    %v5982 = vsel %vm5981, %v5980, 31
    %v5983 = vsel %vm5511, 1, %v5982
    %vm5984 = vcmp.eq.s32.totalorder %v89, 11
    %v5985 = vsel %vm5984, %v5983, %v5505
    %5986 = vst [vmem:[%s9] sm:$0x1] %v5985
    // Predicated region
    $region54: #{g2p_forward.1} parent=1 // pred_check
      _
    $region55: #{g2p_forward.1} parent=1 // pred_check_branch
      %5988 = sbr.rel (0) target = $region57
    $region56: #{g2p_forward.1} parent=1 // pred_region
      _
    $region57: #{g2p_forward.1} parent=1 // pred_fallthru
      _
    // Predicated region
    $region58: #{g2p_forward.1} parent=1 // pred_check
      _
    $region59: #{g2p_forward.1} parent=1 // pred_check_branch
      %5990 = sbr.rel (0) target = $region61
    $region60: #{g2p_forward.1} parent=1 // pred_region
      _
    $region61: #{g2p_forward.1} parent=1 // pred_fallthru
      _
    %5991 = vsyncpa [#allocation3], 1
    %5992 = vsyncpa [#allocation5], 1
    %5993 = vsyncpa [#allocation8], 1

</llo_original>
